<compile_context>
chip_gen: v7x
topology: tpu7x:2x2x1
jax: 0.10.0
libtpu: 0.0.40
codegen_flags: <defaults>
</compile_context>

<pallas_src>
import jax
import jax.numpy as jnp
from jax.experimental import pallas as pl
from jax.experimental.pallas import tpu as pltpu

BN_EPS = 1e-5

# eq_grammar sizes
H = 100        # true hidden size
HP = 128       # padded hidden size (lane-dense)
C = 12         # channels / output feature size
T = 15         # max_seq_length
OUT = 12       # decoder output features
OUTP = 128     # padded output features (lane-dense store)
LOUT = 9       # time length after the three valid convs: 15 -> 14 -> 12 -> 9
GP = 3 * HP    # fused GRU gate width (r | z | n)


def _sigmoid(x):
    # exp and the approximate reciprocal both run on the EUP slot (free vs VPU).
    return pl.reciprocal(1.0 + jnp.exp(-x), approx=True)


# ----------------------------------------------------------------------------
# Fused encoder + reparameterize + decoder kernel (single launch)
# ----------------------------------------------------------------------------
def gvae_kernel(x_ref, eps_ref, enc_conv_ref, w0_ref, wmuvar_ref, vecs_ref,
                sq_w_ref, gru_wih_ref, gru_whh_ref, gru_b_ref,
                muvar_ref, out_ref, seq_scr):
    f32 = jnp.float32
    bf16 = jnp.bfloat16
    B = x_ref.shape[0]

    # ---------------- Encoder ----------------
    ec = enc_conv_ref[...]                       # (18, C) packed conv/BN params

    def conv_bn_relu(x, w, b, g, be):
        # depthwise Conv1d (groups=channels) over time + training-mode BatchNorm1d + ReLU
        k = w.shape[0]
        Lo = x.shape[1] - k + 1
        acc = x[:, 0:Lo, :] * w[0:1, :][None]
        for j in range(1, k):                    # tiny static unroll over kernel width
            acc = acc + x[:, j:j + Lo, :] * w[j:j + 1, :][None]
        acc = acc + b[None]
        m = jnp.mean(acc, axis=(0, 1), keepdims=True)       # stats over (batch, time)
        v = jnp.mean((acc - m) ** 2, axis=(0, 1), keepdims=True)
        y = (acc - m) * jax.lax.rsqrt(v + BN_EPS) * g[None] + be[None]
        return jnp.maximum(y, 0.0)

    x = x_ref[...].astype(f32)                                    # (B, 15, 12)
    x = conv_bn_relu(x, ec[0:2], ec[9:10], ec[12:13], ec[15:16])  # k=2 -> (B,14,12)
    x = conv_bn_relu(x, ec[2:5], ec[10:11], ec[13:14], ec[16:17]) # k=3 -> (B,12,12)
    x = conv_bn_relu(x, ec[5:9], ec[11:12], ec[14:15], ec[17:18]) # k=4 -> (B, 9,12)

    vecs = vecs_ref[...]                                          # (7, HP) f32

    # fc_0: contraction over (l, c).  Kept as a short static loop of (B,C)@(C,HP)
    # dots — a single K=108 matmul would need a minor-dim reshape that Mosaic may
    # not lower cleanly; this stage is negligible vs the GRU recurrence anyway.
    h = jnp.zeros((B, HP), f32)
    for l in range(LOUT):
        h = h + jnp.dot(x[:, l, :].astype(bf16), w0_ref[l],
                        preferred_element_type=f32)
    h = h + vecs[0:1, :]                                          # (B, HP)

    # fc_mu and fc_var fused into one (B,HP)@(HP,2HP) matmul.
    muvar = jnp.dot(h.astype(bf16), wmuvar_ref[...], preferred_element_type=f32)
    mu = muvar[:, 0:HP] + vecs[1:2, :]
    log_var = muvar[:, HP:2 * HP] + vecs[2:3, :]
    muvar_ref[:, 0:HP] = mu                    # lane-aligned 128-wide stores
    muvar_ref[:, HP:2 * HP] = log_var

    # ---------------- Reparameterize ----------------
    # TODO(synk): torch.FloatTensor(...).normal_() has no in-kernel equivalent;
    # the noise is supplied as the deterministic eps input (zero in padded lanes).
    z = eps_ref[...] * jnp.exp(0.5 * log_var) + mu                # (B, HP)

    # ---------------- Decoder ----------------
    # BatchNorm1d over the batch dim (training-mode batch statistics).
    m = jnp.mean(z, axis=0, keepdims=True)
    v = jnp.mean((z - m) ** 2, axis=0, keepdims=True)
    zn = (z - m) * jax.lax.rsqrt(v + BN_EPS) * vecs[3:4, :] + vecs[4:5, :]

    fcin_w = sq_w_ref[0]                                          # (HP, HP)   bf16
    fcout_w = sq_w_ref[1]                                         # (HP, OUTP) bf16
    emb = jnp.maximum(
        jnp.dot(zn.astype(bf16), fcin_w, preferred_element_type=f32)
        + vecs[5:6, :], 0.0)                                      # (B, HP)

    gb = gru_b_ref[...]                                           # (6, GP) f32

    def gru_cell(gi, hprev, w_h, b_h):
        # gi = x @ W_ih + b_ih for all 3 gates (r|z|n), already computed.
        gh = jnp.dot(hprev.astype(bf16), w_h, preferred_element_type=f32) + b_h
        r = _sigmoid(gi[:, 0:HP] + gh[:, 0:HP])
        u = _sigmoid(gi[:, HP:2 * HP] + gh[:, HP:2 * HP])
        n = jnp.tanh(gi[:, 2 * HP:3 * HP] + r * gh[:, 2 * HP:3 * HP])
        return (1.0 - u) * n + u * hprev

    # ---- Layer 1: the input is the same embedding every step (PyTorch .repeat),
    # so its input projection is computed once and reused for all T steps.
    gi1 = jnp.dot(emb.astype(bf16), gru_wih_ref[0],
                  preferred_element_type=f32) + gb[0:1, :]
    whh1 = gru_whh_ref[0]
    hs = jnp.zeros((B, HP), f32)
    for t in range(T):                            # T = 15, statically unrolled
        hs = gru_cell(gi1, hs, whh1, gb[3:4, :])
        seq_scr[t * B:(t + 1) * B, :] = hs        # stash layer-1 output sequence

    # ---- Layers 2 and 3: no feedback across layers, so process layer-wise.
    # The input projection for the WHOLE sequence is one (T*B,HP)@(HP,GP) matmul;
    # the per-step recurrence then only needs the h@W_hh matmul.
    for l in (1, 2):
        gi_all = (jnp.dot(seq_scr[...].astype(bf16), gru_wih_ref[l],
                          preferred_element_type=f32) + gb[l:l + 1, :])
        whh = gru_whh_ref[l]
        bhh = gb[3 + l:4 + l, :]
        hs = jnp.zeros((B, HP), f32)
        for t in range(T):
            hs = gru_cell(gi_all[t * B:(t + 1) * B, :], hs, whh, bhh)
            seq_scr[t * B:(t + 1) * B, :] = hs    # overwrite with this layer's seq

    # fc_out hoisted out of the loop: ONE (T*B, HP)@(HP, OUTP) matmul and ONE
    # lane-dense (128-wide) store.
    o = (jnp.dot(seq_scr[...].astype(bf16), fcout_w, preferred_element_type=f32)
         + vecs[6:7, :])
    out_ref[...] = _sigmoid(o)                    # relu(sigmoid(o)) == sigmoid(o)


# ----------------------------------------------------------------------------
# Parameter construction (synthetic, deterministic) with zero padding to HP=128.
# Padded weight rows/cols and padded biases/BN-gammas are zero, which keeps every
# padded lane exactly zero through the whole network (so real lanes are unaffected:
# padded weight ROWS being zero means padded lanes can never leak into real lanes).
# ----------------------------------------------------------------------------
def make_params(key):
    keys = iter(jax.random.split(key, 64))

    def rnd(shape, scale=0.1):
        return (scale * jax.random.normal(next(keys), shape)).astype(jnp.float32)

    def pad2(a, rows, cols):
        return jnp.pad(a, ((0, rows - a.shape[0]), (0, cols - a.shape[1])))

    def vecpad(v):                      # (1, n) -> (1, HP), zero padded
        return jnp.pad(v, ((0, 0), (0, HP - v.shape[1])))

    p = {}

    # Encoder depthwise-conv / BN pack (18, C):
    #   rows [0:2]=w1(k=2) [2:5]=w2(k=3) [5:9]=w3(k=4)  (PyTorch (C,1,k) transposed)
    #   rows [9:12]=conv biases, [12:15]=BN gammas, [15:18]=BN betas
    p['enc_conv'] = jnp.concatenate([
        rnd((2, C)), rnd((3, C)), rnd((4, C)),
        rnd((3, C), 0.05),
        1.0 + rnd((3, C)),
        rnd((3, C)),
    ], axis=0)

    # fc_0 stored as (LOUT, C, HP); w0[l, c, h] == PyTorch fc_0.weight[h, c*LOUT + l]
    p['w0'] = jnp.pad(rnd((LOUT, C, H)),
                      ((0, 0), (0, 0), (0, HP - H))).astype(jnp.bfloat16)

    # fc_mu / fc_var fused: (HP, 2*HP)
    p['wmuvar'] = jnp.concatenate(
        [pad2(rnd((H, H)), HP, HP), pad2(rnd((H, H)), HP, HP)],
        axis=1).astype(jnp.bfloat16)

    # Packed width-HP vectors (7, HP):
    # 0: fc_0 bias, 1: fc_mu bias, 2: fc_var bias,
    # 3: decoder BN gamma, 4: decoder BN beta, 5: fc_input bias, 6: fc_out bias
    p['vecs'] = jnp.concatenate([
        vecpad(rnd((1, H), 0.05)),
        vecpad(rnd((1, H), 0.05)),
        vecpad(rnd((1, H), 0.05)),
        vecpad(1.0 + rnd((1, H))),       # padded gamma lanes are zero -> zn_pad == 0
        vecpad(rnd((1, H))),
        vecpad(rnd((1, H), 0.05)),
        vecpad(rnd((1, OUT), 0.05)),
    ], axis=0)

    # Square weights (2, HP, {HP|OUTP}): [0]=fc_input, [1]=fc_out
    p['sq_w'] = jnp.stack([pad2(rnd((H, H)), HP, HP),
                           pad2(rnd((H, OUT)), HP, OUTP)],
                          axis=0).astype(jnp.bfloat16)

    # GRU fused gate weights, gate order (r, z, n) like PyTorch; x @ W layout.
    def gate_w():
        return jnp.concatenate([pad2(rnd((H, H)), HP, HP) for _ in range(3)], axis=1)

    p['gru_wih'] = jnp.stack([gate_w() for _ in range(3)], axis=0).astype(jnp.bfloat16)
    p['gru_whh'] = jnp.stack([gate_w() for _ in range(3)], axis=0).astype(jnp.bfloat16)

    def gate_b():
        return jnp.concatenate([vecpad(rnd((1, H), 0.05)) for _ in range(3)], axis=1)

    # rows 0-2: b_ih per layer, rows 3-5: b_hh per layer   -> (6, GP)
    p['gru_b'] = jnp.concatenate([gate_b() for _ in range(6)], axis=0)
    return p


# ----------------------------------------------------------------------------
# Single fused pallas_call wrapper
# ----------------------------------------------------------------------------
def _full_spec(shape):
    n = len(shape)
    return pl.BlockSpec(shape, lambda i, n=n: (0,) * n)


def gvae_forward(x, eps, p):
    B = x.shape[0]
    eps_pad = jnp.pad(eps.astype(jnp.float32), ((0, 0), (0, HP - H)))

    ins = [x, eps_pad,
           p['enc_conv'], p['w0'], p['wmuvar'], p['vecs'],
           p['sq_w'], p['gru_wih'], p['gru_whh'], p['gru_b']]

    out_shapes = (jax.ShapeDtypeStruct((B, 2 * HP), jnp.float32),   # mu | log_var
                  jax.ShapeDtypeStruct((T * B, OUTP), jnp.float32)) # t-major output

    muvar, out_flat = pl.pallas_call(
        gvae_kernel,
        grid=(1,),
        in_specs=[_full_spec(a.shape) for a in ins],
        out_specs=(_full_spec((B, 2 * HP)), _full_spec((T * B, OUTP))),
        out_shape=out_shapes,
        scratch_shapes=[pltpu.VMEM((T * B, HP), jnp.float32)],
        compiler_params=pltpu.CompilerParams(dimension_semantics=("arbitrary",)),
    )(*ins)

    mu = muvar[:, :H]
    log_var = muvar[:, HP:HP + H]
    # out_flat rows are t-major (row = t*B + b); unpack + drop padded lanes.
    output = out_flat.reshape(T, B, OUTP).transpose(1, 0, 2)[:, :, :OUT]
    return output, mu, log_var


if __name__ == "__main__":
    key = jax.random.PRNGKey(0)
    kx, keps, kp = jax.random.split(key, 3)
    B = 2
    x = jax.random.normal(kx, (B, T, C), dtype=jnp.float32)        # (2, 15, 12)
    eps = jax.random.normal(keps, (B, H), dtype=jnp.float32)       # reparam noise
    params = make_params(kp)

    output, mu, log_var = gvae_forward(x, eps, params)
    jax.block_until_ready((output, mu, log_var))

    assert output.shape == (B, T, OUT)
    assert mu.shape == (B, H) and log_var.shape == (B, H)
    assert bool(jnp.all(jnp.isfinite(output)))
    print("KERNEL_OK")
</pallas_src>

<mosaic_0001>
module attributes {stable_mosaic.version = 11 : i64} {
  func.func @gvae_kernel(%arg0: i32, %arg1: memref<2x15x12xf32, #tpu.memory_space<vmem>>, %arg2: memref<2x128xf32, #tpu.memory_space<vmem>>, %arg3: memref<18x12xf32, #tpu.memory_space<vmem>>, %arg4: memref<9x12x128xbf16, #tpu.memory_space<vmem>>, %arg5: memref<128x256xbf16, #tpu.memory_space<vmem>>, %arg6: memref<7x128xf32, #tpu.memory_space<vmem>>, %arg7: memref<2x128x128xbf16, #tpu.memory_space<vmem>>, %arg8: memref<3x128x384xbf16, #tpu.memory_space<vmem>>, %arg9: memref<3x128x384xbf16, #tpu.memory_space<vmem>>, %arg10: memref<6x384xf32, #tpu.memory_space<vmem>>, %arg11: memref<2x256xf32, #tpu.memory_space<vmem>>, %arg12: memref<30x128xf32, #tpu.memory_space<vmem>>, %arg13: memref<30x128xf32, #tpu.memory_space<vmem>>) attributes {dimension_semantics = [#tpu.dimension_semantics<arbitrary>], iteration_bounds = array<i64: 1>, scalar_prefetch = 0 : i64, scratch_operands = 1 : i64, tpu.core_type = #tpu.core_type<tc>, window_params = [{pipeline_mode = #tpu.pipeline_mode<synchronous>, transform_indices = @transform_0, window_bounds = array<i64: 2, 15, 12>}, {pipeline_mode = #tpu.pipeline_mode<synchronous>, transform_indices = @transform_1, window_bounds = array<i64: 2, 128>}, {pipeline_mode = #tpu.pipeline_mode<synchronous>, transform_indices = @transform_2, window_bounds = array<i64: 18, 12>}, {pipeline_mode = #tpu.pipeline_mode<synchronous>, transform_indices = @transform_3, window_bounds = array<i64: 9, 12, 128>}, {pipeline_mode = #tpu.pipeline_mode<synchronous>, transform_indices = @transform_4, window_bounds = array<i64: 128, 256>}, {pipeline_mode = #tpu.pipeline_mode<synchronous>, transform_indices = @transform_5, window_bounds = array<i64: 7, 128>}, {pipeline_mode = #tpu.pipeline_mode<synchronous>, transform_indices = @transform_6, window_bounds = array<i64: 2, 128, 128>}, {pipeline_mode = #tpu.pipeline_mode<synchronous>, transform_indices = @transform_7, window_bounds = array<i64: 3, 128, 384>}, {pipeline_mode = #tpu.pipeline_mode<synchronous>, transform_indices = @transform_8, window_bounds = array<i64: 3, 128, 384>}, {pipeline_mode = #tpu.pipeline_mode<synchronous>, transform_indices = @transform_9, window_bounds = array<i64: 6, 384>}, {pipeline_mode = #tpu.pipeline_mode<synchronous>, transform_indices = @transform_10, window_bounds = array<i64: 2, 256>}, {pipeline_mode = #tpu.pipeline_mode<synchronous>, transform_indices = @transform_11, window_bounds = array<i64: 30, 128>}]} {
    %c0 = arith.constant 0 : index
    %c0_0 = arith.constant 0 : index
    %0 = vector.load %arg3[%c0, %c0_0] : memref<18x12xf32, #tpu.memory_space<vmem>>, vector<18x12xf32>
    %c0_1 = arith.constant 0 : index
    %c0_2 = arith.constant 0 : index
    %c0_3 = arith.constant 0 : index
    %1 = vector.load %arg1[%c0_1, %c0_2, %c0_3] : memref<2x15x12xf32, #tpu.memory_space<vmem>>, vector<2x15x12xf32>
    %2 = vector.extract_strided_slice %0 {offsets = [0, 0], sizes = [2, 12], strides = [1, 1]} : vector<18x12xf32> to vector<2x12xf32>
    %3 = vector.extract_strided_slice %0 {offsets = [9, 0], sizes = [1, 12], strides = [1, 1]} : vector<18x12xf32> to vector<1x12xf32>
    %4 = vector.extract_strided_slice %0 {offsets = [12, 0], sizes = [1, 12], strides = [1, 1]} : vector<18x12xf32> to vector<1x12xf32>
    %5 = vector.extract_strided_slice %0 {offsets = [15, 0], sizes = [1, 12], strides = [1, 1]} : vector<18x12xf32> to vector<1x12xf32>
    %6 = vector.extract_strided_slice %1 {offsets = [0, 0, 0], sizes = [2, 14, 12], strides = [1, 1, 1]} : vector<2x15x12xf32> to vector<2x14x12xf32>
    %7 = vector.extract_strided_slice %2 {offsets = [0, 0], sizes = [1, 12], strides = [1, 1]} : vector<2x12xf32> to vector<1x12xf32>
    %8 = vector.shape_cast %7 : vector<1x12xf32> to vector<1x1x12xf32>
    %9 = vector.broadcast %8 : vector<1x1x12xf32> to vector<2x14x12xf32>
    %10 = arith.mulf %6, %9 : vector<2x14x12xf32>
    %11 = vector.extract_strided_slice %1 {offsets = [0, 1, 0], sizes = [2, 14, 12], strides = [1, 1, 1]} : vector<2x15x12xf32> to vector<2x14x12xf32>
    %12 = vector.extract_strided_slice %2 {offsets = [1, 0], sizes = [1, 12], strides = [1, 1]} : vector<2x12xf32> to vector<1x12xf32>
    %13 = vector.shape_cast %12 : vector<1x12xf32> to vector<1x1x12xf32>
    %14 = vector.broadcast %13 : vector<1x1x12xf32> to vector<2x14x12xf32>
    %15 = arith.mulf %11, %14 : vector<2x14x12xf32>
    %16 = arith.addf %10, %15 : vector<2x14x12xf32>
    %17 = vector.shape_cast %3 : vector<1x12xf32> to vector<1x1x12xf32>
    %18 = vector.broadcast %17 : vector<1x1x12xf32> to vector<2x14x12xf32>
    %19 = arith.addf %16, %18 : vector<2x14x12xf32>
    %cst = arith.constant dense<0.000000e+00> : vector<12xf32>
    %20 = vector.multi_reduction <add>, %19, %cst [0, 1] : vector<2x14x12xf32> to vector<12xf32>
    %21 = vector.shape_cast %20 : vector<12xf32> to vector<1x1x12xf32>
    %cst_4 = arith.constant 2.800000e+01 : f32
    %22 = vector.broadcast %cst_4 : f32 to vector<1x1x12xf32>
    %23 = arith.divf %21, %22 : vector<1x1x12xf32>
    %24 = vector.broadcast %23 : vector<1x1x12xf32> to vector<2x14x12xf32>
    %25 = arith.subf %19, %24 : vector<2x14x12xf32>
    %26 = arith.mulf %25, %25 : vector<2x14x12xf32>
    %cst_5 = arith.constant dense<0.000000e+00> : vector<12xf32>
    %27 = vector.multi_reduction <add>, %26, %cst_5 [0, 1] : vector<2x14x12xf32> to vector<12xf32>
    %28 = vector.shape_cast %27 : vector<12xf32> to vector<1x1x12xf32>
    %cst_6 = arith.constant 2.800000e+01 : f32
    %29 = vector.broadcast %cst_6 : f32 to vector<1x1x12xf32>
    %30 = arith.divf %28, %29 : vector<1x1x12xf32>
    %31 = vector.broadcast %23 : vector<1x1x12xf32> to vector<2x14x12xf32>
    %32 = arith.subf %19, %31 : vector<2x14x12xf32>
    %cst_7 = arith.constant 9.99999974E-6 : f32
    %33 = vector.broadcast %cst_7 : f32 to vector<1x1x12xf32>
    %34 = arith.addf %30, %33 : vector<1x1x12xf32>
    %35 = math.rsqrt %34 : vector<1x1x12xf32>
    %36 = vector.broadcast %35 : vector<1x1x12xf32> to vector<2x14x12xf32>
    %37 = arith.mulf %32, %36 : vector<2x14x12xf32>
    %38 = vector.shape_cast %4 : vector<1x12xf32> to vector<1x1x12xf32>
    %39 = vector.broadcast %38 : vector<1x1x12xf32> to vector<2x14x12xf32>
    %40 = arith.mulf %37, %39 : vector<2x14x12xf32>
    %41 = vector.shape_cast %5 : vector<1x12xf32> to vector<1x1x12xf32>
    %42 = vector.broadcast %41 : vector<1x1x12xf32> to vector<2x14x12xf32>
    %43 = arith.addf %40, %42 : vector<2x14x12xf32>
    %cst_8 = arith.constant 0.000000e+00 : f32
    %44 = vector.broadcast %cst_8 : f32 to vector<2x14x12xf32>
    %45 = arith.maximumf %43, %44 : vector<2x14x12xf32>
    %46 = vector.extract_strided_slice %0 {offsets = [2, 0], sizes = [3, 12], strides = [1, 1]} : vector<18x12xf32> to vector<3x12xf32>
    %47 = vector.extract_strided_slice %0 {offsets = [10, 0], sizes = [1, 12], strides = [1, 1]} : vector<18x12xf32> to vector<1x12xf32>
    %48 = vector.extract_strided_slice %0 {offsets = [13, 0], sizes = [1, 12], strides = [1, 1]} : vector<18x12xf32> to vector<1x12xf32>
    %49 = vector.extract_strided_slice %0 {offsets = [16, 0], sizes = [1, 12], strides = [1, 1]} : vector<18x12xf32> to vector<1x12xf32>
    %50 = vector.extract_strided_slice %45 {offsets = [0, 0, 0], sizes = [2, 12, 12], strides = [1, 1, 1]} : vector<2x14x12xf32> to vector<2x12x12xf32>
    %51 = vector.extract_strided_slice %46 {offsets = [0, 0], sizes = [1, 12], strides = [1, 1]} : vector<3x12xf32> to vector<1x12xf32>
    %52 = vector.shape_cast %51 : vector<1x12xf32> to vector<1x1x12xf32>
    %53 = vector.broadcast %52 : vector<1x1x12xf32> to vector<2x12x12xf32>
    %54 = arith.mulf %50, %53 : vector<2x12x12xf32>
    %55 = vector.extract_strided_slice %45 {offsets = [0, 1, 0], sizes = [2, 12, 12], strides = [1, 1, 1]} : vector<2x14x12xf32> to vector<2x12x12xf32>
    %56 = vector.extract_strided_slice %46 {offsets = [1, 0], sizes = [1, 12], strides = [1, 1]} : vector<3x12xf32> to vector<1x12xf32>
    %57 = vector.shape_cast %56 : vector<1x12xf32> to vector<1x1x12xf32>
    %58 = vector.broadcast %57 : vector<1x1x12xf32> to vector<2x12x12xf32>
    %59 = arith.mulf %55, %58 : vector<2x12x12xf32>
    %60 = arith.addf %54, %59 : vector<2x12x12xf32>
    %61 = vector.extract_strided_slice %45 {offsets = [0, 2, 0], sizes = [2, 12, 12], strides = [1, 1, 1]} : vector<2x14x12xf32> to vector<2x12x12xf32>
    %62 = vector.extract_strided_slice %46 {offsets = [2, 0], sizes = [1, 12], strides = [1, 1]} : vector<3x12xf32> to vector<1x12xf32>
    %63 = vector.shape_cast %62 : vector<1x12xf32> to vector<1x1x12xf32>
    %64 = vector.broadcast %63 : vector<1x1x12xf32> to vector<2x12x12xf32>
    %65 = arith.mulf %61, %64 : vector<2x12x12xf32>
    %66 = arith.addf %60, %65 : vector<2x12x12xf32>
    %67 = vector.shape_cast %47 : vector<1x12xf32> to vector<1x1x12xf32>
    %68 = vector.broadcast %67 : vector<1x1x12xf32> to vector<2x12x12xf32>
    %69 = arith.addf %66, %68 : vector<2x12x12xf32>
    %cst_9 = arith.constant dense<0.000000e+00> : vector<12xf32>
    %70 = vector.multi_reduction <add>, %69, %cst_9 [0, 1] : vector<2x12x12xf32> to vector<12xf32>
    %71 = vector.shape_cast %70 : vector<12xf32> to vector<1x1x12xf32>
    %cst_10 = arith.constant 2.400000e+01 : f32
    %72 = vector.broadcast %cst_10 : f32 to vector<1x1x12xf32>
    %73 = arith.divf %71, %72 : vector<1x1x12xf32>
    %74 = vector.broadcast %73 : vector<1x1x12xf32> to vector<2x12x12xf32>
    %75 = arith.subf %69, %74 : vector<2x12x12xf32>
    %76 = arith.mulf %75, %75 : vector<2x12x12xf32>
    %cst_11 = arith.constant dense<0.000000e+00> : vector<12xf32>
    %77 = vector.multi_reduction <add>, %76, %cst_11 [0, 1] : vector<2x12x12xf32> to vector<12xf32>
    %78 = vector.shape_cast %77 : vector<12xf32> to vector<1x1x12xf32>
    %cst_12 = arith.constant 2.400000e+01 : f32
    %79 = vector.broadcast %cst_12 : f32 to vector<1x1x12xf32>
    %80 = arith.divf %78, %79 : vector<1x1x12xf32>
    %81 = vector.broadcast %73 : vector<1x1x12xf32> to vector<2x12x12xf32>
    %82 = arith.subf %69, %81 : vector<2x12x12xf32>
    %cst_13 = arith.constant 9.99999974E-6 : f32
    %83 = vector.broadcast %cst_13 : f32 to vector<1x1x12xf32>
    %84 = arith.addf %80, %83 : vector<1x1x12xf32>
    %85 = math.rsqrt %84 : vector<1x1x12xf32>
    %86 = vector.broadcast %85 : vector<1x1x12xf32> to vector<2x12x12xf32>
    %87 = arith.mulf %82, %86 : vector<2x12x12xf32>
    %88 = vector.shape_cast %48 : vector<1x12xf32> to vector<1x1x12xf32>
    %89 = vector.broadcast %88 : vector<1x1x12xf32> to vector<2x12x12xf32>
    %90 = arith.mulf %87, %89 : vector<2x12x12xf32>
    %91 = vector.shape_cast %49 : vector<1x12xf32> to vector<1x1x12xf32>
    %92 = vector.broadcast %91 : vector<1x1x12xf32> to vector<2x12x12xf32>
    %93 = arith.addf %90, %92 : vector<2x12x12xf32>
    %cst_14 = arith.constant 0.000000e+00 : f32
    %94 = vector.broadcast %cst_14 : f32 to vector<2x12x12xf32>
    %95 = arith.maximumf %93, %94 : vector<2x12x12xf32>
    %96 = vector.extract_strided_slice %0 {offsets = [5, 0], sizes = [4, 12], strides = [1, 1]} : vector<18x12xf32> to vector<4x12xf32>
    %97 = vector.extract_strided_slice %0 {offsets = [11, 0], sizes = [1, 12], strides = [1, 1]} : vector<18x12xf32> to vector<1x12xf32>
    %98 = vector.extract_strided_slice %0 {offsets = [14, 0], sizes = [1, 12], strides = [1, 1]} : vector<18x12xf32> to vector<1x12xf32>
    %99 = vector.extract_strided_slice %0 {offsets = [17, 0], sizes = [1, 12], strides = [1, 1]} : vector<18x12xf32> to vector<1x12xf32>
    %100 = vector.extract_strided_slice %95 {offsets = [0, 0, 0], sizes = [2, 9, 12], strides = [1, 1, 1]} : vector<2x12x12xf32> to vector<2x9x12xf32>
    %101 = vector.extract_strided_slice %96 {offsets = [0, 0], sizes = [1, 12], strides = [1, 1]} : vector<4x12xf32> to vector<1x12xf32>
    %102 = vector.shape_cast %101 : vector<1x12xf32> to vector<1x1x12xf32>
    %103 = vector.broadcast %102 : vector<1x1x12xf32> to vector<2x9x12xf32>
    %104 = arith.mulf %100, %103 : vector<2x9x12xf32>
    %105 = vector.extract_strided_slice %95 {offsets = [0, 1, 0], sizes = [2, 9, 12], strides = [1, 1, 1]} : vector<2x12x12xf32> to vector<2x9x12xf32>
    %106 = vector.extract_strided_slice %96 {offsets = [1, 0], sizes = [1, 12], strides = [1, 1]} : vector<4x12xf32> to vector<1x12xf32>
    %107 = vector.shape_cast %106 : vector<1x12xf32> to vector<1x1x12xf32>
    %108 = vector.broadcast %107 : vector<1x1x12xf32> to vector<2x9x12xf32>
    %109 = arith.mulf %105, %108 : vector<2x9x12xf32>
    %110 = arith.addf %104, %109 : vector<2x9x12xf32>
    %111 = vector.extract_strided_slice %95 {offsets = [0, 2, 0], sizes = [2, 9, 12], strides = [1, 1, 1]} : vector<2x12x12xf32> to vector<2x9x12xf32>
    %112 = vector.extract_strided_slice %96 {offsets = [2, 0], sizes = [1, 12], strides = [1, 1]} : vector<4x12xf32> to vector<1x12xf32>
    %113 = vector.shape_cast %112 : vector<1x12xf32> to vector<1x1x12xf32>
    %114 = vector.broadcast %113 : vector<1x1x12xf32> to vector<2x9x12xf32>
    %115 = arith.mulf %111, %114 : vector<2x9x12xf32>
    %116 = arith.addf %110, %115 : vector<2x9x12xf32>
    %117 = vector.extract_strided_slice %95 {offsets = [0, 3, 0], sizes = [2, 9, 12], strides = [1, 1, 1]} : vector<2x12x12xf32> to vector<2x9x12xf32>
    %118 = vector.extract_strided_slice %96 {offsets = [3, 0], sizes = [1, 12], strides = [1, 1]} : vector<4x12xf32> to vector<1x12xf32>
    %119 = vector.shape_cast %118 : vector<1x12xf32> to vector<1x1x12xf32>
    %120 = vector.broadcast %119 : vector<1x1x12xf32> to vector<2x9x12xf32>
    %121 = arith.mulf %117, %120 : vector<2x9x12xf32>
    %122 = arith.addf %116, %121 : vector<2x9x12xf32>
    %123 = vector.shape_cast %97 : vector<1x12xf32> to vector<1x1x12xf32>
    %124 = vector.broadcast %123 : vector<1x1x12xf32> to vector<2x9x12xf32>
    %125 = arith.addf %122, %124 : vector<2x9x12xf32>
    %cst_15 = arith.constant dense<0.000000e+00> : vector<12xf32>
    %126 = vector.multi_reduction <add>, %125, %cst_15 [0, 1] : vector<2x9x12xf32> to vector<12xf32>
    %127 = vector.shape_cast %126 : vector<12xf32> to vector<1x1x12xf32>
    %cst_16 = arith.constant 1.800000e+01 : f32
    %128 = vector.broadcast %cst_16 : f32 to vector<1x1x12xf32>
    %129 = arith.divf %127, %128 : vector<1x1x12xf32>
    %130 = vector.broadcast %129 : vector<1x1x12xf32> to vector<2x9x12xf32>
    %131 = arith.subf %125, %130 : vector<2x9x12xf32>
    %132 = arith.mulf %131, %131 : vector<2x9x12xf32>
    %cst_17 = arith.constant dense<0.000000e+00> : vector<12xf32>
    %133 = vector.multi_reduction <add>, %132, %cst_17 [0, 1] : vector<2x9x12xf32> to vector<12xf32>
    %134 = vector.shape_cast %133 : vector<12xf32> to vector<1x1x12xf32>
    %cst_18 = arith.constant 1.800000e+01 : f32
    %135 = vector.broadcast %cst_18 : f32 to vector<1x1x12xf32>
    %136 = arith.divf %134, %135 : vector<1x1x12xf32>
    %137 = vector.broadcast %129 : vector<1x1x12xf32> to vector<2x9x12xf32>
    %138 = arith.subf %125, %137 : vector<2x9x12xf32>
    %cst_19 = arith.constant 9.99999974E-6 : f32
    %139 = vector.broadcast %cst_19 : f32 to vector<1x1x12xf32>
    %140 = arith.addf %136, %139 : vector<1x1x12xf32>
    %141 = math.rsqrt %140 : vector<1x1x12xf32>
    %142 = vector.broadcast %141 : vector<1x1x12xf32> to vector<2x9x12xf32>
    %143 = arith.mulf %138, %142 : vector<2x9x12xf32>
    %144 = vector.shape_cast %98 : vector<1x12xf32> to vector<1x1x12xf32>
    %145 = vector.broadcast %144 : vector<1x1x12xf32> to vector<2x9x12xf32>
    %146 = arith.mulf %143, %145 : vector<2x9x12xf32>
    %147 = vector.shape_cast %99 : vector<1x12xf32> to vector<1x1x12xf32>
    %148 = vector.broadcast %147 : vector<1x1x12xf32> to vector<2x9x12xf32>
    %149 = arith.addf %146, %148 : vector<2x9x12xf32>
    %cst_20 = arith.constant 0.000000e+00 : f32
    %150 = vector.broadcast %cst_20 : f32 to vector<2x9x12xf32>
    %151 = arith.maximumf %149, %150 : vector<2x9x12xf32>
    %c0_21 = arith.constant 0 : index
    %c0_22 = arith.constant 0 : index
    %152 = vector.load %arg6[%c0_21, %c0_22] : memref<7x128xf32, #tpu.memory_space<vmem>>, vector<7x128xf32>
    %cst_23 = arith.constant 0.000000e+00 : f32
    %153 = vector.broadcast %cst_23 : f32 to vector<2x128xf32>
    %154 = vector.extract_strided_slice %151 {offsets = [0, 0, 0], sizes = [2, 1, 12], strides = [1, 1, 1]} : vector<2x9x12xf32> to vector<2x1x12xf32>
    %155 = vector.shape_cast %154 : vector<2x1x12xf32> to vector<2x12xf32>
    %156 = arith.truncf %155 : vector<2x12xf32> to vector<2x12xbf16>
    %c0_24 = arith.constant 0 : index
    %c0_25 = arith.constant 0 : index
    %c0_26 = arith.constant 0 : index
    %157 = vector.load %arg4[%c0_24, %c0_25, %c0_26] : memref<9x12x128xbf16, #tpu.memory_space<vmem>>, vector<1x12x128xbf16>
    %158 = vector.shape_cast %157 : vector<1x12x128xbf16> to vector<12x128xbf16>
    %cst_27 = arith.constant dense<0.000000e+00> : vector<2x128xf32>
    %159 = tpu.matmul %156, %158, %cst_27 {dimension_numbers = #tpu.dot_dimension_numbers<[1], [0], [0], [1], [0, 0, 1, 1], [], []>} : vector<2x12xbf16>, vector<12x128xbf16>, vector<2x128xf32> -> vector<2x128xf32>
    %160 = arith.addf %153, %159 : vector<2x128xf32>
    %161 = vector.extract_strided_slice %151 {offsets = [0, 1, 0], sizes = [2, 1, 12], strides = [1, 1, 1]} : vector<2x9x12xf32> to vector<2x1x12xf32>
    %162 = vector.shape_cast %161 : vector<2x1x12xf32> to vector<2x12xf32>
    %163 = arith.truncf %162 : vector<2x12xf32> to vector<2x12xbf16>
    %c1 = arith.constant 1 : index
    %c0_28 = arith.constant 0 : index
    %c0_29 = arith.constant 0 : index
    %164 = vector.load %arg4[%c1, %c0_28, %c0_29] : memref<9x12x128xbf16, #tpu.memory_space<vmem>>, vector<1x12x128xbf16>
    %165 = vector.shape_cast %164 : vector<1x12x128xbf16> to vector<12x128xbf16>
    %cst_30 = arith.constant dense<0.000000e+00> : vector<2x128xf32>
    %166 = tpu.matmul %163, %165, %cst_30 {dimension_numbers = #tpu.dot_dimension_numbers<[1], [0], [0], [1], [0, 0, 1, 1], [], []>} : vector<2x12xbf16>, vector<12x128xbf16>, vector<2x128xf32> -> vector<2x128xf32>
    %167 = arith.addf %160, %166 : vector<2x128xf32>
    %168 = vector.extract_strided_slice %151 {offsets = [0, 2, 0], sizes = [2, 1, 12], strides = [1, 1, 1]} : vector<2x9x12xf32> to vector<2x1x12xf32>
    %169 = vector.shape_cast %168 : vector<2x1x12xf32> to vector<2x12xf32>
    %170 = arith.truncf %169 : vector<2x12xf32> to vector<2x12xbf16>
    %c2 = arith.constant 2 : index
    %c0_31 = arith.constant 0 : index
    %c0_32 = arith.constant 0 : index
    %171 = vector.load %arg4[%c2, %c0_31, %c0_32] : memref<9x12x128xbf16, #tpu.memory_space<vmem>>, vector<1x12x128xbf16>
    %172 = vector.shape_cast %171 : vector<1x12x128xbf16> to vector<12x128xbf16>
    %cst_33 = arith.constant dense<0.000000e+00> : vector<2x128xf32>
    %173 = tpu.matmul %170, %172, %cst_33 {dimension_numbers = #tpu.dot_dimension_numbers<[1], [0], [0], [1], [0, 0, 1, 1], [], []>} : vector<2x12xbf16>, vector<12x128xbf16>, vector<2x128xf32> -> vector<2x128xf32>
    %174 = arith.addf %167, %173 : vector<2x128xf32>
    %175 = vector.extract_strided_slice %151 {offsets = [0, 3, 0], sizes = [2, 1, 12], strides = [1, 1, 1]} : vector<2x9x12xf32> to vector<2x1x12xf32>
    %176 = vector.shape_cast %175 : vector<2x1x12xf32> to vector<2x12xf32>
    %177 = arith.truncf %176 : vector<2x12xf32> to vector<2x12xbf16>
    %c3 = arith.constant 3 : index
    %c0_34 = arith.constant 0 : index
    %c0_35 = arith.constant 0 : index
    %178 = vector.load %arg4[%c3, %c0_34, %c0_35] : memref<9x12x128xbf16, #tpu.memory_space<vmem>>, vector<1x12x128xbf16>
    %179 = vector.shape_cast %178 : vector<1x12x128xbf16> to vector<12x128xbf16>
    %cst_36 = arith.constant dense<0.000000e+00> : vector<2x128xf32>
    %180 = tpu.matmul %177, %179, %cst_36 {dimension_numbers = #tpu.dot_dimension_numbers<[1], [0], [0], [1], [0, 0, 1, 1], [], []>} : vector<2x12xbf16>, vector<12x128xbf16>, vector<2x128xf32> -> vector<2x128xf32>
    %181 = arith.addf %174, %180 : vector<2x128xf32>
    %182 = vector.extract_strided_slice %151 {offsets = [0, 4, 0], sizes = [2, 1, 12], strides = [1, 1, 1]} : vector<2x9x12xf32> to vector<2x1x12xf32>
    %183 = vector.shape_cast %182 : vector<2x1x12xf32> to vector<2x12xf32>
    %184 = arith.truncf %183 : vector<2x12xf32> to vector<2x12xbf16>
    %c4 = arith.constant 4 : index
    %c0_37 = arith.constant 0 : index
    %c0_38 = arith.constant 0 : index
    %185 = vector.load %arg4[%c4, %c0_37, %c0_38] : memref<9x12x128xbf16, #tpu.memory_space<vmem>>, vector<1x12x128xbf16>
    %186 = vector.shape_cast %185 : vector<1x12x128xbf16> to vector<12x128xbf16>
    %cst_39 = arith.constant dense<0.000000e+00> : vector<2x128xf32>
    %187 = tpu.matmul %184, %186, %cst_39 {dimension_numbers = #tpu.dot_dimension_numbers<[1], [0], [0], [1], [0, 0, 1, 1], [], []>} : vector<2x12xbf16>, vector<12x128xbf16>, vector<2x128xf32> -> vector<2x128xf32>
    %188 = arith.addf %181, %187 : vector<2x128xf32>
    %189 = vector.extract_strided_slice %151 {offsets = [0, 5, 0], sizes = [2, 1, 12], strides = [1, 1, 1]} : vector<2x9x12xf32> to vector<2x1x12xf32>
    %190 = vector.shape_cast %189 : vector<2x1x12xf32> to vector<2x12xf32>
    %191 = arith.truncf %190 : vector<2x12xf32> to vector<2x12xbf16>
    %c5 = arith.constant 5 : index
    %c0_40 = arith.constant 0 : index
    %c0_41 = arith.constant 0 : index
    %192 = vector.load %arg4[%c5, %c0_40, %c0_41] : memref<9x12x128xbf16, #tpu.memory_space<vmem>>, vector<1x12x128xbf16>
    %193 = vector.shape_cast %192 : vector<1x12x128xbf16> to vector<12x128xbf16>
    %cst_42 = arith.constant dense<0.000000e+00> : vector<2x128xf32>
    %194 = tpu.matmul %191, %193, %cst_42 {dimension_numbers = #tpu.dot_dimension_numbers<[1], [0], [0], [1], [0, 0, 1, 1], [], []>} : vector<2x12xbf16>, vector<12x128xbf16>, vector<2x128xf32> -> vector<2x128xf32>
    %195 = arith.addf %188, %194 : vector<2x128xf32>
    %196 = vector.extract_strided_slice %151 {offsets = [0, 6, 0], sizes = [2, 1, 12], strides = [1, 1, 1]} : vector<2x9x12xf32> to vector<2x1x12xf32>
    %197 = vector.shape_cast %196 : vector<2x1x12xf32> to vector<2x12xf32>
    %198 = arith.truncf %197 : vector<2x12xf32> to vector<2x12xbf16>
    %c6 = arith.constant 6 : index
    %c0_43 = arith.constant 0 : index
    %c0_44 = arith.constant 0 : index
    %199 = vector.load %arg4[%c6, %c0_43, %c0_44] : memref<9x12x128xbf16, #tpu.memory_space<vmem>>, vector<1x12x128xbf16>
    %200 = vector.shape_cast %199 : vector<1x12x128xbf16> to vector<12x128xbf16>
    %cst_45 = arith.constant dense<0.000000e+00> : vector<2x128xf32>
    %201 = tpu.matmul %198, %200, %cst_45 {dimension_numbers = #tpu.dot_dimension_numbers<[1], [0], [0], [1], [0, 0, 1, 1], [], []>} : vector<2x12xbf16>, vector<12x128xbf16>, vector<2x128xf32> -> vector<2x128xf32>
    %202 = arith.addf %195, %201 : vector<2x128xf32>
    %203 = vector.extract_strided_slice %151 {offsets = [0, 7, 0], sizes = [2, 1, 12], strides = [1, 1, 1]} : vector<2x9x12xf32> to vector<2x1x12xf32>
    %204 = vector.shape_cast %203 : vector<2x1x12xf32> to vector<2x12xf32>
    %205 = arith.truncf %204 : vector<2x12xf32> to vector<2x12xbf16>
    %c7 = arith.constant 7 : index
    %c0_46 = arith.constant 0 : index
    %c0_47 = arith.constant 0 : index
    %206 = vector.load %arg4[%c7, %c0_46, %c0_47] : memref<9x12x128xbf16, #tpu.memory_space<vmem>>, vector<1x12x128xbf16>
    %207 = vector.shape_cast %206 : vector<1x12x128xbf16> to vector<12x128xbf16>
    %cst_48 = arith.constant dense<0.000000e+00> : vector<2x128xf32>
    %208 = tpu.matmul %205, %207, %cst_48 {dimension_numbers = #tpu.dot_dimension_numbers<[1], [0], [0], [1], [0, 0, 1, 1], [], []>} : vector<2x12xbf16>, vector<12x128xbf16>, vector<2x128xf32> -> vector<2x128xf32>
    %209 = arith.addf %202, %208 : vector<2x128xf32>
    %210 = vector.extract_strided_slice %151 {offsets = [0, 8, 0], sizes = [2, 1, 12], strides = [1, 1, 1]} : vector<2x9x12xf32> to vector<2x1x12xf32>
    %211 = vector.shape_cast %210 : vector<2x1x12xf32> to vector<2x12xf32>
    %212 = arith.truncf %211 : vector<2x12xf32> to vector<2x12xbf16>
    %c8 = arith.constant 8 : index
    %c0_49 = arith.constant 0 : index
    %c0_50 = arith.constant 0 : index
    %213 = vector.load %arg4[%c8, %c0_49, %c0_50] : memref<9x12x128xbf16, #tpu.memory_space<vmem>>, vector<1x12x128xbf16>
    %214 = vector.shape_cast %213 : vector<1x12x128xbf16> to vector<12x128xbf16>
    %cst_51 = arith.constant dense<0.000000e+00> : vector<2x128xf32>
    %215 = tpu.matmul %212, %214, %cst_51 {dimension_numbers = #tpu.dot_dimension_numbers<[1], [0], [0], [1], [0, 0, 1, 1], [], []>} : vector<2x12xbf16>, vector<12x128xbf16>, vector<2x128xf32> -> vector<2x128xf32>
    %216 = arith.addf %209, %215 : vector<2x128xf32>
    %217 = vector.extract_strided_slice %152 {offsets = [0, 0], sizes = [1, 128], strides = [1, 1]} : vector<7x128xf32> to vector<1x128xf32>
    %218 = vector.broadcast %217 : vector<1x128xf32> to vector<2x128xf32>
    %219 = arith.addf %216, %218 : vector<2x128xf32>
    %220 = arith.truncf %219 : vector<2x128xf32> to vector<2x128xbf16>
    %c0_52 = arith.constant 0 : index
    %c0_53 = arith.constant 0 : index
    %221 = vector.load %arg5[%c0_52, %c0_53] : memref<128x256xbf16, #tpu.memory_space<vmem>>, vector<128x256xbf16>
    %cst_54 = arith.constant dense<0.000000e+00> : vector<2x256xf32>
    %222 = tpu.matmul %220, %221, %cst_54 {dimension_numbers = #tpu.dot_dimension_numbers<[1], [0], [0], [1], [0, 0, 1, 1], [], []>} : vector<2x128xbf16>, vector<128x256xbf16>, vector<2x256xf32> -> vector<2x256xf32>
    %223 = vector.extract_strided_slice %222 {offsets = [0, 0], sizes = [2, 128], strides = [1, 1]} : vector<2x256xf32> to vector<2x128xf32>
    %224 = vector.extract_strided_slice %152 {offsets = [1, 0], sizes = [1, 128], strides = [1, 1]} : vector<7x128xf32> to vector<1x128xf32>
    %225 = vector.broadcast %224 : vector<1x128xf32> to vector<2x128xf32>
    %226 = arith.addf %223, %225 : vector<2x128xf32>
    %227 = vector.extract_strided_slice %222 {offsets = [0, 128], sizes = [2, 128], strides = [1, 1]} : vector<2x256xf32> to vector<2x128xf32>
    %228 = vector.extract_strided_slice %152 {offsets = [2, 0], sizes = [1, 128], strides = [1, 1]} : vector<7x128xf32> to vector<1x128xf32>
    %229 = vector.broadcast %228 : vector<1x128xf32> to vector<2x128xf32>
    %230 = arith.addf %227, %229 : vector<2x128xf32>
    %c0_55 = arith.constant 0 : index
    %c0_56 = arith.constant 0 : index
    %231 = vector.load %arg11[%c0_55, %c0_56] : memref<2x256xf32, #tpu.memory_space<vmem>>, vector<2x128xf32>
    tpu.vector_store %arg11[%c0_55, %c0_56], %226 {strides = array<i32>} : memref<2x256xf32, #tpu.memory_space<vmem>>, vector<2x128xf32>,
    %c0_57 = arith.constant 0 : index
    %c128 = arith.constant 128 : index
    %232 = vector.load %arg11[%c0_57, %c128] : memref<2x256xf32, #tpu.memory_space<vmem>>, vector<2x128xf32>
    tpu.vector_store %arg11[%c0_57, %c128], %230 {strides = array<i32>} : memref<2x256xf32, #tpu.memory_space<vmem>>, vector<2x128xf32>,
    %c0_58 = arith.constant 0 : index
    %c0_59 = arith.constant 0 : index
    %233 = vector.load %arg2[%c0_58, %c0_59] : memref<2x128xf32, #tpu.memory_space<vmem>>, vector<2x128xf32>
    %cst_60 = arith.constant 5.000000e-01 : f32
    %234 = vector.broadcast %cst_60 : f32 to vector<2x128xf32>
    %235 = arith.mulf %234, %230 : vector<2x128xf32>
    %236 = math.exp %235 : vector<2x128xf32>
    %237 = arith.mulf %233, %236 : vector<2x128xf32>
    %238 = arith.addf %237, %226 : vector<2x128xf32>
    %cst_61 = arith.constant dense<0.000000e+00> : vector<128xf32>
    %239 = vector.multi_reduction <add>, %238, %cst_61 [0] : vector<2x128xf32> to vector<128xf32>
    %240 = vector.shape_cast %239 : vector<128xf32> to vector<1x128xf32>
    %cst_62 = arith.constant 2.000000e+00 : f32
    %241 = vector.broadcast %cst_62 : f32 to vector<1x128xf32>
    %242 = arith.divf %240, %241 : vector<1x128xf32>
    %243 = vector.broadcast %242 : vector<1x128xf32> to vector<2x128xf32>
    %244 = arith.subf %238, %243 : vector<2x128xf32>
    %245 = arith.mulf %244, %244 : vector<2x128xf32>
    %cst_63 = arith.constant dense<0.000000e+00> : vector<128xf32>
    %246 = vector.multi_reduction <add>, %245, %cst_63 [0] : vector<2x128xf32> to vector<128xf32>
    %247 = vector.shape_cast %246 : vector<128xf32> to vector<1x128xf32>
    %cst_64 = arith.constant 2.000000e+00 : f32
    %248 = vector.broadcast %cst_64 : f32 to vector<1x128xf32>
    %249 = arith.divf %247, %248 : vector<1x128xf32>
    %250 = vector.broadcast %242 : vector<1x128xf32> to vector<2x128xf32>
    %251 = arith.subf %238, %250 : vector<2x128xf32>
    %cst_65 = arith.constant 9.99999974E-6 : f32
    %252 = vector.broadcast %cst_65 : f32 to vector<1x128xf32>
    %253 = arith.addf %249, %252 : vector<1x128xf32>
    %254 = math.rsqrt %253 : vector<1x128xf32>
    %255 = vector.broadcast %254 : vector<1x128xf32> to vector<2x128xf32>
    %256 = arith.mulf %251, %255 : vector<2x128xf32>
    %257 = vector.extract_strided_slice %152 {offsets = [3, 0], sizes = [1, 128], strides = [1, 1]} : vector<7x128xf32> to vector<1x128xf32>
    %258 = vector.broadcast %257 : vector<1x128xf32> to vector<2x128xf32>
    %259 = arith.mulf %256, %258 : vector<2x128xf32>
    %260 = vector.extract_strided_slice %152 {offsets = [4, 0], sizes = [1, 128], strides = [1, 1]} : vector<7x128xf32> to vector<1x128xf32>
    %261 = vector.broadcast %260 : vector<1x128xf32> to vector<2x128xf32>
    %262 = arith.addf %259, %261 : vector<2x128xf32>
    %c0_66 = arith.constant 0 : index
    %c0_67 = arith.constant 0 : index
    %c0_68 = arith.constant 0 : index
    %263 = vector.load %arg7[%c0_66, %c0_67, %c0_68] : memref<2x128x128xbf16, #tpu.memory_space<vmem>>, vector<1x128x128xbf16>
    %264 = vector.shape_cast %263 : vector<1x128x128xbf16> to vector<128x128xbf16>
    %c1_69 = arith.constant 1 : index
    %c0_70 = arith.constant 0 : index
    %c0_71 = arith.constant 0 : index
    %265 = vector.load %arg7[%c1_69, %c0_70, %c0_71] : memref<2x128x128xbf16, #tpu.memory_space<vmem>>, vector<1x128x128xbf16>
    %266 = vector.shape_cast %265 : vector<1x128x128xbf16> to vector<128x128xbf16>
    %267 = arith.truncf %262 : vector<2x128xf32> to vector<2x128xbf16>
    %cst_72 = arith.constant dense<0.000000e+00> : vector<2x128xf32>
    %268 = tpu.matmul %267, %264, %cst_72 {dimension_numbers = #tpu.dot_dimension_numbers<[1], [0], [0], [1], [0, 0, 1, 1], [], []>} : vector<2x128xbf16>, vector<128x128xbf16>, vector<2x128xf32> -> vector<2x128xf32>
    %269 = vector.extract_strided_slice %152 {offsets = [5, 0], sizes = [1, 128], strides = [1, 1]} : vector<7x128xf32> to vector<1x128xf32>
    %270 = vector.broadcast %269 : vector<1x128xf32> to vector<2x128xf32>
    %271 = arith.addf %268, %270 : vector<2x128xf32>
    %cst_73 = arith.constant 0.000000e+00 : f32
    %272 = vector.broadcast %cst_73 : f32 to vector<2x128xf32>
    %273 = arith.maximumf %271, %272 : vector<2x128xf32>
    %c0_74 = arith.constant 0 : index
    %c0_75 = arith.constant 0 : index
    %274 = vector.load %arg10[%c0_74, %c0_75] : memref<6x384xf32, #tpu.memory_space<vmem>>, vector<6x384xf32>
    %275 = arith.truncf %273 : vector<2x128xf32> to vector<2x128xbf16>
    %c0_76 = arith.constant 0 : index
    %c0_77 = arith.constant 0 : index
    %c0_78 = arith.constant 0 : index
    %276 = vector.load %arg8[%c0_76, %c0_77, %c0_78] : memref<3x128x384xbf16, #tpu.memory_space<vmem>>, vector<1x128x384xbf16>
    %277 = vector.shape_cast %276 : vector<1x128x384xbf16> to vector<128x384xbf16>
    %cst_79 = arith.constant dense<0.000000e+00> : vector<2x384xf32>
    %278 = tpu.matmul %275, %277, %cst_79 {dimension_numbers = #tpu.dot_dimension_numbers<[1], [0], [0], [1], [0, 0, 1, 1], [], []>} : vector<2x128xbf16>, vector<128x384xbf16>, vector<2x384xf32> -> vector<2x384xf32>
    %279 = vector.extract_strided_slice %274 {offsets = [0, 0], sizes = [1, 384], strides = [1, 1]} : vector<6x384xf32> to vector<1x384xf32>
    %280 = vector.broadcast %279 : vector<1x384xf32> to vector<2x384xf32>
    %281 = arith.addf %278, %280 : vector<2x384xf32>
    %c0_80 = arith.constant 0 : index
    %c0_81 = arith.constant 0 : index
    %c0_82 = arith.constant 0 : index
    %282 = vector.load %arg9[%c0_80, %c0_81, %c0_82] : memref<3x128x384xbf16, #tpu.memory_space<vmem>>, vector<1x128x384xbf16>
    %283 = vector.shape_cast %282 : vector<1x128x384xbf16> to vector<128x384xbf16>
    %cst_83 = arith.constant 0.000000e+00 : f32
    %284 = vector.broadcast %cst_83 : f32 to vector<2x128xf32>
    %285 = vector.extract_strided_slice %274 {offsets = [3, 0], sizes = [1, 384], strides = [1, 1]} : vector<6x384xf32> to vector<1x384xf32>
    %286 = arith.truncf %284 : vector<2x128xf32> to vector<2x128xbf16>
    %cst_84 = arith.constant dense<0.000000e+00> : vector<2x384xf32>
    %287 = tpu.matmul %286, %283, %cst_84 {dimension_numbers = #tpu.dot_dimension_numbers<[1], [0], [0], [1], [0, 0, 1, 1], [], []>} : vector<2x128xbf16>, vector<128x384xbf16>, vector<2x384xf32> -> vector<2x384xf32>
    %288 = vector.broadcast %285 : vector<1x384xf32> to vector<2x384xf32>
    %289 = arith.addf %287, %288 : vector<2x384xf32>
    %290 = vector.extract_strided_slice %281 {offsets = [0, 0], sizes = [2, 128], strides = [1, 1]} : vector<2x384xf32> to vector<2x128xf32>
    %291 = vector.extract_strided_slice %289 {offsets = [0, 0], sizes = [2, 128], strides = [1, 1]} : vector<2x384xf32> to vector<2x128xf32>
    %292 = arith.addf %290, %291 : vector<2x128xf32>
    %cst_85 = arith.constant 0.000000e+00 : f32
    %293 = vector.broadcast %cst_85 : f32 to vector<2x128xf32>
    %294 = arith.subf %293, %292 : vector<2x128xf32>
    %295 = math.exp %294 : vector<2x128xf32>
    %cst_86 = arith.constant 1.000000e+00 : f32
    %296 = vector.broadcast %cst_86 : f32 to vector<2x128xf32>
    %297 = arith.addf %296, %295 : vector<2x128xf32>
    %298 = tpu.reciprocal %297 {approx = true} : vector<2x128xf32> -> vector<2x128xf32>
    %299 = vector.extract_strided_slice %281 {offsets = [0, 128], sizes = [2, 128], strides = [1, 1]} : vector<2x384xf32> to vector<2x128xf32>
    %300 = vector.extract_strided_slice %289 {offsets = [0, 128], sizes = [2, 128], strides = [1, 1]} : vector<2x384xf32> to vector<2x128xf32>
    %301 = arith.addf %299, %300 : vector<2x128xf32>
    %cst_87 = arith.constant 0.000000e+00 : f32
    %302 = vector.broadcast %cst_87 : f32 to vector<2x128xf32>
    %303 = arith.subf %302, %301 : vector<2x128xf32>
    %304 = math.exp %303 : vector<2x128xf32>
    %cst_88 = arith.constant 1.000000e+00 : f32
    %305 = vector.broadcast %cst_88 : f32 to vector<2x128xf32>
    %306 = arith.addf %305, %304 : vector<2x128xf32>
    %307 = tpu.reciprocal %306 {approx = true} : vector<2x128xf32> -> vector<2x128xf32>
    %308 = vector.extract_strided_slice %281 {offsets = [0, 256], sizes = [2, 128], strides = [1, 1]} : vector<2x384xf32> to vector<2x128xf32>
    %309 = vector.extract_strided_slice %289 {offsets = [0, 256], sizes = [2, 128], strides = [1, 1]} : vector<2x384xf32> to vector<2x128xf32>
    %310 = arith.mulf %298, %309 : vector<2x128xf32>
    %311 = arith.addf %308, %310 : vector<2x128xf32>
    %312 = math.tanh %311 : vector<2x128xf32>
    %cst_89 = arith.constant 1.000000e+00 : f32
    %313 = vector.broadcast %cst_89 : f32 to vector<2x128xf32>
    %314 = arith.subf %313, %307 : vector<2x128xf32>
    %315 = arith.mulf %314, %312 : vector<2x128xf32>
    %316 = arith.mulf %307, %284 : vector<2x128xf32>
    %317 = arith.addf %315, %316 : vector<2x128xf32>
    %c0_90 = arith.constant 0 : index
    %c0_91 = arith.constant 0 : index
    %318 = vector.load %arg13[%c0_90, %c0_91] : memref<30x128xf32, #tpu.memory_space<vmem>>, vector<2x128xf32>
    tpu.vector_store %arg13[%c0_90, %c0_91], %317 {strides = array<i32>} : memref<30x128xf32, #tpu.memory_space<vmem>>, vector<2x128xf32>,
    %319 = vector.extract_strided_slice %274 {offsets = [3, 0], sizes = [1, 384], strides = [1, 1]} : vector<6x384xf32> to vector<1x384xf32>
    %320 = arith.truncf %317 : vector<2x128xf32> to vector<2x128xbf16>
    %cst_92 = arith.constant dense<0.000000e+00> : vector<2x384xf32>
    %321 = tpu.matmul %320, %283, %cst_92 {dimension_numbers = #tpu.dot_dimension_numbers<[1], [0], [0], [1], [0, 0, 1, 1], [], []>} : vector<2x128xbf16>, vector<128x384xbf16>, vector<2x384xf32> -> vector<2x384xf32>
    %322 = vector.broadcast %319 : vector<1x384xf32> to vector<2x384xf32>
    %323 = arith.addf %321, %322 : vector<2x384xf32>
    %324 = vector.extract_strided_slice %281 {offsets = [0, 0], sizes = [2, 128], strides = [1, 1]} : vector<2x384xf32> to vector<2x128xf32>
    %325 = vector.extract_strided_slice %323 {offsets = [0, 0], sizes = [2, 128], strides = [1, 1]} : vector<2x384xf32> to vector<2x128xf32>
    %326 = arith.addf %324, %325 : vector<2x128xf32>
    %cst_93 = arith.constant 0.000000e+00 : f32
    %327 = vector.broadcast %cst_93 : f32 to vector<2x128xf32>
    %328 = arith.subf %327, %326 : vector<2x128xf32>
    %329 = math.exp %328 : vector<2x128xf32>
    %cst_94 = arith.constant 1.000000e+00 : f32
    %330 = vector.broadcast %cst_94 : f32 to vector<2x128xf32>
    %331 = arith.addf %330, %329 : vector<2x128xf32>
    %332 = tpu.reciprocal %331 {approx = true} : vector<2x128xf32> -> vector<2x128xf32>
    %333 = vector.extract_strided_slice %281 {offsets = [0, 128], sizes = [2, 128], strides = [1, 1]} : vector<2x384xf32> to vector<2x128xf32>
    %334 = vector.extract_strided_slice %323 {offsets = [0, 128], sizes = [2, 128], strides = [1, 1]} : vector<2x384xf32> to vector<2x128xf32>
    %335 = arith.addf %333, %334 : vector<2x128xf32>
    %cst_95 = arith.constant 0.000000e+00 : f32
    %336 = vector.broadcast %cst_95 : f32 to vector<2x128xf32>
    %337 = arith.subf %336, %335 : vector<2x128xf32>
    %338 = math.exp %337 : vector<2x128xf32>
    %cst_96 = arith.constant 1.000000e+00 : f32
    %339 = vector.broadcast %cst_96 : f32 to vector<2x128xf32>
    %340 = arith.addf %339, %338 : vector<2x128xf32>
    %341 = tpu.reciprocal %340 {approx = true} : vector<2x128xf32> -> vector<2x128xf32>
    %342 = vector.extract_strided_slice %281 {offsets = [0, 256], sizes = [2, 128], strides = [1, 1]} : vector<2x384xf32> to vector<2x128xf32>
    %343 = vector.extract_strided_slice %323 {offsets = [0, 256], sizes = [2, 128], strides = [1, 1]} : vector<2x384xf32> to vector<2x128xf32>
    %344 = arith.mulf %332, %343 : vector<2x128xf32>
    %345 = arith.addf %342, %344 : vector<2x128xf32>
    %346 = math.tanh %345 : vector<2x128xf32>
    %cst_97 = arith.constant 1.000000e+00 : f32
    %347 = vector.broadcast %cst_97 : f32 to vector<2x128xf32>
    %348 = arith.subf %347, %341 : vector<2x128xf32>
    %349 = arith.mulf %348, %346 : vector<2x128xf32>
    %350 = arith.mulf %341, %317 : vector<2x128xf32>
    %351 = arith.addf %349, %350 : vector<2x128xf32>
    %c2_98 = arith.constant 2 : index
    %c0_99 = arith.constant 0 : index
    %352 = vector.load %arg13[%c2_98, %c0_99] : memref<30x128xf32, #tpu.memory_space<vmem>>, vector<2x128xf32>
    tpu.vector_store %arg13[%c2_98, %c0_99], %351 {strides = array<i32>} : memref<30x128xf32, #tpu.memory_space<vmem>>, vector<2x128xf32>,
    %353 = vector.extract_strided_slice %274 {offsets = [3, 0], sizes = [1, 384], strides = [1, 1]} : vector<6x384xf32> to vector<1x384xf32>
    %354 = arith.truncf %351 : vector<2x128xf32> to vector<2x128xbf16>
    %cst_100 = arith.constant dense<0.000000e+00> : vector<2x384xf32>
    %355 = tpu.matmul %354, %283, %cst_100 {dimension_numbers = #tpu.dot_dimension_numbers<[1], [0], [0], [1], [0, 0, 1, 1], [], []>} : vector<2x128xbf16>, vector<128x384xbf16>, vector<2x384xf32> -> vector<2x384xf32>
    %356 = vector.broadcast %353 : vector<1x384xf32> to vector<2x384xf32>
    %357 = arith.addf %355, %356 : vector<2x384xf32>
    %358 = vector.extract_strided_slice %281 {offsets = [0, 0], sizes = [2, 128], strides = [1, 1]} : vector<2x384xf32> to vector<2x128xf32>
    %359 = vector.extract_strided_slice %357 {offsets = [0, 0], sizes = [2, 128], strides = [1, 1]} : vector<2x384xf32> to vector<2x128xf32>
    %360 = arith.addf %358, %359 : vector<2x128xf32>
    %cst_101 = arith.constant 0.000000e+00 : f32
    %361 = vector.broadcast %cst_101 : f32 to vector<2x128xf32>
    %362 = arith.subf %361, %360 : vector<2x128xf32>
    %363 = math.exp %362 : vector<2x128xf32>
    %cst_102 = arith.constant 1.000000e+00 : f32
    %364 = vector.broadcast %cst_102 : f32 to vector<2x128xf32>
    %365 = arith.addf %364, %363 : vector<2x128xf32>
    %366 = tpu.reciprocal %365 {approx = true} : vector<2x128xf32> -> vector<2x128xf32>
    %367 = vector.extract_strided_slice %281 {offsets = [0, 128], sizes = [2, 128], strides = [1, 1]} : vector<2x384xf32> to vector<2x128xf32>
    %368 = vector.extract_strided_slice %357 {offsets = [0, 128], sizes = [2, 128], strides = [1, 1]} : vector<2x384xf32> to vector<2x128xf32>
    %369 = arith.addf %367, %368 : vector<2x128xf32>
    %cst_103 = arith.constant 0.000000e+00 : f32
    %370 = vector.broadcast %cst_103 : f32 to vector<2x128xf32>
    %371 = arith.subf %370, %369 : vector<2x128xf32>
    %372 = math.exp %371 : vector<2x128xf32>
    %cst_104 = arith.constant 1.000000e+00 : f32
    %373 = vector.broadcast %cst_104 : f32 to vector<2x128xf32>
    %374 = arith.addf %373, %372 : vector<2x128xf32>
    %375 = tpu.reciprocal %374 {approx = true} : vector<2x128xf32> -> vector<2x128xf32>
    %376 = vector.extract_strided_slice %281 {offsets = [0, 256], sizes = [2, 128], strides = [1, 1]} : vector<2x384xf32> to vector<2x128xf32>
    %377 = vector.extract_strided_slice %357 {offsets = [0, 256], sizes = [2, 128], strides = [1, 1]} : vector<2x384xf32> to vector<2x128xf32>
    %378 = arith.mulf %366, %377 : vector<2x128xf32>
    %379 = arith.addf %376, %378 : vector<2x128xf32>
    %380 = math.tanh %379 : vector<2x128xf32>
    %cst_105 = arith.constant 1.000000e+00 : f32
    %381 = vector.broadcast %cst_105 : f32 to vector<2x128xf32>
    %382 = arith.subf %381, %375 : vector<2x128xf32>
    %383 = arith.mulf %382, %380 : vector<2x128xf32>
    %384 = arith.mulf %375, %351 : vector<2x128xf32>
    %385 = arith.addf %383, %384 : vector<2x128xf32>
    %c4_106 = arith.constant 4 : index
    %c0_107 = arith.constant 0 : index
    %386 = vector.load %arg13[%c4_106, %c0_107] : memref<30x128xf32, #tpu.memory_space<vmem>>, vector<2x128xf32>
    tpu.vector_store %arg13[%c4_106, %c0_107], %385 {strides = array<i32>} : memref<30x128xf32, #tpu.memory_space<vmem>>, vector<2x128xf32>,
    %387 = vector.extract_strided_slice %274 {offsets = [3, 0], sizes = [1, 384], strides = [1, 1]} : vector<6x384xf32> to vector<1x384xf32>
    %388 = arith.truncf %385 : vector<2x128xf32> to vector<2x128xbf16>
    %cst_108 = arith.constant dense<0.000000e+00> : vector<2x384xf32>
    %389 = tpu.matmul %388, %283, %cst_108 {dimension_numbers = #tpu.dot_dimension_numbers<[1], [0], [0], [1], [0, 0, 1, 1], [], []>} : vector<2x128xbf16>, vector<128x384xbf16>, vector<2x384xf32> -> vector<2x384xf32>
    %390 = vector.broadcast %387 : vector<1x384xf32> to vector<2x384xf32>
    %391 = arith.addf %389, %390 : vector<2x384xf32>
    %392 = vector.extract_strided_slice %281 {offsets = [0, 0], sizes = [2, 128], strides = [1, 1]} : vector<2x384xf32> to vector<2x128xf32>
    %393 = vector.extract_strided_slice %391 {offsets = [0, 0], sizes = [2, 128], strides = [1, 1]} : vector<2x384xf32> to vector<2x128xf32>
    %394 = arith.addf %392, %393 : vector<2x128xf32>
    %cst_109 = arith.constant 0.000000e+00 : f32
    %395 = vector.broadcast %cst_109 : f32 to vector<2x128xf32>
    %396 = arith.subf %395, %394 : vector<2x128xf32>
    %397 = math.exp %396 : vector<2x128xf32>
    %cst_110 = arith.constant 1.000000e+00 : f32
    %398 = vector.broadcast %cst_110 : f32 to vector<2x128xf32>
    %399 = arith.addf %398, %397 : vector<2x128xf32>
    %400 = tpu.reciprocal %399 {approx = true} : vector<2x128xf32> -> vector<2x128xf32>
    %401 = vector.extract_strided_slice %281 {offsets = [0, 128], sizes = [2, 128], strides = [1, 1]} : vector<2x384xf32> to vector<2x128xf32>
    %402 = vector.extract_strided_slice %391 {offsets = [0, 128], sizes = [2, 128], strides = [1, 1]} : vector<2x384xf32> to vector<2x128xf32>
    %403 = arith.addf %401, %402 : vector<2x128xf32>
    %cst_111 = arith.constant 0.000000e+00 : f32
    %404 = vector.broadcast %cst_111 : f32 to vector<2x128xf32>
    %405 = arith.subf %404, %403 : vector<2x128xf32>
    %406 = math.exp %405 : vector<2x128xf32>
    %cst_112 = arith.constant 1.000000e+00 : f32
    %407 = vector.broadcast %cst_112 : f32 to vector<2x128xf32>
    %408 = arith.addf %407, %406 : vector<2x128xf32>
    %409 = tpu.reciprocal %408 {approx = true} : vector<2x128xf32> -> vector<2x128xf32>
    %410 = vector.extract_strided_slice %281 {offsets = [0, 256], sizes = [2, 128], strides = [1, 1]} : vector<2x384xf32> to vector<2x128xf32>
    %411 = vector.extract_strided_slice %391 {offsets = [0, 256], sizes = [2, 128], strides = [1, 1]} : vector<2x384xf32> to vector<2x128xf32>
    %412 = arith.mulf %400, %411 : vector<2x128xf32>
    %413 = arith.addf %410, %412 : vector<2x128xf32>
    %414 = math.tanh %413 : vector<2x128xf32>
    %cst_113 = arith.constant 1.000000e+00 : f32
    %415 = vector.broadcast %cst_113 : f32 to vector<2x128xf32>
    %416 = arith.subf %415, %409 : vector<2x128xf32>
    %417 = arith.mulf %416, %414 : vector<2x128xf32>
    %418 = arith.mulf %409, %385 : vector<2x128xf32>
    %419 = arith.addf %417, %418 : vector<2x128xf32>
    %c6_114 = arith.constant 6 : index
    %c0_115 = arith.constant 0 : index
    %420 = vector.load %arg13[%c6_114, %c0_115] : memref<30x128xf32, #tpu.memory_space<vmem>>, vector<2x128xf32>
    tpu.vector_store %arg13[%c6_114, %c0_115], %419 {strides = array<i32>} : memref<30x128xf32, #tpu.memory_space<vmem>>, vector<2x128xf32>,
    %421 = vector.extract_strided_slice %274 {offsets = [3, 0], sizes = [1, 384], strides = [1, 1]} : vector<6x384xf32> to vector<1x384xf32>
    %422 = arith.truncf %419 : vector<2x128xf32> to vector<2x128xbf16>
    %cst_116 = arith.constant dense<0.000000e+00> : vector<2x384xf32>
    %423 = tpu.matmul %422, %283, %cst_116 {dimension_numbers = #tpu.dot_dimension_numbers<[1], [0], [0], [1], [0, 0, 1, 1], [], []>} : vector<2x128xbf16>, vector<128x384xbf16>, vector<2x384xf32> -> vector<2x384xf32>
    %424 = vector.broadcast %421 : vector<1x384xf32> to vector<2x384xf32>
    %425 = arith.addf %423, %424 : vector<2x384xf32>
    %426 = vector.extract_strided_slice %281 {offsets = [0, 0], sizes = [2, 128], strides = [1, 1]} : vector<2x384xf32> to vector<2x128xf32>
    %427 = vector.extract_strided_slice %425 {offsets = [0, 0], sizes = [2, 128], strides = [1, 1]} : vector<2x384xf32> to vector<2x128xf32>
    %428 = arith.addf %426, %427 : vector<2x128xf32>
    %cst_117 = arith.constant 0.000000e+00 : f32
    %429 = vector.broadcast %cst_117 : f32 to vector<2x128xf32>
    %430 = arith.subf %429, %428 : vector<2x128xf32>
    %431 = math.exp %430 : vector<2x128xf32>
    %cst_118 = arith.constant 1.000000e+00 : f32
    %432 = vector.broadcast %cst_118 : f32 to vector<2x128xf32>
    %433 = arith.addf %432, %431 : vector<2x128xf32>
    %434 = tpu.reciprocal %433 {approx = true} : vector<2x128xf32> -> vector<2x128xf32>
    %435 = vector.extract_strided_slice %281 {offsets = [0, 128], sizes = [2, 128], strides = [1, 1]} : vector<2x384xf32> to vector<2x128xf32>
    %436 = vector.extract_strided_slice %425 {offsets = [0, 128], sizes = [2, 128], strides = [1, 1]} : vector<2x384xf32> to vector<2x128xf32>
    %437 = arith.addf %435, %436 : vector<2x128xf32>
    %cst_119 = arith.constant 0.000000e+00 : f32
    %438 = vector.broadcast %cst_119 : f32 to vector<2x128xf32>
    %439 = arith.subf %438, %437 : vector<2x128xf32>
    %440 = math.exp %439 : vector<2x128xf32>
    %cst_120 = arith.constant 1.000000e+00 : f32
    %441 = vector.broadcast %cst_120 : f32 to vector<2x128xf32>
    %442 = arith.addf %441, %440 : vector<2x128xf32>
    %443 = tpu.reciprocal %442 {approx = true} : vector<2x128xf32> -> vector<2x128xf32>
    %444 = vector.extract_strided_slice %281 {offsets = [0, 256], sizes = [2, 128], strides = [1, 1]} : vector<2x384xf32> to vector<2x128xf32>
    %445 = vector.extract_strided_slice %425 {offsets = [0, 256], sizes = [2, 128], strides = [1, 1]} : vector<2x384xf32> to vector<2x128xf32>
    %446 = arith.mulf %434, %445 : vector<2x128xf32>
    %447 = arith.addf %444, %446 : vector<2x128xf32>
    %448 = math.tanh %447 : vector<2x128xf32>
    %cst_121 = arith.constant 1.000000e+00 : f32
    %449 = vector.broadcast %cst_121 : f32 to vector<2x128xf32>
    %450 = arith.subf %449, %443 : vector<2x128xf32>
    %451 = arith.mulf %450, %448 : vector<2x128xf32>
    %452 = arith.mulf %443, %419 : vector<2x128xf32>
    %453 = arith.addf %451, %452 : vector<2x128xf32>
    %c8_122 = arith.constant 8 : index
    %c0_123 = arith.constant 0 : index
    %454 = vector.load %arg13[%c8_122, %c0_123] : memref<30x128xf32, #tpu.memory_space<vmem>>, vector<2x128xf32>
    tpu.vector_store %arg13[%c8_122, %c0_123], %453 {strides = array<i32>} : memref<30x128xf32, #tpu.memory_space<vmem>>, vector<2x128xf32>,
    %455 = vector.extract_strided_slice %274 {offsets = [3, 0], sizes = [1, 384], strides = [1, 1]} : vector<6x384xf32> to vector<1x384xf32>
    %456 = arith.truncf %453 : vector<2x128xf32> to vector<2x128xbf16>
    %cst_124 = arith.constant dense<0.000000e+00> : vector<2x384xf32>
    %457 = tpu.matmul %456, %283, %cst_124 {dimension_numbers = #tpu.dot_dimension_numbers<[1], [0], [0], [1], [0, 0, 1, 1], [], []>} : vector<2x128xbf16>, vector<128x384xbf16>, vector<2x384xf32> -> vector<2x384xf32>
    %458 = vector.broadcast %455 : vector<1x384xf32> to vector<2x384xf32>
    %459 = arith.addf %457, %458 : vector<2x384xf32>
    %460 = vector.extract_strided_slice %281 {offsets = [0, 0], sizes = [2, 128], strides = [1, 1]} : vector<2x384xf32> to vector<2x128xf32>
    %461 = vector.extract_strided_slice %459 {offsets = [0, 0], sizes = [2, 128], strides = [1, 1]} : vector<2x384xf32> to vector<2x128xf32>
    %462 = arith.addf %460, %461 : vector<2x128xf32>
    %cst_125 = arith.constant 0.000000e+00 : f32
    %463 = vector.broadcast %cst_125 : f32 to vector<2x128xf32>
    %464 = arith.subf %463, %462 : vector<2x128xf32>
    %465 = math.exp %464 : vector<2x128xf32>
    %cst_126 = arith.constant 1.000000e+00 : f32
    %466 = vector.broadcast %cst_126 : f32 to vector<2x128xf32>
    %467 = arith.addf %466, %465 : vector<2x128xf32>
    %468 = tpu.reciprocal %467 {approx = true} : vector<2x128xf32> -> vector<2x128xf32>
    %469 = vector.extract_strided_slice %281 {offsets = [0, 128], sizes = [2, 128], strides = [1, 1]} : vector<2x384xf32> to vector<2x128xf32>
    %470 = vector.extract_strided_slice %459 {offsets = [0, 128], sizes = [2, 128], strides = [1, 1]} : vector<2x384xf32> to vector<2x128xf32>
    %471 = arith.addf %469, %470 : vector<2x128xf32>
    %cst_127 = arith.constant 0.000000e+00 : f32
    %472 = vector.broadcast %cst_127 : f32 to vector<2x128xf32>
    %473 = arith.subf %472, %471 : vector<2x128xf32>
    %474 = math.exp %473 : vector<2x128xf32>
    %cst_128 = arith.constant 1.000000e+00 : f32
    %475 = vector.broadcast %cst_128 : f32 to vector<2x128xf32>
    %476 = arith.addf %475, %474 : vector<2x128xf32>
    %477 = tpu.reciprocal %476 {approx = true} : vector<2x128xf32> -> vector<2x128xf32>
    %478 = vector.extract_strided_slice %281 {offsets = [0, 256], sizes = [2, 128], strides = [1, 1]} : vector<2x384xf32> to vector<2x128xf32>
    %479 = vector.extract_strided_slice %459 {offsets = [0, 256], sizes = [2, 128], strides = [1, 1]} : vector<2x384xf32> to vector<2x128xf32>
    %480 = arith.mulf %468, %479 : vector<2x128xf32>
    %481 = arith.addf %478, %480 : vector<2x128xf32>
    %482 = math.tanh %481 : vector<2x128xf32>
    %cst_129 = arith.constant 1.000000e+00 : f32
    %483 = vector.broadcast %cst_129 : f32 to vector<2x128xf32>
    %484 = arith.subf %483, %477 : vector<2x128xf32>
    %485 = arith.mulf %484, %482 : vector<2x128xf32>
    %486 = arith.mulf %477, %453 : vector<2x128xf32>
    %487 = arith.addf %485, %486 : vector<2x128xf32>
    %c10 = arith.constant 10 : index
    %c0_130 = arith.constant 0 : index
    %488 = vector.load %arg13[%c10, %c0_130] : memref<30x128xf32, #tpu.memory_space<vmem>>, vector<2x128xf32>
    tpu.vector_store %arg13[%c10, %c0_130], %487 {strides = array<i32>} : memref<30x128xf32, #tpu.memory_space<vmem>>, vector<2x128xf32>,
    %489 = vector.extract_strided_slice %274 {offsets = [3, 0], sizes = [1, 384], strides = [1, 1]} : vector<6x384xf32> to vector<1x384xf32>
    %490 = arith.truncf %487 : vector<2x128xf32> to vector<2x128xbf16>
    %cst_131 = arith.constant dense<0.000000e+00> : vector<2x384xf32>
    %491 = tpu.matmul %490, %283, %cst_131 {dimension_numbers = #tpu.dot_dimension_numbers<[1], [0], [0], [1], [0, 0, 1, 1], [], []>} : vector<2x128xbf16>, vector<128x384xbf16>, vector<2x384xf32> -> vector<2x384xf32>
    %492 = vector.broadcast %489 : vector<1x384xf32> to vector<2x384xf32>
    %493 = arith.addf %491, %492 : vector<2x384xf32>
    %494 = vector.extract_strided_slice %281 {offsets = [0, 0], sizes = [2, 128], strides = [1, 1]} : vector<2x384xf32> to vector<2x128xf32>
    %495 = vector.extract_strided_slice %493 {offsets = [0, 0], sizes = [2, 128], strides = [1, 1]} : vector<2x384xf32> to vector<2x128xf32>
    %496 = arith.addf %494, %495 : vector<2x128xf32>
    %cst_132 = arith.constant 0.000000e+00 : f32
    %497 = vector.broadcast %cst_132 : f32 to vector<2x128xf32>
    %498 = arith.subf %497, %496 : vector<2x128xf32>
    %499 = math.exp %498 : vector<2x128xf32>
    %cst_133 = arith.constant 1.000000e+00 : f32
    %500 = vector.broadcast %cst_133 : f32 to vector<2x128xf32>
    %501 = arith.addf %500, %499 : vector<2x128xf32>
    %502 = tpu.reciprocal %501 {approx = true} : vector<2x128xf32> -> vector<2x128xf32>
    %503 = vector.extract_strided_slice %281 {offsets = [0, 128], sizes = [2, 128], strides = [1, 1]} : vector<2x384xf32> to vector<2x128xf32>
    %504 = vector.extract_strided_slice %493 {offsets = [0, 128], sizes = [2, 128], strides = [1, 1]} : vector<2x384xf32> to vector<2x128xf32>
    %505 = arith.addf %503, %504 : vector<2x128xf32>
    %cst_134 = arith.constant 0.000000e+00 : f32
    %506 = vector.broadcast %cst_134 : f32 to vector<2x128xf32>
    %507 = arith.subf %506, %505 : vector<2x128xf32>
    %508 = math.exp %507 : vector<2x128xf32>
    %cst_135 = arith.constant 1.000000e+00 : f32
    %509 = vector.broadcast %cst_135 : f32 to vector<2x128xf32>
    %510 = arith.addf %509, %508 : vector<2x128xf32>
    %511 = tpu.reciprocal %510 {approx = true} : vector<2x128xf32> -> vector<2x128xf32>
    %512 = vector.extract_strided_slice %281 {offsets = [0, 256], sizes = [2, 128], strides = [1, 1]} : vector<2x384xf32> to vector<2x128xf32>
    %513 = vector.extract_strided_slice %493 {offsets = [0, 256], sizes = [2, 128], strides = [1, 1]} : vector<2x384xf32> to vector<2x128xf32>
    %514 = arith.mulf %502, %513 : vector<2x128xf32>
    %515 = arith.addf %512, %514 : vector<2x128xf32>
    %516 = math.tanh %515 : vector<2x128xf32>
    %cst_136 = arith.constant 1.000000e+00 : f32
    %517 = vector.broadcast %cst_136 : f32 to vector<2x128xf32>
    %518 = arith.subf %517, %511 : vector<2x128xf32>
    %519 = arith.mulf %518, %516 : vector<2x128xf32>
    %520 = arith.mulf %511, %487 : vector<2x128xf32>
    %521 = arith.addf %519, %520 : vector<2x128xf32>
    %c12 = arith.constant 12 : index
    %c0_137 = arith.constant 0 : index
    %522 = vector.load %arg13[%c12, %c0_137] : memref<30x128xf32, #tpu.memory_space<vmem>>, vector<2x128xf32>
    tpu.vector_store %arg13[%c12, %c0_137], %521 {strides = array<i32>} : memref<30x128xf32, #tpu.memory_space<vmem>>, vector<2x128xf32>,
    %523 = vector.extract_strided_slice %274 {offsets = [3, 0], sizes = [1, 384], strides = [1, 1]} : vector<6x384xf32> to vector<1x384xf32>
    %524 = arith.truncf %521 : vector<2x128xf32> to vector<2x128xbf16>
    %cst_138 = arith.constant dense<0.000000e+00> : vector<2x384xf32>
    %525 = tpu.matmul %524, %283, %cst_138 {dimension_numbers = #tpu.dot_dimension_numbers<[1], [0], [0], [1], [0, 0, 1, 1], [], []>} : vector<2x128xbf16>, vector<128x384xbf16>, vector<2x384xf32> -> vector<2x384xf32>
    %526 = vector.broadcast %523 : vector<1x384xf32> to vector<2x384xf32>
    %527 = arith.addf %525, %526 : vector<2x384xf32>
    %528 = vector.extract_strided_slice %281 {offsets = [0, 0], sizes = [2, 128], strides = [1, 1]} : vector<2x384xf32> to vector<2x128xf32>
    %529 = vector.extract_strided_slice %527 {offsets = [0, 0], sizes = [2, 128], strides = [1, 1]} : vector<2x384xf32> to vector<2x128xf32>
    %530 = arith.addf %528, %529 : vector<2x128xf32>
    %cst_139 = arith.constant 0.000000e+00 : f32
    %531 = vector.broadcast %cst_139 : f32 to vector<2x128xf32>
    %532 = arith.subf %531, %530 : vector<2x128xf32>
    %533 = math.exp %532 : vector<2x128xf32>
    %cst_140 = arith.constant 1.000000e+00 : f32
    %534 = vector.broadcast %cst_140 : f32 to vector<2x128xf32>
    %535 = arith.addf %534, %533 : vector<2x128xf32>
    %536 = tpu.reciprocal %535 {approx = true} : vector<2x128xf32> -> vector<2x128xf32>
    %537 = vector.extract_strided_slice %281 {offsets = [0, 128], sizes = [2, 128], strides = [1, 1]} : vector<2x384xf32> to vector<2x128xf32>
    %538 = vector.extract_strided_slice %527 {offsets = [0, 128], sizes = [2, 128], strides = [1, 1]} : vector<2x384xf32> to vector<2x128xf32>
    %539 = arith.addf %537, %538 : vector<2x128xf32>
    %cst_141 = arith.constant 0.000000e+00 : f32
    %540 = vector.broadcast %cst_141 : f32 to vector<2x128xf32>
    %541 = arith.subf %540, %539 : vector<2x128xf32>
    %542 = math.exp %541 : vector<2x128xf32>
    %cst_142 = arith.constant 1.000000e+00 : f32
    %543 = vector.broadcast %cst_142 : f32 to vector<2x128xf32>
    %544 = arith.addf %543, %542 : vector<2x128xf32>
    %545 = tpu.reciprocal %544 {approx = true} : vector<2x128xf32> -> vector<2x128xf32>
    %546 = vector.extract_strided_slice %281 {offsets = [0, 256], sizes = [2, 128], strides = [1, 1]} : vector<2x384xf32> to vector<2x128xf32>
    %547 = vector.extract_strided_slice %527 {offsets = [0, 256], sizes = [2, 128], strides = [1, 1]} : vector<2x384xf32> to vector<2x128xf32>
    %548 = arith.mulf %536, %547 : vector<2x128xf32>
    %549 = arith.addf %546, %548 : vector<2x128xf32>
    %550 = math.tanh %549 : vector<2x128xf32>
    %cst_143 = arith.constant 1.000000e+00 : f32
    %551 = vector.broadcast %cst_143 : f32 to vector<2x128xf32>
    %552 = arith.subf %551, %545 : vector<2x128xf32>
    %553 = arith.mulf %552, %550 : vector<2x128xf32>
    %554 = arith.mulf %545, %521 : vector<2x128xf32>
    %555 = arith.addf %553, %554 : vector<2x128xf32>
    %c14 = arith.constant 14 : index
    %c0_144 = arith.constant 0 : index
    %556 = vector.load %arg13[%c14, %c0_144] : memref<30x128xf32, #tpu.memory_space<vmem>>, vector<2x128xf32>
    tpu.vector_store %arg13[%c14, %c0_144], %555 {strides = array<i32>} : memref<30x128xf32, #tpu.memory_space<vmem>>, vector<2x128xf32>,
    %557 = vector.extract_strided_slice %274 {offsets = [3, 0], sizes = [1, 384], strides = [1, 1]} : vector<6x384xf32> to vector<1x384xf32>
    %558 = arith.truncf %555 : vector<2x128xf32> to vector<2x128xbf16>
    %cst_145 = arith.constant dense<0.000000e+00> : vector<2x384xf32>
    %559 = tpu.matmul %558, %283, %cst_145 {dimension_numbers = #tpu.dot_dimension_numbers<[1], [0], [0], [1], [0, 0, 1, 1], [], []>} : vector<2x128xbf16>, vector<128x384xbf16>, vector<2x384xf32> -> vector<2x384xf32>
    %560 = vector.broadcast %557 : vector<1x384xf32> to vector<2x384xf32>
    %561 = arith.addf %559, %560 : vector<2x384xf32>
    %562 = vector.extract_strided_slice %281 {offsets = [0, 0], sizes = [2, 128], strides = [1, 1]} : vector<2x384xf32> to vector<2x128xf32>
    %563 = vector.extract_strided_slice %561 {offsets = [0, 0], sizes = [2, 128], strides = [1, 1]} : vector<2x384xf32> to vector<2x128xf32>
    %564 = arith.addf %562, %563 : vector<2x128xf32>
    %cst_146 = arith.constant 0.000000e+00 : f32
    %565 = vector.broadcast %cst_146 : f32 to vector<2x128xf32>
    %566 = arith.subf %565, %564 : vector<2x128xf32>
    %567 = math.exp %566 : vector<2x128xf32>
    %cst_147 = arith.constant 1.000000e+00 : f32
    %568 = vector.broadcast %cst_147 : f32 to vector<2x128xf32>
    %569 = arith.addf %568, %567 : vector<2x128xf32>
    %570 = tpu.reciprocal %569 {approx = true} : vector<2x128xf32> -> vector<2x128xf32>
    %571 = vector.extract_strided_slice %281 {offsets = [0, 128], sizes = [2, 128], strides = [1, 1]} : vector<2x384xf32> to vector<2x128xf32>
    %572 = vector.extract_strided_slice %561 {offsets = [0, 128], sizes = [2, 128], strides = [1, 1]} : vector<2x384xf32> to vector<2x128xf32>
    %573 = arith.addf %571, %572 : vector<2x128xf32>
    %cst_148 = arith.constant 0.000000e+00 : f32
    %574 = vector.broadcast %cst_148 : f32 to vector<2x128xf32>
    %575 = arith.subf %574, %573 : vector<2x128xf32>
    %576 = math.exp %575 : vector<2x128xf32>
    %cst_149 = arith.constant 1.000000e+00 : f32
    %577 = vector.broadcast %cst_149 : f32 to vector<2x128xf32>
    %578 = arith.addf %577, %576 : vector<2x128xf32>
    %579 = tpu.reciprocal %578 {approx = true} : vector<2x128xf32> -> vector<2x128xf32>
    %580 = vector.extract_strided_slice %281 {offsets = [0, 256], sizes = [2, 128], strides = [1, 1]} : vector<2x384xf32> to vector<2x128xf32>
    %581 = vector.extract_strided_slice %561 {offsets = [0, 256], sizes = [2, 128], strides = [1, 1]} : vector<2x384xf32> to vector<2x128xf32>
    %582 = arith.mulf %570, %581 : vector<2x128xf32>
    %583 = arith.addf %580, %582 : vector<2x128xf32>
    %584 = math.tanh %583 : vector<2x128xf32>
    %cst_150 = arith.constant 1.000000e+00 : f32
    %585 = vector.broadcast %cst_150 : f32 to vector<2x128xf32>
    %586 = arith.subf %585, %579 : vector<2x128xf32>
    %587 = arith.mulf %586, %584 : vector<2x128xf32>
    %588 = arith.mulf %579, %555 : vector<2x128xf32>
    %589 = arith.addf %587, %588 : vector<2x128xf32>
    %c16 = arith.constant 16 : index
    %c0_151 = arith.constant 0 : index
    %590 = vector.load %arg13[%c16, %c0_151] : memref<30x128xf32, #tpu.memory_space<vmem>>, vector<2x128xf32>
    tpu.vector_store %arg13[%c16, %c0_151], %589 {strides = array<i32>} : memref<30x128xf32, #tpu.memory_space<vmem>>, vector<2x128xf32>,
    %591 = vector.extract_strided_slice %274 {offsets = [3, 0], sizes = [1, 384], strides = [1, 1]} : vector<6x384xf32> to vector<1x384xf32>
    %592 = arith.truncf %589 : vector<2x128xf32> to vector<2x128xbf16>
    %cst_152 = arith.constant dense<0.000000e+00> : vector<2x384xf32>
    %593 = tpu.matmul %592, %283, %cst_152 {dimension_numbers = #tpu.dot_dimension_numbers<[1], [0], [0], [1], [0, 0, 1, 1], [], []>} : vector<2x128xbf16>, vector<128x384xbf16>, vector<2x384xf32> -> vector<2x384xf32>
    %594 = vector.broadcast %591 : vector<1x384xf32> to vector<2x384xf32>
    %595 = arith.addf %593, %594 : vector<2x384xf32>
    %596 = vector.extract_strided_slice %281 {offsets = [0, 0], sizes = [2, 128], strides = [1, 1]} : vector<2x384xf32> to vector<2x128xf32>
    %597 = vector.extract_strided_slice %595 {offsets = [0, 0], sizes = [2, 128], strides = [1, 1]} : vector<2x384xf32> to vector<2x128xf32>
    %598 = arith.addf %596, %597 : vector<2x128xf32>
    %cst_153 = arith.constant 0.000000e+00 : f32
    %599 = vector.broadcast %cst_153 : f32 to vector<2x128xf32>
    %600 = arith.subf %599, %598 : vector<2x128xf32>
    %601 = math.exp %600 : vector<2x128xf32>
    %cst_154 = arith.constant 1.000000e+00 : f32
    %602 = vector.broadcast %cst_154 : f32 to vector<2x128xf32>
    %603 = arith.addf %602, %601 : vector<2x128xf32>
    %604 = tpu.reciprocal %603 {approx = true} : vector<2x128xf32> -> vector<2x128xf32>
    %605 = vector.extract_strided_slice %281 {offsets = [0, 128], sizes = [2, 128], strides = [1, 1]} : vector<2x384xf32> to vector<2x128xf32>
    %606 = vector.extract_strided_slice %595 {offsets = [0, 128], sizes = [2, 128], strides = [1, 1]} : vector<2x384xf32> to vector<2x128xf32>
    %607 = arith.addf %605, %606 : vector<2x128xf32>
    %cst_155 = arith.constant 0.000000e+00 : f32
    %608 = vector.broadcast %cst_155 : f32 to vector<2x128xf32>
    %609 = arith.subf %608, %607 : vector<2x128xf32>
    %610 = math.exp %609 : vector<2x128xf32>
    %cst_156 = arith.constant 1.000000e+00 : f32
    %611 = vector.broadcast %cst_156 : f32 to vector<2x128xf32>
    %612 = arith.addf %611, %610 : vector<2x128xf32>
    %613 = tpu.reciprocal %612 {approx = true} : vector<2x128xf32> -> vector<2x128xf32>
    %614 = vector.extract_strided_slice %281 {offsets = [0, 256], sizes = [2, 128], strides = [1, 1]} : vector<2x384xf32> to vector<2x128xf32>
    %615 = vector.extract_strided_slice %595 {offsets = [0, 256], sizes = [2, 128], strides = [1, 1]} : vector<2x384xf32> to vector<2x128xf32>
    %616 = arith.mulf %604, %615 : vector<2x128xf32>
    %617 = arith.addf %614, %616 : vector<2x128xf32>
    %618 = math.tanh %617 : vector<2x128xf32>
    %cst_157 = arith.constant 1.000000e+00 : f32
    %619 = vector.broadcast %cst_157 : f32 to vector<2x128xf32>
    %620 = arith.subf %619, %613 : vector<2x128xf32>
    %621 = arith.mulf %620, %618 : vector<2x128xf32>
    %622 = arith.mulf %613, %589 : vector<2x128xf32>
    %623 = arith.addf %621, %622 : vector<2x128xf32>
    %c18 = arith.constant 18 : index
    %c0_158 = arith.constant 0 : index
    %624 = vector.load %arg13[%c18, %c0_158] : memref<30x128xf32, #tpu.memory_space<vmem>>, vector<2x128xf32>
    tpu.vector_store %arg13[%c18, %c0_158], %623 {strides = array<i32>} : memref<30x128xf32, #tpu.memory_space<vmem>>, vector<2x128xf32>,
    %625 = vector.extract_strided_slice %274 {offsets = [3, 0], sizes = [1, 384], strides = [1, 1]} : vector<6x384xf32> to vector<1x384xf32>
    %626 = arith.truncf %623 : vector<2x128xf32> to vector<2x128xbf16>
    %cst_159 = arith.constant dense<0.000000e+00> : vector<2x384xf32>
    %627 = tpu.matmul %626, %283, %cst_159 {dimension_numbers = #tpu.dot_dimension_numbers<[1], [0], [0], [1], [0, 0, 1, 1], [], []>} : vector<2x128xbf16>, vector<128x384xbf16>, vector<2x384xf32> -> vector<2x384xf32>
    %628 = vector.broadcast %625 : vector<1x384xf32> to vector<2x384xf32>
    %629 = arith.addf %627, %628 : vector<2x384xf32>
    %630 = vector.extract_strided_slice %281 {offsets = [0, 0], sizes = [2, 128], strides = [1, 1]} : vector<2x384xf32> to vector<2x128xf32>
    %631 = vector.extract_strided_slice %629 {offsets = [0, 0], sizes = [2, 128], strides = [1, 1]} : vector<2x384xf32> to vector<2x128xf32>
    %632 = arith.addf %630, %631 : vector<2x128xf32>
    %cst_160 = arith.constant 0.000000e+00 : f32
    %633 = vector.broadcast %cst_160 : f32 to vector<2x128xf32>
    %634 = arith.subf %633, %632 : vector<2x128xf32>
    %635 = math.exp %634 : vector<2x128xf32>
    %cst_161 = arith.constant 1.000000e+00 : f32
    %636 = vector.broadcast %cst_161 : f32 to vector<2x128xf32>
    %637 = arith.addf %636, %635 : vector<2x128xf32>
    %638 = tpu.reciprocal %637 {approx = true} : vector<2x128xf32> -> vector<2x128xf32>
    %639 = vector.extract_strided_slice %281 {offsets = [0, 128], sizes = [2, 128], strides = [1, 1]} : vector<2x384xf32> to vector<2x128xf32>
    %640 = vector.extract_strided_slice %629 {offsets = [0, 128], sizes = [2, 128], strides = [1, 1]} : vector<2x384xf32> to vector<2x128xf32>
    %641 = arith.addf %639, %640 : vector<2x128xf32>
    %cst_162 = arith.constant 0.000000e+00 : f32
    %642 = vector.broadcast %cst_162 : f32 to vector<2x128xf32>
    %643 = arith.subf %642, %641 : vector<2x128xf32>
    %644 = math.exp %643 : vector<2x128xf32>
    %cst_163 = arith.constant 1.000000e+00 : f32
    %645 = vector.broadcast %cst_163 : f32 to vector<2x128xf32>
    %646 = arith.addf %645, %644 : vector<2x128xf32>
    %647 = tpu.reciprocal %646 {approx = true} : vector<2x128xf32> -> vector<2x128xf32>
    %648 = vector.extract_strided_slice %281 {offsets = [0, 256], sizes = [2, 128], strides = [1, 1]} : vector<2x384xf32> to vector<2x128xf32>
    %649 = vector.extract_strided_slice %629 {offsets = [0, 256], sizes = [2, 128], strides = [1, 1]} : vector<2x384xf32> to vector<2x128xf32>
    %650 = arith.mulf %638, %649 : vector<2x128xf32>
    %651 = arith.addf %648, %650 : vector<2x128xf32>
    %652 = math.tanh %651 : vector<2x128xf32>
    %cst_164 = arith.constant 1.000000e+00 : f32
    %653 = vector.broadcast %cst_164 : f32 to vector<2x128xf32>
    %654 = arith.subf %653, %647 : vector<2x128xf32>
    %655 = arith.mulf %654, %652 : vector<2x128xf32>
    %656 = arith.mulf %647, %623 : vector<2x128xf32>
    %657 = arith.addf %655, %656 : vector<2x128xf32>
    %c20 = arith.constant 20 : index
    %c0_165 = arith.constant 0 : index
    %658 = vector.load %arg13[%c20, %c0_165] : memref<30x128xf32, #tpu.memory_space<vmem>>, vector<2x128xf32>
    tpu.vector_store %arg13[%c20, %c0_165], %657 {strides = array<i32>} : memref<30x128xf32, #tpu.memory_space<vmem>>, vector<2x128xf32>,
    %659 = vector.extract_strided_slice %274 {offsets = [3, 0], sizes = [1, 384], strides = [1, 1]} : vector<6x384xf32> to vector<1x384xf32>
    %660 = arith.truncf %657 : vector<2x128xf32> to vector<2x128xbf16>
    %cst_166 = arith.constant dense<0.000000e+00> : vector<2x384xf32>
    %661 = tpu.matmul %660, %283, %cst_166 {dimension_numbers = #tpu.dot_dimension_numbers<[1], [0], [0], [1], [0, 0, 1, 1], [], []>} : vector<2x128xbf16>, vector<128x384xbf16>, vector<2x384xf32> -> vector<2x384xf32>
    %662 = vector.broadcast %659 : vector<1x384xf32> to vector<2x384xf32>
    %663 = arith.addf %661, %662 : vector<2x384xf32>
    %664 = vector.extract_strided_slice %281 {offsets = [0, 0], sizes = [2, 128], strides = [1, 1]} : vector<2x384xf32> to vector<2x128xf32>
    %665 = vector.extract_strided_slice %663 {offsets = [0, 0], sizes = [2, 128], strides = [1, 1]} : vector<2x384xf32> to vector<2x128xf32>
    %666 = arith.addf %664, %665 : vector<2x128xf32>
    %cst_167 = arith.constant 0.000000e+00 : f32
    %667 = vector.broadcast %cst_167 : f32 to vector<2x128xf32>
    %668 = arith.subf %667, %666 : vector<2x128xf32>
    %669 = math.exp %668 : vector<2x128xf32>
    %cst_168 = arith.constant 1.000000e+00 : f32
    %670 = vector.broadcast %cst_168 : f32 to vector<2x128xf32>
    %671 = arith.addf %670, %669 : vector<2x128xf32>
    %672 = tpu.reciprocal %671 {approx = true} : vector<2x128xf32> -> vector<2x128xf32>
    %673 = vector.extract_strided_slice %281 {offsets = [0, 128], sizes = [2, 128], strides = [1, 1]} : vector<2x384xf32> to vector<2x128xf32>
    %674 = vector.extract_strided_slice %663 {offsets = [0, 128], sizes = [2, 128], strides = [1, 1]} : vector<2x384xf32> to vector<2x128xf32>
    %675 = arith.addf %673, %674 : vector<2x128xf32>
    %cst_169 = arith.constant 0.000000e+00 : f32
    %676 = vector.broadcast %cst_169 : f32 to vector<2x128xf32>
    %677 = arith.subf %676, %675 : vector<2x128xf32>
    %678 = math.exp %677 : vector<2x128xf32>
    %cst_170 = arith.constant 1.000000e+00 : f32
    %679 = vector.broadcast %cst_170 : f32 to vector<2x128xf32>
    %680 = arith.addf %679, %678 : vector<2x128xf32>
    %681 = tpu.reciprocal %680 {approx = true} : vector<2x128xf32> -> vector<2x128xf32>
    %682 = vector.extract_strided_slice %281 {offsets = [0, 256], sizes = [2, 128], strides = [1, 1]} : vector<2x384xf32> to vector<2x128xf32>
    %683 = vector.extract_strided_slice %663 {offsets = [0, 256], sizes = [2, 128], strides = [1, 1]} : vector<2x384xf32> to vector<2x128xf32>
    %684 = arith.mulf %672, %683 : vector<2x128xf32>
    %685 = arith.addf %682, %684 : vector<2x128xf32>
    %686 = math.tanh %685 : vector<2x128xf32>
    %cst_171 = arith.constant 1.000000e+00 : f32
    %687 = vector.broadcast %cst_171 : f32 to vector<2x128xf32>
    %688 = arith.subf %687, %681 : vector<2x128xf32>
    %689 = arith.mulf %688, %686 : vector<2x128xf32>
    %690 = arith.mulf %681, %657 : vector<2x128xf32>
    %691 = arith.addf %689, %690 : vector<2x128xf32>
    %c22 = arith.constant 22 : index
    %c0_172 = arith.constant 0 : index
    %692 = vector.load %arg13[%c22, %c0_172] : memref<30x128xf32, #tpu.memory_space<vmem>>, vector<2x128xf32>
    tpu.vector_store %arg13[%c22, %c0_172], %691 {strides = array<i32>} : memref<30x128xf32, #tpu.memory_space<vmem>>, vector<2x128xf32>,
    %693 = vector.extract_strided_slice %274 {offsets = [3, 0], sizes = [1, 384], strides = [1, 1]} : vector<6x384xf32> to vector<1x384xf32>
    %694 = arith.truncf %691 : vector<2x128xf32> to vector<2x128xbf16>
    %cst_173 = arith.constant dense<0.000000e+00> : vector<2x384xf32>
    %695 = tpu.matmul %694, %283, %cst_173 {dimension_numbers = #tpu.dot_dimension_numbers<[1], [0], [0], [1], [0, 0, 1, 1], [], []>} : vector<2x128xbf16>, vector<128x384xbf16>, vector<2x384xf32> -> vector<2x384xf32>
    %696 = vector.broadcast %693 : vector<1x384xf32> to vector<2x384xf32>
    %697 = arith.addf %695, %696 : vector<2x384xf32>
    %698 = vector.extract_strided_slice %281 {offsets = [0, 0], sizes = [2, 128], strides = [1, 1]} : vector<2x384xf32> to vector<2x128xf32>
    %699 = vector.extract_strided_slice %697 {offsets = [0, 0], sizes = [2, 128], strides = [1, 1]} : vector<2x384xf32> to vector<2x128xf32>
    %700 = arith.addf %698, %699 : vector<2x128xf32>
    %cst_174 = arith.constant 0.000000e+00 : f32
    %701 = vector.broadcast %cst_174 : f32 to vector<2x128xf32>
    %702 = arith.subf %701, %700 : vector<2x128xf32>
    %703 = math.exp %702 : vector<2x128xf32>
    %cst_175 = arith.constant 1.000000e+00 : f32
    %704 = vector.broadcast %cst_175 : f32 to vector<2x128xf32>
    %705 = arith.addf %704, %703 : vector<2x128xf32>
    %706 = tpu.reciprocal %705 {approx = true} : vector<2x128xf32> -> vector<2x128xf32>
    %707 = vector.extract_strided_slice %281 {offsets = [0, 128], sizes = [2, 128], strides = [1, 1]} : vector<2x384xf32> to vector<2x128xf32>
    %708 = vector.extract_strided_slice %697 {offsets = [0, 128], sizes = [2, 128], strides = [1, 1]} : vector<2x384xf32> to vector<2x128xf32>
    %709 = arith.addf %707, %708 : vector<2x128xf32>
    %cst_176 = arith.constant 0.000000e+00 : f32
    %710 = vector.broadcast %cst_176 : f32 to vector<2x128xf32>
    %711 = arith.subf %710, %709 : vector<2x128xf32>
    %712 = math.exp %711 : vector<2x128xf32>
    %cst_177 = arith.constant 1.000000e+00 : f32
    %713 = vector.broadcast %cst_177 : f32 to vector<2x128xf32>
    %714 = arith.addf %713, %712 : vector<2x128xf32>
    %715 = tpu.reciprocal %714 {approx = true} : vector<2x128xf32> -> vector<2x128xf32>
    %716 = vector.extract_strided_slice %281 {offsets = [0, 256], sizes = [2, 128], strides = [1, 1]} : vector<2x384xf32> to vector<2x128xf32>
    %717 = vector.extract_strided_slice %697 {offsets = [0, 256], sizes = [2, 128], strides = [1, 1]} : vector<2x384xf32> to vector<2x128xf32>
    %718 = arith.mulf %706, %717 : vector<2x128xf32>
    %719 = arith.addf %716, %718 : vector<2x128xf32>
    %720 = math.tanh %719 : vector<2x128xf32>
    %cst_178 = arith.constant 1.000000e+00 : f32
    %721 = vector.broadcast %cst_178 : f32 to vector<2x128xf32>
    %722 = arith.subf %721, %715 : vector<2x128xf32>
    %723 = arith.mulf %722, %720 : vector<2x128xf32>
    %724 = arith.mulf %715, %691 : vector<2x128xf32>
    %725 = arith.addf %723, %724 : vector<2x128xf32>
    %c24 = arith.constant 24 : index
    %c0_179 = arith.constant 0 : index
    %726 = vector.load %arg13[%c24, %c0_179] : memref<30x128xf32, #tpu.memory_space<vmem>>, vector<2x128xf32>
    tpu.vector_store %arg13[%c24, %c0_179], %725 {strides = array<i32>} : memref<30x128xf32, #tpu.memory_space<vmem>>, vector<2x128xf32>,
    %727 = vector.extract_strided_slice %274 {offsets = [3, 0], sizes = [1, 384], strides = [1, 1]} : vector<6x384xf32> to vector<1x384xf32>
    %728 = arith.truncf %725 : vector<2x128xf32> to vector<2x128xbf16>
    %cst_180 = arith.constant dense<0.000000e+00> : vector<2x384xf32>
    %729 = tpu.matmul %728, %283, %cst_180 {dimension_numbers = #tpu.dot_dimension_numbers<[1], [0], [0], [1], [0, 0, 1, 1], [], []>} : vector<2x128xbf16>, vector<128x384xbf16>, vector<2x384xf32> -> vector<2x384xf32>
    %730 = vector.broadcast %727 : vector<1x384xf32> to vector<2x384xf32>
    %731 = arith.addf %729, %730 : vector<2x384xf32>
    %732 = vector.extract_strided_slice %281 {offsets = [0, 0], sizes = [2, 128], strides = [1, 1]} : vector<2x384xf32> to vector<2x128xf32>
    %733 = vector.extract_strided_slice %731 {offsets = [0, 0], sizes = [2, 128], strides = [1, 1]} : vector<2x384xf32> to vector<2x128xf32>
    %734 = arith.addf %732, %733 : vector<2x128xf32>
    %cst_181 = arith.constant 0.000000e+00 : f32
    %735 = vector.broadcast %cst_181 : f32 to vector<2x128xf32>
    %736 = arith.subf %735, %734 : vector<2x128xf32>
    %737 = math.exp %736 : vector<2x128xf32>
    %cst_182 = arith.constant 1.000000e+00 : f32
    %738 = vector.broadcast %cst_182 : f32 to vector<2x128xf32>
    %739 = arith.addf %738, %737 : vector<2x128xf32>
    %740 = tpu.reciprocal %739 {approx = true} : vector<2x128xf32> -> vector<2x128xf32>
    %741 = vector.extract_strided_slice %281 {offsets = [0, 128], sizes = [2, 128], strides = [1, 1]} : vector<2x384xf32> to vector<2x128xf32>
    %742 = vector.extract_strided_slice %731 {offsets = [0, 128], sizes = [2, 128], strides = [1, 1]} : vector<2x384xf32> to vector<2x128xf32>
    %743 = arith.addf %741, %742 : vector<2x128xf32>
    %cst_183 = arith.constant 0.000000e+00 : f32
    %744 = vector.broadcast %cst_183 : f32 to vector<2x128xf32>
    %745 = arith.subf %744, %743 : vector<2x128xf32>
    %746 = math.exp %745 : vector<2x128xf32>
    %cst_184 = arith.constant 1.000000e+00 : f32
    %747 = vector.broadcast %cst_184 : f32 to vector<2x128xf32>
    %748 = arith.addf %747, %746 : vector<2x128xf32>
    %749 = tpu.reciprocal %748 {approx = true} : vector<2x128xf32> -> vector<2x128xf32>
    %750 = vector.extract_strided_slice %281 {offsets = [0, 256], sizes = [2, 128], strides = [1, 1]} : vector<2x384xf32> to vector<2x128xf32>
    %751 = vector.extract_strided_slice %731 {offsets = [0, 256], sizes = [2, 128], strides = [1, 1]} : vector<2x384xf32> to vector<2x128xf32>
    %752 = arith.mulf %740, %751 : vector<2x128xf32>
    %753 = arith.addf %750, %752 : vector<2x128xf32>
    %754 = math.tanh %753 : vector<2x128xf32>
    %cst_185 = arith.constant 1.000000e+00 : f32
    %755 = vector.broadcast %cst_185 : f32 to vector<2x128xf32>
    %756 = arith.subf %755, %749 : vector<2x128xf32>
    %757 = arith.mulf %756, %754 : vector<2x128xf32>
    %758 = arith.mulf %749, %725 : vector<2x128xf32>
    %759 = arith.addf %757, %758 : vector<2x128xf32>
    %c26 = arith.constant 26 : index
    %c0_186 = arith.constant 0 : index
    %760 = vector.load %arg13[%c26, %c0_186] : memref<30x128xf32, #tpu.memory_space<vmem>>, vector<2x128xf32>
    tpu.vector_store %arg13[%c26, %c0_186], %759 {strides = array<i32>} : memref<30x128xf32, #tpu.memory_space<vmem>>, vector<2x128xf32>,
    %761 = vector.extract_strided_slice %274 {offsets = [3, 0], sizes = [1, 384], strides = [1, 1]} : vector<6x384xf32> to vector<1x384xf32>
    %762 = arith.truncf %759 : vector<2x128xf32> to vector<2x128xbf16>
    %cst_187 = arith.constant dense<0.000000e+00> : vector<2x384xf32>
    %763 = tpu.matmul %762, %283, %cst_187 {dimension_numbers = #tpu.dot_dimension_numbers<[1], [0], [0], [1], [0, 0, 1, 1], [], []>} : vector<2x128xbf16>, vector<128x384xbf16>, vector<2x384xf32> -> vector<2x384xf32>
    %764 = vector.broadcast %761 : vector<1x384xf32> to vector<2x384xf32>
    %765 = arith.addf %763, %764 : vector<2x384xf32>
    %766 = vector.extract_strided_slice %281 {offsets = [0, 0], sizes = [2, 128], strides = [1, 1]} : vector<2x384xf32> to vector<2x128xf32>
    %767 = vector.extract_strided_slice %765 {offsets = [0, 0], sizes = [2, 128], strides = [1, 1]} : vector<2x384xf32> to vector<2x128xf32>
    %768 = arith.addf %766, %767 : vector<2x128xf32>
    %cst_188 = arith.constant 0.000000e+00 : f32
    %769 = vector.broadcast %cst_188 : f32 to vector<2x128xf32>
    %770 = arith.subf %769, %768 : vector<2x128xf32>
    %771 = math.exp %770 : vector<2x128xf32>
    %cst_189 = arith.constant 1.000000e+00 : f32
    %772 = vector.broadcast %cst_189 : f32 to vector<2x128xf32>
    %773 = arith.addf %772, %771 : vector<2x128xf32>
    %774 = tpu.reciprocal %773 {approx = true} : vector<2x128xf32> -> vector<2x128xf32>
    %775 = vector.extract_strided_slice %281 {offsets = [0, 128], sizes = [2, 128], strides = [1, 1]} : vector<2x384xf32> to vector<2x128xf32>
    %776 = vector.extract_strided_slice %765 {offsets = [0, 128], sizes = [2, 128], strides = [1, 1]} : vector<2x384xf32> to vector<2x128xf32>
    %777 = arith.addf %775, %776 : vector<2x128xf32>
    %cst_190 = arith.constant 0.000000e+00 : f32
    %778 = vector.broadcast %cst_190 : f32 to vector<2x128xf32>
    %779 = arith.subf %778, %777 : vector<2x128xf32>
    %780 = math.exp %779 : vector<2x128xf32>
    %cst_191 = arith.constant 1.000000e+00 : f32
    %781 = vector.broadcast %cst_191 : f32 to vector<2x128xf32>
    %782 = arith.addf %781, %780 : vector<2x128xf32>
    %783 = tpu.reciprocal %782 {approx = true} : vector<2x128xf32> -> vector<2x128xf32>
    %784 = vector.extract_strided_slice %281 {offsets = [0, 256], sizes = [2, 128], strides = [1, 1]} : vector<2x384xf32> to vector<2x128xf32>
    %785 = vector.extract_strided_slice %765 {offsets = [0, 256], sizes = [2, 128], strides = [1, 1]} : vector<2x384xf32> to vector<2x128xf32>
    %786 = arith.mulf %774, %785 : vector<2x128xf32>
    %787 = arith.addf %784, %786 : vector<2x128xf32>
    %788 = math.tanh %787 : vector<2x128xf32>
    %cst_192 = arith.constant 1.000000e+00 : f32
    %789 = vector.broadcast %cst_192 : f32 to vector<2x128xf32>
    %790 = arith.subf %789, %783 : vector<2x128xf32>
    %791 = arith.mulf %790, %788 : vector<2x128xf32>
    %792 = arith.mulf %783, %759 : vector<2x128xf32>
    %793 = arith.addf %791, %792 : vector<2x128xf32>
    %c28 = arith.constant 28 : index
    %c0_193 = arith.constant 0 : index
    %794 = vector.load %arg13[%c28, %c0_193] : memref<30x128xf32, #tpu.memory_space<vmem>>, vector<2x128xf32>
    tpu.vector_store %arg13[%c28, %c0_193], %793 {strides = array<i32>} : memref<30x128xf32, #tpu.memory_space<vmem>>, vector<2x128xf32>,
    %c0_194 = arith.constant 0 : index
    %c0_195 = arith.constant 0 : index
    %795 = vector.load %arg13[%c0_194, %c0_195] : memref<30x128xf32, #tpu.memory_space<vmem>>, vector<30x128xf32>
    %796 = arith.truncf %795 : vector<30x128xf32> to vector<30x128xbf16>
    %c1_196 = arith.constant 1 : index
    %c0_197 = arith.constant 0 : index
    %c0_198 = arith.constant 0 : index
    %797 = vector.load %arg8[%c1_196, %c0_197, %c0_198] : memref<3x128x384xbf16, #tpu.memory_space<vmem>>, vector<1x128x384xbf16>
    %798 = vector.shape_cast %797 : vector<1x128x384xbf16> to vector<128x384xbf16>
    %cst_199 = arith.constant dense<0.000000e+00> : vector<30x384xf32>
    %799 = tpu.matmul %796, %798, %cst_199 {dimension_numbers = #tpu.dot_dimension_numbers<[1], [0], [0], [1], [0, 0, 1, 1], [], []>} : vector<30x128xbf16>, vector<128x384xbf16>, vector<30x384xf32> -> vector<30x384xf32>
    %800 = vector.extract_strided_slice %274 {offsets = [1, 0], sizes = [1, 384], strides = [1, 1]} : vector<6x384xf32> to vector<1x384xf32>
    %801 = vector.broadcast %800 : vector<1x384xf32> to vector<30x384xf32>
    %802 = arith.addf %799, %801 : vector<30x384xf32>
    %c1_200 = arith.constant 1 : index
    %c0_201 = arith.constant 0 : index
    %c0_202 = arith.constant 0 : index
    %803 = vector.load %arg9[%c1_200, %c0_201, %c0_202] : memref<3x128x384xbf16, #tpu.memory_space<vmem>>, vector<1x128x384xbf16>
    %804 = vector.shape_cast %803 : vector<1x128x384xbf16> to vector<128x384xbf16>
    %805 = vector.extract_strided_slice %274 {offsets = [4, 0], sizes = [1, 384], strides = [1, 1]} : vector<6x384xf32> to vector<1x384xf32>
    %cst_203 = arith.constant 0.000000e+00 : f32
    %806 = vector.broadcast %cst_203 : f32 to vector<2x128xf32>
    %807 = vector.extract_strided_slice %802 {offsets = [0, 0], sizes = [2, 384], strides = [1, 1]} : vector<30x384xf32> to vector<2x384xf32>
    %808 = arith.truncf %806 : vector<2x128xf32> to vector<2x128xbf16>
    %cst_204 = arith.constant dense<0.000000e+00> : vector<2x384xf32>
    %809 = tpu.matmul %808, %804, %cst_204 {dimension_numbers = #tpu.dot_dimension_numbers<[1], [0], [0], [1], [0, 0, 1, 1], [], []>} : vector<2x128xbf16>, vector<128x384xbf16>, vector<2x384xf32> -> vector<2x384xf32>
    %810 = vector.broadcast %805 : vector<1x384xf32> to vector<2x384xf32>
    %811 = arith.addf %809, %810 : vector<2x384xf32>
    %812 = vector.extract_strided_slice %807 {offsets = [0, 0], sizes = [2, 128], strides = [1, 1]} : vector<2x384xf32> to vector<2x128xf32>
    %813 = vector.extract_strided_slice %811 {offsets = [0, 0], sizes = [2, 128], strides = [1, 1]} : vector<2x384xf32> to vector<2x128xf32>
    %814 = arith.addf %812, %813 : vector<2x128xf32>
    %cst_205 = arith.constant 0.000000e+00 : f32
    %815 = vector.broadcast %cst_205 : f32 to vector<2x128xf32>
    %816 = arith.subf %815, %814 : vector<2x128xf32>
    %817 = math.exp %816 : vector<2x128xf32>
    %cst_206 = arith.constant 1.000000e+00 : f32
    %818 = vector.broadcast %cst_206 : f32 to vector<2x128xf32>
    %819 = arith.addf %818, %817 : vector<2x128xf32>
    %820 = tpu.reciprocal %819 {approx = true} : vector<2x128xf32> -> vector<2x128xf32>
    %821 = vector.extract_strided_slice %807 {offsets = [0, 128], sizes = [2, 128], strides = [1, 1]} : vector<2x384xf32> to vector<2x128xf32>
    %822 = vector.extract_strided_slice %811 {offsets = [0, 128], sizes = [2, 128], strides = [1, 1]} : vector<2x384xf32> to vector<2x128xf32>
    %823 = arith.addf %821, %822 : vector<2x128xf32>
    %cst_207 = arith.constant 0.000000e+00 : f32
    %824 = vector.broadcast %cst_207 : f32 to vector<2x128xf32>
    %825 = arith.subf %824, %823 : vector<2x128xf32>
    %826 = math.exp %825 : vector<2x128xf32>
    %cst_208 = arith.constant 1.000000e+00 : f32
    %827 = vector.broadcast %cst_208 : f32 to vector<2x128xf32>
    %828 = arith.addf %827, %826 : vector<2x128xf32>
    %829 = tpu.reciprocal %828 {approx = true} : vector<2x128xf32> -> vector<2x128xf32>
    %830 = vector.extract_strided_slice %807 {offsets = [0, 256], sizes = [2, 128], strides = [1, 1]} : vector<2x384xf32> to vector<2x128xf32>
    %831 = vector.extract_strided_slice %811 {offsets = [0, 256], sizes = [2, 128], strides = [1, 1]} : vector<2x384xf32> to vector<2x128xf32>
    %832 = arith.mulf %820, %831 : vector<2x128xf32>
    %833 = arith.addf %830, %832 : vector<2x128xf32>
    %834 = math.tanh %833 : vector<2x128xf32>
    %cst_209 = arith.constant 1.000000e+00 : f32
    %835 = vector.broadcast %cst_209 : f32 to vector<2x128xf32>
    %836 = arith.subf %835, %829 : vector<2x128xf32>
    %837 = arith.mulf %836, %834 : vector<2x128xf32>
    %838 = arith.mulf %829, %806 : vector<2x128xf32>
    %839 = arith.addf %837, %838 : vector<2x128xf32>
    %c0_210 = arith.constant 0 : index
    %c0_211 = arith.constant 0 : index
    %840 = vector.load %arg13[%c0_210, %c0_211] : memref<30x128xf32, #tpu.memory_space<vmem>>, vector<2x128xf32>
    tpu.vector_store %arg13[%c0_210, %c0_211], %839 {strides = array<i32>} : memref<30x128xf32, #tpu.memory_space<vmem>>, vector<2x128xf32>,
    %841 = vector.extract_strided_slice %802 {offsets = [2, 0], sizes = [2, 384], strides = [1, 1]} : vector<30x384xf32> to vector<2x384xf32>
    %842 = arith.truncf %839 : vector<2x128xf32> to vector<2x128xbf16>
    %cst_212 = arith.constant dense<0.000000e+00> : vector<2x384xf32>
    %843 = tpu.matmul %842, %804, %cst_212 {dimension_numbers = #tpu.dot_dimension_numbers<[1], [0], [0], [1], [0, 0, 1, 1], [], []>} : vector<2x128xbf16>, vector<128x384xbf16>, vector<2x384xf32> -> vector<2x384xf32>
    %844 = vector.broadcast %805 : vector<1x384xf32> to vector<2x384xf32>
    %845 = arith.addf %843, %844 : vector<2x384xf32>
    %846 = vector.extract_strided_slice %841 {offsets = [0, 0], sizes = [2, 128], strides = [1, 1]} : vector<2x384xf32> to vector<2x128xf32>
    %847 = vector.extract_strided_slice %845 {offsets = [0, 0], sizes = [2, 128], strides = [1, 1]} : vector<2x384xf32> to vector<2x128xf32>
    %848 = arith.addf %846, %847 : vector<2x128xf32>
    %cst_213 = arith.constant 0.000000e+00 : f32
    %849 = vector.broadcast %cst_213 : f32 to vector<2x128xf32>
    %850 = arith.subf %849, %848 : vector<2x128xf32>
    %851 = math.exp %850 : vector<2x128xf32>
    %cst_214 = arith.constant 1.000000e+00 : f32
    %852 = vector.broadcast %cst_214 : f32 to vector<2x128xf32>
    %853 = arith.addf %852, %851 : vector<2x128xf32>
    %854 = tpu.reciprocal %853 {approx = true} : vector<2x128xf32> -> vector<2x128xf32>
    %855 = vector.extract_strided_slice %841 {offsets = [0, 128], sizes = [2, 128], strides = [1, 1]} : vector<2x384xf32> to vector<2x128xf32>
    %856 = vector.extract_strided_slice %845 {offsets = [0, 128], sizes = [2, 128], strides = [1, 1]} : vector<2x384xf32> to vector<2x128xf32>
    %857 = arith.addf %855, %856 : vector<2x128xf32>
    %cst_215 = arith.constant 0.000000e+00 : f32
    %858 = vector.broadcast %cst_215 : f32 to vector<2x128xf32>
    %859 = arith.subf %858, %857 : vector<2x128xf32>
    %860 = math.exp %859 : vector<2x128xf32>
    %cst_216 = arith.constant 1.000000e+00 : f32
    %861 = vector.broadcast %cst_216 : f32 to vector<2x128xf32>
    %862 = arith.addf %861, %860 : vector<2x128xf32>
    %863 = tpu.reciprocal %862 {approx = true} : vector<2x128xf32> -> vector<2x128xf32>
    %864 = vector.extract_strided_slice %841 {offsets = [0, 256], sizes = [2, 128], strides = [1, 1]} : vector<2x384xf32> to vector<2x128xf32>
    %865 = vector.extract_strided_slice %845 {offsets = [0, 256], sizes = [2, 128], strides = [1, 1]} : vector<2x384xf32> to vector<2x128xf32>
    %866 = arith.mulf %854, %865 : vector<2x128xf32>
    %867 = arith.addf %864, %866 : vector<2x128xf32>
    %868 = math.tanh %867 : vector<2x128xf32>
    %cst_217 = arith.constant 1.000000e+00 : f32
    %869 = vector.broadcast %cst_217 : f32 to vector<2x128xf32>
    %870 = arith.subf %869, %863 : vector<2x128xf32>
    %871 = arith.mulf %870, %868 : vector<2x128xf32>
    %872 = arith.mulf %863, %839 : vector<2x128xf32>
    %873 = arith.addf %871, %872 : vector<2x128xf32>
    %c2_218 = arith.constant 2 : index
    %c0_219 = arith.constant 0 : index
    %874 = vector.load %arg13[%c2_218, %c0_219] : memref<30x128xf32, #tpu.memory_space<vmem>>, vector<2x128xf32>
    tpu.vector_store %arg13[%c2_218, %c0_219], %873 {strides = array<i32>} : memref<30x128xf32, #tpu.memory_space<vmem>>, vector<2x128xf32>,
    %875 = vector.extract_strided_slice %802 {offsets = [4, 0], sizes = [2, 384], strides = [1, 1]} : vector<30x384xf32> to vector<2x384xf32>
    %876 = arith.truncf %873 : vector<2x128xf32> to vector<2x128xbf16>
    %cst_220 = arith.constant dense<0.000000e+00> : vector<2x384xf32>
    %877 = tpu.matmul %876, %804, %cst_220 {dimension_numbers = #tpu.dot_dimension_numbers<[1], [0], [0], [1], [0, 0, 1, 1], [], []>} : vector<2x128xbf16>, vector<128x384xbf16>, vector<2x384xf32> -> vector<2x384xf32>
    %878 = vector.broadcast %805 : vector<1x384xf32> to vector<2x384xf32>
    %879 = arith.addf %877, %878 : vector<2x384xf32>
    %880 = vector.extract_strided_slice %875 {offsets = [0, 0], sizes = [2, 128], strides = [1, 1]} : vector<2x384xf32> to vector<2x128xf32>
    %881 = vector.extract_strided_slice %879 {offsets = [0, 0], sizes = [2, 128], strides = [1, 1]} : vector<2x384xf32> to vector<2x128xf32>
    %882 = arith.addf %880, %881 : vector<2x128xf32>
    %cst_221 = arith.constant 0.000000e+00 : f32
    %883 = vector.broadcast %cst_221 : f32 to vector<2x128xf32>
    %884 = arith.subf %883, %882 : vector<2x128xf32>
    %885 = math.exp %884 : vector<2x128xf32>
    %cst_222 = arith.constant 1.000000e+00 : f32
    %886 = vector.broadcast %cst_222 : f32 to vector<2x128xf32>
    %887 = arith.addf %886, %885 : vector<2x128xf32>
    %888 = tpu.reciprocal %887 {approx = true} : vector<2x128xf32> -> vector<2x128xf32>
    %889 = vector.extract_strided_slice %875 {offsets = [0, 128], sizes = [2, 128], strides = [1, 1]} : vector<2x384xf32> to vector<2x128xf32>
    %890 = vector.extract_strided_slice %879 {offsets = [0, 128], sizes = [2, 128], strides = [1, 1]} : vector<2x384xf32> to vector<2x128xf32>
    %891 = arith.addf %889, %890 : vector<2x128xf32>
    %cst_223 = arith.constant 0.000000e+00 : f32
    %892 = vector.broadcast %cst_223 : f32 to vector<2x128xf32>
    %893 = arith.subf %892, %891 : vector<2x128xf32>
    %894 = math.exp %893 : vector<2x128xf32>
    %cst_224 = arith.constant 1.000000e+00 : f32
    %895 = vector.broadcast %cst_224 : f32 to vector<2x128xf32>
    %896 = arith.addf %895, %894 : vector<2x128xf32>
    %897 = tpu.reciprocal %896 {approx = true} : vector<2x128xf32> -> vector<2x128xf32>
    %898 = vector.extract_strided_slice %875 {offsets = [0, 256], sizes = [2, 128], strides = [1, 1]} : vector<2x384xf32> to vector<2x128xf32>
    %899 = vector.extract_strided_slice %879 {offsets = [0, 256], sizes = [2, 128], strides = [1, 1]} : vector<2x384xf32> to vector<2x128xf32>
    %900 = arith.mulf %888, %899 : vector<2x128xf32>
    %901 = arith.addf %898, %900 : vector<2x128xf32>
    %902 = math.tanh %901 : vector<2x128xf32>
    %cst_225 = arith.constant 1.000000e+00 : f32
    %903 = vector.broadcast %cst_225 : f32 to vector<2x128xf32>
    %904 = arith.subf %903, %897 : vector<2x128xf32>
    %905 = arith.mulf %904, %902 : vector<2x128xf32>
    %906 = arith.mulf %897, %873 : vector<2x128xf32>
    %907 = arith.addf %905, %906 : vector<2x128xf32>
    %c4_226 = arith.constant 4 : index
    %c0_227 = arith.constant 0 : index
    %908 = vector.load %arg13[%c4_226, %c0_227] : memref<30x128xf32, #tpu.memory_space<vmem>>, vector<2x128xf32>
    tpu.vector_store %arg13[%c4_226, %c0_227], %907 {strides = array<i32>} : memref<30x128xf32, #tpu.memory_space<vmem>>, vector<2x128xf32>,
    %909 = vector.extract_strided_slice %802 {offsets = [6, 0], sizes = [2, 384], strides = [1, 1]} : vector<30x384xf32> to vector<2x384xf32>
    %910 = arith.truncf %907 : vector<2x128xf32> to vector<2x128xbf16>
    %cst_228 = arith.constant dense<0.000000e+00> : vector<2x384xf32>
    %911 = tpu.matmul %910, %804, %cst_228 {dimension_numbers = #tpu.dot_dimension_numbers<[1], [0], [0], [1], [0, 0, 1, 1], [], []>} : vector<2x128xbf16>, vector<128x384xbf16>, vector<2x384xf32> -> vector<2x384xf32>
    %912 = vector.broadcast %805 : vector<1x384xf32> to vector<2x384xf32>
    %913 = arith.addf %911, %912 : vector<2x384xf32>
    %914 = vector.extract_strided_slice %909 {offsets = [0, 0], sizes = [2, 128], strides = [1, 1]} : vector<2x384xf32> to vector<2x128xf32>
    %915 = vector.extract_strided_slice %913 {offsets = [0, 0], sizes = [2, 128], strides = [1, 1]} : vector<2x384xf32> to vector<2x128xf32>
    %916 = arith.addf %914, %915 : vector<2x128xf32>
    %cst_229 = arith.constant 0.000000e+00 : f32
    %917 = vector.broadcast %cst_229 : f32 to vector<2x128xf32>
    %918 = arith.subf %917, %916 : vector<2x128xf32>
    %919 = math.exp %918 : vector<2x128xf32>
    %cst_230 = arith.constant 1.000000e+00 : f32
    %920 = vector.broadcast %cst_230 : f32 to vector<2x128xf32>
    %921 = arith.addf %920, %919 : vector<2x128xf32>
    %922 = tpu.reciprocal %921 {approx = true} : vector<2x128xf32> -> vector<2x128xf32>
    %923 = vector.extract_strided_slice %909 {offsets = [0, 128], sizes = [2, 128], strides = [1, 1]} : vector<2x384xf32> to vector<2x128xf32>
    %924 = vector.extract_strided_slice %913 {offsets = [0, 128], sizes = [2, 128], strides = [1, 1]} : vector<2x384xf32> to vector<2x128xf32>
    %925 = arith.addf %923, %924 : vector<2x128xf32>
    %cst_231 = arith.constant 0.000000e+00 : f32
    %926 = vector.broadcast %cst_231 : f32 to vector<2x128xf32>
    %927 = arith.subf %926, %925 : vector<2x128xf32>
    %928 = math.exp %927 : vector<2x128xf32>
    %cst_232 = arith.constant 1.000000e+00 : f32
    %929 = vector.broadcast %cst_232 : f32 to vector<2x128xf32>
    %930 = arith.addf %929, %928 : vector<2x128xf32>
    %931 = tpu.reciprocal %930 {approx = true} : vector<2x128xf32> -> vector<2x128xf32>
    %932 = vector.extract_strided_slice %909 {offsets = [0, 256], sizes = [2, 128], strides = [1, 1]} : vector<2x384xf32> to vector<2x128xf32>
    %933 = vector.extract_strided_slice %913 {offsets = [0, 256], sizes = [2, 128], strides = [1, 1]} : vector<2x384xf32> to vector<2x128xf32>
    %934 = arith.mulf %922, %933 : vector<2x128xf32>
    %935 = arith.addf %932, %934 : vector<2x128xf32>
    %936 = math.tanh %935 : vector<2x128xf32>
    %cst_233 = arith.constant 1.000000e+00 : f32
    %937 = vector.broadcast %cst_233 : f32 to vector<2x128xf32>
    %938 = arith.subf %937, %931 : vector<2x128xf32>
    %939 = arith.mulf %938, %936 : vector<2x128xf32>
    %940 = arith.mulf %931, %907 : vector<2x128xf32>
    %941 = arith.addf %939, %940 : vector<2x128xf32>
    %c6_234 = arith.constant 6 : index
    %c0_235 = arith.constant 0 : index
    %942 = vector.load %arg13[%c6_234, %c0_235] : memref<30x128xf32, #tpu.memory_space<vmem>>, vector<2x128xf32>
    tpu.vector_store %arg13[%c6_234, %c0_235], %941 {strides = array<i32>} : memref<30x128xf32, #tpu.memory_space<vmem>>, vector<2x128xf32>,
    %943 = vector.extract_strided_slice %802 {offsets = [8, 0], sizes = [2, 384], strides = [1, 1]} : vector<30x384xf32> to vector<2x384xf32>
    %944 = arith.truncf %941 : vector<2x128xf32> to vector<2x128xbf16>
    %cst_236 = arith.constant dense<0.000000e+00> : vector<2x384xf32>
    %945 = tpu.matmul %944, %804, %cst_236 {dimension_numbers = #tpu.dot_dimension_numbers<[1], [0], [0], [1], [0, 0, 1, 1], [], []>} : vector<2x128xbf16>, vector<128x384xbf16>, vector<2x384xf32> -> vector<2x384xf32>
    %946 = vector.broadcast %805 : vector<1x384xf32> to vector<2x384xf32>
    %947 = arith.addf %945, %946 : vector<2x384xf32>
    %948 = vector.extract_strided_slice %943 {offsets = [0, 0], sizes = [2, 128], strides = [1, 1]} : vector<2x384xf32> to vector<2x128xf32>
    %949 = vector.extract_strided_slice %947 {offsets = [0, 0], sizes = [2, 128], strides = [1, 1]} : vector<2x384xf32> to vector<2x128xf32>
    %950 = arith.addf %948, %949 : vector<2x128xf32>
    %cst_237 = arith.constant 0.000000e+00 : f32
    %951 = vector.broadcast %cst_237 : f32 to vector<2x128xf32>
    %952 = arith.subf %951, %950 : vector<2x128xf32>
    %953 = math.exp %952 : vector<2x128xf32>
    %cst_238 = arith.constant 1.000000e+00 : f32
    %954 = vector.broadcast %cst_238 : f32 to vector<2x128xf32>
    %955 = arith.addf %954, %953 : vector<2x128xf32>
    %956 = tpu.reciprocal %955 {approx = true} : vector<2x128xf32> -> vector<2x128xf32>
    %957 = vector.extract_strided_slice %943 {offsets = [0, 128], sizes = [2, 128], strides = [1, 1]} : vector<2x384xf32> to vector<2x128xf32>
    %958 = vector.extract_strided_slice %947 {offsets = [0, 128], sizes = [2, 128], strides = [1, 1]} : vector<2x384xf32> to vector<2x128xf32>
    %959 = arith.addf %957, %958 : vector<2x128xf32>
    %cst_239 = arith.constant 0.000000e+00 : f32
    %960 = vector.broadcast %cst_239 : f32 to vector<2x128xf32>
    %961 = arith.subf %960, %959 : vector<2x128xf32>
    %962 = math.exp %961 : vector<2x128xf32>
    %cst_240 = arith.constant 1.000000e+00 : f32
    %963 = vector.broadcast %cst_240 : f32 to vector<2x128xf32>
    %964 = arith.addf %963, %962 : vector<2x128xf32>
    %965 = tpu.reciprocal %964 {approx = true} : vector<2x128xf32> -> vector<2x128xf32>
    %966 = vector.extract_strided_slice %943 {offsets = [0, 256], sizes = [2, 128], strides = [1, 1]} : vector<2x384xf32> to vector<2x128xf32>
    %967 = vector.extract_strided_slice %947 {offsets = [0, 256], sizes = [2, 128], strides = [1, 1]} : vector<2x384xf32> to vector<2x128xf32>
    %968 = arith.mulf %956, %967 : vector<2x128xf32>
    %969 = arith.addf %966, %968 : vector<2x128xf32>
    %970 = math.tanh %969 : vector<2x128xf32>
    %cst_241 = arith.constant 1.000000e+00 : f32
    %971 = vector.broadcast %cst_241 : f32 to vector<2x128xf32>
    %972 = arith.subf %971, %965 : vector<2x128xf32>
    %973 = arith.mulf %972, %970 : vector<2x128xf32>
    %974 = arith.mulf %965, %941 : vector<2x128xf32>
    %975 = arith.addf %973, %974 : vector<2x128xf32>
    %c8_242 = arith.constant 8 : index
    %c0_243 = arith.constant 0 : index
    %976 = vector.load %arg13[%c8_242, %c0_243] : memref<30x128xf32, #tpu.memory_space<vmem>>, vector<2x128xf32>
    tpu.vector_store %arg13[%c8_242, %c0_243], %975 {strides = array<i32>} : memref<30x128xf32, #tpu.memory_space<vmem>>, vector<2x128xf32>,
    %977 = vector.extract_strided_slice %802 {offsets = [10, 0], sizes = [2, 384], strides = [1, 1]} : vector<30x384xf32> to vector<2x384xf32>
    %978 = arith.truncf %975 : vector<2x128xf32> to vector<2x128xbf16>
    %cst_244 = arith.constant dense<0.000000e+00> : vector<2x384xf32>
    %979 = tpu.matmul %978, %804, %cst_244 {dimension_numbers = #tpu.dot_dimension_numbers<[1], [0], [0], [1], [0, 0, 1, 1], [], []>} : vector<2x128xbf16>, vector<128x384xbf16>, vector<2x384xf32> -> vector<2x384xf32>
    %980 = vector.broadcast %805 : vector<1x384xf32> to vector<2x384xf32>
    %981 = arith.addf %979, %980 : vector<2x384xf32>
    %982 = vector.extract_strided_slice %977 {offsets = [0, 0], sizes = [2, 128], strides = [1, 1]} : vector<2x384xf32> to vector<2x128xf32>
    %983 = vector.extract_strided_slice %981 {offsets = [0, 0], sizes = [2, 128], strides = [1, 1]} : vector<2x384xf32> to vector<2x128xf32>
    %984 = arith.addf %982, %983 : vector<2x128xf32>
    %cst_245 = arith.constant 0.000000e+00 : f32
    %985 = vector.broadcast %cst_245 : f32 to vector<2x128xf32>
    %986 = arith.subf %985, %984 : vector<2x128xf32>
    %987 = math.exp %986 : vector<2x128xf32>
    %cst_246 = arith.constant 1.000000e+00 : f32
    %988 = vector.broadcast %cst_246 : f32 to vector<2x128xf32>
    %989 = arith.addf %988, %987 : vector<2x128xf32>
    %990 = tpu.reciprocal %989 {approx = true} : vector<2x128xf32> -> vector<2x128xf32>
    %991 = vector.extract_strided_slice %977 {offsets = [0, 128], sizes = [2, 128], strides = [1, 1]} : vector<2x384xf32> to vector<2x128xf32>
    %992 = vector.extract_strided_slice %981 {offsets = [0, 128], sizes = [2, 128], strides = [1, 1]} : vector<2x384xf32> to vector<2x128xf32>
    %993 = arith.addf %991, %992 : vector<2x128xf32>
    %cst_247 = arith.constant 0.000000e+00 : f32
    %994 = vector.broadcast %cst_247 : f32 to vector<2x128xf32>
    %995 = arith.subf %994, %993 : vector<2x128xf32>
    %996 = math.exp %995 : vector<2x128xf32>
    %cst_248 = arith.constant 1.000000e+00 : f32
    %997 = vector.broadcast %cst_248 : f32 to vector<2x128xf32>
    %998 = arith.addf %997, %996 : vector<2x128xf32>
    %999 = tpu.reciprocal %998 {approx = true} : vector<2x128xf32> -> vector<2x128xf32>
    %1000 = vector.extract_strided_slice %977 {offsets = [0, 256], sizes = [2, 128], strides = [1, 1]} : vector<2x384xf32> to vector<2x128xf32>
    %1001 = vector.extract_strided_slice %981 {offsets = [0, 256], sizes = [2, 128], strides = [1, 1]} : vector<2x384xf32> to vector<2x128xf32>
    %1002 = arith.mulf %990, %1001 : vector<2x128xf32>
    %1003 = arith.addf %1000, %1002 : vector<2x128xf32>
    %1004 = math.tanh %1003 : vector<2x128xf32>
    %cst_249 = arith.constant 1.000000e+00 : f32
    %1005 = vector.broadcast %cst_249 : f32 to vector<2x128xf32>
    %1006 = arith.subf %1005, %999 : vector<2x128xf32>
    %1007 = arith.mulf %1006, %1004 : vector<2x128xf32>
    %1008 = arith.mulf %999, %975 : vector<2x128xf32>
    %1009 = arith.addf %1007, %1008 : vector<2x128xf32>
    %c10_250 = arith.constant 10 : index
    %c0_251 = arith.constant 0 : index
    %1010 = vector.load %arg13[%c10_250, %c0_251] : memref<30x128xf32, #tpu.memory_space<vmem>>, vector<2x128xf32>
    tpu.vector_store %arg13[%c10_250, %c0_251], %1009 {strides = array<i32>} : memref<30x128xf32, #tpu.memory_space<vmem>>, vector<2x128xf32>,
    %1011 = vector.extract_strided_slice %802 {offsets = [12, 0], sizes = [2, 384], strides = [1, 1]} : vector<30x384xf32> to vector<2x384xf32>
    %1012 = arith.truncf %1009 : vector<2x128xf32> to vector<2x128xbf16>
    %cst_252 = arith.constant dense<0.000000e+00> : vector<2x384xf32>
    %1013 = tpu.matmul %1012, %804, %cst_252 {dimension_numbers = #tpu.dot_dimension_numbers<[1], [0], [0], [1], [0, 0, 1, 1], [], []>} : vector<2x128xbf16>, vector<128x384xbf16>, vector<2x384xf32> -> vector<2x384xf32>
    %1014 = vector.broadcast %805 : vector<1x384xf32> to vector<2x384xf32>
    %1015 = arith.addf %1013, %1014 : vector<2x384xf32>
    %1016 = vector.extract_strided_slice %1011 {offsets = [0, 0], sizes = [2, 128], strides = [1, 1]} : vector<2x384xf32> to vector<2x128xf32>
    %1017 = vector.extract_strided_slice %1015 {offsets = [0, 0], sizes = [2, 128], strides = [1, 1]} : vector<2x384xf32> to vector<2x128xf32>
    %1018 = arith.addf %1016, %1017 : vector<2x128xf32>
    %cst_253 = arith.constant 0.000000e+00 : f32
    %1019 = vector.broadcast %cst_253 : f32 to vector<2x128xf32>
    %1020 = arith.subf %1019, %1018 : vector<2x128xf32>
    %1021 = math.exp %1020 : vector<2x128xf32>
    %cst_254 = arith.constant 1.000000e+00 : f32
    %1022 = vector.broadcast %cst_254 : f32 to vector<2x128xf32>
    %1023 = arith.addf %1022, %1021 : vector<2x128xf32>
    %1024 = tpu.reciprocal %1023 {approx = true} : vector<2x128xf32> -> vector<2x128xf32>
    %1025 = vector.extract_strided_slice %1011 {offsets = [0, 128], sizes = [2, 128], strides = [1, 1]} : vector<2x384xf32> to vector<2x128xf32>
    %1026 = vector.extract_strided_slice %1015 {offsets = [0, 128], sizes = [2, 128], strides = [1, 1]} : vector<2x384xf32> to vector<2x128xf32>
    %1027 = arith.addf %1025, %1026 : vector<2x128xf32>
    %cst_255 = arith.constant 0.000000e+00 : f32
    %1028 = vector.broadcast %cst_255 : f32 to vector<2x128xf32>
    %1029 = arith.subf %1028, %1027 : vector<2x128xf32>
    %1030 = math.exp %1029 : vector<2x128xf32>
    %cst_256 = arith.constant 1.000000e+00 : f32
    %1031 = vector.broadcast %cst_256 : f32 to vector<2x128xf32>
    %1032 = arith.addf %1031, %1030 : vector<2x128xf32>
    %1033 = tpu.reciprocal %1032 {approx = true} : vector<2x128xf32> -> vector<2x128xf32>
    %1034 = vector.extract_strided_slice %1011 {offsets = [0, 256], sizes = [2, 128], strides = [1, 1]} : vector<2x384xf32> to vector<2x128xf32>
    %1035 = vector.extract_strided_slice %1015 {offsets = [0, 256], sizes = [2, 128], strides = [1, 1]} : vector<2x384xf32> to vector<2x128xf32>
    %1036 = arith.mulf %1024, %1035 : vector<2x128xf32>
    %1037 = arith.addf %1034, %1036 : vector<2x128xf32>
    %1038 = math.tanh %1037 : vector<2x128xf32>
    %cst_257 = arith.constant 1.000000e+00 : f32
    %1039 = vector.broadcast %cst_257 : f32 to vector<2x128xf32>
    %1040 = arith.subf %1039, %1033 : vector<2x128xf32>
    %1041 = arith.mulf %1040, %1038 : vector<2x128xf32>
    %1042 = arith.mulf %1033, %1009 : vector<2x128xf32>
    %1043 = arith.addf %1041, %1042 : vector<2x128xf32>
    %c12_258 = arith.constant 12 : index
    %c0_259 = arith.constant 0 : index
    %1044 = vector.load %arg13[%c12_258, %c0_259] : memref<30x128xf32, #tpu.memory_space<vmem>>, vector<2x128xf32>
    tpu.vector_store %arg13[%c12_258, %c0_259], %1043 {strides = array<i32>} : memref<30x128xf32, #tpu.memory_space<vmem>>, vector<2x128xf32>,
    %1045 = vector.extract_strided_slice %802 {offsets = [14, 0], sizes = [2, 384], strides = [1, 1]} : vector<30x384xf32> to vector<2x384xf32>
    %1046 = arith.truncf %1043 : vector<2x128xf32> to vector<2x128xbf16>
    %cst_260 = arith.constant dense<0.000000e+00> : vector<2x384xf32>
    %1047 = tpu.matmul %1046, %804, %cst_260 {dimension_numbers = #tpu.dot_dimension_numbers<[1], [0], [0], [1], [0, 0, 1, 1], [], []>} : vector<2x128xbf16>, vector<128x384xbf16>, vector<2x384xf32> -> vector<2x384xf32>
    %1048 = vector.broadcast %805 : vector<1x384xf32> to vector<2x384xf32>
    %1049 = arith.addf %1047, %1048 : vector<2x384xf32>
    %1050 = vector.extract_strided_slice %1045 {offsets = [0, 0], sizes = [2, 128], strides = [1, 1]} : vector<2x384xf32> to vector<2x128xf32>
    %1051 = vector.extract_strided_slice %1049 {offsets = [0, 0], sizes = [2, 128], strides = [1, 1]} : vector<2x384xf32> to vector<2x128xf32>
    %1052 = arith.addf %1050, %1051 : vector<2x128xf32>
    %cst_261 = arith.constant 0.000000e+00 : f32
    %1053 = vector.broadcast %cst_261 : f32 to vector<2x128xf32>
    %1054 = arith.subf %1053, %1052 : vector<2x128xf32>
    %1055 = math.exp %1054 : vector<2x128xf32>
    %cst_262 = arith.constant 1.000000e+00 : f32
    %1056 = vector.broadcast %cst_262 : f32 to vector<2x128xf32>
    %1057 = arith.addf %1056, %1055 : vector<2x128xf32>
    %1058 = tpu.reciprocal %1057 {approx = true} : vector<2x128xf32> -> vector<2x128xf32>
    %1059 = vector.extract_strided_slice %1045 {offsets = [0, 128], sizes = [2, 128], strides = [1, 1]} : vector<2x384xf32> to vector<2x128xf32>
    %1060 = vector.extract_strided_slice %1049 {offsets = [0, 128], sizes = [2, 128], strides = [1, 1]} : vector<2x384xf32> to vector<2x128xf32>
    %1061 = arith.addf %1059, %1060 : vector<2x128xf32>
    %cst_263 = arith.constant 0.000000e+00 : f32
    %1062 = vector.broadcast %cst_263 : f32 to vector<2x128xf32>
    %1063 = arith.subf %1062, %1061 : vector<2x128xf32>
    %1064 = math.exp %1063 : vector<2x128xf32>
    %cst_264 = arith.constant 1.000000e+00 : f32
    %1065 = vector.broadcast %cst_264 : f32 to vector<2x128xf32>
    %1066 = arith.addf %1065, %1064 : vector<2x128xf32>
    %1067 = tpu.reciprocal %1066 {approx = true} : vector<2x128xf32> -> vector<2x128xf32>
    %1068 = vector.extract_strided_slice %1045 {offsets = [0, 256], sizes = [2, 128], strides = [1, 1]} : vector<2x384xf32> to vector<2x128xf32>
    %1069 = vector.extract_strided_slice %1049 {offsets = [0, 256], sizes = [2, 128], strides = [1, 1]} : vector<2x384xf32> to vector<2x128xf32>
    %1070 = arith.mulf %1058, %1069 : vector<2x128xf32>
    %1071 = arith.addf %1068, %1070 : vector<2x128xf32>
    %1072 = math.tanh %1071 : vector<2x128xf32>
    %cst_265 = arith.constant 1.000000e+00 : f32
    %1073 = vector.broadcast %cst_265 : f32 to vector<2x128xf32>
    %1074 = arith.subf %1073, %1067 : vector<2x128xf32>
    %1075 = arith.mulf %1074, %1072 : vector<2x128xf32>
    %1076 = arith.mulf %1067, %1043 : vector<2x128xf32>
    %1077 = arith.addf %1075, %1076 : vector<2x128xf32>
    %c14_266 = arith.constant 14 : index
    %c0_267 = arith.constant 0 : index
    %1078 = vector.load %arg13[%c14_266, %c0_267] : memref<30x128xf32, #tpu.memory_space<vmem>>, vector<2x128xf32>
    tpu.vector_store %arg13[%c14_266, %c0_267], %1077 {strides = array<i32>} : memref<30x128xf32, #tpu.memory_space<vmem>>, vector<2x128xf32>,
    %1079 = vector.extract_strided_slice %802 {offsets = [16, 0], sizes = [2, 384], strides = [1, 1]} : vector<30x384xf32> to vector<2x384xf32>
    %1080 = arith.truncf %1077 : vector<2x128xf32> to vector<2x128xbf16>
    %cst_268 = arith.constant dense<0.000000e+00> : vector<2x384xf32>
    %1081 = tpu.matmul %1080, %804, %cst_268 {dimension_numbers = #tpu.dot_dimension_numbers<[1], [0], [0], [1], [0, 0, 1, 1], [], []>} : vector<2x128xbf16>, vector<128x384xbf16>, vector<2x384xf32> -> vector<2x384xf32>
    %1082 = vector.broadcast %805 : vector<1x384xf32> to vector<2x384xf32>
    %1083 = arith.addf %1081, %1082 : vector<2x384xf32>
    %1084 = vector.extract_strided_slice %1079 {offsets = [0, 0], sizes = [2, 128], strides = [1, 1]} : vector<2x384xf32> to vector<2x128xf32>
    %1085 = vector.extract_strided_slice %1083 {offsets = [0, 0], sizes = [2, 128], strides = [1, 1]} : vector<2x384xf32> to vector<2x128xf32>
    %1086 = arith.addf %1084, %1085 : vector<2x128xf32>
    %cst_269 = arith.constant 0.000000e+00 : f32
    %1087 = vector.broadcast %cst_269 : f32 to vector<2x128xf32>
    %1088 = arith.subf %1087, %1086 : vector<2x128xf32>
    %1089 = math.exp %1088 : vector<2x128xf32>
    %cst_270 = arith.constant 1.000000e+00 : f32
    %1090 = vector.broadcast %cst_270 : f32 to vector<2x128xf32>
    %1091 = arith.addf %1090, %1089 : vector<2x128xf32>
    %1092 = tpu.reciprocal %1091 {approx = true} : vector<2x128xf32> -> vector<2x128xf32>
    %1093 = vector.extract_strided_slice %1079 {offsets = [0, 128], sizes = [2, 128], strides = [1, 1]} : vector<2x384xf32> to vector<2x128xf32>
    %1094 = vector.extract_strided_slice %1083 {offsets = [0, 128], sizes = [2, 128], strides = [1, 1]} : vector<2x384xf32> to vector<2x128xf32>
    %1095 = arith.addf %1093, %1094 : vector<2x128xf32>
    %cst_271 = arith.constant 0.000000e+00 : f32
    %1096 = vector.broadcast %cst_271 : f32 to vector<2x128xf32>
    %1097 = arith.subf %1096, %1095 : vector<2x128xf32>
    %1098 = math.exp %1097 : vector<2x128xf32>
    %cst_272 = arith.constant 1.000000e+00 : f32
    %1099 = vector.broadcast %cst_272 : f32 to vector<2x128xf32>
    %1100 = arith.addf %1099, %1098 : vector<2x128xf32>
    %1101 = tpu.reciprocal %1100 {approx = true} : vector<2x128xf32> -> vector<2x128xf32>
    %1102 = vector.extract_strided_slice %1079 {offsets = [0, 256], sizes = [2, 128], strides = [1, 1]} : vector<2x384xf32> to vector<2x128xf32>
    %1103 = vector.extract_strided_slice %1083 {offsets = [0, 256], sizes = [2, 128], strides = [1, 1]} : vector<2x384xf32> to vector<2x128xf32>
    %1104 = arith.mulf %1092, %1103 : vector<2x128xf32>
    %1105 = arith.addf %1102, %1104 : vector<2x128xf32>
    %1106 = math.tanh %1105 : vector<2x128xf32>
    %cst_273 = arith.constant 1.000000e+00 : f32
    %1107 = vector.broadcast %cst_273 : f32 to vector<2x128xf32>
    %1108 = arith.subf %1107, %1101 : vector<2x128xf32>
    %1109 = arith.mulf %1108, %1106 : vector<2x128xf32>
    %1110 = arith.mulf %1101, %1077 : vector<2x128xf32>
    %1111 = arith.addf %1109, %1110 : vector<2x128xf32>
    %c16_274 = arith.constant 16 : index
    %c0_275 = arith.constant 0 : index
    %1112 = vector.load %arg13[%c16_274, %c0_275] : memref<30x128xf32, #tpu.memory_space<vmem>>, vector<2x128xf32>
    tpu.vector_store %arg13[%c16_274, %c0_275], %1111 {strides = array<i32>} : memref<30x128xf32, #tpu.memory_space<vmem>>, vector<2x128xf32>,
    %1113 = vector.extract_strided_slice %802 {offsets = [18, 0], sizes = [2, 384], strides = [1, 1]} : vector<30x384xf32> to vector<2x384xf32>
    %1114 = arith.truncf %1111 : vector<2x128xf32> to vector<2x128xbf16>
    %cst_276 = arith.constant dense<0.000000e+00> : vector<2x384xf32>
    %1115 = tpu.matmul %1114, %804, %cst_276 {dimension_numbers = #tpu.dot_dimension_numbers<[1], [0], [0], [1], [0, 0, 1, 1], [], []>} : vector<2x128xbf16>, vector<128x384xbf16>, vector<2x384xf32> -> vector<2x384xf32>
    %1116 = vector.broadcast %805 : vector<1x384xf32> to vector<2x384xf32>
    %1117 = arith.addf %1115, %1116 : vector<2x384xf32>
    %1118 = vector.extract_strided_slice %1113 {offsets = [0, 0], sizes = [2, 128], strides = [1, 1]} : vector<2x384xf32> to vector<2x128xf32>
    %1119 = vector.extract_strided_slice %1117 {offsets = [0, 0], sizes = [2, 128], strides = [1, 1]} : vector<2x384xf32> to vector<2x128xf32>
    %1120 = arith.addf %1118, %1119 : vector<2x128xf32>
    %cst_277 = arith.constant 0.000000e+00 : f32
    %1121 = vector.broadcast %cst_277 : f32 to vector<2x128xf32>
    %1122 = arith.subf %1121, %1120 : vector<2x128xf32>
    %1123 = math.exp %1122 : vector<2x128xf32>
    %cst_278 = arith.constant 1.000000e+00 : f32
    %1124 = vector.broadcast %cst_278 : f32 to vector<2x128xf32>
    %1125 = arith.addf %1124, %1123 : vector<2x128xf32>
    %1126 = tpu.reciprocal %1125 {approx = true} : vector<2x128xf32> -> vector<2x128xf32>
    %1127 = vector.extract_strided_slice %1113 {offsets = [0, 128], sizes = [2, 128], strides = [1, 1]} : vector<2x384xf32> to vector<2x128xf32>
    %1128 = vector.extract_strided_slice %1117 {offsets = [0, 128], sizes = [2, 128], strides = [1, 1]} : vector<2x384xf32> to vector<2x128xf32>
    %1129 = arith.addf %1127, %1128 : vector<2x128xf32>
    %cst_279 = arith.constant 0.000000e+00 : f32
    %1130 = vector.broadcast %cst_279 : f32 to vector<2x128xf32>
    %1131 = arith.subf %1130, %1129 : vector<2x128xf32>
    %1132 = math.exp %1131 : vector<2x128xf32>
    %cst_280 = arith.constant 1.000000e+00 : f32
    %1133 = vector.broadcast %cst_280 : f32 to vector<2x128xf32>
    %1134 = arith.addf %1133, %1132 : vector<2x128xf32>
    %1135 = tpu.reciprocal %1134 {approx = true} : vector<2x128xf32> -> vector<2x128xf32>
    %1136 = vector.extract_strided_slice %1113 {offsets = [0, 256], sizes = [2, 128], strides = [1, 1]} : vector<2x384xf32> to vector<2x128xf32>
    %1137 = vector.extract_strided_slice %1117 {offsets = [0, 256], sizes = [2, 128], strides = [1, 1]} : vector<2x384xf32> to vector<2x128xf32>
    %1138 = arith.mulf %1126, %1137 : vector<2x128xf32>
    %1139 = arith.addf %1136, %1138 : vector<2x128xf32>
    %1140 = math.tanh %1139 : vector<2x128xf32>
    %cst_281 = arith.constant 1.000000e+00 : f32
    %1141 = vector.broadcast %cst_281 : f32 to vector<2x128xf32>
    %1142 = arith.subf %1141, %1135 : vector<2x128xf32>
    %1143 = arith.mulf %1142, %1140 : vector<2x128xf32>
    %1144 = arith.mulf %1135, %1111 : vector<2x128xf32>
    %1145 = arith.addf %1143, %1144 : vector<2x128xf32>
    %c18_282 = arith.constant 18 : index
    %c0_283 = arith.constant 0 : index
    %1146 = vector.load %arg13[%c18_282, %c0_283] : memref<30x128xf32, #tpu.memory_space<vmem>>, vector<2x128xf32>
    tpu.vector_store %arg13[%c18_282, %c0_283], %1145 {strides = array<i32>} : memref<30x128xf32, #tpu.memory_space<vmem>>, vector<2x128xf32>,
    %1147 = vector.extract_strided_slice %802 {offsets = [20, 0], sizes = [2, 384], strides = [1, 1]} : vector<30x384xf32> to vector<2x384xf32>
    %1148 = arith.truncf %1145 : vector<2x128xf32> to vector<2x128xbf16>
    %cst_284 = arith.constant dense<0.000000e+00> : vector<2x384xf32>
    %1149 = tpu.matmul %1148, %804, %cst_284 {dimension_numbers = #tpu.dot_dimension_numbers<[1], [0], [0], [1], [0, 0, 1, 1], [], []>} : vector<2x128xbf16>, vector<128x384xbf16>, vector<2x384xf32> -> vector<2x384xf32>
    %1150 = vector.broadcast %805 : vector<1x384xf32> to vector<2x384xf32>
    %1151 = arith.addf %1149, %1150 : vector<2x384xf32>
    %1152 = vector.extract_strided_slice %1147 {offsets = [0, 0], sizes = [2, 128], strides = [1, 1]} : vector<2x384xf32> to vector<2x128xf32>
    %1153 = vector.extract_strided_slice %1151 {offsets = [0, 0], sizes = [2, 128], strides = [1, 1]} : vector<2x384xf32> to vector<2x128xf32>
    %1154 = arith.addf %1152, %1153 : vector<2x128xf32>
    %cst_285 = arith.constant 0.000000e+00 : f32
    %1155 = vector.broadcast %cst_285 : f32 to vector<2x128xf32>
    %1156 = arith.subf %1155, %1154 : vector<2x128xf32>
    %1157 = math.exp %1156 : vector<2x128xf32>
    %cst_286 = arith.constant 1.000000e+00 : f32
    %1158 = vector.broadcast %cst_286 : f32 to vector<2x128xf32>
    %1159 = arith.addf %1158, %1157 : vector<2x128xf32>
    %1160 = tpu.reciprocal %1159 {approx = true} : vector<2x128xf32> -> vector<2x128xf32>
    %1161 = vector.extract_strided_slice %1147 {offsets = [0, 128], sizes = [2, 128], strides = [1, 1]} : vector<2x384xf32> to vector<2x128xf32>
    %1162 = vector.extract_strided_slice %1151 {offsets = [0, 128], sizes = [2, 128], strides = [1, 1]} : vector<2x384xf32> to vector<2x128xf32>
    %1163 = arith.addf %1161, %1162 : vector<2x128xf32>
    %cst_287 = arith.constant 0.000000e+00 : f32
    %1164 = vector.broadcast %cst_287 : f32 to vector<2x128xf32>
    %1165 = arith.subf %1164, %1163 : vector<2x128xf32>
    %1166 = math.exp %1165 : vector<2x128xf32>
    %cst_288 = arith.constant 1.000000e+00 : f32
    %1167 = vector.broadcast %cst_288 : f32 to vector<2x128xf32>
    %1168 = arith.addf %1167, %1166 : vector<2x128xf32>
    %1169 = tpu.reciprocal %1168 {approx = true} : vector<2x128xf32> -> vector<2x128xf32>
    %1170 = vector.extract_strided_slice %1147 {offsets = [0, 256], sizes = [2, 128], strides = [1, 1]} : vector<2x384xf32> to vector<2x128xf32>
    %1171 = vector.extract_strided_slice %1151 {offsets = [0, 256], sizes = [2, 128], strides = [1, 1]} : vector<2x384xf32> to vector<2x128xf32>
    %1172 = arith.mulf %1160, %1171 : vector<2x128xf32>
    %1173 = arith.addf %1170, %1172 : vector<2x128xf32>
    %1174 = math.tanh %1173 : vector<2x128xf32>
    %cst_289 = arith.constant 1.000000e+00 : f32
    %1175 = vector.broadcast %cst_289 : f32 to vector<2x128xf32>
    %1176 = arith.subf %1175, %1169 : vector<2x128xf32>
    %1177 = arith.mulf %1176, %1174 : vector<2x128xf32>
    %1178 = arith.mulf %1169, %1145 : vector<2x128xf32>
    %1179 = arith.addf %1177, %1178 : vector<2x128xf32>
    %c20_290 = arith.constant 20 : index
    %c0_291 = arith.constant 0 : index
    %1180 = vector.load %arg13[%c20_290, %c0_291] : memref<30x128xf32, #tpu.memory_space<vmem>>, vector<2x128xf32>
    tpu.vector_store %arg13[%c20_290, %c0_291], %1179 {strides = array<i32>} : memref<30x128xf32, #tpu.memory_space<vmem>>, vector<2x128xf32>,
    %1181 = vector.extract_strided_slice %802 {offsets = [22, 0], sizes = [2, 384], strides = [1, 1]} : vector<30x384xf32> to vector<2x384xf32>
    %1182 = arith.truncf %1179 : vector<2x128xf32> to vector<2x128xbf16>
    %cst_292 = arith.constant dense<0.000000e+00> : vector<2x384xf32>
    %1183 = tpu.matmul %1182, %804, %cst_292 {dimension_numbers = #tpu.dot_dimension_numbers<[1], [0], [0], [1], [0, 0, 1, 1], [], []>} : vector<2x128xbf16>, vector<128x384xbf16>, vector<2x384xf32> -> vector<2x384xf32>
    %1184 = vector.broadcast %805 : vector<1x384xf32> to vector<2x384xf32>
    %1185 = arith.addf %1183, %1184 : vector<2x384xf32>
    %1186 = vector.extract_strided_slice %1181 {offsets = [0, 0], sizes = [2, 128], strides = [1, 1]} : vector<2x384xf32> to vector<2x128xf32>
    %1187 = vector.extract_strided_slice %1185 {offsets = [0, 0], sizes = [2, 128], strides = [1, 1]} : vector<2x384xf32> to vector<2x128xf32>
    %1188 = arith.addf %1186, %1187 : vector<2x128xf32>
    %cst_293 = arith.constant 0.000000e+00 : f32
    %1189 = vector.broadcast %cst_293 : f32 to vector<2x128xf32>
    %1190 = arith.subf %1189, %1188 : vector<2x128xf32>
    %1191 = math.exp %1190 : vector<2x128xf32>
    %cst_294 = arith.constant 1.000000e+00 : f32
    %1192 = vector.broadcast %cst_294 : f32 to vector<2x128xf32>
    %1193 = arith.addf %1192, %1191 : vector<2x128xf32>
    %1194 = tpu.reciprocal %1193 {approx = true} : vector<2x128xf32> -> vector<2x128xf32>
    %1195 = vector.extract_strided_slice %1181 {offsets = [0, 128], sizes = [2, 128], strides = [1, 1]} : vector<2x384xf32> to vector<2x128xf32>
    %1196 = vector.extract_strided_slice %1185 {offsets = [0, 128], sizes = [2, 128], strides = [1, 1]} : vector<2x384xf32> to vector<2x128xf32>
    %1197 = arith.addf %1195, %1196 : vector<2x128xf32>
    %cst_295 = arith.constant 0.000000e+00 : f32
    %1198 = vector.broadcast %cst_295 : f32 to vector<2x128xf32>
    %1199 = arith.subf %1198, %1197 : vector<2x128xf32>
    %1200 = math.exp %1199 : vector<2x128xf32>
    %cst_296 = arith.constant 1.000000e+00 : f32
    %1201 = vector.broadcast %cst_296 : f32 to vector<2x128xf32>
    %1202 = arith.addf %1201, %1200 : vector<2x128xf32>
    %1203 = tpu.reciprocal %1202 {approx = true} : vector<2x128xf32> -> vector<2x128xf32>
    %1204 = vector.extract_strided_slice %1181 {offsets = [0, 256], sizes = [2, 128], strides = [1, 1]} : vector<2x384xf32> to vector<2x128xf32>
    %1205 = vector.extract_strided_slice %1185 {offsets = [0, 256], sizes = [2, 128], strides = [1, 1]} : vector<2x384xf32> to vector<2x128xf32>
    %1206 = arith.mulf %1194, %1205 : vector<2x128xf32>
    %1207 = arith.addf %1204, %1206 : vector<2x128xf32>
    %1208 = math.tanh %1207 : vector<2x128xf32>
    %cst_297 = arith.constant 1.000000e+00 : f32
    %1209 = vector.broadcast %cst_297 : f32 to vector<2x128xf32>
    %1210 = arith.subf %1209, %1203 : vector<2x128xf32>
    %1211 = arith.mulf %1210, %1208 : vector<2x128xf32>
    %1212 = arith.mulf %1203, %1179 : vector<2x128xf32>
    %1213 = arith.addf %1211, %1212 : vector<2x128xf32>
    %c22_298 = arith.constant 22 : index
    %c0_299 = arith.constant 0 : index
    %1214 = vector.load %arg13[%c22_298, %c0_299] : memref<30x128xf32, #tpu.memory_space<vmem>>, vector<2x128xf32>
    tpu.vector_store %arg13[%c22_298, %c0_299], %1213 {strides = array<i32>} : memref<30x128xf32, #tpu.memory_space<vmem>>, vector<2x128xf32>,
    %1215 = vector.extract_strided_slice %802 {offsets = [24, 0], sizes = [2, 384], strides = [1, 1]} : vector<30x384xf32> to vector<2x384xf32>
    %1216 = arith.truncf %1213 : vector<2x128xf32> to vector<2x128xbf16>
    %cst_300 = arith.constant dense<0.000000e+00> : vector<2x384xf32>
    %1217 = tpu.matmul %1216, %804, %cst_300 {dimension_numbers = #tpu.dot_dimension_numbers<[1], [0], [0], [1], [0, 0, 1, 1], [], []>} : vector<2x128xbf16>, vector<128x384xbf16>, vector<2x384xf32> -> vector<2x384xf32>
    %1218 = vector.broadcast %805 : vector<1x384xf32> to vector<2x384xf32>
    %1219 = arith.addf %1217, %1218 : vector<2x384xf32>
    %1220 = vector.extract_strided_slice %1215 {offsets = [0, 0], sizes = [2, 128], strides = [1, 1]} : vector<2x384xf32> to vector<2x128xf32>
    %1221 = vector.extract_strided_slice %1219 {offsets = [0, 0], sizes = [2, 128], strides = [1, 1]} : vector<2x384xf32> to vector<2x128xf32>
    %1222 = arith.addf %1220, %1221 : vector<2x128xf32>
    %cst_301 = arith.constant 0.000000e+00 : f32
    %1223 = vector.broadcast %cst_301 : f32 to vector<2x128xf32>
    %1224 = arith.subf %1223, %1222 : vector<2x128xf32>
    %1225 = math.exp %1224 : vector<2x128xf32>
    %cst_302 = arith.constant 1.000000e+00 : f32
    %1226 = vector.broadcast %cst_302 : f32 to vector<2x128xf32>
    %1227 = arith.addf %1226, %1225 : vector<2x128xf32>
    %1228 = tpu.reciprocal %1227 {approx = true} : vector<2x128xf32> -> vector<2x128xf32>
    %1229 = vector.extract_strided_slice %1215 {offsets = [0, 128], sizes = [2, 128], strides = [1, 1]} : vector<2x384xf32> to vector<2x128xf32>
    %1230 = vector.extract_strided_slice %1219 {offsets = [0, 128], sizes = [2, 128], strides = [1, 1]} : vector<2x384xf32> to vector<2x128xf32>
    %1231 = arith.addf %1229, %1230 : vector<2x128xf32>
    %cst_303 = arith.constant 0.000000e+00 : f32
    %1232 = vector.broadcast %cst_303 : f32 to vector<2x128xf32>
    %1233 = arith.subf %1232, %1231 : vector<2x128xf32>
    %1234 = math.exp %1233 : vector<2x128xf32>
    %cst_304 = arith.constant 1.000000e+00 : f32
    %1235 = vector.broadcast %cst_304 : f32 to vector<2x128xf32>
    %1236 = arith.addf %1235, %1234 : vector<2x128xf32>
    %1237 = tpu.reciprocal %1236 {approx = true} : vector<2x128xf32> -> vector<2x128xf32>
    %1238 = vector.extract_strided_slice %1215 {offsets = [0, 256], sizes = [2, 128], strides = [1, 1]} : vector<2x384xf32> to vector<2x128xf32>
    %1239 = vector.extract_strided_slice %1219 {offsets = [0, 256], sizes = [2, 128], strides = [1, 1]} : vector<2x384xf32> to vector<2x128xf32>
    %1240 = arith.mulf %1228, %1239 : vector<2x128xf32>
    %1241 = arith.addf %1238, %1240 : vector<2x128xf32>
    %1242 = math.tanh %1241 : vector<2x128xf32>
    %cst_305 = arith.constant 1.000000e+00 : f32
    %1243 = vector.broadcast %cst_305 : f32 to vector<2x128xf32>
    %1244 = arith.subf %1243, %1237 : vector<2x128xf32>
    %1245 = arith.mulf %1244, %1242 : vector<2x128xf32>
    %1246 = arith.mulf %1237, %1213 : vector<2x128xf32>
    %1247 = arith.addf %1245, %1246 : vector<2x128xf32>
    %c24_306 = arith.constant 24 : index
    %c0_307 = arith.constant 0 : index
    %1248 = vector.load %arg13[%c24_306, %c0_307] : memref<30x128xf32, #tpu.memory_space<vmem>>, vector<2x128xf32>
    tpu.vector_store %arg13[%c24_306, %c0_307], %1247 {strides = array<i32>} : memref<30x128xf32, #tpu.memory_space<vmem>>, vector<2x128xf32>,
    %1249 = vector.extract_strided_slice %802 {offsets = [26, 0], sizes = [2, 384], strides = [1, 1]} : vector<30x384xf32> to vector<2x384xf32>
    %1250 = arith.truncf %1247 : vector<2x128xf32> to vector<2x128xbf16>
    %cst_308 = arith.constant dense<0.000000e+00> : vector<2x384xf32>
    %1251 = tpu.matmul %1250, %804, %cst_308 {dimension_numbers = #tpu.dot_dimension_numbers<[1], [0], [0], [1], [0, 0, 1, 1], [], []>} : vector<2x128xbf16>, vector<128x384xbf16>, vector<2x384xf32> -> vector<2x384xf32>
    %1252 = vector.broadcast %805 : vector<1x384xf32> to vector<2x384xf32>
    %1253 = arith.addf %1251, %1252 : vector<2x384xf32>
    %1254 = vector.extract_strided_slice %1249 {offsets = [0, 0], sizes = [2, 128], strides = [1, 1]} : vector<2x384xf32> to vector<2x128xf32>
    %1255 = vector.extract_strided_slice %1253 {offsets = [0, 0], sizes = [2, 128], strides = [1, 1]} : vector<2x384xf32> to vector<2x128xf32>
    %1256 = arith.addf %1254, %1255 : vector<2x128xf32>
    %cst_309 = arith.constant 0.000000e+00 : f32
    %1257 = vector.broadcast %cst_309 : f32 to vector<2x128xf32>
    %1258 = arith.subf %1257, %1256 : vector<2x128xf32>
    %1259 = math.exp %1258 : vector<2x128xf32>
    %cst_310 = arith.constant 1.000000e+00 : f32
    %1260 = vector.broadcast %cst_310 : f32 to vector<2x128xf32>
    %1261 = arith.addf %1260, %1259 : vector<2x128xf32>
    %1262 = tpu.reciprocal %1261 {approx = true} : vector<2x128xf32> -> vector<2x128xf32>
    %1263 = vector.extract_strided_slice %1249 {offsets = [0, 128], sizes = [2, 128], strides = [1, 1]} : vector<2x384xf32> to vector<2x128xf32>
    %1264 = vector.extract_strided_slice %1253 {offsets = [0, 128], sizes = [2, 128], strides = [1, 1]} : vector<2x384xf32> to vector<2x128xf32>
    %1265 = arith.addf %1263, %1264 : vector<2x128xf32>
    %cst_311 = arith.constant 0.000000e+00 : f32
    %1266 = vector.broadcast %cst_311 : f32 to vector<2x128xf32>
    %1267 = arith.subf %1266, %1265 : vector<2x128xf32>
    %1268 = math.exp %1267 : vector<2x128xf32>
    %cst_312 = arith.constant 1.000000e+00 : f32
    %1269 = vector.broadcast %cst_312 : f32 to vector<2x128xf32>
    %1270 = arith.addf %1269, %1268 : vector<2x128xf32>
    %1271 = tpu.reciprocal %1270 {approx = true} : vector<2x128xf32> -> vector<2x128xf32>
    %1272 = vector.extract_strided_slice %1249 {offsets = [0, 256], sizes = [2, 128], strides = [1, 1]} : vector<2x384xf32> to vector<2x128xf32>
    %1273 = vector.extract_strided_slice %1253 {offsets = [0, 256], sizes = [2, 128], strides = [1, 1]} : vector<2x384xf32> to vector<2x128xf32>
    %1274 = arith.mulf %1262, %1273 : vector<2x128xf32>
    %1275 = arith.addf %1272, %1274 : vector<2x128xf32>
    %1276 = math.tanh %1275 : vector<2x128xf32>
    %cst_313 = arith.constant 1.000000e+00 : f32
    %1277 = vector.broadcast %cst_313 : f32 to vector<2x128xf32>
    %1278 = arith.subf %1277, %1271 : vector<2x128xf32>
    %1279 = arith.mulf %1278, %1276 : vector<2x128xf32>
    %1280 = arith.mulf %1271, %1247 : vector<2x128xf32>
    %1281 = arith.addf %1279, %1280 : vector<2x128xf32>
    %c26_314 = arith.constant 26 : index
    %c0_315 = arith.constant 0 : index
    %1282 = vector.load %arg13[%c26_314, %c0_315] : memref<30x128xf32, #tpu.memory_space<vmem>>, vector<2x128xf32>
    tpu.vector_store %arg13[%c26_314, %c0_315], %1281 {strides = array<i32>} : memref<30x128xf32, #tpu.memory_space<vmem>>, vector<2x128xf32>,
    %1283 = vector.extract_strided_slice %802 {offsets = [28, 0], sizes = [2, 384], strides = [1, 1]} : vector<30x384xf32> to vector<2x384xf32>
    %1284 = arith.truncf %1281 : vector<2x128xf32> to vector<2x128xbf16>
    %cst_316 = arith.constant dense<0.000000e+00> : vector<2x384xf32>
    %1285 = tpu.matmul %1284, %804, %cst_316 {dimension_numbers = #tpu.dot_dimension_numbers<[1], [0], [0], [1], [0, 0, 1, 1], [], []>} : vector<2x128xbf16>, vector<128x384xbf16>, vector<2x384xf32> -> vector<2x384xf32>
    %1286 = vector.broadcast %805 : vector<1x384xf32> to vector<2x384xf32>
    %1287 = arith.addf %1285, %1286 : vector<2x384xf32>
    %1288 = vector.extract_strided_slice %1283 {offsets = [0, 0], sizes = [2, 128], strides = [1, 1]} : vector<2x384xf32> to vector<2x128xf32>
    %1289 = vector.extract_strided_slice %1287 {offsets = [0, 0], sizes = [2, 128], strides = [1, 1]} : vector<2x384xf32> to vector<2x128xf32>
    %1290 = arith.addf %1288, %1289 : vector<2x128xf32>
    %cst_317 = arith.constant 0.000000e+00 : f32
    %1291 = vector.broadcast %cst_317 : f32 to vector<2x128xf32>
    %1292 = arith.subf %1291, %1290 : vector<2x128xf32>
    %1293 = math.exp %1292 : vector<2x128xf32>
    %cst_318 = arith.constant 1.000000e+00 : f32
    %1294 = vector.broadcast %cst_318 : f32 to vector<2x128xf32>
    %1295 = arith.addf %1294, %1293 : vector<2x128xf32>
    %1296 = tpu.reciprocal %1295 {approx = true} : vector<2x128xf32> -> vector<2x128xf32>
    %1297 = vector.extract_strided_slice %1283 {offsets = [0, 128], sizes = [2, 128], strides = [1, 1]} : vector<2x384xf32> to vector<2x128xf32>
    %1298 = vector.extract_strided_slice %1287 {offsets = [0, 128], sizes = [2, 128], strides = [1, 1]} : vector<2x384xf32> to vector<2x128xf32>
    %1299 = arith.addf %1297, %1298 : vector<2x128xf32>
    %cst_319 = arith.constant 0.000000e+00 : f32
    %1300 = vector.broadcast %cst_319 : f32 to vector<2x128xf32>
    %1301 = arith.subf %1300, %1299 : vector<2x128xf32>
    %1302 = math.exp %1301 : vector<2x128xf32>
    %cst_320 = arith.constant 1.000000e+00 : f32
    %1303 = vector.broadcast %cst_320 : f32 to vector<2x128xf32>
    %1304 = arith.addf %1303, %1302 : vector<2x128xf32>
    %1305 = tpu.reciprocal %1304 {approx = true} : vector<2x128xf32> -> vector<2x128xf32>
    %1306 = vector.extract_strided_slice %1283 {offsets = [0, 256], sizes = [2, 128], strides = [1, 1]} : vector<2x384xf32> to vector<2x128xf32>
    %1307 = vector.extract_strided_slice %1287 {offsets = [0, 256], sizes = [2, 128], strides = [1, 1]} : vector<2x384xf32> to vector<2x128xf32>
    %1308 = arith.mulf %1296, %1307 : vector<2x128xf32>
    %1309 = arith.addf %1306, %1308 : vector<2x128xf32>
    %1310 = math.tanh %1309 : vector<2x128xf32>
    %cst_321 = arith.constant 1.000000e+00 : f32
    %1311 = vector.broadcast %cst_321 : f32 to vector<2x128xf32>
    %1312 = arith.subf %1311, %1305 : vector<2x128xf32>
    %1313 = arith.mulf %1312, %1310 : vector<2x128xf32>
    %1314 = arith.mulf %1305, %1281 : vector<2x128xf32>
    %1315 = arith.addf %1313, %1314 : vector<2x128xf32>
    %c28_322 = arith.constant 28 : index
    %c0_323 = arith.constant 0 : index
    %1316 = vector.load %arg13[%c28_322, %c0_323] : memref<30x128xf32, #tpu.memory_space<vmem>>, vector<2x128xf32>
    tpu.vector_store %arg13[%c28_322, %c0_323], %1315 {strides = array<i32>} : memref<30x128xf32, #tpu.memory_space<vmem>>, vector<2x128xf32>,
    %c0_324 = arith.constant 0 : index
    %c0_325 = arith.constant 0 : index
    %1317 = vector.load %arg13[%c0_324, %c0_325] : memref<30x128xf32, #tpu.memory_space<vmem>>, vector<30x128xf32>
    %1318 = arith.truncf %1317 : vector<30x128xf32> to vector<30x128xbf16>
    %c2_326 = arith.constant 2 : index
    %c0_327 = arith.constant 0 : index
    %c0_328 = arith.constant 0 : index
    %1319 = vector.load %arg8[%c2_326, %c0_327, %c0_328] : memref<3x128x384xbf16, #tpu.memory_space<vmem>>, vector<1x128x384xbf16>
    %1320 = vector.shape_cast %1319 : vector<1x128x384xbf16> to vector<128x384xbf16>
    %cst_329 = arith.constant dense<0.000000e+00> : vector<30x384xf32>
    %1321 = tpu.matmul %1318, %1320, %cst_329 {dimension_numbers = #tpu.dot_dimension_numbers<[1], [0], [0], [1], [0, 0, 1, 1], [], []>} : vector<30x128xbf16>, vector<128x384xbf16>, vector<30x384xf32> -> vector<30x384xf32>
    %1322 = vector.extract_strided_slice %274 {offsets = [2, 0], sizes = [1, 384], strides = [1, 1]} : vector<6x384xf32> to vector<1x384xf32>
    %1323 = vector.broadcast %1322 : vector<1x384xf32> to vector<30x384xf32>
    %1324 = arith.addf %1321, %1323 : vector<30x384xf32>
    %c2_330 = arith.constant 2 : index
    %c0_331 = arith.constant 0 : index
    %c0_332 = arith.constant 0 : index
    %1325 = vector.load %arg9[%c2_330, %c0_331, %c0_332] : memref<3x128x384xbf16, #tpu.memory_space<vmem>>, vector<1x128x384xbf16>
    %1326 = vector.shape_cast %1325 : vector<1x128x384xbf16> to vector<128x384xbf16>
    %1327 = vector.extract_strided_slice %274 {offsets = [5, 0], sizes = [1, 384], strides = [1, 1]} : vector<6x384xf32> to vector<1x384xf32>
    %cst_333 = arith.constant 0.000000e+00 : f32
    %1328 = vector.broadcast %cst_333 : f32 to vector<2x128xf32>
    %1329 = vector.extract_strided_slice %1324 {offsets = [0, 0], sizes = [2, 384], strides = [1, 1]} : vector<30x384xf32> to vector<2x384xf32>
    %1330 = arith.truncf %1328 : vector<2x128xf32> to vector<2x128xbf16>
    %cst_334 = arith.constant dense<0.000000e+00> : vector<2x384xf32>
    %1331 = tpu.matmul %1330, %1326, %cst_334 {dimension_numbers = #tpu.dot_dimension_numbers<[1], [0], [0], [1], [0, 0, 1, 1], [], []>} : vector<2x128xbf16>, vector<128x384xbf16>, vector<2x384xf32> -> vector<2x384xf32>
    %1332 = vector.broadcast %1327 : vector<1x384xf32> to vector<2x384xf32>
    %1333 = arith.addf %1331, %1332 : vector<2x384xf32>
    %1334 = vector.extract_strided_slice %1329 {offsets = [0, 0], sizes = [2, 128], strides = [1, 1]} : vector<2x384xf32> to vector<2x128xf32>
    %1335 = vector.extract_strided_slice %1333 {offsets = [0, 0], sizes = [2, 128], strides = [1, 1]} : vector<2x384xf32> to vector<2x128xf32>
    %1336 = arith.addf %1334, %1335 : vector<2x128xf32>
    %cst_335 = arith.constant 0.000000e+00 : f32
    %1337 = vector.broadcast %cst_335 : f32 to vector<2x128xf32>
    %1338 = arith.subf %1337, %1336 : vector<2x128xf32>
    %1339 = math.exp %1338 : vector<2x128xf32>
    %cst_336 = arith.constant 1.000000e+00 : f32
    %1340 = vector.broadcast %cst_336 : f32 to vector<2x128xf32>
    %1341 = arith.addf %1340, %1339 : vector<2x128xf32>
    %1342 = tpu.reciprocal %1341 {approx = true} : vector<2x128xf32> -> vector<2x128xf32>
    %1343 = vector.extract_strided_slice %1329 {offsets = [0, 128], sizes = [2, 128], strides = [1, 1]} : vector<2x384xf32> to vector<2x128xf32>
    %1344 = vector.extract_strided_slice %1333 {offsets = [0, 128], sizes = [2, 128], strides = [1, 1]} : vector<2x384xf32> to vector<2x128xf32>
    %1345 = arith.addf %1343, %1344 : vector<2x128xf32>
    %cst_337 = arith.constant 0.000000e+00 : f32
    %1346 = vector.broadcast %cst_337 : f32 to vector<2x128xf32>
    %1347 = arith.subf %1346, %1345 : vector<2x128xf32>
    %1348 = math.exp %1347 : vector<2x128xf32>
    %cst_338 = arith.constant 1.000000e+00 : f32
    %1349 = vector.broadcast %cst_338 : f32 to vector<2x128xf32>
    %1350 = arith.addf %1349, %1348 : vector<2x128xf32>
    %1351 = tpu.reciprocal %1350 {approx = true} : vector<2x128xf32> -> vector<2x128xf32>
    %1352 = vector.extract_strided_slice %1329 {offsets = [0, 256], sizes = [2, 128], strides = [1, 1]} : vector<2x384xf32> to vector<2x128xf32>
    %1353 = vector.extract_strided_slice %1333 {offsets = [0, 256], sizes = [2, 128], strides = [1, 1]} : vector<2x384xf32> to vector<2x128xf32>
    %1354 = arith.mulf %1342, %1353 : vector<2x128xf32>
    %1355 = arith.addf %1352, %1354 : vector<2x128xf32>
    %1356 = math.tanh %1355 : vector<2x128xf32>
    %cst_339 = arith.constant 1.000000e+00 : f32
    %1357 = vector.broadcast %cst_339 : f32 to vector<2x128xf32>
    %1358 = arith.subf %1357, %1351 : vector<2x128xf32>
    %1359 = arith.mulf %1358, %1356 : vector<2x128xf32>
    %1360 = arith.mulf %1351, %1328 : vector<2x128xf32>
    %1361 = arith.addf %1359, %1360 : vector<2x128xf32>
    %c0_340 = arith.constant 0 : index
    %c0_341 = arith.constant 0 : index
    %1362 = vector.load %arg13[%c0_340, %c0_341] : memref<30x128xf32, #tpu.memory_space<vmem>>, vector<2x128xf32>
    tpu.vector_store %arg13[%c0_340, %c0_341], %1361 {strides = array<i32>} : memref<30x128xf32, #tpu.memory_space<vmem>>, vector<2x128xf32>,
    %1363 = vector.extract_strided_slice %1324 {offsets = [2, 0], sizes = [2, 384], strides = [1, 1]} : vector<30x384xf32> to vector<2x384xf32>
    %1364 = arith.truncf %1361 : vector<2x128xf32> to vector<2x128xbf16>
    %cst_342 = arith.constant dense<0.000000e+00> : vector<2x384xf32>
    %1365 = tpu.matmul %1364, %1326, %cst_342 {dimension_numbers = #tpu.dot_dimension_numbers<[1], [0], [0], [1], [0, 0, 1, 1], [], []>} : vector<2x128xbf16>, vector<128x384xbf16>, vector<2x384xf32> -> vector<2x384xf32>
    %1366 = vector.broadcast %1327 : vector<1x384xf32> to vector<2x384xf32>
    %1367 = arith.addf %1365, %1366 : vector<2x384xf32>
    %1368 = vector.extract_strided_slice %1363 {offsets = [0, 0], sizes = [2, 128], strides = [1, 1]} : vector<2x384xf32> to vector<2x128xf32>
    %1369 = vector.extract_strided_slice %1367 {offsets = [0, 0], sizes = [2, 128], strides = [1, 1]} : vector<2x384xf32> to vector<2x128xf32>
    %1370 = arith.addf %1368, %1369 : vector<2x128xf32>
    %cst_343 = arith.constant 0.000000e+00 : f32
    %1371 = vector.broadcast %cst_343 : f32 to vector<2x128xf32>
    %1372 = arith.subf %1371, %1370 : vector<2x128xf32>
    %1373 = math.exp %1372 : vector<2x128xf32>
    %cst_344 = arith.constant 1.000000e+00 : f32
    %1374 = vector.broadcast %cst_344 : f32 to vector<2x128xf32>
    %1375 = arith.addf %1374, %1373 : vector<2x128xf32>
    %1376 = tpu.reciprocal %1375 {approx = true} : vector<2x128xf32> -> vector<2x128xf32>
    %1377 = vector.extract_strided_slice %1363 {offsets = [0, 128], sizes = [2, 128], strides = [1, 1]} : vector<2x384xf32> to vector<2x128xf32>
    %1378 = vector.extract_strided_slice %1367 {offsets = [0, 128], sizes = [2, 128], strides = [1, 1]} : vector<2x384xf32> to vector<2x128xf32>
    %1379 = arith.addf %1377, %1378 : vector<2x128xf32>
    %cst_345 = arith.constant 0.000000e+00 : f32
    %1380 = vector.broadcast %cst_345 : f32 to vector<2x128xf32>
    %1381 = arith.subf %1380, %1379 : vector<2x128xf32>
    %1382 = math.exp %1381 : vector<2x128xf32>
    %cst_346 = arith.constant 1.000000e+00 : f32
    %1383 = vector.broadcast %cst_346 : f32 to vector<2x128xf32>
    %1384 = arith.addf %1383, %1382 : vector<2x128xf32>
    %1385 = tpu.reciprocal %1384 {approx = true} : vector<2x128xf32> -> vector<2x128xf32>
    %1386 = vector.extract_strided_slice %1363 {offsets = [0, 256], sizes = [2, 128], strides = [1, 1]} : vector<2x384xf32> to vector<2x128xf32>
    %1387 = vector.extract_strided_slice %1367 {offsets = [0, 256], sizes = [2, 128], strides = [1, 1]} : vector<2x384xf32> to vector<2x128xf32>
    %1388 = arith.mulf %1376, %1387 : vector<2x128xf32>
    %1389 = arith.addf %1386, %1388 : vector<2x128xf32>
    %1390 = math.tanh %1389 : vector<2x128xf32>
    %cst_347 = arith.constant 1.000000e+00 : f32
    %1391 = vector.broadcast %cst_347 : f32 to vector<2x128xf32>
    %1392 = arith.subf %1391, %1385 : vector<2x128xf32>
    %1393 = arith.mulf %1392, %1390 : vector<2x128xf32>
    %1394 = arith.mulf %1385, %1361 : vector<2x128xf32>
    %1395 = arith.addf %1393, %1394 : vector<2x128xf32>
    %c2_348 = arith.constant 2 : index
    %c0_349 = arith.constant 0 : index
    %1396 = vector.load %arg13[%c2_348, %c0_349] : memref<30x128xf32, #tpu.memory_space<vmem>>, vector<2x128xf32>
    tpu.vector_store %arg13[%c2_348, %c0_349], %1395 {strides = array<i32>} : memref<30x128xf32, #tpu.memory_space<vmem>>, vector<2x128xf32>,
    %1397 = vector.extract_strided_slice %1324 {offsets = [4, 0], sizes = [2, 384], strides = [1, 1]} : vector<30x384xf32> to vector<2x384xf32>
    %1398 = arith.truncf %1395 : vector<2x128xf32> to vector<2x128xbf16>
    %cst_350 = arith.constant dense<0.000000e+00> : vector<2x384xf32>
    %1399 = tpu.matmul %1398, %1326, %cst_350 {dimension_numbers = #tpu.dot_dimension_numbers<[1], [0], [0], [1], [0, 0, 1, 1], [], []>} : vector<2x128xbf16>, vector<128x384xbf16>, vector<2x384xf32> -> vector<2x384xf32>
    %1400 = vector.broadcast %1327 : vector<1x384xf32> to vector<2x384xf32>
    %1401 = arith.addf %1399, %1400 : vector<2x384xf32>
    %1402 = vector.extract_strided_slice %1397 {offsets = [0, 0], sizes = [2, 128], strides = [1, 1]} : vector<2x384xf32> to vector<2x128xf32>
    %1403 = vector.extract_strided_slice %1401 {offsets = [0, 0], sizes = [2, 128], strides = [1, 1]} : vector<2x384xf32> to vector<2x128xf32>
    %1404 = arith.addf %1402, %1403 : vector<2x128xf32>
    %cst_351 = arith.constant 0.000000e+00 : f32
    %1405 = vector.broadcast %cst_351 : f32 to vector<2x128xf32>
    %1406 = arith.subf %1405, %1404 : vector<2x128xf32>
    %1407 = math.exp %1406 : vector<2x128xf32>
    %cst_352 = arith.constant 1.000000e+00 : f32
    %1408 = vector.broadcast %cst_352 : f32 to vector<2x128xf32>
    %1409 = arith.addf %1408, %1407 : vector<2x128xf32>
    %1410 = tpu.reciprocal %1409 {approx = true} : vector<2x128xf32> -> vector<2x128xf32>
    %1411 = vector.extract_strided_slice %1397 {offsets = [0, 128], sizes = [2, 128], strides = [1, 1]} : vector<2x384xf32> to vector<2x128xf32>
    %1412 = vector.extract_strided_slice %1401 {offsets = [0, 128], sizes = [2, 128], strides = [1, 1]} : vector<2x384xf32> to vector<2x128xf32>
    %1413 = arith.addf %1411, %1412 : vector<2x128xf32>
    %cst_353 = arith.constant 0.000000e+00 : f32
    %1414 = vector.broadcast %cst_353 : f32 to vector<2x128xf32>
    %1415 = arith.subf %1414, %1413 : vector<2x128xf32>
    %1416 = math.exp %1415 : vector<2x128xf32>
    %cst_354 = arith.constant 1.000000e+00 : f32
    %1417 = vector.broadcast %cst_354 : f32 to vector<2x128xf32>
    %1418 = arith.addf %1417, %1416 : vector<2x128xf32>
    %1419 = tpu.reciprocal %1418 {approx = true} : vector<2x128xf32> -> vector<2x128xf32>
    %1420 = vector.extract_strided_slice %1397 {offsets = [0, 256], sizes = [2, 128], strides = [1, 1]} : vector<2x384xf32> to vector<2x128xf32>
    %1421 = vector.extract_strided_slice %1401 {offsets = [0, 256], sizes = [2, 128], strides = [1, 1]} : vector<2x384xf32> to vector<2x128xf32>
    %1422 = arith.mulf %1410, %1421 : vector<2x128xf32>
    %1423 = arith.addf %1420, %1422 : vector<2x128xf32>
    %1424 = math.tanh %1423 : vector<2x128xf32>
    %cst_355 = arith.constant 1.000000e+00 : f32
    %1425 = vector.broadcast %cst_355 : f32 to vector<2x128xf32>
    %1426 = arith.subf %1425, %1419 : vector<2x128xf32>
    %1427 = arith.mulf %1426, %1424 : vector<2x128xf32>
    %1428 = arith.mulf %1419, %1395 : vector<2x128xf32>
    %1429 = arith.addf %1427, %1428 : vector<2x128xf32>
    %c4_356 = arith.constant 4 : index
    %c0_357 = arith.constant 0 : index
    %1430 = vector.load %arg13[%c4_356, %c0_357] : memref<30x128xf32, #tpu.memory_space<vmem>>, vector<2x128xf32>
    tpu.vector_store %arg13[%c4_356, %c0_357], %1429 {strides = array<i32>} : memref<30x128xf32, #tpu.memory_space<vmem>>, vector<2x128xf32>,
    %1431 = vector.extract_strided_slice %1324 {offsets = [6, 0], sizes = [2, 384], strides = [1, 1]} : vector<30x384xf32> to vector<2x384xf32>
    %1432 = arith.truncf %1429 : vector<2x128xf32> to vector<2x128xbf16>
    %cst_358 = arith.constant dense<0.000000e+00> : vector<2x384xf32>
    %1433 = tpu.matmul %1432, %1326, %cst_358 {dimension_numbers = #tpu.dot_dimension_numbers<[1], [0], [0], [1], [0, 0, 1, 1], [], []>} : vector<2x128xbf16>, vector<128x384xbf16>, vector<2x384xf32> -> vector<2x384xf32>
    %1434 = vector.broadcast %1327 : vector<1x384xf32> to vector<2x384xf32>
    %1435 = arith.addf %1433, %1434 : vector<2x384xf32>
    %1436 = vector.extract_strided_slice %1431 {offsets = [0, 0], sizes = [2, 128], strides = [1, 1]} : vector<2x384xf32> to vector<2x128xf32>
    %1437 = vector.extract_strided_slice %1435 {offsets = [0, 0], sizes = [2, 128], strides = [1, 1]} : vector<2x384xf32> to vector<2x128xf32>
    %1438 = arith.addf %1436, %1437 : vector<2x128xf32>
    %cst_359 = arith.constant 0.000000e+00 : f32
    %1439 = vector.broadcast %cst_359 : f32 to vector<2x128xf32>
    %1440 = arith.subf %1439, %1438 : vector<2x128xf32>
    %1441 = math.exp %1440 : vector<2x128xf32>
    %cst_360 = arith.constant 1.000000e+00 : f32
    %1442 = vector.broadcast %cst_360 : f32 to vector<2x128xf32>
    %1443 = arith.addf %1442, %1441 : vector<2x128xf32>
    %1444 = tpu.reciprocal %1443 {approx = true} : vector<2x128xf32> -> vector<2x128xf32>
    %1445 = vector.extract_strided_slice %1431 {offsets = [0, 128], sizes = [2, 128], strides = [1, 1]} : vector<2x384xf32> to vector<2x128xf32>
    %1446 = vector.extract_strided_slice %1435 {offsets = [0, 128], sizes = [2, 128], strides = [1, 1]} : vector<2x384xf32> to vector<2x128xf32>
    %1447 = arith.addf %1445, %1446 : vector<2x128xf32>
    %cst_361 = arith.constant 0.000000e+00 : f32
    %1448 = vector.broadcast %cst_361 : f32 to vector<2x128xf32>
    %1449 = arith.subf %1448, %1447 : vector<2x128xf32>
    %1450 = math.exp %1449 : vector<2x128xf32>
    %cst_362 = arith.constant 1.000000e+00 : f32
    %1451 = vector.broadcast %cst_362 : f32 to vector<2x128xf32>
    %1452 = arith.addf %1451, %1450 : vector<2x128xf32>
    %1453 = tpu.reciprocal %1452 {approx = true} : vector<2x128xf32> -> vector<2x128xf32>
    %1454 = vector.extract_strided_slice %1431 {offsets = [0, 256], sizes = [2, 128], strides = [1, 1]} : vector<2x384xf32> to vector<2x128xf32>
    %1455 = vector.extract_strided_slice %1435 {offsets = [0, 256], sizes = [2, 128], strides = [1, 1]} : vector<2x384xf32> to vector<2x128xf32>
    %1456 = arith.mulf %1444, %1455 : vector<2x128xf32>
    %1457 = arith.addf %1454, %1456 : vector<2x128xf32>
    %1458 = math.tanh %1457 : vector<2x128xf32>
    %cst_363 = arith.constant 1.000000e+00 : f32
    %1459 = vector.broadcast %cst_363 : f32 to vector<2x128xf32>
    %1460 = arith.subf %1459, %1453 : vector<2x128xf32>
    %1461 = arith.mulf %1460, %1458 : vector<2x128xf32>
    %1462 = arith.mulf %1453, %1429 : vector<2x128xf32>
    %1463 = arith.addf %1461, %1462 : vector<2x128xf32>
    %c6_364 = arith.constant 6 : index
    %c0_365 = arith.constant 0 : index
    %1464 = vector.load %arg13[%c6_364, %c0_365] : memref<30x128xf32, #tpu.memory_space<vmem>>, vector<2x128xf32>
    tpu.vector_store %arg13[%c6_364, %c0_365], %1463 {strides = array<i32>} : memref<30x128xf32, #tpu.memory_space<vmem>>, vector<2x128xf32>,
    %1465 = vector.extract_strided_slice %1324 {offsets = [8, 0], sizes = [2, 384], strides = [1, 1]} : vector<30x384xf32> to vector<2x384xf32>
    %1466 = arith.truncf %1463 : vector<2x128xf32> to vector<2x128xbf16>
    %cst_366 = arith.constant dense<0.000000e+00> : vector<2x384xf32>
    %1467 = tpu.matmul %1466, %1326, %cst_366 {dimension_numbers = #tpu.dot_dimension_numbers<[1], [0], [0], [1], [0, 0, 1, 1], [], []>} : vector<2x128xbf16>, vector<128x384xbf16>, vector<2x384xf32> -> vector<2x384xf32>
    %1468 = vector.broadcast %1327 : vector<1x384xf32> to vector<2x384xf32>
    %1469 = arith.addf %1467, %1468 : vector<2x384xf32>
    %1470 = vector.extract_strided_slice %1465 {offsets = [0, 0], sizes = [2, 128], strides = [1, 1]} : vector<2x384xf32> to vector<2x128xf32>
    %1471 = vector.extract_strided_slice %1469 {offsets = [0, 0], sizes = [2, 128], strides = [1, 1]} : vector<2x384xf32> to vector<2x128xf32>
    %1472 = arith.addf %1470, %1471 : vector<2x128xf32>
    %cst_367 = arith.constant 0.000000e+00 : f32
    %1473 = vector.broadcast %cst_367 : f32 to vector<2x128xf32>
    %1474 = arith.subf %1473, %1472 : vector<2x128xf32>
    %1475 = math.exp %1474 : vector<2x128xf32>
    %cst_368 = arith.constant 1.000000e+00 : f32
    %1476 = vector.broadcast %cst_368 : f32 to vector<2x128xf32>
    %1477 = arith.addf %1476, %1475 : vector<2x128xf32>
    %1478 = tpu.reciprocal %1477 {approx = true} : vector<2x128xf32> -> vector<2x128xf32>
    %1479 = vector.extract_strided_slice %1465 {offsets = [0, 128], sizes = [2, 128], strides = [1, 1]} : vector<2x384xf32> to vector<2x128xf32>
    %1480 = vector.extract_strided_slice %1469 {offsets = [0, 128], sizes = [2, 128], strides = [1, 1]} : vector<2x384xf32> to vector<2x128xf32>
    %1481 = arith.addf %1479, %1480 : vector<2x128xf32>
    %cst_369 = arith.constant 0.000000e+00 : f32
    %1482 = vector.broadcast %cst_369 : f32 to vector<2x128xf32>
    %1483 = arith.subf %1482, %1481 : vector<2x128xf32>
    %1484 = math.exp %1483 : vector<2x128xf32>
    %cst_370 = arith.constant 1.000000e+00 : f32
    %1485 = vector.broadcast %cst_370 : f32 to vector<2x128xf32>
    %1486 = arith.addf %1485, %1484 : vector<2x128xf32>
    %1487 = tpu.reciprocal %1486 {approx = true} : vector<2x128xf32> -> vector<2x128xf32>
    %1488 = vector.extract_strided_slice %1465 {offsets = [0, 256], sizes = [2, 128], strides = [1, 1]} : vector<2x384xf32> to vector<2x128xf32>
    %1489 = vector.extract_strided_slice %1469 {offsets = [0, 256], sizes = [2, 128], strides = [1, 1]} : vector<2x384xf32> to vector<2x128xf32>
    %1490 = arith.mulf %1478, %1489 : vector<2x128xf32>
    %1491 = arith.addf %1488, %1490 : vector<2x128xf32>
    %1492 = math.tanh %1491 : vector<2x128xf32>
    %cst_371 = arith.constant 1.000000e+00 : f32
    %1493 = vector.broadcast %cst_371 : f32 to vector<2x128xf32>
    %1494 = arith.subf %1493, %1487 : vector<2x128xf32>
    %1495 = arith.mulf %1494, %1492 : vector<2x128xf32>
    %1496 = arith.mulf %1487, %1463 : vector<2x128xf32>
    %1497 = arith.addf %1495, %1496 : vector<2x128xf32>
    %c8_372 = arith.constant 8 : index
    %c0_373 = arith.constant 0 : index
    %1498 = vector.load %arg13[%c8_372, %c0_373] : memref<30x128xf32, #tpu.memory_space<vmem>>, vector<2x128xf32>
    tpu.vector_store %arg13[%c8_372, %c0_373], %1497 {strides = array<i32>} : memref<30x128xf32, #tpu.memory_space<vmem>>, vector<2x128xf32>,
    %1499 = vector.extract_strided_slice %1324 {offsets = [10, 0], sizes = [2, 384], strides = [1, 1]} : vector<30x384xf32> to vector<2x384xf32>
    %1500 = arith.truncf %1497 : vector<2x128xf32> to vector<2x128xbf16>
    %cst_374 = arith.constant dense<0.000000e+00> : vector<2x384xf32>
    %1501 = tpu.matmul %1500, %1326, %cst_374 {dimension_numbers = #tpu.dot_dimension_numbers<[1], [0], [0], [1], [0, 0, 1, 1], [], []>} : vector<2x128xbf16>, vector<128x384xbf16>, vector<2x384xf32> -> vector<2x384xf32>
    %1502 = vector.broadcast %1327 : vector<1x384xf32> to vector<2x384xf32>
    %1503 = arith.addf %1501, %1502 : vector<2x384xf32>
    %1504 = vector.extract_strided_slice %1499 {offsets = [0, 0], sizes = [2, 128], strides = [1, 1]} : vector<2x384xf32> to vector<2x128xf32>
    %1505 = vector.extract_strided_slice %1503 {offsets = [0, 0], sizes = [2, 128], strides = [1, 1]} : vector<2x384xf32> to vector<2x128xf32>
    %1506 = arith.addf %1504, %1505 : vector<2x128xf32>
    %cst_375 = arith.constant 0.000000e+00 : f32
    %1507 = vector.broadcast %cst_375 : f32 to vector<2x128xf32>
    %1508 = arith.subf %1507, %1506 : vector<2x128xf32>
    %1509 = math.exp %1508 : vector<2x128xf32>
    %cst_376 = arith.constant 1.000000e+00 : f32
    %1510 = vector.broadcast %cst_376 : f32 to vector<2x128xf32>
    %1511 = arith.addf %1510, %1509 : vector<2x128xf32>
    %1512 = tpu.reciprocal %1511 {approx = true} : vector<2x128xf32> -> vector<2x128xf32>
    %1513 = vector.extract_strided_slice %1499 {offsets = [0, 128], sizes = [2, 128], strides = [1, 1]} : vector<2x384xf32> to vector<2x128xf32>
    %1514 = vector.extract_strided_slice %1503 {offsets = [0, 128], sizes = [2, 128], strides = [1, 1]} : vector<2x384xf32> to vector<2x128xf32>
    %1515 = arith.addf %1513, %1514 : vector<2x128xf32>
    %cst_377 = arith.constant 0.000000e+00 : f32
    %1516 = vector.broadcast %cst_377 : f32 to vector<2x128xf32>
    %1517 = arith.subf %1516, %1515 : vector<2x128xf32>
    %1518 = math.exp %1517 : vector<2x128xf32>
    %cst_378 = arith.constant 1.000000e+00 : f32
    %1519 = vector.broadcast %cst_378 : f32 to vector<2x128xf32>
    %1520 = arith.addf %1519, %1518 : vector<2x128xf32>
    %1521 = tpu.reciprocal %1520 {approx = true} : vector<2x128xf32> -> vector<2x128xf32>
    %1522 = vector.extract_strided_slice %1499 {offsets = [0, 256], sizes = [2, 128], strides = [1, 1]} : vector<2x384xf32> to vector<2x128xf32>
    %1523 = vector.extract_strided_slice %1503 {offsets = [0, 256], sizes = [2, 128], strides = [1, 1]} : vector<2x384xf32> to vector<2x128xf32>
    %1524 = arith.mulf %1512, %1523 : vector<2x128xf32>
    %1525 = arith.addf %1522, %1524 : vector<2x128xf32>
    %1526 = math.tanh %1525 : vector<2x128xf32>
    %cst_379 = arith.constant 1.000000e+00 : f32
    %1527 = vector.broadcast %cst_379 : f32 to vector<2x128xf32>
    %1528 = arith.subf %1527, %1521 : vector<2x128xf32>
    %1529 = arith.mulf %1528, %1526 : vector<2x128xf32>
    %1530 = arith.mulf %1521, %1497 : vector<2x128xf32>
    %1531 = arith.addf %1529, %1530 : vector<2x128xf32>
    %c10_380 = arith.constant 10 : index
    %c0_381 = arith.constant 0 : index
    %1532 = vector.load %arg13[%c10_380, %c0_381] : memref<30x128xf32, #tpu.memory_space<vmem>>, vector<2x128xf32>
    tpu.vector_store %arg13[%c10_380, %c0_381], %1531 {strides = array<i32>} : memref<30x128xf32, #tpu.memory_space<vmem>>, vector<2x128xf32>,
    %1533 = vector.extract_strided_slice %1324 {offsets = [12, 0], sizes = [2, 384], strides = [1, 1]} : vector<30x384xf32> to vector<2x384xf32>
    %1534 = arith.truncf %1531 : vector<2x128xf32> to vector<2x128xbf16>
    %cst_382 = arith.constant dense<0.000000e+00> : vector<2x384xf32>
    %1535 = tpu.matmul %1534, %1326, %cst_382 {dimension_numbers = #tpu.dot_dimension_numbers<[1], [0], [0], [1], [0, 0, 1, 1], [], []>} : vector<2x128xbf16>, vector<128x384xbf16>, vector<2x384xf32> -> vector<2x384xf32>
    %1536 = vector.broadcast %1327 : vector<1x384xf32> to vector<2x384xf32>
    %1537 = arith.addf %1535, %1536 : vector<2x384xf32>
    %1538 = vector.extract_strided_slice %1533 {offsets = [0, 0], sizes = [2, 128], strides = [1, 1]} : vector<2x384xf32> to vector<2x128xf32>
    %1539 = vector.extract_strided_slice %1537 {offsets = [0, 0], sizes = [2, 128], strides = [1, 1]} : vector<2x384xf32> to vector<2x128xf32>
    %1540 = arith.addf %1538, %1539 : vector<2x128xf32>
    %cst_383 = arith.constant 0.000000e+00 : f32
    %1541 = vector.broadcast %cst_383 : f32 to vector<2x128xf32>
    %1542 = arith.subf %1541, %1540 : vector<2x128xf32>
    %1543 = math.exp %1542 : vector<2x128xf32>
    %cst_384 = arith.constant 1.000000e+00 : f32
    %1544 = vector.broadcast %cst_384 : f32 to vector<2x128xf32>
    %1545 = arith.addf %1544, %1543 : vector<2x128xf32>
    %1546 = tpu.reciprocal %1545 {approx = true} : vector<2x128xf32> -> vector<2x128xf32>
    %1547 = vector.extract_strided_slice %1533 {offsets = [0, 128], sizes = [2, 128], strides = [1, 1]} : vector<2x384xf32> to vector<2x128xf32>
    %1548 = vector.extract_strided_slice %1537 {offsets = [0, 128], sizes = [2, 128], strides = [1, 1]} : vector<2x384xf32> to vector<2x128xf32>
    %1549 = arith.addf %1547, %1548 : vector<2x128xf32>
    %cst_385 = arith.constant 0.000000e+00 : f32
    %1550 = vector.broadcast %cst_385 : f32 to vector<2x128xf32>
    %1551 = arith.subf %1550, %1549 : vector<2x128xf32>
    %1552 = math.exp %1551 : vector<2x128xf32>
    %cst_386 = arith.constant 1.000000e+00 : f32
    %1553 = vector.broadcast %cst_386 : f32 to vector<2x128xf32>
    %1554 = arith.addf %1553, %1552 : vector<2x128xf32>
    %1555 = tpu.reciprocal %1554 {approx = true} : vector<2x128xf32> -> vector<2x128xf32>
    %1556 = vector.extract_strided_slice %1533 {offsets = [0, 256], sizes = [2, 128], strides = [1, 1]} : vector<2x384xf32> to vector<2x128xf32>
    %1557 = vector.extract_strided_slice %1537 {offsets = [0, 256], sizes = [2, 128], strides = [1, 1]} : vector<2x384xf32> to vector<2x128xf32>
    %1558 = arith.mulf %1546, %1557 : vector<2x128xf32>
    %1559 = arith.addf %1556, %1558 : vector<2x128xf32>
    %1560 = math.tanh %1559 : vector<2x128xf32>
    %cst_387 = arith.constant 1.000000e+00 : f32
    %1561 = vector.broadcast %cst_387 : f32 to vector<2x128xf32>
    %1562 = arith.subf %1561, %1555 : vector<2x128xf32>
    %1563 = arith.mulf %1562, %1560 : vector<2x128xf32>
    %1564 = arith.mulf %1555, %1531 : vector<2x128xf32>
    %1565 = arith.addf %1563, %1564 : vector<2x128xf32>
    %c12_388 = arith.constant 12 : index
    %c0_389 = arith.constant 0 : index
    %1566 = vector.load %arg13[%c12_388, %c0_389] : memref<30x128xf32, #tpu.memory_space<vmem>>, vector<2x128xf32>
    tpu.vector_store %arg13[%c12_388, %c0_389], %1565 {strides = array<i32>} : memref<30x128xf32, #tpu.memory_space<vmem>>, vector<2x128xf32>,
    %1567 = vector.extract_strided_slice %1324 {offsets = [14, 0], sizes = [2, 384], strides = [1, 1]} : vector<30x384xf32> to vector<2x384xf32>
    %1568 = arith.truncf %1565 : vector<2x128xf32> to vector<2x128xbf16>
    %cst_390 = arith.constant dense<0.000000e+00> : vector<2x384xf32>
    %1569 = tpu.matmul %1568, %1326, %cst_390 {dimension_numbers = #tpu.dot_dimension_numbers<[1], [0], [0], [1], [0, 0, 1, 1], [], []>} : vector<2x128xbf16>, vector<128x384xbf16>, vector<2x384xf32> -> vector<2x384xf32>
    %1570 = vector.broadcast %1327 : vector<1x384xf32> to vector<2x384xf32>
    %1571 = arith.addf %1569, %1570 : vector<2x384xf32>
    %1572 = vector.extract_strided_slice %1567 {offsets = [0, 0], sizes = [2, 128], strides = [1, 1]} : vector<2x384xf32> to vector<2x128xf32>
    %1573 = vector.extract_strided_slice %1571 {offsets = [0, 0], sizes = [2, 128], strides = [1, 1]} : vector<2x384xf32> to vector<2x128xf32>
    %1574 = arith.addf %1572, %1573 : vector<2x128xf32>
    %cst_391 = arith.constant 0.000000e+00 : f32
    %1575 = vector.broadcast %cst_391 : f32 to vector<2x128xf32>
    %1576 = arith.subf %1575, %1574 : vector<2x128xf32>
    %1577 = math.exp %1576 : vector<2x128xf32>
    %cst_392 = arith.constant 1.000000e+00 : f32
    %1578 = vector.broadcast %cst_392 : f32 to vector<2x128xf32>
    %1579 = arith.addf %1578, %1577 : vector<2x128xf32>
    %1580 = tpu.reciprocal %1579 {approx = true} : vector<2x128xf32> -> vector<2x128xf32>
    %1581 = vector.extract_strided_slice %1567 {offsets = [0, 128], sizes = [2, 128], strides = [1, 1]} : vector<2x384xf32> to vector<2x128xf32>
    %1582 = vector.extract_strided_slice %1571 {offsets = [0, 128], sizes = [2, 128], strides = [1, 1]} : vector<2x384xf32> to vector<2x128xf32>
    %1583 = arith.addf %1581, %1582 : vector<2x128xf32>
    %cst_393 = arith.constant 0.000000e+00 : f32
    %1584 = vector.broadcast %cst_393 : f32 to vector<2x128xf32>
    %1585 = arith.subf %1584, %1583 : vector<2x128xf32>
    %1586 = math.exp %1585 : vector<2x128xf32>
    %cst_394 = arith.constant 1.000000e+00 : f32
    %1587 = vector.broadcast %cst_394 : f32 to vector<2x128xf32>
    %1588 = arith.addf %1587, %1586 : vector<2x128xf32>
    %1589 = tpu.reciprocal %1588 {approx = true} : vector<2x128xf32> -> vector<2x128xf32>
    %1590 = vector.extract_strided_slice %1567 {offsets = [0, 256], sizes = [2, 128], strides = [1, 1]} : vector<2x384xf32> to vector<2x128xf32>
    %1591 = vector.extract_strided_slice %1571 {offsets = [0, 256], sizes = [2, 128], strides = [1, 1]} : vector<2x384xf32> to vector<2x128xf32>
    %1592 = arith.mulf %1580, %1591 : vector<2x128xf32>
    %1593 = arith.addf %1590, %1592 : vector<2x128xf32>
    %1594 = math.tanh %1593 : vector<2x128xf32>
    %cst_395 = arith.constant 1.000000e+00 : f32
    %1595 = vector.broadcast %cst_395 : f32 to vector<2x128xf32>
    %1596 = arith.subf %1595, %1589 : vector<2x128xf32>
    %1597 = arith.mulf %1596, %1594 : vector<2x128xf32>
    %1598 = arith.mulf %1589, %1565 : vector<2x128xf32>
    %1599 = arith.addf %1597, %1598 : vector<2x128xf32>
    %c14_396 = arith.constant 14 : index
    %c0_397 = arith.constant 0 : index
    %1600 = vector.load %arg13[%c14_396, %c0_397] : memref<30x128xf32, #tpu.memory_space<vmem>>, vector<2x128xf32>
    tpu.vector_store %arg13[%c14_396, %c0_397], %1599 {strides = array<i32>} : memref<30x128xf32, #tpu.memory_space<vmem>>, vector<2x128xf32>,
    %1601 = vector.extract_strided_slice %1324 {offsets = [16, 0], sizes = [2, 384], strides = [1, 1]} : vector<30x384xf32> to vector<2x384xf32>
    %1602 = arith.truncf %1599 : vector<2x128xf32> to vector<2x128xbf16>
    %cst_398 = arith.constant dense<0.000000e+00> : vector<2x384xf32>
    %1603 = tpu.matmul %1602, %1326, %cst_398 {dimension_numbers = #tpu.dot_dimension_numbers<[1], [0], [0], [1], [0, 0, 1, 1], [], []>} : vector<2x128xbf16>, vector<128x384xbf16>, vector<2x384xf32> -> vector<2x384xf32>
    %1604 = vector.broadcast %1327 : vector<1x384xf32> to vector<2x384xf32>
    %1605 = arith.addf %1603, %1604 : vector<2x384xf32>
    %1606 = vector.extract_strided_slice %1601 {offsets = [0, 0], sizes = [2, 128], strides = [1, 1]} : vector<2x384xf32> to vector<2x128xf32>
    %1607 = vector.extract_strided_slice %1605 {offsets = [0, 0], sizes = [2, 128], strides = [1, 1]} : vector<2x384xf32> to vector<2x128xf32>
    %1608 = arith.addf %1606, %1607 : vector<2x128xf32>
    %cst_399 = arith.constant 0.000000e+00 : f32
    %1609 = vector.broadcast %cst_399 : f32 to vector<2x128xf32>
    %1610 = arith.subf %1609, %1608 : vector<2x128xf32>
    %1611 = math.exp %1610 : vector<2x128xf32>
    %cst_400 = arith.constant 1.000000e+00 : f32
    %1612 = vector.broadcast %cst_400 : f32 to vector<2x128xf32>
    %1613 = arith.addf %1612, %1611 : vector<2x128xf32>
    %1614 = tpu.reciprocal %1613 {approx = true} : vector<2x128xf32> -> vector<2x128xf32>
    %1615 = vector.extract_strided_slice %1601 {offsets = [0, 128], sizes = [2, 128], strides = [1, 1]} : vector<2x384xf32> to vector<2x128xf32>
    %1616 = vector.extract_strided_slice %1605 {offsets = [0, 128], sizes = [2, 128], strides = [1, 1]} : vector<2x384xf32> to vector<2x128xf32>
    %1617 = arith.addf %1615, %1616 : vector<2x128xf32>
    %cst_401 = arith.constant 0.000000e+00 : f32
    %1618 = vector.broadcast %cst_401 : f32 to vector<2x128xf32>
    %1619 = arith.subf %1618, %1617 : vector<2x128xf32>
    %1620 = math.exp %1619 : vector<2x128xf32>
    %cst_402 = arith.constant 1.000000e+00 : f32
    %1621 = vector.broadcast %cst_402 : f32 to vector<2x128xf32>
    %1622 = arith.addf %1621, %1620 : vector<2x128xf32>
    %1623 = tpu.reciprocal %1622 {approx = true} : vector<2x128xf32> -> vector<2x128xf32>
    %1624 = vector.extract_strided_slice %1601 {offsets = [0, 256], sizes = [2, 128], strides = [1, 1]} : vector<2x384xf32> to vector<2x128xf32>
    %1625 = vector.extract_strided_slice %1605 {offsets = [0, 256], sizes = [2, 128], strides = [1, 1]} : vector<2x384xf32> to vector<2x128xf32>
    %1626 = arith.mulf %1614, %1625 : vector<2x128xf32>
    %1627 = arith.addf %1624, %1626 : vector<2x128xf32>
    %1628 = math.tanh %1627 : vector<2x128xf32>
    %cst_403 = arith.constant 1.000000e+00 : f32
    %1629 = vector.broadcast %cst_403 : f32 to vector<2x128xf32>
    %1630 = arith.subf %1629, %1623 : vector<2x128xf32>
    %1631 = arith.mulf %1630, %1628 : vector<2x128xf32>
    %1632 = arith.mulf %1623, %1599 : vector<2x128xf32>
    %1633 = arith.addf %1631, %1632 : vector<2x128xf32>
    %c16_404 = arith.constant 16 : index
    %c0_405 = arith.constant 0 : index
    %1634 = vector.load %arg13[%c16_404, %c0_405] : memref<30x128xf32, #tpu.memory_space<vmem>>, vector<2x128xf32>
    tpu.vector_store %arg13[%c16_404, %c0_405], %1633 {strides = array<i32>} : memref<30x128xf32, #tpu.memory_space<vmem>>, vector<2x128xf32>,
    %1635 = vector.extract_strided_slice %1324 {offsets = [18, 0], sizes = [2, 384], strides = [1, 1]} : vector<30x384xf32> to vector<2x384xf32>
    %1636 = arith.truncf %1633 : vector<2x128xf32> to vector<2x128xbf16>
    %cst_406 = arith.constant dense<0.000000e+00> : vector<2x384xf32>
    %1637 = tpu.matmul %1636, %1326, %cst_406 {dimension_numbers = #tpu.dot_dimension_numbers<[1], [0], [0], [1], [0, 0, 1, 1], [], []>} : vector<2x128xbf16>, vector<128x384xbf16>, vector<2x384xf32> -> vector<2x384xf32>
    %1638 = vector.broadcast %1327 : vector<1x384xf32> to vector<2x384xf32>
    %1639 = arith.addf %1637, %1638 : vector<2x384xf32>
    %1640 = vector.extract_strided_slice %1635 {offsets = [0, 0], sizes = [2, 128], strides = [1, 1]} : vector<2x384xf32> to vector<2x128xf32>
    %1641 = vector.extract_strided_slice %1639 {offsets = [0, 0], sizes = [2, 128], strides = [1, 1]} : vector<2x384xf32> to vector<2x128xf32>
    %1642 = arith.addf %1640, %1641 : vector<2x128xf32>
    %cst_407 = arith.constant 0.000000e+00 : f32
    %1643 = vector.broadcast %cst_407 : f32 to vector<2x128xf32>
    %1644 = arith.subf %1643, %1642 : vector<2x128xf32>
    %1645 = math.exp %1644 : vector<2x128xf32>
    %cst_408 = arith.constant 1.000000e+00 : f32
    %1646 = vector.broadcast %cst_408 : f32 to vector<2x128xf32>
    %1647 = arith.addf %1646, %1645 : vector<2x128xf32>
    %1648 = tpu.reciprocal %1647 {approx = true} : vector<2x128xf32> -> vector<2x128xf32>
    %1649 = vector.extract_strided_slice %1635 {offsets = [0, 128], sizes = [2, 128], strides = [1, 1]} : vector<2x384xf32> to vector<2x128xf32>
    %1650 = vector.extract_strided_slice %1639 {offsets = [0, 128], sizes = [2, 128], strides = [1, 1]} : vector<2x384xf32> to vector<2x128xf32>
    %1651 = arith.addf %1649, %1650 : vector<2x128xf32>
    %cst_409 = arith.constant 0.000000e+00 : f32
    %1652 = vector.broadcast %cst_409 : f32 to vector<2x128xf32>
    %1653 = arith.subf %1652, %1651 : vector<2x128xf32>
    %1654 = math.exp %1653 : vector<2x128xf32>
    %cst_410 = arith.constant 1.000000e+00 : f32
    %1655 = vector.broadcast %cst_410 : f32 to vector<2x128xf32>
    %1656 = arith.addf %1655, %1654 : vector<2x128xf32>
    %1657 = tpu.reciprocal %1656 {approx = true} : vector<2x128xf32> -> vector<2x128xf32>
    %1658 = vector.extract_strided_slice %1635 {offsets = [0, 256], sizes = [2, 128], strides = [1, 1]} : vector<2x384xf32> to vector<2x128xf32>
    %1659 = vector.extract_strided_slice %1639 {offsets = [0, 256], sizes = [2, 128], strides = [1, 1]} : vector<2x384xf32> to vector<2x128xf32>
    %1660 = arith.mulf %1648, %1659 : vector<2x128xf32>
    %1661 = arith.addf %1658, %1660 : vector<2x128xf32>
    %1662 = math.tanh %1661 : vector<2x128xf32>
    %cst_411 = arith.constant 1.000000e+00 : f32
    %1663 = vector.broadcast %cst_411 : f32 to vector<2x128xf32>
    %1664 = arith.subf %1663, %1657 : vector<2x128xf32>
    %1665 = arith.mulf %1664, %1662 : vector<2x128xf32>
    %1666 = arith.mulf %1657, %1633 : vector<2x128xf32>
    %1667 = arith.addf %1665, %1666 : vector<2x128xf32>
    %c18_412 = arith.constant 18 : index
    %c0_413 = arith.constant 0 : index
    %1668 = vector.load %arg13[%c18_412, %c0_413] : memref<30x128xf32, #tpu.memory_space<vmem>>, vector<2x128xf32>
    tpu.vector_store %arg13[%c18_412, %c0_413], %1667 {strides = array<i32>} : memref<30x128xf32, #tpu.memory_space<vmem>>, vector<2x128xf32>,
    %1669 = vector.extract_strided_slice %1324 {offsets = [20, 0], sizes = [2, 384], strides = [1, 1]} : vector<30x384xf32> to vector<2x384xf32>
    %1670 = arith.truncf %1667 : vector<2x128xf32> to vector<2x128xbf16>
    %cst_414 = arith.constant dense<0.000000e+00> : vector<2x384xf32>
    %1671 = tpu.matmul %1670, %1326, %cst_414 {dimension_numbers = #tpu.dot_dimension_numbers<[1], [0], [0], [1], [0, 0, 1, 1], [], []>} : vector<2x128xbf16>, vector<128x384xbf16>, vector<2x384xf32> -> vector<2x384xf32>
    %1672 = vector.broadcast %1327 : vector<1x384xf32> to vector<2x384xf32>
    %1673 = arith.addf %1671, %1672 : vector<2x384xf32>
    %1674 = vector.extract_strided_slice %1669 {offsets = [0, 0], sizes = [2, 128], strides = [1, 1]} : vector<2x384xf32> to vector<2x128xf32>
    %1675 = vector.extract_strided_slice %1673 {offsets = [0, 0], sizes = [2, 128], strides = [1, 1]} : vector<2x384xf32> to vector<2x128xf32>
    %1676 = arith.addf %1674, %1675 : vector<2x128xf32>
    %cst_415 = arith.constant 0.000000e+00 : f32
    %1677 = vector.broadcast %cst_415 : f32 to vector<2x128xf32>
    %1678 = arith.subf %1677, %1676 : vector<2x128xf32>
    %1679 = math.exp %1678 : vector<2x128xf32>
    %cst_416 = arith.constant 1.000000e+00 : f32
    %1680 = vector.broadcast %cst_416 : f32 to vector<2x128xf32>
    %1681 = arith.addf %1680, %1679 : vector<2x128xf32>
    %1682 = tpu.reciprocal %1681 {approx = true} : vector<2x128xf32> -> vector<2x128xf32>
    %1683 = vector.extract_strided_slice %1669 {offsets = [0, 128], sizes = [2, 128], strides = [1, 1]} : vector<2x384xf32> to vector<2x128xf32>
    %1684 = vector.extract_strided_slice %1673 {offsets = [0, 128], sizes = [2, 128], strides = [1, 1]} : vector<2x384xf32> to vector<2x128xf32>
    %1685 = arith.addf %1683, %1684 : vector<2x128xf32>
    %cst_417 = arith.constant 0.000000e+00 : f32
    %1686 = vector.broadcast %cst_417 : f32 to vector<2x128xf32>
    %1687 = arith.subf %1686, %1685 : vector<2x128xf32>
    %1688 = math.exp %1687 : vector<2x128xf32>
    %cst_418 = arith.constant 1.000000e+00 : f32
    %1689 = vector.broadcast %cst_418 : f32 to vector<2x128xf32>
    %1690 = arith.addf %1689, %1688 : vector<2x128xf32>
    %1691 = tpu.reciprocal %1690 {approx = true} : vector<2x128xf32> -> vector<2x128xf32>
    %1692 = vector.extract_strided_slice %1669 {offsets = [0, 256], sizes = [2, 128], strides = [1, 1]} : vector<2x384xf32> to vector<2x128xf32>
    %1693 = vector.extract_strided_slice %1673 {offsets = [0, 256], sizes = [2, 128], strides = [1, 1]} : vector<2x384xf32> to vector<2x128xf32>
    %1694 = arith.mulf %1682, %1693 : vector<2x128xf32>
    %1695 = arith.addf %1692, %1694 : vector<2x128xf32>
    %1696 = math.tanh %1695 : vector<2x128xf32>
    %cst_419 = arith.constant 1.000000e+00 : f32
    %1697 = vector.broadcast %cst_419 : f32 to vector<2x128xf32>
    %1698 = arith.subf %1697, %1691 : vector<2x128xf32>
    %1699 = arith.mulf %1698, %1696 : vector<2x128xf32>
    %1700 = arith.mulf %1691, %1667 : vector<2x128xf32>
    %1701 = arith.addf %1699, %1700 : vector<2x128xf32>
    %c20_420 = arith.constant 20 : index
    %c0_421 = arith.constant 0 : index
    %1702 = vector.load %arg13[%c20_420, %c0_421] : memref<30x128xf32, #tpu.memory_space<vmem>>, vector<2x128xf32>
    tpu.vector_store %arg13[%c20_420, %c0_421], %1701 {strides = array<i32>} : memref<30x128xf32, #tpu.memory_space<vmem>>, vector<2x128xf32>,
    %1703 = vector.extract_strided_slice %1324 {offsets = [22, 0], sizes = [2, 384], strides = [1, 1]} : vector<30x384xf32> to vector<2x384xf32>
    %1704 = arith.truncf %1701 : vector<2x128xf32> to vector<2x128xbf16>
    %cst_422 = arith.constant dense<0.000000e+00> : vector<2x384xf32>
    %1705 = tpu.matmul %1704, %1326, %cst_422 {dimension_numbers = #tpu.dot_dimension_numbers<[1], [0], [0], [1], [0, 0, 1, 1], [], []>} : vector<2x128xbf16>, vector<128x384xbf16>, vector<2x384xf32> -> vector<2x384xf32>
    %1706 = vector.broadcast %1327 : vector<1x384xf32> to vector<2x384xf32>
    %1707 = arith.addf %1705, %1706 : vector<2x384xf32>
    %1708 = vector.extract_strided_slice %1703 {offsets = [0, 0], sizes = [2, 128], strides = [1, 1]} : vector<2x384xf32> to vector<2x128xf32>
    %1709 = vector.extract_strided_slice %1707 {offsets = [0, 0], sizes = [2, 128], strides = [1, 1]} : vector<2x384xf32> to vector<2x128xf32>
    %1710 = arith.addf %1708, %1709 : vector<2x128xf32>
    %cst_423 = arith.constant 0.000000e+00 : f32
    %1711 = vector.broadcast %cst_423 : f32 to vector<2x128xf32>
    %1712 = arith.subf %1711, %1710 : vector<2x128xf32>
    %1713 = math.exp %1712 : vector<2x128xf32>
    %cst_424 = arith.constant 1.000000e+00 : f32
    %1714 = vector.broadcast %cst_424 : f32 to vector<2x128xf32>
    %1715 = arith.addf %1714, %1713 : vector<2x128xf32>
    %1716 = tpu.reciprocal %1715 {approx = true} : vector<2x128xf32> -> vector<2x128xf32>
    %1717 = vector.extract_strided_slice %1703 {offsets = [0, 128], sizes = [2, 128], strides = [1, 1]} : vector<2x384xf32> to vector<2x128xf32>
    %1718 = vector.extract_strided_slice %1707 {offsets = [0, 128], sizes = [2, 128], strides = [1, 1]} : vector<2x384xf32> to vector<2x128xf32>
    %1719 = arith.addf %1717, %1718 : vector<2x128xf32>
    %cst_425 = arith.constant 0.000000e+00 : f32
    %1720 = vector.broadcast %cst_425 : f32 to vector<2x128xf32>
    %1721 = arith.subf %1720, %1719 : vector<2x128xf32>
    %1722 = math.exp %1721 : vector<2x128xf32>
    %cst_426 = arith.constant 1.000000e+00 : f32
    %1723 = vector.broadcast %cst_426 : f32 to vector<2x128xf32>
    %1724 = arith.addf %1723, %1722 : vector<2x128xf32>
    %1725 = tpu.reciprocal %1724 {approx = true} : vector<2x128xf32> -> vector<2x128xf32>
    %1726 = vector.extract_strided_slice %1703 {offsets = [0, 256], sizes = [2, 128], strides = [1, 1]} : vector<2x384xf32> to vector<2x128xf32>
    %1727 = vector.extract_strided_slice %1707 {offsets = [0, 256], sizes = [2, 128], strides = [1, 1]} : vector<2x384xf32> to vector<2x128xf32>
    %1728 = arith.mulf %1716, %1727 : vector<2x128xf32>
    %1729 = arith.addf %1726, %1728 : vector<2x128xf32>
    %1730 = math.tanh %1729 : vector<2x128xf32>
    %cst_427 = arith.constant 1.000000e+00 : f32
    %1731 = vector.broadcast %cst_427 : f32 to vector<2x128xf32>
    %1732 = arith.subf %1731, %1725 : vector<2x128xf32>
    %1733 = arith.mulf %1732, %1730 : vector<2x128xf32>
    %1734 = arith.mulf %1725, %1701 : vector<2x128xf32>
    %1735 = arith.addf %1733, %1734 : vector<2x128xf32>
    %c22_428 = arith.constant 22 : index
    %c0_429 = arith.constant 0 : index
    %1736 = vector.load %arg13[%c22_428, %c0_429] : memref<30x128xf32, #tpu.memory_space<vmem>>, vector<2x128xf32>
    tpu.vector_store %arg13[%c22_428, %c0_429], %1735 {strides = array<i32>} : memref<30x128xf32, #tpu.memory_space<vmem>>, vector<2x128xf32>,
    %1737 = vector.extract_strided_slice %1324 {offsets = [24, 0], sizes = [2, 384], strides = [1, 1]} : vector<30x384xf32> to vector<2x384xf32>
    %1738 = arith.truncf %1735 : vector<2x128xf32> to vector<2x128xbf16>
    %cst_430 = arith.constant dense<0.000000e+00> : vector<2x384xf32>
    %1739 = tpu.matmul %1738, %1326, %cst_430 {dimension_numbers = #tpu.dot_dimension_numbers<[1], [0], [0], [1], [0, 0, 1, 1], [], []>} : vector<2x128xbf16>, vector<128x384xbf16>, vector<2x384xf32> -> vector<2x384xf32>
    %1740 = vector.broadcast %1327 : vector<1x384xf32> to vector<2x384xf32>
    %1741 = arith.addf %1739, %1740 : vector<2x384xf32>
    %1742 = vector.extract_strided_slice %1737 {offsets = [0, 0], sizes = [2, 128], strides = [1, 1]} : vector<2x384xf32> to vector<2x128xf32>
    %1743 = vector.extract_strided_slice %1741 {offsets = [0, 0], sizes = [2, 128], strides = [1, 1]} : vector<2x384xf32> to vector<2x128xf32>
    %1744 = arith.addf %1742, %1743 : vector<2x128xf32>
    %cst_431 = arith.constant 0.000000e+00 : f32
    %1745 = vector.broadcast %cst_431 : f32 to vector<2x128xf32>
    %1746 = arith.subf %1745, %1744 : vector<2x128xf32>
    %1747 = math.exp %1746 : vector<2x128xf32>
    %cst_432 = arith.constant 1.000000e+00 : f32
    %1748 = vector.broadcast %cst_432 : f32 to vector<2x128xf32>
    %1749 = arith.addf %1748, %1747 : vector<2x128xf32>
    %1750 = tpu.reciprocal %1749 {approx = true} : vector<2x128xf32> -> vector<2x128xf32>
    %1751 = vector.extract_strided_slice %1737 {offsets = [0, 128], sizes = [2, 128], strides = [1, 1]} : vector<2x384xf32> to vector<2x128xf32>
    %1752 = vector.extract_strided_slice %1741 {offsets = [0, 128], sizes = [2, 128], strides = [1, 1]} : vector<2x384xf32> to vector<2x128xf32>
    %1753 = arith.addf %1751, %1752 : vector<2x128xf32>
    %cst_433 = arith.constant 0.000000e+00 : f32
    %1754 = vector.broadcast %cst_433 : f32 to vector<2x128xf32>
    %1755 = arith.subf %1754, %1753 : vector<2x128xf32>
    %1756 = math.exp %1755 : vector<2x128xf32>
    %cst_434 = arith.constant 1.000000e+00 : f32
    %1757 = vector.broadcast %cst_434 : f32 to vector<2x128xf32>
    %1758 = arith.addf %1757, %1756 : vector<2x128xf32>
    %1759 = tpu.reciprocal %1758 {approx = true} : vector<2x128xf32> -> vector<2x128xf32>
    %1760 = vector.extract_strided_slice %1737 {offsets = [0, 256], sizes = [2, 128], strides = [1, 1]} : vector<2x384xf32> to vector<2x128xf32>
    %1761 = vector.extract_strided_slice %1741 {offsets = [0, 256], sizes = [2, 128], strides = [1, 1]} : vector<2x384xf32> to vector<2x128xf32>
    %1762 = arith.mulf %1750, %1761 : vector<2x128xf32>
    %1763 = arith.addf %1760, %1762 : vector<2x128xf32>
    %1764 = math.tanh %1763 : vector<2x128xf32>
    %cst_435 = arith.constant 1.000000e+00 : f32
    %1765 = vector.broadcast %cst_435 : f32 to vector<2x128xf32>
    %1766 = arith.subf %1765, %1759 : vector<2x128xf32>
    %1767 = arith.mulf %1766, %1764 : vector<2x128xf32>
    %1768 = arith.mulf %1759, %1735 : vector<2x128xf32>
    %1769 = arith.addf %1767, %1768 : vector<2x128xf32>
    %c24_436 = arith.constant 24 : index
    %c0_437 = arith.constant 0 : index
    %1770 = vector.load %arg13[%c24_436, %c0_437] : memref<30x128xf32, #tpu.memory_space<vmem>>, vector<2x128xf32>
    tpu.vector_store %arg13[%c24_436, %c0_437], %1769 {strides = array<i32>} : memref<30x128xf32, #tpu.memory_space<vmem>>, vector<2x128xf32>,
    %1771 = vector.extract_strided_slice %1324 {offsets = [26, 0], sizes = [2, 384], strides = [1, 1]} : vector<30x384xf32> to vector<2x384xf32>
    %1772 = arith.truncf %1769 : vector<2x128xf32> to vector<2x128xbf16>
    %cst_438 = arith.constant dense<0.000000e+00> : vector<2x384xf32>
    %1773 = tpu.matmul %1772, %1326, %cst_438 {dimension_numbers = #tpu.dot_dimension_numbers<[1], [0], [0], [1], [0, 0, 1, 1], [], []>} : vector<2x128xbf16>, vector<128x384xbf16>, vector<2x384xf32> -> vector<2x384xf32>
    %1774 = vector.broadcast %1327 : vector<1x384xf32> to vector<2x384xf32>
    %1775 = arith.addf %1773, %1774 : vector<2x384xf32>
    %1776 = vector.extract_strided_slice %1771 {offsets = [0, 0], sizes = [2, 128], strides = [1, 1]} : vector<2x384xf32> to vector<2x128xf32>
    %1777 = vector.extract_strided_slice %1775 {offsets = [0, 0], sizes = [2, 128], strides = [1, 1]} : vector<2x384xf32> to vector<2x128xf32>
    %1778 = arith.addf %1776, %1777 : vector<2x128xf32>
    %cst_439 = arith.constant 0.000000e+00 : f32
    %1779 = vector.broadcast %cst_439 : f32 to vector<2x128xf32>
    %1780 = arith.subf %1779, %1778 : vector<2x128xf32>
    %1781 = math.exp %1780 : vector<2x128xf32>
    %cst_440 = arith.constant 1.000000e+00 : f32
    %1782 = vector.broadcast %cst_440 : f32 to vector<2x128xf32>
    %1783 = arith.addf %1782, %1781 : vector<2x128xf32>
    %1784 = tpu.reciprocal %1783 {approx = true} : vector<2x128xf32> -> vector<2x128xf32>
    %1785 = vector.extract_strided_slice %1771 {offsets = [0, 128], sizes = [2, 128], strides = [1, 1]} : vector<2x384xf32> to vector<2x128xf32>
    %1786 = vector.extract_strided_slice %1775 {offsets = [0, 128], sizes = [2, 128], strides = [1, 1]} : vector<2x384xf32> to vector<2x128xf32>
    %1787 = arith.addf %1785, %1786 : vector<2x128xf32>
    %cst_441 = arith.constant 0.000000e+00 : f32
    %1788 = vector.broadcast %cst_441 : f32 to vector<2x128xf32>
    %1789 = arith.subf %1788, %1787 : vector<2x128xf32>
    %1790 = math.exp %1789 : vector<2x128xf32>
    %cst_442 = arith.constant 1.000000e+00 : f32
    %1791 = vector.broadcast %cst_442 : f32 to vector<2x128xf32>
    %1792 = arith.addf %1791, %1790 : vector<2x128xf32>
    %1793 = tpu.reciprocal %1792 {approx = true} : vector<2x128xf32> -> vector<2x128xf32>
    %1794 = vector.extract_strided_slice %1771 {offsets = [0, 256], sizes = [2, 128], strides = [1, 1]} : vector<2x384xf32> to vector<2x128xf32>
    %1795 = vector.extract_strided_slice %1775 {offsets = [0, 256], sizes = [2, 128], strides = [1, 1]} : vector<2x384xf32> to vector<2x128xf32>
    %1796 = arith.mulf %1784, %1795 : vector<2x128xf32>
    %1797 = arith.addf %1794, %1796 : vector<2x128xf32>
    %1798 = math.tanh %1797 : vector<2x128xf32>
    %cst_443 = arith.constant 1.000000e+00 : f32
    %1799 = vector.broadcast %cst_443 : f32 to vector<2x128xf32>
    %1800 = arith.subf %1799, %1793 : vector<2x128xf32>
    %1801 = arith.mulf %1800, %1798 : vector<2x128xf32>
    %1802 = arith.mulf %1793, %1769 : vector<2x128xf32>
    %1803 = arith.addf %1801, %1802 : vector<2x128xf32>
    %c26_444 = arith.constant 26 : index
    %c0_445 = arith.constant 0 : index
    %1804 = vector.load %arg13[%c26_444, %c0_445] : memref<30x128xf32, #tpu.memory_space<vmem>>, vector<2x128xf32>
    tpu.vector_store %arg13[%c26_444, %c0_445], %1803 {strides = array<i32>} : memref<30x128xf32, #tpu.memory_space<vmem>>, vector<2x128xf32>,
    %1805 = vector.extract_strided_slice %1324 {offsets = [28, 0], sizes = [2, 384], strides = [1, 1]} : vector<30x384xf32> to vector<2x384xf32>
    %1806 = arith.truncf %1803 : vector<2x128xf32> to vector<2x128xbf16>
    %cst_446 = arith.constant dense<0.000000e+00> : vector<2x384xf32>
    %1807 = tpu.matmul %1806, %1326, %cst_446 {dimension_numbers = #tpu.dot_dimension_numbers<[1], [0], [0], [1], [0, 0, 1, 1], [], []>} : vector<2x128xbf16>, vector<128x384xbf16>, vector<2x384xf32> -> vector<2x384xf32>
    %1808 = vector.broadcast %1327 : vector<1x384xf32> to vector<2x384xf32>
    %1809 = arith.addf %1807, %1808 : vector<2x384xf32>
    %1810 = vector.extract_strided_slice %1805 {offsets = [0, 0], sizes = [2, 128], strides = [1, 1]} : vector<2x384xf32> to vector<2x128xf32>
    %1811 = vector.extract_strided_slice %1809 {offsets = [0, 0], sizes = [2, 128], strides = [1, 1]} : vector<2x384xf32> to vector<2x128xf32>
    %1812 = arith.addf %1810, %1811 : vector<2x128xf32>
    %cst_447 = arith.constant 0.000000e+00 : f32
    %1813 = vector.broadcast %cst_447 : f32 to vector<2x128xf32>
    %1814 = arith.subf %1813, %1812 : vector<2x128xf32>
    %1815 = math.exp %1814 : vector<2x128xf32>
    %cst_448 = arith.constant 1.000000e+00 : f32
    %1816 = vector.broadcast %cst_448 : f32 to vector<2x128xf32>
    %1817 = arith.addf %1816, %1815 : vector<2x128xf32>
    %1818 = tpu.reciprocal %1817 {approx = true} : vector<2x128xf32> -> vector<2x128xf32>
    %1819 = vector.extract_strided_slice %1805 {offsets = [0, 128], sizes = [2, 128], strides = [1, 1]} : vector<2x384xf32> to vector<2x128xf32>
    %1820 = vector.extract_strided_slice %1809 {offsets = [0, 128], sizes = [2, 128], strides = [1, 1]} : vector<2x384xf32> to vector<2x128xf32>
    %1821 = arith.addf %1819, %1820 : vector<2x128xf32>
    %cst_449 = arith.constant 0.000000e+00 : f32
    %1822 = vector.broadcast %cst_449 : f32 to vector<2x128xf32>
    %1823 = arith.subf %1822, %1821 : vector<2x128xf32>
    %1824 = math.exp %1823 : vector<2x128xf32>
    %cst_450 = arith.constant 1.000000e+00 : f32
    %1825 = vector.broadcast %cst_450 : f32 to vector<2x128xf32>
    %1826 = arith.addf %1825, %1824 : vector<2x128xf32>
    %1827 = tpu.reciprocal %1826 {approx = true} : vector<2x128xf32> -> vector<2x128xf32>
    %1828 = vector.extract_strided_slice %1805 {offsets = [0, 256], sizes = [2, 128], strides = [1, 1]} : vector<2x384xf32> to vector<2x128xf32>
    %1829 = vector.extract_strided_slice %1809 {offsets = [0, 256], sizes = [2, 128], strides = [1, 1]} : vector<2x384xf32> to vector<2x128xf32>
    %1830 = arith.mulf %1818, %1829 : vector<2x128xf32>
    %1831 = arith.addf %1828, %1830 : vector<2x128xf32>
    %1832 = math.tanh %1831 : vector<2x128xf32>
    %cst_451 = arith.constant 1.000000e+00 : f32
    %1833 = vector.broadcast %cst_451 : f32 to vector<2x128xf32>
    %1834 = arith.subf %1833, %1827 : vector<2x128xf32>
    %1835 = arith.mulf %1834, %1832 : vector<2x128xf32>
    %1836 = arith.mulf %1827, %1803 : vector<2x128xf32>
    %1837 = arith.addf %1835, %1836 : vector<2x128xf32>
    %c28_452 = arith.constant 28 : index
    %c0_453 = arith.constant 0 : index
    %1838 = vector.load %arg13[%c28_452, %c0_453] : memref<30x128xf32, #tpu.memory_space<vmem>>, vector<2x128xf32>
    tpu.vector_store %arg13[%c28_452, %c0_453], %1837 {strides = array<i32>} : memref<30x128xf32, #tpu.memory_space<vmem>>, vector<2x128xf32>,
    %c0_454 = arith.constant 0 : index
    %c0_455 = arith.constant 0 : index
    %1839 = vector.load %arg13[%c0_454, %c0_455] : memref<30x128xf32, #tpu.memory_space<vmem>>, vector<30x128xf32>
    %1840 = arith.truncf %1839 : vector<30x128xf32> to vector<30x128xbf16>
    %cst_456 = arith.constant dense<0.000000e+00> : vector<30x128xf32>
    %1841 = tpu.matmul %1840, %266, %cst_456 {dimension_numbers = #tpu.dot_dimension_numbers<[1], [0], [0], [1], [0, 0, 1, 1], [], []>} : vector<30x128xbf16>, vector<128x128xbf16>, vector<30x128xf32> -> vector<30x128xf32>
    %1842 = vector.extract_strided_slice %152 {offsets = [6, 0], sizes = [1, 128], strides = [1, 1]} : vector<7x128xf32> to vector<1x128xf32>
    %1843 = vector.broadcast %1842 : vector<1x128xf32> to vector<30x128xf32>
    %1844 = arith.addf %1841, %1843 : vector<30x128xf32>
    %cst_457 = arith.constant 0.000000e+00 : f32
    %1845 = vector.broadcast %cst_457 : f32 to vector<30x128xf32>
    %1846 = arith.subf %1845, %1844 : vector<30x128xf32>
    %1847 = math.exp %1846 : vector<30x128xf32>
    %cst_458 = arith.constant 1.000000e+00 : f32
    %1848 = vector.broadcast %cst_458 : f32 to vector<30x128xf32>
    %1849 = arith.addf %1848, %1847 : vector<30x128xf32>
    %1850 = tpu.reciprocal %1849 {approx = true} : vector<30x128xf32> -> vector<30x128xf32>
    %c0_459 = arith.constant 0 : index
    %c0_460 = arith.constant 0 : index
    %1851 = vector.load %arg12[%c0_459, %c0_460] : memref<30x128xf32, #tpu.memory_space<vmem>>, vector<30x128xf32>
    tpu.vector_store %arg12[%c0_459, %c0_460], %1850 {strides = array<i32>} : memref<30x128xf32, #tpu.memory_space<vmem>>, vector<30x128xf32>,
    return
  }
  func.func @transform_0(%arg0: i32) -> (i32, i32, i32) {
    %c0_i32 = arith.constant 0 : i32
    %c0_i32_0 = arith.constant 0 : i32
    %c0_i32_1 = arith.constant 0 : i32
    %c0_i32_2 = arith.constant 0 : i32
    return %c0_i32, %c0_i32_0, %c0_i32_1 : i32, i32, i32
  }
  func.func @transform_1(%arg0: i32) -> (i32, i32) {
    %c0_i32 = arith.constant 0 : i32
    %c0_i32_0 = arith.constant 0 : i32
    %c0_i32_1 = arith.constant 0 : i32
    return %c0_i32, %c0_i32_0 : i32, i32
  }
  func.func @transform_2(%arg0: i32) -> (i32, i32) {
    %c0_i32 = arith.constant 0 : i32
    %c0_i32_0 = arith.constant 0 : i32
    %c0_i32_1 = arith.constant 0 : i32
    return %c0_i32, %c0_i32_0 : i32, i32
  }
  func.func @transform_3(%arg0: i32) -> (i32, i32, i32) {
    %c0_i32 = arith.constant 0 : i32
    %c0_i32_0 = arith.constant 0 : i32
    %c0_i32_1 = arith.constant 0 : i32
    %c0_i32_2 = arith.constant 0 : i32
    return %c0_i32, %c0_i32_0, %c0_i32_1 : i32, i32, i32
  }
  func.func @transform_4(%arg0: i32) -> (i32, i32) {
    %c0_i32 = arith.constant 0 : i32
    %c0_i32_0 = arith.constant 0 : i32
    %c0_i32_1 = arith.constant 0 : i32
    return %c0_i32, %c0_i32_0 : i32, i32
  }
  func.func @transform_5(%arg0: i32) -> (i32, i32) {
    %c0_i32 = arith.constant 0 : i32
    %c0_i32_0 = arith.constant 0 : i32
    %c0_i32_1 = arith.constant 0 : i32
    return %c0_i32, %c0_i32_0 : i32, i32
  }
  func.func @transform_6(%arg0: i32) -> (i32, i32, i32) {
    %c0_i32 = arith.constant 0 : i32
    %c0_i32_0 = arith.constant 0 : i32
    %c0_i32_1 = arith.constant 0 : i32
    %c0_i32_2 = arith.constant 0 : i32
    return %c0_i32, %c0_i32_0, %c0_i32_1 : i32, i32, i32
  }
  func.func @transform_7(%arg0: i32) -> (i32, i32, i32) {
    %c0_i32 = arith.constant 0 : i32
    %c0_i32_0 = arith.constant 0 : i32
    %c0_i32_1 = arith.constant 0 : i32
    %c0_i32_2 = arith.constant 0 : i32
    return %c0_i32, %c0_i32_0, %c0_i32_1 : i32, i32, i32
  }
  func.func @transform_8(%arg0: i32) -> (i32, i32, i32) {
    %c0_i32 = arith.constant 0 : i32
    %c0_i32_0 = arith.constant 0 : i32
    %c0_i32_1 = arith.constant 0 : i32
    %c0_i32_2 = arith.constant 0 : i32
    return %c0_i32, %c0_i32_0, %c0_i32_1 : i32, i32, i32
  }
  func.func @transform_9(%arg0: i32) -> (i32, i32) {
    %c0_i32 = arith.constant 0 : i32
    %c0_i32_0 = arith.constant 0 : i32
    %c0_i32_1 = arith.constant 0 : i32
    return %c0_i32, %c0_i32_0 : i32, i32
  }
  func.func @transform_10(%arg0: i32) -> (i32, i32) {
    %c0_i32 = arith.constant 0 : i32
    %c0_i32_0 = arith.constant 0 : i32
    %c0_i32_1 = arith.constant 0 : i32
    return %c0_i32, %c0_i32_0 : i32, i32
  }
  func.func @transform_11(%arg0: i32) -> (i32, i32) {
    %c0_i32 = arith.constant 0 : i32
    %c0_i32_0 = arith.constant 0 : i32
    %c0_i32_1 = arith.constant 0 : i32
    return %c0_i32, %c0_i32_0 : i32, i32
  }
}

</mosaic_0001>

<llo_original>
// kernel: tpu_custom_call.1
$region0: #{tpu_custom_call.1}
  #allocation0 [shape = 'u32[]', space=smem, size = 0x4, offset = 0x4, fixed_abs, tag = 'smem constant byte address 0x4 - core index']
  #allocation1 [shape = 'u32[144,128]{1,0:T(1,128)}', space=vmem, size = 0x12000, scoped, tag = 'internal scratch']
  #allocation2 [shape = 'f32[30,128]{1,0:T(8,128)}', space=vmem, size = 0x4000, scoped, tag = 'scratch operand']
  %s0 = inlined_call_operand.vmem [shape: f32[2,15,12], index: 0, kind: input, shape index: {}]
  %s1 = inlined_call_operand.vmem [shape: f32[2,128], index: 1, kind: input, shape index: {}]
  %s2 = inlined_call_operand.vmem [shape: f32[18,12], index: 2, kind: input, shape index: {}]
  %s3 = inlined_call_operand.vmem [shape: bf16[9,12,128], index: 3, kind: input, shape index: {}]
  %s4 = inlined_call_operand.hbm [shape: bf16[128,256], index: 4, kind: input, shape index: {}]
  %s5 = inlined_call_operand.vmem [shape: f32[7,128], index: 5, kind: input, shape index: {}]
  %s6 = inlined_call_operand.hbm [shape: bf16[2,128,128], index: 6, kind: input, shape index: {}]
  %s7 = inlined_call_operand.hbm [shape: bf16[3,128,384], index: 7, kind: input, shape index: {}]
  %s8 = inlined_call_operand.hbm [shape: bf16[3,128,384], index: 8, kind: input, shape index: {}]
  %s9 = inlined_call_operand.vmem [shape: f32[6,384], index: 9, kind: input, shape index: {}]
  %s10 = inlined_call_operand.hbm [shape: f32[2,256], index: 10, kind: output, shape index: {0}]
  %s11 = inlined_call_operand.hbm [shape: f32[30,128], index: 11, kind: output, shape index: {1}]
  %12 = xla_tuple %s10, %s11
  %s13 = sld [smem:[#allocation0]]
  $region74: #{tpu_custom_call.1} parent=0
    _
  %s15 = ssub.s32 1, %s13
  %s16 = scalar_select 0, %s15, %s13
  $region1: #{tpu_custom_call.1} parent=0
    #allocation3 [shape = 'u8[65536]{0}', space=vmem, size = 0x10000, scoped, tag = 'input window, operand 4, single buffered']
    #allocation4 [shape = 's32[1]{0}', space=sflag, size = 0x4, scoped, tag = 'scoped memory for tpu_custom_call.1']
    #allocation5 [shape = 's32[1]{0}', space=sflag, size = 0x4, scoped, tag = 'scoped memory for tpu_custom_call.1']
    #allocation6 [shape = 'u8[65536]{0}', space=vmem, size = 0x10000, scoped, tag = 'input window, operand 6, single buffered']
    #allocation7 [shape = 's32[1]{0}', space=sflag, size = 0x4, scoped, tag = 'scoped memory for tpu_custom_call.1']
    #allocation8 [shape = 'u8[294912]{0}', space=vmem, size = 0x48000, scoped, tag = 'input window, operand 7, single buffered']
    #allocation9 [shape = 'u8[294912]{0}', space=vmem, size = 0x48000, scoped, tag = 'input window, operand 8, single buffered']
    #allocation10 [shape = 's32[1]{0}', space=sflag, size = 0x4, scoped, tag = 'scoped memory for tpu_custom_call.1']
    #allocation11 [shape = 'u8[2048]{0}', space=vmem, size = 0x800, scoped, tag = 'output window, operand 0, single buffered']
    #allocation12 [shape = 'u8[16384]{0}', space=vmem, size = 0x4000, scoped, tag = 'output window, operand 1, single buffered']
    #allocation13 [shape = 's32[1]{0}', space=sflag, size = 0x4, scoped, tag = 'scoped memory for tpu_custom_call.1']
    %17 = vsyncpa [#allocation4], 0
    %18 = vsyncpa [#allocation7], 0
    %19 = vsyncpa [#allocation10], 0
    %20 = vsyncpa [#allocation5], 0
    %21 = vsyncpa [#allocation13], 0
    // Predicated region
    $region2: #{tpu_custom_call.1} parent=1 // pred_check
      _
    $region3: #{tpu_custom_call.1} parent=1 // pred_check_branch
      %23 = sbr.rel (0) target = $region5
    $region4: #{tpu_custom_call.1} parent=1 // pred_region
      _
    $region5: #{tpu_custom_call.1} parent=1 // pred_fallthru
      _
    // Predicated region
    $region6: #{tpu_custom_call.1} parent=1 // pred_check
      _
    $region7: #{tpu_custom_call.1} parent=1 // pred_check_branch
      %25 = sbr.rel (0) target = $region9
    $region8: #{tpu_custom_call.1} parent=1 // pred_region
      _
    $region9: #{tpu_custom_call.1} parent=1 // pred_fallthru
      _
    // Predicated region
    $region10: #{tpu_custom_call.1} parent=1 // pred_check
      _
    $region11: #{tpu_custom_call.1} parent=1 // pred_check_branch
      %27 = sbr.rel (0) target = $region13
    $region12: #{tpu_custom_call.1} parent=1 // pred_region
      _
    $region13: #{tpu_custom_call.1} parent=1 // pred_fallthru
      _
    // Predicated region
    $region14: #{tpu_custom_call.1} parent=1 // pred_check
      _
    $region15: #{tpu_custom_call.1} parent=1 // pred_check_branch
      %29 = sbr.rel (0) target = $region17
    $region16: #{tpu_custom_call.1} parent=1 // pred_region
      _
    $region17: #{tpu_custom_call.1} parent=1 // pred_fallthru
      _
    // Predicated region
    $region18: #{tpu_custom_call.1} parent=1 // pred_check
      _
    $region19: #{tpu_custom_call.1} parent=1 // pred_check_branch
      %31 = sbr.rel (0) target = $region21
    $region20: #{tpu_custom_call.1} parent=1 // pred_region
      %s33 = ssub.s32 2048, 2048
      %34 = vsyncadd [#allocation4], %s33
      %s35 = sshll.u32 [#allocation3], 4
      %s36 = int_to_ptr.vmem [resolvable:$true] %s35
      %41 = dma.hbm_to_vmem [thread:$0]  %s4, 2048, %s36, [#allocation4], 128, 128, 8
    $region21: #{tpu_custom_call.1} parent=1 // pred_fallthru
      _
    // Predicated region
    $region22: #{tpu_custom_call.1} parent=1 // pred_check
      _
    $region23: #{tpu_custom_call.1} parent=1 // pred_check_branch
      %43 = sbr.rel (0) target = $region25
    $region24: #{tpu_custom_call.1} parent=1 // pred_region
      _
    $region25: #{tpu_custom_call.1} parent=1 // pred_fallthru
      _
    // Predicated region
    $region26: #{tpu_custom_call.1} parent=1 // pred_check
      _
    $region27: #{tpu_custom_call.1} parent=1 // pred_check_branch
      %45 = sbr.rel (0) target = $region29
    $region28: #{tpu_custom_call.1} parent=1 // pred_region
      %s47 = ssub.s32 2048, 2048
      %48 = vsyncadd [#allocation7], %s47
      %s49 = sshll.u32 [#allocation6], 4
      %s50 = int_to_ptr.vmem [resolvable:$true] %s49
      %55 = dma.hbm_to_vmem [thread:$0]  %s6, 2048, %s50, [#allocation7], 64, 64, 4
    $region29: #{tpu_custom_call.1} parent=1 // pred_fallthru
      _
    // Predicated region
    $region30: #{tpu_custom_call.1} parent=1 // pred_check
      _
    $region31: #{tpu_custom_call.1} parent=1 // pred_check_branch
      %57 = sbr.rel (0) target = $region33
    $region32: #{tpu_custom_call.1} parent=1 // pred_region
      %s59 = ssub.s32 9216, 9216
      %60 = vsyncadd [#allocation7], %s59
      %s61 = sshll.u32 [#allocation8], 4
      %s62 = int_to_ptr.vmem [resolvable:$true] %s61
      %67 = dma.hbm_to_vmem [thread:$0]  %s7, 9216, %s62, [#allocation7], 192, 192, 12
    $region33: #{tpu_custom_call.1} parent=1 // pred_fallthru
      _
    // Predicated region
    $region34: #{tpu_custom_call.1} parent=1 // pred_check
      _
    $region35: #{tpu_custom_call.1} parent=1 // pred_check_branch
      %69 = sbr.rel (0) target = $region37
    $region36: #{tpu_custom_call.1} parent=1 // pred_region
      %s71 = ssub.s32 9216, 9216
      %72 = vsyncadd [#allocation10], %s71
      %s73 = sshll.u32 [#allocation9], 4
      %s74 = int_to_ptr.vmem [resolvable:$true] %s73
      %79 = dma.hbm_to_vmem [thread:$0]  %s8, 9216, %s74, [#allocation10], 192, 192, 12
    $region37: #{tpu_custom_call.1} parent=1 // pred_fallthru
      _
    // Predicated region
    $region38: #{tpu_custom_call.1} parent=1 // pred_check
      _
    $region39: #{tpu_custom_call.1} parent=1 // pred_check_branch
      %81 = sbr.rel (0) target = $region41
    $region40: #{tpu_custom_call.1} parent=1 // pred_region
      _
    $region41: #{tpu_custom_call.1} parent=1 // pred_fallthru
      _
    // Predicated region
    $region42: #{tpu_custom_call.1} parent=1 // pred_check
      _
    $region43: #{tpu_custom_call.1} parent=1 // pred_check_branch
      %83 = sbr.rel (0) target = $region45
    $region44: #{tpu_custom_call.1} parent=1 // pred_region
      %84 = dma.done [#allocation4], 2048
    $region45: #{tpu_custom_call.1} parent=1 // pred_fallthru
      _
    // Predicated region
    $region46: #{tpu_custom_call.1} parent=1 // pred_check
      _
    $region47: #{tpu_custom_call.1} parent=1 // pred_check_branch
      %86 = sbr.rel (0) target = $region49
    $region48: #{tpu_custom_call.1} parent=1 // pred_region
      %87 = dma.done [#allocation7], 2048
    $region49: #{tpu_custom_call.1} parent=1 // pred_fallthru
      _
    // Predicated region
    $region50: #{tpu_custom_call.1} parent=1 // pred_check
      _
    $region51: #{tpu_custom_call.1} parent=1 // pred_check_branch
      %89 = sbr.rel (0) target = $region53
    $region52: #{tpu_custom_call.1} parent=1 // pred_region
      %90 = dma.done [#allocation7], 9216
    $region53: #{tpu_custom_call.1} parent=1 // pred_fallthru
      _
    // Predicated region
    $region54: #{tpu_custom_call.1} parent=1 // pred_check
      _
    $region55: #{tpu_custom_call.1} parent=1 // pred_check_branch
      %92 = sbr.rel (0) target = $region57
    $region56: #{tpu_custom_call.1} parent=1 // pred_region
      %93 = dma.done [#allocation10], 9216
    $region57: #{tpu_custom_call.1} parent=1 // pred_fallthru
      _
    %v95 = vld [vmem:[%s2] sm:$0xff]
    %v96 = vld [vmem:[%s2 + $0x8] sm:$0xff]
    %v97 = vld [vmem:[%s2 + $0x10] sm:$0x3]
    %v98 = vld [vmem:[%s0] sm:$0xff]
    %v99 = vld [vmem:[%s0 + $0x8] sm:$0x7f]
    %v100 = vld [vmem:[%s0 + $0x10] sm:$0xff]
    %v101 = vld [vmem:[%s0 + $0x18] sm:$0x7f]
    %v102 = vlaneseq
    %v103 = vshrl.u32 %v102, 7
    %v104 = vsub.s32 0, %v103
    %v105 = vrot.slane %v95, %v104
    %v106 = vmul.f32 %v98, %v105
    %v107 = vmul.f32 %v99, %v105
    %v108 = vmul.f32 %v100, %v105
    %v109 = vmul.f32 %v101, %v105
    %v110 = vlaneseq
    %v111 = vshrl.u32 %v110, 7
    %v112 = vsub.s32 1, %v111
    %v113 = vrot.slane %v95, %v112
    %v114 = vmul.f32 %v98, %v113
    %v115 = vmul.f32 %v99, %v113
    %v116 = vmul.f32 %v100, %v113
    %v117 = vmul.f32 %v101, %v113
    %vm122 = vcmask 1046528
    %v123 = vrot.slane %v114, 1
    %v124 = vrot.slane %v115, 1
    %v125 = vsel %vm122, %v123, %v124
    %v126 = vrot.slane %v116, 1
    %v127 = vrot.slane %v117, 1
    %v128 = vsel %vm122, %v126, %v127
    %v133 = vadd.f32 %v106, %v125
    %v134 = vadd.f32 %v107, %v124
    %v135 = vadd.f32 %v108, %v128
    %v136 = vadd.f32 %v109, %v127
    %v137 = vlaneseq
    %v138 = vshrl.u32 %v137, 7
    %v139 = vsub.s32 1, %v138
    %v140 = vrot.slane %v96, %v139
    %v141 = vadd.f32 %v133, %v140
    %v142 = vadd.f32 %v134, %v140
    %v143 = vadd.f32 %v135, %v140
    %v144 = vadd.f32 %v136, %v140
    %vm145 = vcmask 97280
    %v146 = vsel %vm145, %v141, 0.0
    %vm147 = vcmask 95232
    %v148 = vsel %vm147, %v142, 0.0
    %v149 = vadd.f32 %v146, %v148
    %v150 = vsel %vm145, %v143, 0.0
    %v151 = vadd.f32 %v149, %v150
    %v152 = vsel %vm147, %v144, 0.0
    %v153 = vadd.f32 %v151, %v152
    %v154 = vrot.slane %v153, 4
    %v155 = vadd.f32 %v153, %v154
    %v156 = vrot.slane %v155, 2
    %v157 = vadd.f32 %v155, %v156
    %v158 = vrot.slane %v157, 1
    %v159 = vadd.f32 %v157, %v158
    %v160 = vrcp.pop 28.0
    %v161 = vmul.f32 %v159, %v160
    %v162 = vsub.f32 %v141, %v161
    %v163 = vsub.f32 %v142, %v161
    %v164 = vsub.f32 %v143, %v161
    %v165 = vsub.f32 %v144, %v161
    %v166 = vmul.f32 %v162, %v162
    %v167 = vmul.f32 %v163, %v163
    %v168 = vmul.f32 %v164, %v164
    %v169 = vmul.f32 %v165, %v165
    %v170 = vsel %vm145, %v166, 0.0
    %v171 = vsel %vm147, %v167, 0.0
    %v172 = vadd.f32 %v170, %v171
    %v173 = vsel %vm145, %v168, 0.0
    %v174 = vadd.f32 %v172, %v173
    %v175 = vsel %vm147, %v169, 0.0
    %v176 = vadd.f32 %v174, %v175
    %v177 = vrot.slane %v176, 4
    %v178 = vadd.f32 %v176, %v177
    %v179 = vrot.slane %v178, 2
    %v180 = vadd.f32 %v178, %v179
    %v181 = vrot.slane %v180, 1
    %v182 = vadd.f32 %v180, %v181
    %v183 = vmul.f32 %v182, %v160
    %v184 = vadd.f32 %v183, 1e-05
    %v185 = vrsqrt.pop %v184
    %v186 = vmul.f32 %v162, %v185
    %v187 = vmul.f32 %v163, %v185
    %v188 = vmul.f32 %v164, %v185
    %v189 = vmul.f32 %v165, %v185
    %v190 = vlaneseq
    %v191 = vshrl.u32 %v190, 7
    %v192 = vsub.s32 4, %v191
    %v193 = vrot.slane %v96, %v192
    %v194 = vmul.f32 %v186, %v193
    %v195 = vmul.f32 %v187, %v193
    %v196 = vmul.f32 %v188, %v193
    %v197 = vmul.f32 %v189, %v193
    %v198 = vlaneseq
    %v199 = vshrl.u32 %v198, 7
    %v200 = vsub.s32 7, %v199
    %v201 = vrot.slane %v96, %v200
    %v202 = vadd.f32 %v194, %v201
    %v203 = vadd.f32 %v195, %v201
    %v204 = vadd.f32 %v196, %v201
    %v205 = vadd.f32 %v197, %v201
    %v206 = vmax.f32 %v202, 0.0
    %v207 = vmax.f32 %v203, 0.0
    %v208 = vmax.f32 %v204, 0.0
    %v209 = vmax.f32 %v205, 0.0
    %v210 = vlaneseq
    %v211 = vshrl.u32 %v210, 7
    %v212 = vsub.s32 2, %v211
    %v213 = vrot.slane %v95, %v212
    %v214 = vmul.f32 %v206, %v213
    %v215 = vmul.f32 %v207, %v213
    %v216 = vmul.f32 %v208, %v213
    %v217 = vmul.f32 %v209, %v213
    %v218 = vlaneseq
    %v219 = vshrl.u32 %v218, 7
    %v220 = vsub.s32 3, %v219
    %v221 = vrot.slane %v95, %v220
    %v222 = vmul.f32 %v206, %v221
    %v223 = vmul.f32 %v207, %v221
    %v224 = vmul.f32 %v208, %v221
    %v225 = vmul.f32 %v209, %v221
    %v230 = vrot.slane %v222, 1
    %v231 = vrot.slane %v223, 1
    %v232 = vsel %vm122, %v230, %v231
    %v233 = vrot.slane %v224, 1
    %v234 = vrot.slane %v225, 1
    %v235 = vsel %vm122, %v233, %v234
    %v240 = vadd.f32 %v214, %v232
    %v241 = vadd.f32 %v215, %v231
    %v242 = vadd.f32 %v216, %v235
    %v243 = vadd.f32 %v217, %v234
    %v244 = vlaneseq
    %v245 = vshrl.u32 %v244, 7
    %v246 = vsub.s32 4, %v245
    %v247 = vrot.slane %v95, %v246
    %v248 = vmul.f32 %v206, %v247
    %v249 = vmul.f32 %v207, %v247
    %v250 = vmul.f32 %v208, %v247
    %v251 = vmul.f32 %v209, %v247
    %vm256 = vcmask 1045504
    %v257 = vrot.slane %v248, 2
    %v258 = vrot.slane %v249, 2
    %v259 = vsel %vm256, %v257, %v258
    %v260 = vrot.slane %v250, 2
    %v261 = vrot.slane %v251, 2
    %v262 = vsel %vm256, %v260, %v261
    %v267 = vadd.f32 %v240, %v259
    %v268 = vadd.f32 %v241, %v258
    %v269 = vadd.f32 %v242, %v262
    %v270 = vadd.f32 %v243, %v261
    %v271 = vlaneseq
    %v272 = vshrl.u32 %v271, 7
    %v273 = vsub.s32 2, %v272
    %v274 = vrot.slane %v96, %v273
    %v275 = vadd.f32 %v267, %v274
    %v276 = vadd.f32 %v268, %v274
    %v277 = vadd.f32 %v269, %v274
    %v278 = vadd.f32 %v270, %v274
    %v279 = vsel %vm145, %v275, 0.0
    %vm280 = vcmask 93184
    %v281 = vsel %vm280, %v276, 0.0
    %v282 = vadd.f32 %v279, %v281
    %v283 = vsel %vm145, %v277, 0.0
    %v284 = vadd.f32 %v282, %v283
    %v285 = vsel %vm280, %v278, 0.0
    %v286 = vadd.f32 %v284, %v285
    %v287 = vrot.slane %v286, 4
    %v288 = vadd.f32 %v286, %v287
    %v289 = vrot.slane %v288, 2
    %v290 = vadd.f32 %v288, %v289
    %v291 = vrot.slane %v290, 1
    %v292 = vadd.f32 %v290, %v291
    %v293 = vrcp.pop 24.0
    %v294 = vmul.f32 %v292, %v293
    %v295 = vsub.f32 %v275, %v294
    %v296 = vsub.f32 %v276, %v294
    %v297 = vsub.f32 %v277, %v294
    %v298 = vsub.f32 %v278, %v294
    %v299 = vmul.f32 %v295, %v295
    %v300 = vmul.f32 %v296, %v296
    %v301 = vmul.f32 %v297, %v297
    %v302 = vmul.f32 %v298, %v298
    %v303 = vsel %vm145, %v299, 0.0
    %v304 = vsel %vm280, %v300, 0.0
    %v305 = vadd.f32 %v303, %v304
    %v306 = vsel %vm145, %v301, 0.0
    %v307 = vadd.f32 %v305, %v306
    %v308 = vsel %vm280, %v302, 0.0
    %v309 = vadd.f32 %v307, %v308
    %v310 = vrot.slane %v309, 4
    %v311 = vadd.f32 %v309, %v310
    %v312 = vrot.slane %v311, 2
    %v313 = vadd.f32 %v311, %v312
    %v314 = vrot.slane %v313, 1
    %v315 = vadd.f32 %v313, %v314
    %v316 = vmul.f32 %v315, %v293
    %v317 = vadd.f32 %v316, 1e-05
    %v318 = vrsqrt.pop %v317
    %v319 = vmul.f32 %v295, %v318
    %v320 = vmul.f32 %v296, %v318
    %v321 = vmul.f32 %v297, %v318
    %v322 = vmul.f32 %v298, %v318
    %v323 = vlaneseq
    %v324 = vshrl.u32 %v323, 7
    %v325 = vsub.s32 5, %v324
    %v326 = vrot.slane %v96, %v325
    %v327 = vmul.f32 %v319, %v326
    %v328 = vmul.f32 %v320, %v326
    %v329 = vmul.f32 %v321, %v326
    %v330 = vmul.f32 %v322, %v326
    %v331 = vlaneseq
    %v332 = vshrl.u32 %v331, 7
    %v333 = vsub.s32 0, %v332
    %v334 = vrot.slane %v97, %v333
    %v335 = vadd.f32 %v327, %v334
    %v336 = vadd.f32 %v328, %v334
    %v337 = vadd.f32 %v329, %v334
    %v338 = vadd.f32 %v330, %v334
    %v339 = vmax.f32 %v335, 0.0
    %v340 = vmax.f32 %v336, 0.0
    %v341 = vmax.f32 %v337, 0.0
    %v342 = vmax.f32 %v338, 0.0
    %v343 = vlaneseq
    %v344 = vshrl.u32 %v343, 7
    %v345 = vsub.s32 5, %v344
    %v346 = vrot.slane %v95, %v345
    %v347 = vmul.f32 %v339, %v346
    %v348 = vmul.f32 %v340, %v346
    %v349 = vmul.f32 %v341, %v346
    %v350 = vmul.f32 %v342, %v346
    %v351 = vlaneseq
    %v352 = vshrl.u32 %v351, 7
    %v353 = vsub.s32 6, %v352
    %v354 = vrot.slane %v95, %v353
    %v355 = vmul.f32 %v339, %v354
    %v356 = vmul.f32 %v340, %v354
    %v357 = vmul.f32 %v341, %v354
    %v358 = vmul.f32 %v342, %v354
    %v363 = vrot.slane %v355, 1
    %v364 = vrot.slane %v356, 1
    %v365 = vsel %vm122, %v363, %v364
    %v366 = vrot.slane %v357, 1
    %v367 = vrot.slane %v358, 1
    %v368 = vsel %vm122, %v366, %v367
    %v373 = vadd.f32 %v347, %v365
    %v374 = vadd.f32 %v348, %v364
    %v375 = vadd.f32 %v349, %v368
    %v376 = vadd.f32 %v350, %v367
    %v377 = vlaneseq
    %v378 = vshrl.u32 %v377, 7
    %v379 = vsub.s32 7, %v378
    %v380 = vrot.slane %v95, %v379
    %v381 = vmul.f32 %v339, %v380
    %v382 = vmul.f32 %v340, %v380
    %v383 = vmul.f32 %v341, %v380
    %v384 = vmul.f32 %v342, %v380
    %v389 = vrot.slane %v381, 2
    %v390 = vrot.slane %v382, 2
    %v391 = vsel %vm256, %v389, %v390
    %v392 = vrot.slane %v383, 2
    %v393 = vrot.slane %v384, 2
    %v394 = vsel %vm256, %v392, %v393
    %v399 = vadd.f32 %v373, %v391
    %v400 = vadd.f32 %v374, %v390
    %v401 = vadd.f32 %v375, %v394
    %v402 = vadd.f32 %v376, %v393
    %v403 = vlaneseq
    %v404 = vshrl.u32 %v403, 7
    %v405 = vsub.s32 0, %v404
    %v406 = vrot.slane %v96, %v405
    %v407 = vmul.f32 %v339, %v406
    %v408 = vmul.f32 %v340, %v406
    %v409 = vmul.f32 %v341, %v406
    %v410 = vmul.f32 %v342, %v406
    %vm415 = vcmask 1044480
    %v416 = vrot.slane %v407, 3
    %v417 = vrot.slane %v408, 3
    %v418 = vsel %vm415, %v416, %v417
    %v419 = vrot.slane %v409, 3
    %v420 = vrot.slane %v410, 3
    %v421 = vsel %vm415, %v419, %v420
    %v426 = vadd.f32 %v399, %v418
    %v427 = vadd.f32 %v400, %v417
    %v428 = vadd.f32 %v401, %v421
    %v429 = vadd.f32 %v402, %v420
    %v430 = vlaneseq
    %v431 = vshrl.u32 %v430, 7
    %v432 = vsub.s32 3, %v431
    %v433 = vrot.slane %v96, %v432
    %v434 = vadd.f32 %v426, %v433
    %v435 = vadd.f32 %v427, %v433
    %v436 = vadd.f32 %v428, %v433
    %v437 = vadd.f32 %v429, %v433
    %v438 = vsel %vm145, %v434, 0.0
    %vm439 = vcmask 90112
    %v440 = vsel %vm439, %v435, 0.0
    %v441 = vadd.f32 %v438, %v440
    %v442 = vsel %vm145, %v436, 0.0
    %v443 = vadd.f32 %v441, %v442
    %v444 = vsel %vm439, %v437, 0.0
    %v445 = vadd.f32 %v443, %v444
    %v446 = vrot.slane %v445, 4
    %v447 = vadd.f32 %v445, %v446
    %v448 = vrot.slane %v447, 2
    %v449 = vadd.f32 %v447, %v448
    %v450 = vrot.slane %v449, 1
    %v451 = vadd.f32 %v449, %v450
    %v452 = vrcp.pop 18.0
    %v453 = vmul.f32 %v451, %v452
    %v454 = vsub.f32 %v434, %v453
    %v455 = vsub.f32 %v435, %v453
    %v456 = vsub.f32 %v436, %v453
    %v457 = vsub.f32 %v437, %v453
    %v458 = vmul.f32 %v454, %v454
    %v459 = vmul.f32 %v455, %v455
    %v460 = vmul.f32 %v456, %v456
    %v461 = vmul.f32 %v457, %v457
    %v462 = vsel %vm145, %v458, 0.0
    %v463 = vsel %vm439, %v459, 0.0
    %v464 = vadd.f32 %v462, %v463
    %v465 = vsel %vm145, %v460, 0.0
    %v466 = vadd.f32 %v464, %v465
    %v467 = vsel %vm439, %v461, 0.0
    %v468 = vadd.f32 %v466, %v467
    %v469 = vrot.slane %v468, 4
    %v470 = vadd.f32 %v468, %v469
    %v471 = vrot.slane %v470, 2
    %v472 = vadd.f32 %v470, %v471
    %v473 = vrot.slane %v472, 1
    %v474 = vadd.f32 %v472, %v473
    %v475 = vmul.f32 %v474, %v452
    %v476 = vadd.f32 %v475, 1e-05
    %v477 = vrsqrt.pop %v476
    %v478 = vmul.f32 %v454, %v477
    %v479 = vmul.f32 %v455, %v477
    %v480 = vmul.f32 %v456, %v477
    %v481 = vmul.f32 %v457, %v477
    %v482 = vlaneseq
    %v483 = vshrl.u32 %v482, 7
    %v484 = vsub.s32 6, %v483
    %v485 = vrot.slane %v96, %v484
    %v486 = vmul.f32 %v478, %v485
    %v487 = vmul.f32 %v479, %v485
    %v488 = vmul.f32 %v480, %v485
    %v489 = vmul.f32 %v481, %v485
    %v490 = vlaneseq
    %v491 = vshrl.u32 %v490, 7
    %v492 = vsub.s32 1, %v491
    %v493 = vrot.slane %v97, %v492
    %v494 = vadd.f32 %v486, %v493
    %v495 = vadd.f32 %v487, %v493
    %v496 = vadd.f32 %v488, %v493
    %v497 = vadd.f32 %v489, %v493
    %v498 = vmax.f32 %v494, 0.0
    %v499 = vmax.f32 %v495, 0.0
    %v500 = vmax.f32 %v496, 0.0
    %v501 = vmax.f32 %v497, 0.0
    %v502 = vld [vmem:[%s5] sm:$0x7f]
    %v503 = vpack.c.bf16 %v498, %v498
    %v504 = vpack.c.bf16 %v500, %v500
    %v505 = vld [vmem:[%s3] sm:$0xf]
    %v506 = vld [vmem:[%s3 + $0x4] sm:$0x3]
    %s507 = scalar_lea.vmem %s3, 8
    %v508 = vld [vmem:[%s507] sm:$0xf]
    %v509 = vld [vmem:[%s507 + $0x4] sm:$0x3]
    %v512 = vunpack.c.l.b16 %v503
    %v513 = vunpack.c.l.b16 %v504
    %v514 = vrot.slane %v512, 1
    %vm515 = vcmask 1041409
    %v516 = vsel %vm515, %v513, %v514
    %v517 = vpack.c.b16 %v516, %v516
    %v520 = vunpack.c.l.b16 %v508
    %v521 = vunpack.c.l.b16 %v509
    %v522 = vpack.c.b16 %v521, %v520
    %v524 = vsel %vm145, %v517, 0
    %v527 = vsel %vm256, %v522, 0
    %529 = vmatprep.subr.bf16.mxu0 0
    %530 = vmatpush1.bf16.msra.mxu0 %v527
    %531 = vmatprep.subr.bf16.mxu0 0
    %532 = vmatpush1.bf16.msra.mxu0 0
    %533 = vmatprep.subr.bf16.mxu0 0
    %534 = vmatpush1.bf16.msra.mxu0 0
    %535 = vmatprep.subr.bf16.mxu0 0
    %536 = vmatpush1.bf16.msra.mxu0 0
    %537 = vmatprep.subr.bf16.mxu0 0
    %538 = vmatpush1.bf16.msra.mxu0 0
    %539 = vmatprep.subr.bf16.mxu0 0
    %540 = vmatpush1.bf16.msra.mxu0 0
    %541 = vmatprep.subr.bf16.mxu0 0
    %542 = vmatpush1.bf16.msra.mxu0 0
    %543 = vmatprep.subr.bf16.mxu0 0
    %544 = vmatpush1.bf16.msra.mxu0 0
    %545 = vmatprep.subr.bf16.mxu0 0
    %546 = vmatpush1.bf16.msra.mxu0 0
    %547 = vmatprep.subr.bf16.mxu0 0
    %548 = vmatpush1.bf16.msra.mxu0 0
    %549 = vmatprep.subr.bf16.mxu0 0
    %550 = vmatpush1.bf16.msra.mxu0 0
    %551 = vmatprep.subr.bf16.mxu0 0
    %552 = vmatpush1.bf16.msra.mxu0 0
    %553 = vmatprep.subr.bf16.mxu0 0
    %554 = vmatpush1.bf16.msra.mxu0 0
    %555 = vmatprep.subr.bf16.mxu0 0
    %556 = vmatpush1.bf16.msra.mxu0 0
    %557 = vmatprep.subr.bf16.mxu0 0
    %558 = vmatpush1.bf16.msra.mxu0 0
    %559 = vmatprep.subr.bf16.mxu0 0
    %560 = vmatpush1.bf16.msra.mxu0 0
    %561 = vmatprep.mubr.bf16.mxu0 0
    %562 = vmatmul.mubr.bf16.gmra.mrb[0].mxu0 %v524
    %v563 = vpop.f32.mrb[0].mxu0
    %v564 = vadd.f32 0.0, %v563
    %v565 = vpop.f32.mrb[0].mxu0
    %v566 = vpop.f32.mrb[0].mxu0
    %v567 = vpop.f32.mrb[0].mxu0
    %568 = vdwg.mxu0
    %v569 = vrot.slane %v513, 7
    %v570 = vsel %vm515, %v569, %v512
    %v571 = vpack.c.b16 %v570, %v570
    %v574 = vunpack.c.l.b16 %v505
    %v575 = vunpack.c.l.b16 %v506
    %v576 = vpack.c.b16 %v575, %v574
    %v578 = vsel %vm145, %v571, 0
    %v581 = vsel %vm256, %v576, 0
    %583 = vmatprep.subr.bf16.mxu0 0
    %584 = vmatpush1.bf16.msra.mxu0 %v581
    %585 = vmatprep.subr.bf16.mxu0 0
    %586 = vmatpush1.bf16.msra.mxu0 0
    %587 = vmatprep.subr.bf16.mxu0 0
    %588 = vmatpush1.bf16.msra.mxu0 0
    %589 = vmatprep.subr.bf16.mxu0 0
    %590 = vmatpush1.bf16.msra.mxu0 0
    %591 = vmatprep.subr.bf16.mxu0 0
    %592 = vmatpush1.bf16.msra.mxu0 0
    %593 = vmatprep.subr.bf16.mxu0 0
    %594 = vmatpush1.bf16.msra.mxu0 0
    %595 = vmatprep.subr.bf16.mxu0 0
    %596 = vmatpush1.bf16.msra.mxu0 0
    %597 = vmatprep.subr.bf16.mxu0 0
    %598 = vmatpush1.bf16.msra.mxu0 0
    %599 = vmatprep.subr.bf16.mxu0 0
    %600 = vmatpush1.bf16.msra.mxu0 0
    %601 = vmatprep.subr.bf16.mxu0 0
    %602 = vmatpush1.bf16.msra.mxu0 0
    %603 = vmatprep.subr.bf16.mxu0 0
    %604 = vmatpush1.bf16.msra.mxu0 0
    %605 = vmatprep.subr.bf16.mxu0 0
    %606 = vmatpush1.bf16.msra.mxu0 0
    %607 = vmatprep.subr.bf16.mxu0 0
    %608 = vmatpush1.bf16.msra.mxu0 0
    %609 = vmatprep.subr.bf16.mxu0 0
    %610 = vmatpush1.bf16.msra.mxu0 0
    %611 = vmatprep.subr.bf16.mxu0 0
    %612 = vmatpush1.bf16.msra.mxu0 0
    %613 = vmatprep.subr.bf16.mxu0 0
    %614 = vmatpush1.bf16.msra.mxu0 0
    %615 = vmatprep.mubr.bf16.mxu0 0
    %616 = vmatmul.mubr.bf16.gmra.mrb[0].mxu0 %v578
    %v617 = vpop.f32.mrb[0].mxu0
    %v618 = vadd.f32 %v564, %v617
    %v619 = vpop.f32.mrb[0].mxu0
    %v620 = vpop.f32.mrb[0].mxu0
    %v621 = vpop.f32.mrb[0].mxu0
    %622 = vdwg.mxu0
    %s623 = scalar_lea.vmem %s3, 16
    %v624 = vld [vmem:[%s623] sm:$0xf]
    %v625 = vld [vmem:[%s623 + $0x4] sm:$0x3]
    %v626 = vrot.slane %v512, 2
    %v627 = vrot.slane %v513, 1
    %v628 = vsel %vm515, %v627, %v626
    %v629 = vpack.c.b16 %v628, %v628
    %v632 = vunpack.c.l.b16 %v624
    %v633 = vunpack.c.l.b16 %v625
    %v634 = vpack.c.b16 %v633, %v632
    %v636 = vsel %vm145, %v629, 0
    %v639 = vsel %vm256, %v634, 0
    %641 = vmatprep.subr.bf16.mxu0 0
    %642 = vmatpush1.bf16.msra.mxu0 %v639
    %643 = vmatprep.subr.bf16.mxu0 0
    %644 = vmatpush1.bf16.msra.mxu0 0
    %645 = vmatprep.subr.bf16.mxu0 0
    %646 = vmatpush1.bf16.msra.mxu0 0
    %647 = vmatprep.subr.bf16.mxu0 0
    %648 = vmatpush1.bf16.msra.mxu0 0
    %649 = vmatprep.subr.bf16.mxu0 0
    %650 = vmatpush1.bf16.msra.mxu0 0
    %651 = vmatprep.subr.bf16.mxu0 0
    %652 = vmatpush1.bf16.msra.mxu0 0
    %653 = vmatprep.subr.bf16.mxu0 0
    %654 = vmatpush1.bf16.msra.mxu0 0
    %655 = vmatprep.subr.bf16.mxu0 0
    %656 = vmatpush1.bf16.msra.mxu0 0
    %657 = vmatprep.subr.bf16.mxu0 0
    %658 = vmatpush1.bf16.msra.mxu0 0
    %659 = vmatprep.subr.bf16.mxu0 0
    %660 = vmatpush1.bf16.msra.mxu0 0
    %661 = vmatprep.subr.bf16.mxu0 0
    %662 = vmatpush1.bf16.msra.mxu0 0
    %663 = vmatprep.subr.bf16.mxu0 0
    %664 = vmatpush1.bf16.msra.mxu0 0
    %665 = vmatprep.subr.bf16.mxu0 0
    %666 = vmatpush1.bf16.msra.mxu0 0
    %667 = vmatprep.subr.bf16.mxu0 0
    %668 = vmatpush1.bf16.msra.mxu0 0
    %669 = vmatprep.subr.bf16.mxu0 0
    %670 = vmatpush1.bf16.msra.mxu0 0
    %671 = vmatprep.subr.bf16.mxu0 0
    %672 = vmatpush1.bf16.msra.mxu0 0
    %673 = vmatprep.mubr.bf16.mxu0 0
    %674 = vmatmul.mubr.bf16.gmra.mrb[0].mxu0 %v636
    %v675 = vpop.f32.mrb[0].mxu0
    %v676 = vadd.f32 0.0, %v675
    %v677 = vpop.f32.mrb[0].mxu0
    %v678 = vpop.f32.mrb[0].mxu0
    %v679 = vpop.f32.mrb[0].mxu0
    %680 = vdwg.mxu0
    %v681 = vadd.f32 %v618, %v676
    %s682 = scalar_lea.vmem %s3, 24
    %v683 = vld [vmem:[%s682] sm:$0xf]
    %v684 = vld [vmem:[%s682 + $0x4] sm:$0x3]
    %v685 = vrot.slane %v512, 3
    %v686 = vrot.slane %v513, 2
    %v687 = vsel %vm515, %v686, %v685
    %v688 = vpack.c.b16 %v687, %v687
    %v691 = vunpack.c.l.b16 %v683
    %v692 = vunpack.c.l.b16 %v684
    %v693 = vpack.c.b16 %v692, %v691
    %v695 = vsel %vm145, %v688, 0
    %v698 = vsel %vm256, %v693, 0
    %700 = vmatprep.subr.bf16.mxu0 0
    %701 = vmatpush1.bf16.msra.mxu0 %v698
    %702 = vmatprep.subr.bf16.mxu0 0
    %703 = vmatpush1.bf16.msra.mxu0 0
    %704 = vmatprep.subr.bf16.mxu0 0
    %705 = vmatpush1.bf16.msra.mxu0 0
    %706 = vmatprep.subr.bf16.mxu0 0
    %707 = vmatpush1.bf16.msra.mxu0 0
    %708 = vmatprep.subr.bf16.mxu0 0
    %709 = vmatpush1.bf16.msra.mxu0 0
    %710 = vmatprep.subr.bf16.mxu0 0
    %711 = vmatpush1.bf16.msra.mxu0 0
    %712 = vmatprep.subr.bf16.mxu0 0
    %713 = vmatpush1.bf16.msra.mxu0 0
    %714 = vmatprep.subr.bf16.mxu0 0
    %715 = vmatpush1.bf16.msra.mxu0 0
    %716 = vmatprep.subr.bf16.mxu0 0
    %717 = vmatpush1.bf16.msra.mxu0 0
    %718 = vmatprep.subr.bf16.mxu0 0
    %719 = vmatpush1.bf16.msra.mxu0 0
    %720 = vmatprep.subr.bf16.mxu0 0
    %721 = vmatpush1.bf16.msra.mxu0 0
    %722 = vmatprep.subr.bf16.mxu0 0
    %723 = vmatpush1.bf16.msra.mxu0 0
    %724 = vmatprep.subr.bf16.mxu0 0
    %725 = vmatpush1.bf16.msra.mxu0 0
    %726 = vmatprep.subr.bf16.mxu0 0
    %727 = vmatpush1.bf16.msra.mxu0 0
    %728 = vmatprep.subr.bf16.mxu0 0
    %729 = vmatpush1.bf16.msra.mxu0 0
    %730 = vmatprep.subr.bf16.mxu0 0
    %731 = vmatpush1.bf16.msra.mxu0 0
    %732 = vmatprep.mubr.bf16.mxu0 0
    %733 = vmatmul.mubr.bf16.gmra.mrb[0].mxu0 %v695
    %v734 = vpop.f32.mrb[0].mxu0
    %v735 = vadd.f32 0.0, %v734
    %v736 = vpop.f32.mrb[0].mxu0
    %v737 = vpop.f32.mrb[0].mxu0
    %v738 = vpop.f32.mrb[0].mxu0
    %739 = vdwg.mxu0
    %v740 = vadd.f32 %v681, %v735
    %s741 = scalar_lea.vmem %s3, 32
    %v742 = vld [vmem:[%s741] sm:$0xf]
    %v743 = vld [vmem:[%s741 + $0x4] sm:$0x3]
    %v744 = vrot.slane %v512, 4
    %v745 = vrot.slane %v513, 3
    %v746 = vsel %vm515, %v745, %v744
    %v747 = vpack.c.b16 %v746, %v746
    %v750 = vunpack.c.l.b16 %v742
    %v751 = vunpack.c.l.b16 %v743
    %v752 = vpack.c.b16 %v751, %v750
    %v754 = vsel %vm145, %v747, 0
    %v757 = vsel %vm256, %v752, 0
    %759 = vmatprep.subr.bf16.mxu0 0
    %760 = vmatpush1.bf16.msra.mxu0 %v757
    %761 = vmatprep.subr.bf16.mxu0 0
    %762 = vmatpush1.bf16.msra.mxu0 0
    %763 = vmatprep.subr.bf16.mxu0 0
    %764 = vmatpush1.bf16.msra.mxu0 0
    %765 = vmatprep.subr.bf16.mxu0 0
    %766 = vmatpush1.bf16.msra.mxu0 0
    %767 = vmatprep.subr.bf16.mxu0 0
    %768 = vmatpush1.bf16.msra.mxu0 0
    %769 = vmatprep.subr.bf16.mxu0 0
    %770 = vmatpush1.bf16.msra.mxu0 0
    %771 = vmatprep.subr.bf16.mxu0 0
    %772 = vmatpush1.bf16.msra.mxu0 0
    %773 = vmatprep.subr.bf16.mxu0 0
    %774 = vmatpush1.bf16.msra.mxu0 0
    %775 = vmatprep.subr.bf16.mxu0 0
    %776 = vmatpush1.bf16.msra.mxu0 0
    %777 = vmatprep.subr.bf16.mxu0 0
    %778 = vmatpush1.bf16.msra.mxu0 0
    %779 = vmatprep.subr.bf16.mxu0 0
    %780 = vmatpush1.bf16.msra.mxu0 0
    %781 = vmatprep.subr.bf16.mxu0 0
    %782 = vmatpush1.bf16.msra.mxu0 0
    %783 = vmatprep.subr.bf16.mxu0 0
    %784 = vmatpush1.bf16.msra.mxu0 0
    %785 = vmatprep.subr.bf16.mxu0 0
    %786 = vmatpush1.bf16.msra.mxu0 0
    %787 = vmatprep.subr.bf16.mxu0 0
    %788 = vmatpush1.bf16.msra.mxu0 0
    %789 = vmatprep.subr.bf16.mxu0 0
    %790 = vmatpush1.bf16.msra.mxu0 0
    %791 = vmatprep.mubr.bf16.mxu0 0
    %792 = vmatmul.mubr.bf16.gmra.mrb[0].mxu0 %v754
    %v793 = vpop.f32.mrb[0].mxu0
    %v794 = vadd.f32 0.0, %v793
    %v795 = vpop.f32.mrb[0].mxu0
    %v796 = vpop.f32.mrb[0].mxu0
    %v797 = vpop.f32.mrb[0].mxu0
    %798 = vdwg.mxu0
    %v799 = vadd.f32 %v740, %v794
    %s800 = scalar_lea.vmem %s3, 40
    %v801 = vld [vmem:[%s800] sm:$0xf]
    %v802 = vld [vmem:[%s800 + $0x4] sm:$0x3]
    %v803 = vrot.slane %v512, 5
    %v804 = vrot.slane %v513, 4
    %v805 = vsel %vm515, %v804, %v803
    %v806 = vpack.c.b16 %v805, %v805
    %v809 = vunpack.c.l.b16 %v801
    %v810 = vunpack.c.l.b16 %v802
    %v811 = vpack.c.b16 %v810, %v809
    %v813 = vsel %vm145, %v806, 0
    %v816 = vsel %vm256, %v811, 0
    %818 = vmatprep.subr.bf16.mxu0 0
    %819 = vmatpush1.bf16.msra.mxu0 %v816
    %820 = vmatprep.subr.bf16.mxu0 0
    %821 = vmatpush1.bf16.msra.mxu0 0
    %822 = vmatprep.subr.bf16.mxu0 0
    %823 = vmatpush1.bf16.msra.mxu0 0
    %824 = vmatprep.subr.bf16.mxu0 0
    %825 = vmatpush1.bf16.msra.mxu0 0
    %826 = vmatprep.subr.bf16.mxu0 0
    %827 = vmatpush1.bf16.msra.mxu0 0
    %828 = vmatprep.subr.bf16.mxu0 0
    %829 = vmatpush1.bf16.msra.mxu0 0
    %830 = vmatprep.subr.bf16.mxu0 0
    %831 = vmatpush1.bf16.msra.mxu0 0
    %832 = vmatprep.subr.bf16.mxu0 0
    %833 = vmatpush1.bf16.msra.mxu0 0
    %834 = vmatprep.subr.bf16.mxu0 0
    %835 = vmatpush1.bf16.msra.mxu0 0
    %836 = vmatprep.subr.bf16.mxu0 0
    %837 = vmatpush1.bf16.msra.mxu0 0
    %838 = vmatprep.subr.bf16.mxu0 0
    %839 = vmatpush1.bf16.msra.mxu0 0
    %840 = vmatprep.subr.bf16.mxu0 0
    %841 = vmatpush1.bf16.msra.mxu0 0
    %842 = vmatprep.subr.bf16.mxu0 0
    %843 = vmatpush1.bf16.msra.mxu0 0
    %844 = vmatprep.subr.bf16.mxu0 0
    %845 = vmatpush1.bf16.msra.mxu0 0
    %846 = vmatprep.subr.bf16.mxu0 0
    %847 = vmatpush1.bf16.msra.mxu0 0
    %848 = vmatprep.subr.bf16.mxu0 0
    %849 = vmatpush1.bf16.msra.mxu0 0
    %850 = vmatprep.mubr.bf16.mxu0 0
    %851 = vmatmul.mubr.bf16.gmra.mrb[0].mxu0 %v813
    %v852 = vpop.f32.mrb[0].mxu0
    %v853 = vadd.f32 0.0, %v852
    %v854 = vpop.f32.mrb[0].mxu0
    %v855 = vpop.f32.mrb[0].mxu0
    %v856 = vpop.f32.mrb[0].mxu0
    %857 = vdwg.mxu0
    %v858 = vadd.f32 %v799, %v853
    %s859 = scalar_lea.vmem %s3, 48
    %v860 = vld [vmem:[%s859] sm:$0xf]
    %v861 = vld [vmem:[%s859 + $0x4] sm:$0x3]
    %v862 = vrot.slane %v512, 6
    %v863 = vrot.slane %v513, 5
    %v864 = vsel %vm515, %v863, %v862
    %v865 = vpack.c.b16 %v864, %v864
    %v868 = vunpack.c.l.b16 %v860
    %v869 = vunpack.c.l.b16 %v861
    %v870 = vpack.c.b16 %v869, %v868
    %v872 = vsel %vm145, %v865, 0
    %v875 = vsel %vm256, %v870, 0
    %877 = vmatprep.subr.bf16.mxu0 0
    %878 = vmatpush1.bf16.msra.mxu0 %v875
    %879 = vmatprep.subr.bf16.mxu0 0
    %880 = vmatpush1.bf16.msra.mxu0 0
    %881 = vmatprep.subr.bf16.mxu0 0
    %882 = vmatpush1.bf16.msra.mxu0 0
    %883 = vmatprep.subr.bf16.mxu0 0
    %884 = vmatpush1.bf16.msra.mxu0 0
    %885 = vmatprep.subr.bf16.mxu0 0
    %886 = vmatpush1.bf16.msra.mxu0 0
    %887 = vmatprep.subr.bf16.mxu0 0
    %888 = vmatpush1.bf16.msra.mxu0 0
    %889 = vmatprep.subr.bf16.mxu0 0
    %890 = vmatpush1.bf16.msra.mxu0 0
    %891 = vmatprep.subr.bf16.mxu0 0
    %892 = vmatpush1.bf16.msra.mxu0 0
    %893 = vmatprep.subr.bf16.mxu0 0
    %894 = vmatpush1.bf16.msra.mxu0 0
    %895 = vmatprep.subr.bf16.mxu0 0
    %896 = vmatpush1.bf16.msra.mxu0 0
    %897 = vmatprep.subr.bf16.mxu0 0
    %898 = vmatpush1.bf16.msra.mxu0 0
    %899 = vmatprep.subr.bf16.mxu0 0
    %900 = vmatpush1.bf16.msra.mxu0 0
    %901 = vmatprep.subr.bf16.mxu0 0
    %902 = vmatpush1.bf16.msra.mxu0 0
    %903 = vmatprep.subr.bf16.mxu0 0
    %904 = vmatpush1.bf16.msra.mxu0 0
    %905 = vmatprep.subr.bf16.mxu0 0
    %906 = vmatpush1.bf16.msra.mxu0 0
    %907 = vmatprep.subr.bf16.mxu0 0
    %908 = vmatpush1.bf16.msra.mxu0 0
    %909 = vmatprep.mubr.bf16.mxu0 0
    %910 = vmatmul.mubr.bf16.gmra.mrb[0].mxu0 %v872
    %v911 = vpop.f32.mrb[0].mxu0
    %v912 = vadd.f32 0.0, %v911
    %v913 = vpop.f32.mrb[0].mxu0
    %v914 = vpop.f32.mrb[0].mxu0
    %v915 = vpop.f32.mrb[0].mxu0
    %916 = vdwg.mxu0
    %v917 = vadd.f32 %v858, %v912
    %s918 = scalar_lea.vmem %s3, 56
    %v919 = vld [vmem:[%s918] sm:$0xf]
    %v920 = vld [vmem:[%s918 + $0x4] sm:$0x3]
    %v921 = vrot.slane %v512, 7
    %v922 = vrot.slane %v513, 6
    %v923 = vsel %vm515, %v922, %v921
    %v924 = vpack.c.b16 %v923, %v923
    %v927 = vunpack.c.l.b16 %v919
    %v928 = vunpack.c.l.b16 %v920
    %v929 = vpack.c.b16 %v928, %v927
    %v931 = vsel %vm145, %v924, 0
    %v934 = vsel %vm256, %v929, 0
    %936 = vmatprep.subr.bf16.mxu0 0
    %937 = vmatpush1.bf16.msra.mxu0 %v934
    %938 = vmatprep.subr.bf16.mxu0 0
    %939 = vmatpush1.bf16.msra.mxu0 0
    %940 = vmatprep.subr.bf16.mxu0 0
    %941 = vmatpush1.bf16.msra.mxu0 0
    %942 = vmatprep.subr.bf16.mxu0 0
    %943 = vmatpush1.bf16.msra.mxu0 0
    %944 = vmatprep.subr.bf16.mxu0 0
    %945 = vmatpush1.bf16.msra.mxu0 0
    %946 = vmatprep.subr.bf16.mxu0 0
    %947 = vmatpush1.bf16.msra.mxu0 0
    %948 = vmatprep.subr.bf16.mxu0 0
    %949 = vmatpush1.bf16.msra.mxu0 0
    %950 = vmatprep.subr.bf16.mxu0 0
    %951 = vmatpush1.bf16.msra.mxu0 0
    %952 = vmatprep.subr.bf16.mxu0 0
    %953 = vmatpush1.bf16.msra.mxu0 0
    %954 = vmatprep.subr.bf16.mxu0 0
    %955 = vmatpush1.bf16.msra.mxu0 0
    %956 = vmatprep.subr.bf16.mxu0 0
    %957 = vmatpush1.bf16.msra.mxu0 0
    %958 = vmatprep.subr.bf16.mxu0 0
    %959 = vmatpush1.bf16.msra.mxu0 0
    %960 = vmatprep.subr.bf16.mxu0 0
    %961 = vmatpush1.bf16.msra.mxu0 0
    %962 = vmatprep.subr.bf16.mxu0 0
    %963 = vmatpush1.bf16.msra.mxu0 0
    %964 = vmatprep.subr.bf16.mxu0 0
    %965 = vmatpush1.bf16.msra.mxu0 0
    %966 = vmatprep.subr.bf16.mxu0 0
    %967 = vmatpush1.bf16.msra.mxu0 0
    %968 = vmatprep.mubr.bf16.mxu0 0
    %969 = vmatmul.mubr.bf16.gmra.mrb[0].mxu0 %v931
    %v970 = vpop.f32.mrb[0].mxu0
    %v971 = vadd.f32 0.0, %v970
    %v972 = vpop.f32.mrb[0].mxu0
    %v973 = vpop.f32.mrb[0].mxu0
    %v974 = vpop.f32.mrb[0].mxu0
    %975 = vdwg.mxu0
    %v976 = vadd.f32 %v917, %v971
    %v977 = vpack.c.bf16 %v499, %v499
    %v978 = vpack.c.bf16 %v501, %v501
    %s979 = scalar_lea.vmem %s3, 64
    %v980 = vld [vmem:[%s979] sm:$0xf]
    %v981 = vld [vmem:[%s979 + $0x4] sm:$0x3]
    %v984 = vunpack.c.l.b16 %v977
    %v985 = vunpack.c.l.b16 %v978
    %v986 = vrot.slane %v985, 7
    %v987 = vsel %vm515, %v986, %v984
    %v988 = vpack.c.b16 %v987, %v987
    %v991 = vunpack.c.l.b16 %v980
    %v992 = vunpack.c.l.b16 %v981
    %v993 = vpack.c.b16 %v992, %v991
    %v995 = vsel %vm145, %v988, 0
    %v998 = vsel %vm256, %v993, 0
    %1000 = vmatprep.subr.bf16.mxu0 0
    %1001 = vmatpush1.bf16.msra.mxu0 %v998
    %1002 = vmatprep.subr.bf16.mxu0 0
    %1003 = vmatpush1.bf16.msra.mxu0 0
    %1004 = vmatprep.subr.bf16.mxu0 0
    %1005 = vmatpush1.bf16.msra.mxu0 0
    %1006 = vmatprep.subr.bf16.mxu0 0
    %1007 = vmatpush1.bf16.msra.mxu0 0
    %1008 = vmatprep.subr.bf16.mxu0 0
    %1009 = vmatpush1.bf16.msra.mxu0 0
    %1010 = vmatprep.subr.bf16.mxu0 0
    %1011 = vmatpush1.bf16.msra.mxu0 0
    %1012 = vmatprep.subr.bf16.mxu0 0
    %1013 = vmatpush1.bf16.msra.mxu0 0
    %1014 = vmatprep.subr.bf16.mxu0 0
    %1015 = vmatpush1.bf16.msra.mxu0 0
    %1016 = vmatprep.subr.bf16.mxu0 0
    %1017 = vmatpush1.bf16.msra.mxu0 0
    %1018 = vmatprep.subr.bf16.mxu0 0
    %1019 = vmatpush1.bf16.msra.mxu0 0
    %1020 = vmatprep.subr.bf16.mxu0 0
    %1021 = vmatpush1.bf16.msra.mxu0 0
    %1022 = vmatprep.subr.bf16.mxu0 0
    %1023 = vmatpush1.bf16.msra.mxu0 0
    %1024 = vmatprep.subr.bf16.mxu0 0
    %1025 = vmatpush1.bf16.msra.mxu0 0
    %1026 = vmatprep.subr.bf16.mxu0 0
    %1027 = vmatpush1.bf16.msra.mxu0 0
    %1028 = vmatprep.subr.bf16.mxu0 0
    %1029 = vmatpush1.bf16.msra.mxu0 0
    %1030 = vmatprep.subr.bf16.mxu0 0
    %1031 = vmatpush1.bf16.msra.mxu0 0
    %1032 = vmatprep.mubr.bf16.mxu0 0
    %1033 = vmatmul.mubr.bf16.gmra.mrb[0].mxu0 %v995
    %v1034 = vpop.f32.mrb[0].mxu0
    %v1035 = vadd.f32 0.0, %v1034
    %v1036 = vpop.f32.mrb[0].mxu0
    %v1037 = vpop.f32.mrb[0].mxu0
    %v1038 = vpop.f32.mrb[0].mxu0
    %1039 = vdwg.mxu0
    %v1040 = vadd.f32 %v976, %v1035
    %v1041 = vlaneseq
    %v1042 = vshrl.u32 %v1041, 7
    %v1043 = vsub.s32 0, %v1042
    %v1044 = vrot.slane %v502, %v1043
    %v1045 = vadd.f32 %v1040, %v1044
    %v1046 = vpack.c.bf16 %v1045, %v1045
    %v1047 = vld [vmem:[#allocation3] sm:$0xff]
    %v1048 = vld [vmem:[#allocation3 + $0x8] sm:$0xff]
    %v1049 = vld [vmem:[#allocation3 + $0x10] sm:$0xff]
    %v1050 = vld [vmem:[#allocation3 + $0x18] sm:$0xff]
    %v1051 = vld [vmem:[#allocation3 + $0x20] sm:$0xff]
    %v1052 = vld [vmem:[#allocation3 + $0x28] sm:$0xff]
    %v1053 = vld [vmem:[#allocation3 + $0x30] sm:$0xff]
    %v1054 = vld [vmem:[#allocation3 + $0x38] sm:$0xff]
    %v1055 = vld [vmem:[#allocation3 + $0x40] sm:$0xff]
    %v1056 = vld [vmem:[#allocation3 + $0x48] sm:$0xff]
    %v1057 = vld [vmem:[#allocation3 + $0x50] sm:$0xff]
    %v1058 = vld [vmem:[#allocation3 + $0x58] sm:$0xff]
    %v1059 = vld [vmem:[#allocation3 + $0x60] sm:$0xff]
    %v1060 = vld [vmem:[#allocation3 + $0x68] sm:$0xff]
    %v1061 = vld [vmem:[#allocation3 + $0x70] sm:$0xff]
    %v1062 = vld [vmem:[#allocation3 + $0x78] sm:$0xff]
    %v1079 = vunpack.c.l.b16 %v1047
    %v1080 = vunpack.c.h.b16 %v1047
    %v1081 = vunpack.c.l.b16 %v1048
    %v1082 = vunpack.c.h.b16 %v1048
    %v1083 = vunpack.c.l.b16 %v1049
    %v1084 = vunpack.c.h.b16 %v1049
    %v1085 = vunpack.c.l.b16 %v1050
    %v1086 = vunpack.c.h.b16 %v1050
    %v1087 = vunpack.c.l.b16 %v1051
    %v1088 = vunpack.c.h.b16 %v1051
    %v1089 = vunpack.c.l.b16 %v1052
    %v1090 = vunpack.c.h.b16 %v1052
    %v1091 = vunpack.c.l.b16 %v1053
    %v1092 = vunpack.c.h.b16 %v1053
    %v1093 = vunpack.c.l.b16 %v1054
    %v1094 = vunpack.c.h.b16 %v1054
    %v1095 = vunpack.c.l.b16 %v1055
    %v1096 = vunpack.c.h.b16 %v1055
    %v1097 = vunpack.c.l.b16 %v1056
    %v1098 = vunpack.c.h.b16 %v1056
    %v1099 = vunpack.c.l.b16 %v1057
    %v1100 = vunpack.c.h.b16 %v1057
    %v1101 = vunpack.c.l.b16 %v1058
    %v1102 = vunpack.c.h.b16 %v1058
    %v1103 = vunpack.c.l.b16 %v1059
    %v1104 = vunpack.c.h.b16 %v1059
    %v1105 = vunpack.c.l.b16 %v1060
    %v1106 = vunpack.c.h.b16 %v1060
    %v1107 = vunpack.c.l.b16 %v1061
    %v1108 = vunpack.c.h.b16 %v1061
    %v1109 = vunpack.c.l.b16 %v1062
    %v1110 = vunpack.c.h.b16 %v1062
    %v1111 = vpack.c.b16 %v1081, %v1079
    %v1112 = vpack.c.b16 %v1082, %v1080
    %v1113 = vpack.c.b16 %v1085, %v1083
    %v1114 = vpack.c.b16 %v1086, %v1084
    %v1115 = vpack.c.b16 %v1089, %v1087
    %v1116 = vpack.c.b16 %v1090, %v1088
    %v1117 = vpack.c.b16 %v1093, %v1091
    %v1118 = vpack.c.b16 %v1094, %v1092
    %v1119 = vpack.c.b16 %v1097, %v1095
    %v1120 = vpack.c.b16 %v1098, %v1096
    %v1121 = vpack.c.b16 %v1101, %v1099
    %v1122 = vpack.c.b16 %v1102, %v1100
    %v1123 = vpack.c.b16 %v1105, %v1103
    %v1124 = vpack.c.b16 %v1106, %v1104
    %v1125 = vpack.c.b16 %v1109, %v1107
    %v1126 = vpack.c.b16 %v1110, %v1108
    %1143 = vmatprep.subr.bf16.mxu0 %v1112
    %1144 = vmatpush1.bf16.msra.mxu0 %v1111
    %1145 = vmatprep.subr.bf16.mxu0 %v1114
    %1146 = vmatpush1.bf16.msra.mxu0 %v1113
    %1147 = vmatprep.subr.bf16.mxu0 %v1116
    %1148 = vmatpush1.bf16.msra.mxu0 %v1115
    %1149 = vmatprep.subr.bf16.mxu0 %v1118
    %1150 = vmatpush1.bf16.msra.mxu0 %v1117
    %1151 = vmatprep.subr.bf16.mxu0 %v1120
    %1152 = vmatpush1.bf16.msra.mxu0 %v1119
    %1153 = vmatprep.subr.bf16.mxu0 %v1122
    %1154 = vmatpush1.bf16.msra.mxu0 %v1121
    %1155 = vmatprep.subr.bf16.mxu0 %v1124
    %1156 = vmatpush1.bf16.msra.mxu0 %v1123
    %1157 = vmatprep.subr.bf16.mxu0 %v1126
    %1158 = vmatpush1.bf16.msra.mxu0 %v1125
    %1159 = vmatprep.subr.bf16.mxu0 0
    %1160 = vmatpush1.bf16.msra.mxu0 0
    %1161 = vmatprep.subr.bf16.mxu0 0
    %1162 = vmatpush1.bf16.msra.mxu0 0
    %1163 = vmatprep.subr.bf16.mxu0 0
    %1164 = vmatpush1.bf16.msra.mxu0 0
    %1165 = vmatprep.subr.bf16.mxu0 0
    %1166 = vmatpush1.bf16.msra.mxu0 0
    %1167 = vmatprep.subr.bf16.mxu0 0
    %1168 = vmatpush1.bf16.msra.mxu0 0
    %1169 = vmatprep.subr.bf16.mxu0 0
    %1170 = vmatpush1.bf16.msra.mxu0 0
    %1171 = vmatprep.subr.bf16.mxu0 0
    %1172 = vmatpush1.bf16.msra.mxu0 0
    %1173 = vmatprep.subr.bf16.mxu0 0
    %1174 = vmatpush1.bf16.msra.mxu0 0
    %1175 = vmatprep.mubr.bf16.mxu0 0
    %1176 = vmatmul.mubr.bf16.gmra.mrb[0].mxu0 %v1046
    %v1177 = vpop.f32.mrb[0].mxu0
    %v1178 = vadd.f32 0.0, %v1177
    %v1179 = vpop.f32.mrb[0].mxu0
    %v1180 = vadd.f32 0.0, %v1179
    %v1181 = vpop.f32.mrb[0].mxu0
    %v1182 = vpop.f32.mrb[0].mxu0
    %1183 = vdwg.mxu0
    %v1184 = vlaneseq
    %v1185 = vshrl.u32 %v1184, 7
    %v1186 = vsub.s32 1, %v1185
    %v1187 = vrot.slane %v502, %v1186
    %v1188 = vadd.f32 %v1178, %v1187
    %v1189 = vlaneseq
    %v1190 = vshrl.u32 %v1189, 7
    %v1191 = vsub.s32 2, %v1190
    %v1192 = vrot.slane %v502, %v1191
    %v1193 = vadd.f32 %v1180, %v1192
    %1194 = vst [vmem:[#allocation11] sm:$0x3] %v1188
    %1195 = vst [vmem:[#allocation11 + $0x2] sm:$0x3] %v1193
    %v1196 = vld [vmem:[%s1] sm:$0x3]
    %v1197 = vmul.f32 %v1193, 0.5
    %v1198 = vmul.f32 %v1197, 1.442695
    %v1199 = vpow.pop %v1198
    %v1200 = vmul.f32 %v1196, %v1199
    %v1201 = vadd.f32 %v1200, %v1188
    %vm1202 = vcmask 1041408
    %v1203 = vsel %vm1202, %v1201, 0.0
    %v1204 = vrot.slane %v1203, 4
    %v1205 = vadd.f32 %v1203, %v1204
    %v1206 = vrot.slane %v1205, 2
    %v1207 = vadd.f32 %v1205, %v1206
    %v1208 = vrot.slane %v1207, 1
    %v1209 = vadd.f32 %v1207, %v1208
    %v1210 = vrcp.pop 2.0
    %v1211 = vmul.f32 %v1209, %v1210
    %v1212 = vsub.f32 %v1201, %v1211
    %v1213 = vmul.f32 %v1212, %v1212
    %v1214 = vsel %vm1202, %v1213, 0.0
    %v1215 = vrot.slane %v1214, 4
    %v1216 = vadd.f32 %v1214, %v1215
    %v1217 = vrot.slane %v1216, 2
    %v1218 = vadd.f32 %v1216, %v1217
    %v1219 = vrot.slane %v1218, 1
    %v1220 = vadd.f32 %v1218, %v1219
    %v1221 = vmul.f32 %v1220, %v1210
    %v1222 = vadd.f32 %v1221, 1e-05
    %v1223 = vrsqrt.pop %v1222
    %v1224 = vmul.f32 %v1212, %v1223
    %v1225 = vlaneseq
    %v1226 = vshrl.u32 %v1225, 7
    %v1227 = vsub.s32 3, %v1226
    %v1228 = vrot.slane %v502, %v1227
    %v1229 = vmul.f32 %v1224, %v1228
    %v1230 = vlaneseq
    %v1231 = vshrl.u32 %v1230, 7
    %v1232 = vsub.s32 4, %v1231
    %v1233 = vrot.slane %v502, %v1232
    %v1234 = vadd.f32 %v1229, %v1233
    %v1235 = vld [vmem:[#allocation6] sm:$0xf]
    %v1236 = vld [vmem:[#allocation6 + $0x4] sm:$0xf]
    %v1237 = vld [vmem:[#allocation6 + $0x8] sm:$0xf]
    %v1238 = vld [vmem:[#allocation6 + $0xc] sm:$0xf]
    %v1239 = vld [vmem:[#allocation6 + $0x10] sm:$0xf]
    %v1240 = vld [vmem:[#allocation6 + $0x14] sm:$0xf]
    %v1241 = vld [vmem:[#allocation6 + $0x18] sm:$0xf]
    %v1242 = vld [vmem:[#allocation6 + $0x1c] sm:$0xf]
    %v1243 = vld [vmem:[#allocation6 + $0x20] sm:$0xf]
    %v1244 = vld [vmem:[#allocation6 + $0x24] sm:$0xf]
    %v1245 = vld [vmem:[#allocation6 + $0x28] sm:$0xf]
    %v1246 = vld [vmem:[#allocation6 + $0x2c] sm:$0xf]
    %v1247 = vld [vmem:[#allocation6 + $0x30] sm:$0xf]
    %v1248 = vld [vmem:[#allocation6 + $0x34] sm:$0xf]
    %v1249 = vld [vmem:[#allocation6 + $0x38] sm:$0xf]
    %v1250 = vld [vmem:[#allocation6 + $0x3c] sm:$0xf]
    %s1251 = scalar_lea.vmem [#allocation6], 64
    %v1252 = vld [vmem:[%s1251] sm:$0xf]
    %v1253 = vld [vmem:[%s1251 + $0x4] sm:$0xf]
    %v1254 = vld [vmem:[%s1251 + $0x8] sm:$0xf]
    %v1255 = vld [vmem:[%s1251 + $0xc] sm:$0xf]
    %v1256 = vld [vmem:[%s1251 + $0x10] sm:$0xf]
    %v1257 = vld [vmem:[%s1251 + $0x14] sm:$0xf]
    %v1258 = vld [vmem:[%s1251 + $0x18] sm:$0xf]
    %v1259 = vld [vmem:[%s1251 + $0x1c] sm:$0xf]
    %v1260 = vld [vmem:[%s1251 + $0x20] sm:$0xf]
    %v1261 = vld [vmem:[%s1251 + $0x24] sm:$0xf]
    %v1262 = vld [vmem:[%s1251 + $0x28] sm:$0xf]
    %v1263 = vld [vmem:[%s1251 + $0x2c] sm:$0xf]
    %v1264 = vld [vmem:[%s1251 + $0x30] sm:$0xf]
    %v1265 = vld [vmem:[%s1251 + $0x34] sm:$0xf]
    %v1266 = vld [vmem:[%s1251 + $0x38] sm:$0xf]
    %v1267 = vld [vmem:[%s1251 + $0x3c] sm:$0xf]
    %v1268 = vpack.c.bf16 %v1234, %v1234
    %v1269 = vlaneseq
    %v1270 = vshrl.u32 %v1269, 7
    %v1271 = vsub.s32 5, %v1270
    %v1272 = vrot.slane %v502, %v1271
    %v1289 = vunpack.c.l.b16 %v1235
    %v1290 = vunpack.c.l.b16 %v1236
    %v1291 = vunpack.c.l.b16 %v1237
    %v1292 = vunpack.c.l.b16 %v1238
    %v1293 = vunpack.c.l.b16 %v1239
    %v1294 = vunpack.c.l.b16 %v1240
    %v1295 = vunpack.c.l.b16 %v1241
    %v1296 = vunpack.c.l.b16 %v1242
    %v1297 = vunpack.c.l.b16 %v1243
    %v1298 = vunpack.c.l.b16 %v1244
    %v1299 = vunpack.c.l.b16 %v1245
    %v1300 = vunpack.c.l.b16 %v1246
    %v1301 = vunpack.c.l.b16 %v1247
    %v1302 = vunpack.c.l.b16 %v1248
    %v1303 = vunpack.c.l.b16 %v1249
    %v1304 = vunpack.c.l.b16 %v1250
    %v1305 = vpack.c.b16 %v1290, %v1289
    %v1306 = vpack.c.b16 %v1292, %v1291
    %v1307 = vpack.c.b16 %v1294, %v1293
    %v1308 = vpack.c.b16 %v1296, %v1295
    %v1309 = vpack.c.b16 %v1298, %v1297
    %v1310 = vpack.c.b16 %v1300, %v1299
    %v1311 = vpack.c.b16 %v1302, %v1301
    %v1312 = vpack.c.b16 %v1304, %v1303
    %1321 = vmatprep.subr.bf16.mxu0 0
    %1322 = vmatpush1.bf16.msra.mxu0 %v1305
    %1323 = vmatprep.subr.bf16.mxu0 0
    %1324 = vmatpush1.bf16.msra.mxu0 %v1306
    %1325 = vmatprep.subr.bf16.mxu0 0
    %1326 = vmatpush1.bf16.msra.mxu0 %v1307
    %1327 = vmatprep.subr.bf16.mxu0 0
    %1328 = vmatpush1.bf16.msra.mxu0 %v1308
    %1329 = vmatprep.subr.bf16.mxu0 0
    %1330 = vmatpush1.bf16.msra.mxu0 %v1309
    %1331 = vmatprep.subr.bf16.mxu0 0
    %1332 = vmatpush1.bf16.msra.mxu0 %v1310
    %1333 = vmatprep.subr.bf16.mxu0 0
    %1334 = vmatpush1.bf16.msra.mxu0 %v1311
    %1335 = vmatprep.subr.bf16.mxu0 0
    %1336 = vmatpush1.bf16.msra.mxu0 %v1312
    %1337 = vmatprep.subr.bf16.mxu0 0
    %1338 = vmatpush1.bf16.msra.mxu0 0
    %1339 = vmatprep.subr.bf16.mxu0 0
    %1340 = vmatpush1.bf16.msra.mxu0 0
    %1341 = vmatprep.subr.bf16.mxu0 0
    %1342 = vmatpush1.bf16.msra.mxu0 0
    %1343 = vmatprep.subr.bf16.mxu0 0
    %1344 = vmatpush1.bf16.msra.mxu0 0
    %1345 = vmatprep.subr.bf16.mxu0 0
    %1346 = vmatpush1.bf16.msra.mxu0 0
    %1347 = vmatprep.subr.bf16.mxu0 0
    %1348 = vmatpush1.bf16.msra.mxu0 0
    %1349 = vmatprep.subr.bf16.mxu0 0
    %1350 = vmatpush1.bf16.msra.mxu0 0
    %1351 = vmatprep.subr.bf16.mxu0 0
    %1352 = vmatpush1.bf16.msra.mxu0 0
    %1353 = vmatprep.mubr.bf16.mxu0 0
    %1354 = vmatmul.mubr.bf16.gmra.mrb[0].mxu0 %v1268
    %v1355 = vpop.f32.mrb[0].mxu0
    %v1356 = vadd.f32 %v1272, %v1355
    %v1357 = vpop.f32.mrb[0].mxu0
    %v1358 = vpop.f32.mrb[0].mxu0
    %v1359 = vpop.f32.mrb[0].mxu0
    %1360 = vdwg.mxu0
    %v1361 = vmax.f32 %v1356, 0.0
    %v1362 = vld [vmem:[%s9] sm:$0x3f]
    %v1363 = vld [vmem:[%s9 + $0x8] sm:$0x3f]
    %v1364 = vld [vmem:[%s9 + $0x10] sm:$0x3f]
    %v1365 = vpack.c.bf16 %v1361, %v1361
    %v1366 = vld [vmem:[#allocation8] sm:$0xff]
    %v1367 = vld [vmem:[#allocation8 + $0x8] sm:$0xf]
    %v1368 = vld [vmem:[#allocation8 + $0xc] sm:$0xff]
    %v1369 = vld [vmem:[#allocation8 + $0x14] sm:$0xf]
    %v1370 = vld [vmem:[#allocation8 + $0x18] sm:$0xff]
    %v1371 = vld [vmem:[#allocation8 + $0x20] sm:$0xf]
    %v1372 = vld [vmem:[#allocation8 + $0x24] sm:$0xff]
    %v1373 = vld [vmem:[#allocation8 + $0x2c] sm:$0xf]
    %v1374 = vld [vmem:[#allocation8 + $0x30] sm:$0xff]
    %v1375 = vld [vmem:[#allocation8 + $0x38] sm:$0xf]
    %v1376 = vld [vmem:[#allocation8 + $0x3c] sm:$0xff]
    %v1377 = vld [vmem:[#allocation8 + $0x44] sm:$0xf]
    %v1378 = vld [vmem:[#allocation8 + $0x48] sm:$0xff]
    %v1379 = vld [vmem:[#allocation8 + $0x50] sm:$0xf]
    %v1380 = vld [vmem:[#allocation8 + $0x54] sm:$0xff]
    %v1381 = vld [vmem:[#allocation8 + $0x5c] sm:$0xf]
    %v1382 = vld [vmem:[#allocation8 + $0x60] sm:$0xff]
    %v1383 = vld [vmem:[#allocation8 + $0x68] sm:$0xf]
    %v1384 = vld [vmem:[#allocation8 + $0x6c] sm:$0xff]
    %v1385 = vld [vmem:[#allocation8 + $0x74] sm:$0xf]
    %v1386 = vld [vmem:[#allocation8 + $0x78] sm:$0xff]
    %v1387 = vld [vmem:[#allocation8 + $0x80] sm:$0xf]
    %v1388 = vld [vmem:[#allocation8 + $0x84] sm:$0xff]
    %v1389 = vld [vmem:[#allocation8 + $0x8c] sm:$0xf]
    %v1390 = vld [vmem:[#allocation8 + $0x90] sm:$0xff]
    %v1391 = vld [vmem:[#allocation8 + $0x98] sm:$0xf]
    %v1392 = vld [vmem:[#allocation8 + $0x9c] sm:$0xff]
    %v1393 = vld [vmem:[#allocation8 + $0xa4] sm:$0xf]
    %v1394 = vld [vmem:[#allocation8 + $0xa8] sm:$0xff]
    %v1395 = vld [vmem:[#allocation8 + $0xb0] sm:$0xf]
    %v1396 = vld [vmem:[#allocation8 + $0xb4] sm:$0xff]
    %v1397 = vld [vmem:[#allocation8 + $0xbc] sm:$0xf]
    %v1398 = vlaneseq
    %v1399 = vshrl.u32 %v1398, 7
    %v1400 = vsub.s32 0, %v1399
    %v1401 = vrot.slane %v1362, %v1400
    %v1402 = vlaneseq
    %v1403 = vshrl.u32 %v1402, 7
    %v1404 = vsub.s32 0, %v1403
    %v1405 = vrot.slane %v1363, %v1404
    %v1406 = vlaneseq
    %v1407 = vshrl.u32 %v1406, 7
    %v1408 = vsub.s32 0, %v1407
    %v1409 = vrot.slane %v1364, %v1408
    %v1442 = vunpack.c.l.b16 %v1366
    %v1443 = vunpack.c.h.b16 %v1366
    %v1444 = vunpack.c.l.b16 %v1367
    %v1445 = vunpack.c.l.b16 %v1368
    %v1446 = vunpack.c.h.b16 %v1368
    %v1447 = vunpack.c.l.b16 %v1369
    %v1448 = vunpack.c.l.b16 %v1370
    %v1449 = vunpack.c.h.b16 %v1370
    %v1450 = vunpack.c.l.b16 %v1371
    %v1451 = vunpack.c.l.b16 %v1372
    %v1452 = vunpack.c.h.b16 %v1372
    %v1453 = vunpack.c.l.b16 %v1373
    %v1454 = vunpack.c.l.b16 %v1374
    %v1455 = vunpack.c.h.b16 %v1374
    %v1456 = vunpack.c.l.b16 %v1375
    %v1457 = vunpack.c.l.b16 %v1376
    %v1458 = vunpack.c.h.b16 %v1376
    %v1459 = vunpack.c.l.b16 %v1377
    %v1460 = vunpack.c.l.b16 %v1378
    %v1461 = vunpack.c.h.b16 %v1378
    %v1462 = vunpack.c.l.b16 %v1379
    %v1463 = vunpack.c.l.b16 %v1380
    %v1464 = vunpack.c.h.b16 %v1380
    %v1465 = vunpack.c.l.b16 %v1381
    %v1466 = vunpack.c.l.b16 %v1382
    %v1467 = vunpack.c.h.b16 %v1382
    %v1468 = vunpack.c.l.b16 %v1383
    %v1469 = vunpack.c.l.b16 %v1384
    %v1470 = vunpack.c.h.b16 %v1384
    %v1471 = vunpack.c.l.b16 %v1385
    %v1472 = vunpack.c.l.b16 %v1386
    %v1473 = vunpack.c.h.b16 %v1386
    %v1474 = vunpack.c.l.b16 %v1387
    %v1475 = vunpack.c.l.b16 %v1388
    %v1476 = vunpack.c.h.b16 %v1388
    %v1477 = vunpack.c.l.b16 %v1389
    %v1478 = vunpack.c.l.b16 %v1390
    %v1479 = vunpack.c.h.b16 %v1390
    %v1480 = vunpack.c.l.b16 %v1391
    %v1481 = vunpack.c.l.b16 %v1392
    %v1482 = vunpack.c.h.b16 %v1392
    %v1483 = vunpack.c.l.b16 %v1393
    %v1484 = vunpack.c.l.b16 %v1394
    %v1485 = vunpack.c.h.b16 %v1394
    %v1486 = vunpack.c.l.b16 %v1395
    %v1487 = vunpack.c.l.b16 %v1396
    %v1488 = vunpack.c.h.b16 %v1396
    %v1489 = vunpack.c.l.b16 %v1397
    %v1490 = vpack.c.b16 %v1445, %v1442
    %v1491 = vpack.c.b16 %v1446, %v1443
    %v1492 = vpack.c.b16 %v1447, %v1444
    %v1493 = vpack.c.b16 %v1451, %v1448
    %v1494 = vpack.c.b16 %v1452, %v1449
    %v1495 = vpack.c.b16 %v1453, %v1450
    %v1496 = vpack.c.b16 %v1457, %v1454
    %v1497 = vpack.c.b16 %v1458, %v1455
    %v1498 = vpack.c.b16 %v1459, %v1456
    %v1499 = vpack.c.b16 %v1463, %v1460
    %v1500 = vpack.c.b16 %v1464, %v1461
    %v1501 = vpack.c.b16 %v1465, %v1462
    %v1502 = vpack.c.b16 %v1469, %v1466
    %v1503 = vpack.c.b16 %v1470, %v1467
    %v1504 = vpack.c.b16 %v1471, %v1468
    %v1505 = vpack.c.b16 %v1475, %v1472
    %v1506 = vpack.c.b16 %v1476, %v1473
    %v1507 = vpack.c.b16 %v1477, %v1474
    %v1508 = vpack.c.b16 %v1481, %v1478
    %v1509 = vpack.c.b16 %v1482, %v1479
    %v1510 = vpack.c.b16 %v1483, %v1480
    %v1511 = vpack.c.b16 %v1487, %v1484
    %v1512 = vpack.c.b16 %v1488, %v1485
    %v1513 = vpack.c.b16 %v1489, %v1486
    %1538 = vmatprep.subr.bf16.mxu0 %v1491
    %1539 = vmatpush1.bf16.msra.mxu0 %v1490
    %1540 = vmatprep.subr.bf16.mxu0 %v1494
    %1541 = vmatpush1.bf16.msra.mxu0 %v1493
    %1542 = vmatprep.subr.bf16.mxu0 %v1497
    %1543 = vmatpush1.bf16.msra.mxu0 %v1496
    %1544 = vmatprep.subr.bf16.mxu0 %v1500
    %1545 = vmatpush1.bf16.msra.mxu0 %v1499
    %1546 = vmatprep.subr.bf16.mxu0 %v1503
    %1547 = vmatpush1.bf16.msra.mxu0 %v1502
    %1548 = vmatprep.subr.bf16.mxu0 %v1506
    %1549 = vmatpush1.bf16.msra.mxu0 %v1505
    %1550 = vmatprep.subr.bf16.mxu0 %v1509
    %1551 = vmatpush1.bf16.msra.mxu0 %v1508
    %1552 = vmatprep.subr.bf16.mxu0 %v1512
    %1553 = vmatpush1.bf16.msra.mxu0 %v1511
    %1554 = vmatprep.subr.bf16.mxu0 0
    %1555 = vmatpush1.bf16.msra.mxu0 0
    %1556 = vmatprep.subr.bf16.mxu0 0
    %1557 = vmatpush1.bf16.msra.mxu0 0
    %1558 = vmatprep.subr.bf16.mxu0 0
    %1559 = vmatpush1.bf16.msra.mxu0 0
    %1560 = vmatprep.subr.bf16.mxu0 0
    %1561 = vmatpush1.bf16.msra.mxu0 0
    %1562 = vmatprep.subr.bf16.mxu0 0
    %1563 = vmatpush1.bf16.msra.mxu0 0
    %1564 = vmatprep.subr.bf16.mxu0 0
    %1565 = vmatpush1.bf16.msra.mxu0 0
    %1566 = vmatprep.subr.bf16.mxu0 0
    %1567 = vmatpush1.bf16.msra.mxu0 0
    %1568 = vmatprep.subr.bf16.mxu0 0
    %1569 = vmatpush1.bf16.msra.mxu0 0
    %1570 = vmatprep.mubr.bf16.mxu0 0
    %1571 = vmatmul.mubr.bf16.gmra.mrb[0].mxu0 %v1365
    %v1572 = vpop.f32.mrb[0].mxu0
    %v1573 = vadd.f32 %v1401, %v1572
    %v1574 = vpop.f32.mrb[0].mxu0
    %v1575 = vadd.f32 %v1405, %v1574
    %v1576 = vpop.f32.mrb[0].mxu0
    %v1577 = vpop.f32.mrb[0].mxu0
    %1578 = vdwg.mxu0
    %1579 = vmatprep.subr.bf16.mxu0 0
    %1580 = vmatpush1.bf16.msra.mxu0 %v1492
    %1581 = vmatprep.subr.bf16.mxu0 0
    %1582 = vmatpush1.bf16.msra.mxu0 %v1495
    %1583 = vmatprep.subr.bf16.mxu0 0
    %1584 = vmatpush1.bf16.msra.mxu0 %v1498
    %1585 = vmatprep.subr.bf16.mxu0 0
    %1586 = vmatpush1.bf16.msra.mxu0 %v1501
    %1587 = vmatprep.subr.bf16.mxu0 0
    %1588 = vmatpush1.bf16.msra.mxu0 %v1504
    %1589 = vmatprep.subr.bf16.mxu0 0
    %1590 = vmatpush1.bf16.msra.mxu0 %v1507
    %1591 = vmatprep.subr.bf16.mxu0 0
    %1592 = vmatpush1.bf16.msra.mxu0 %v1510
    %1593 = vmatprep.subr.bf16.mxu0 0
    %1594 = vmatpush1.bf16.msra.mxu0 %v1513
    %1595 = vmatprep.subr.bf16.mxu0 0
    %1596 = vmatpush1.bf16.msra.mxu0 0
    %1597 = vmatprep.subr.bf16.mxu0 0
    %1598 = vmatpush1.bf16.msra.mxu0 0
    %1599 = vmatprep.subr.bf16.mxu0 0
    %1600 = vmatpush1.bf16.msra.mxu0 0
    %1601 = vmatprep.subr.bf16.mxu0 0
    %1602 = vmatpush1.bf16.msra.mxu0 0
    %1603 = vmatprep.subr.bf16.mxu0 0
    %1604 = vmatpush1.bf16.msra.mxu0 0
    %1605 = vmatprep.subr.bf16.mxu0 0
    %1606 = vmatpush1.bf16.msra.mxu0 0
    %1607 = vmatprep.subr.bf16.mxu0 0
    %1608 = vmatpush1.bf16.msra.mxu0 0
    %1609 = vmatprep.subr.bf16.mxu0 0
    %1610 = vmatpush1.bf16.msra.mxu0 0
    %1611 = vmatprep.mubr.bf16.mxu0 0
    %1612 = vmatmul.mubr.bf16.gmra.mrb[0].mxu0 %v1365
    %v1613 = vpop.f32.mrb[0].mxu0
    %v1614 = vadd.f32 %v1409, %v1613
    %v1615 = vpop.f32.mrb[0].mxu0
    %v1616 = vpop.f32.mrb[0].mxu0
    %v1617 = vpop.f32.mrb[0].mxu0
    %1618 = vdwg.mxu0
    %v1619 = vld [vmem:[#allocation9] sm:$0xff]
    %v1620 = vld [vmem:[#allocation9 + $0x8] sm:$0xf]
    %v1621 = vld [vmem:[#allocation9 + $0xc] sm:$0xff]
    %v1622 = vld [vmem:[#allocation9 + $0x14] sm:$0xf]
    %v1623 = vld [vmem:[#allocation9 + $0x18] sm:$0xff]
    %v1624 = vld [vmem:[#allocation9 + $0x20] sm:$0xf]
    %v1625 = vld [vmem:[#allocation9 + $0x24] sm:$0xff]
    %v1626 = vld [vmem:[#allocation9 + $0x2c] sm:$0xf]
    %v1627 = vld [vmem:[#allocation9 + $0x30] sm:$0xff]
    %v1628 = vld [vmem:[#allocation9 + $0x38] sm:$0xf]
    %v1629 = vld [vmem:[#allocation9 + $0x3c] sm:$0xff]
    %v1630 = vld [vmem:[#allocation9 + $0x44] sm:$0xf]
    %v1631 = vld [vmem:[#allocation9 + $0x48] sm:$0xff]
    %v1632 = vld [vmem:[#allocation9 + $0x50] sm:$0xf]
    %v1633 = vld [vmem:[#allocation9 + $0x54] sm:$0xff]
    %v1634 = vld [vmem:[#allocation9 + $0x5c] sm:$0xf]
    %v1635 = vld [vmem:[#allocation9 + $0x60] sm:$0xff]
    %v1636 = vld [vmem:[#allocation9 + $0x68] sm:$0xf]
    %v1637 = vld [vmem:[#allocation9 + $0x6c] sm:$0xff]
    %v1638 = vld [vmem:[#allocation9 + $0x74] sm:$0xf]
    %v1639 = vld [vmem:[#allocation9 + $0x78] sm:$0xff]
    %v1640 = vld [vmem:[#allocation9 + $0x80] sm:$0xf]
    %v1641 = vld [vmem:[#allocation9 + $0x84] sm:$0xff]
    %v1642 = vld [vmem:[#allocation9 + $0x8c] sm:$0xf]
    %v1643 = vld [vmem:[#allocation9 + $0x90] sm:$0xff]
    %v1644 = vld [vmem:[#allocation9 + $0x98] sm:$0xf]
    %v1645 = vld [vmem:[#allocation9 + $0x9c] sm:$0xff]
    %v1646 = vld [vmem:[#allocation9 + $0xa4] sm:$0xf]
    %v1647 = vld [vmem:[#allocation9 + $0xa8] sm:$0xff]
    %v1648 = vld [vmem:[#allocation9 + $0xb0] sm:$0xf]
    %v1649 = vld [vmem:[#allocation9 + $0xb4] sm:$0xff]
    %v1650 = vld [vmem:[#allocation9 + $0xbc] sm:$0xf]
    %v1651 = vlaneseq
    %v1652 = vshrl.u32 %v1651, 7
    %v1653 = vsub.s32 3, %v1652
    %v1654 = vrot.slane %v1362, %v1653
    %v1655 = vlaneseq
    %v1656 = vshrl.u32 %v1655, 7
    %v1657 = vsub.s32 3, %v1656
    %v1658 = vrot.slane %v1363, %v1657
    %v1659 = vlaneseq
    %v1660 = vshrl.u32 %v1659, 7
    %v1661 = vsub.s32 3, %v1660
    %v1662 = vrot.slane %v1364, %v1661
    %v1695 = vunpack.c.l.b16 %v1619
    %v1696 = vunpack.c.h.b16 %v1619
    %v1697 = vunpack.c.l.b16 %v1620
    %v1698 = vunpack.c.l.b16 %v1621
    %v1699 = vunpack.c.h.b16 %v1621
    %v1700 = vunpack.c.l.b16 %v1622
    %v1701 = vunpack.c.l.b16 %v1623
    %v1702 = vunpack.c.h.b16 %v1623
    %v1703 = vunpack.c.l.b16 %v1624
    %v1704 = vunpack.c.l.b16 %v1625
    %v1705 = vunpack.c.h.b16 %v1625
    %v1706 = vunpack.c.l.b16 %v1626
    %v1707 = vunpack.c.l.b16 %v1627
    %v1708 = vunpack.c.h.b16 %v1627
    %v1709 = vunpack.c.l.b16 %v1628
    %v1710 = vunpack.c.l.b16 %v1629
    %v1711 = vunpack.c.h.b16 %v1629
    %v1712 = vunpack.c.l.b16 %v1630
    %v1713 = vunpack.c.l.b16 %v1631
    %v1714 = vunpack.c.h.b16 %v1631
    %v1715 = vunpack.c.l.b16 %v1632
    %v1716 = vunpack.c.l.b16 %v1633
    %v1717 = vunpack.c.h.b16 %v1633
    %v1718 = vunpack.c.l.b16 %v1634
    %v1719 = vunpack.c.l.b16 %v1635
    %v1720 = vunpack.c.h.b16 %v1635
    %v1721 = vunpack.c.l.b16 %v1636
    %v1722 = vunpack.c.l.b16 %v1637
    %v1723 = vunpack.c.h.b16 %v1637
    %v1724 = vunpack.c.l.b16 %v1638
    %v1725 = vunpack.c.l.b16 %v1639
    %v1726 = vunpack.c.h.b16 %v1639
    %v1727 = vunpack.c.l.b16 %v1640
    %v1728 = vunpack.c.l.b16 %v1641
    %v1729 = vunpack.c.h.b16 %v1641
    %v1730 = vunpack.c.l.b16 %v1642
    %v1731 = vunpack.c.l.b16 %v1643
    %v1732 = vunpack.c.h.b16 %v1643
    %v1733 = vunpack.c.l.b16 %v1644
    %v1734 = vunpack.c.l.b16 %v1645
    %v1735 = vunpack.c.h.b16 %v1645
    %v1736 = vunpack.c.l.b16 %v1646
    %v1737 = vunpack.c.l.b16 %v1647
    %v1738 = vunpack.c.h.b16 %v1647
    %v1739 = vunpack.c.l.b16 %v1648
    %v1740 = vunpack.c.l.b16 %v1649
    %v1741 = vunpack.c.h.b16 %v1649
    %v1742 = vunpack.c.l.b16 %v1650
    %v1743 = vpack.c.b16 %v1698, %v1695
    %v1744 = vpack.c.b16 %v1699, %v1696
    %v1745 = vpack.c.b16 %v1700, %v1697
    %v1746 = vpack.c.b16 %v1704, %v1701
    %v1747 = vpack.c.b16 %v1705, %v1702
    %v1748 = vpack.c.b16 %v1706, %v1703
    %v1749 = vpack.c.b16 %v1710, %v1707
    %v1750 = vpack.c.b16 %v1711, %v1708
    %v1751 = vpack.c.b16 %v1712, %v1709
    %v1752 = vpack.c.b16 %v1716, %v1713
    %v1753 = vpack.c.b16 %v1717, %v1714
    %v1754 = vpack.c.b16 %v1718, %v1715
    %v1755 = vpack.c.b16 %v1722, %v1719
    %v1756 = vpack.c.b16 %v1723, %v1720
    %v1757 = vpack.c.b16 %v1724, %v1721
    %v1758 = vpack.c.b16 %v1728, %v1725
    %v1759 = vpack.c.b16 %v1729, %v1726
    %v1760 = vpack.c.b16 %v1730, %v1727
    %v1761 = vpack.c.b16 %v1734, %v1731
    %v1762 = vpack.c.b16 %v1735, %v1732
    %v1763 = vpack.c.b16 %v1736, %v1733
    %v1764 = vpack.c.b16 %v1740, %v1737
    %v1765 = vpack.c.b16 %v1741, %v1738
    %v1766 = vpack.c.b16 %v1742, %v1739
    %1791 = vmatprep.subr.bf16.mxu0 %v1744
    %1792 = vmatpush1.bf16.msra.mxu0 %v1743
    %1793 = vmatprep.subr.bf16.mxu0 %v1747
    %1794 = vmatpush1.bf16.msra.mxu0 %v1746
    %1795 = vmatprep.subr.bf16.mxu0 %v1750
    %1796 = vmatpush1.bf16.msra.mxu0 %v1749
    %1797 = vmatprep.subr.bf16.mxu0 %v1753
    %1798 = vmatpush1.bf16.msra.mxu0 %v1752
    %1799 = vmatprep.subr.bf16.mxu0 %v1756
    %1800 = vmatpush1.bf16.msra.mxu0 %v1755
    %1801 = vmatprep.subr.bf16.mxu0 %v1759
    %1802 = vmatpush1.bf16.msra.mxu0 %v1758
    %1803 = vmatprep.subr.bf16.mxu0 %v1762
    %1804 = vmatpush1.bf16.msra.mxu0 %v1761
    %1805 = vmatprep.subr.bf16.mxu0 %v1765
    %1806 = vmatpush1.bf16.msra.mxu0 %v1764
    %1807 = vmatprep.subr.bf16.mxu0 0
    %1808 = vmatpush1.bf16.msra.mxu0 0
    %1809 = vmatprep.subr.bf16.mxu0 0
    %1810 = vmatpush1.bf16.msra.mxu0 0
    %1811 = vmatprep.subr.bf16.mxu0 0
    %1812 = vmatpush1.bf16.msra.mxu0 0
    %1813 = vmatprep.subr.bf16.mxu0 0
    %1814 = vmatpush1.bf16.msra.mxu0 0
    %1815 = vmatprep.subr.bf16.mxu0 0
    %1816 = vmatpush1.bf16.msra.mxu0 0
    %1817 = vmatprep.subr.bf16.mxu0 0
    %1818 = vmatpush1.bf16.msra.mxu0 0
    %1819 = vmatprep.subr.bf16.mxu0 0
    %1820 = vmatpush1.bf16.msra.mxu0 0
    %1821 = vmatprep.subr.bf16.mxu0 0
    %1822 = vmatpush1.bf16.msra.mxu0 0
    %1823 = vmatprep.mubr.bf16.mxu0 0
    %1824 = vmatmul.mubr.bf16.gmra.mrb[0].mxu0 0
    %v1825 = vpop.f32.mrb[0].mxu0
    %v1826 = vadd.f32 %v1654, %v1825
    %v1827 = vpop.f32.mrb[0].mxu0
    %v1828 = vadd.f32 %v1658, %v1827
    %v1829 = vpop.f32.mrb[0].mxu0
    %v1830 = vpop.f32.mrb[0].mxu0
    %1831 = vdwg.mxu0
    %1832 = vmatprep.subr.bf16.mxu0 0
    %1833 = vmatpush1.bf16.msra.mxu0 %v1745
    %1834 = vmatprep.subr.bf16.mxu0 0
    %1835 = vmatpush1.bf16.msra.mxu0 %v1748
    %1836 = vmatprep.subr.bf16.mxu0 0
    %1837 = vmatpush1.bf16.msra.mxu0 %v1751
    %1838 = vmatprep.subr.bf16.mxu0 0
    %1839 = vmatpush1.bf16.msra.mxu0 %v1754
    %1840 = vmatprep.subr.bf16.mxu0 0
    %1841 = vmatpush1.bf16.msra.mxu0 %v1757
    %1842 = vmatprep.subr.bf16.mxu0 0
    %1843 = vmatpush1.bf16.msra.mxu0 %v1760
    %1844 = vmatprep.subr.bf16.mxu0 0
    %1845 = vmatpush1.bf16.msra.mxu0 %v1763
    %1846 = vmatprep.subr.bf16.mxu0 0
    %1847 = vmatpush1.bf16.msra.mxu0 %v1766
    %1848 = vmatprep.subr.bf16.mxu0 0
    %1849 = vmatpush1.bf16.msra.mxu0 0
    %1850 = vmatprep.subr.bf16.mxu0 0
    %1851 = vmatpush1.bf16.msra.mxu0 0
    %1852 = vmatprep.subr.bf16.mxu0 0
    %1853 = vmatpush1.bf16.msra.mxu0 0
    %1854 = vmatprep.subr.bf16.mxu0 0
    %1855 = vmatpush1.bf16.msra.mxu0 0
    %1856 = vmatprep.subr.bf16.mxu0 0
    %1857 = vmatpush1.bf16.msra.mxu0 0
    %1858 = vmatprep.subr.bf16.mxu0 0
    %1859 = vmatpush1.bf16.msra.mxu0 0
    %1860 = vmatprep.subr.bf16.mxu0 0
    %1861 = vmatpush1.bf16.msra.mxu0 0
    %1862 = vmatprep.subr.bf16.mxu0 0
    %1863 = vmatpush1.bf16.msra.mxu0 0
    %1864 = vmatprep.mubr.bf16.mxu0 0
    %1865 = vmatmul.mubr.bf16.gmra.mrb[0].mxu0 0
    %v1866 = vpop.f32.mrb[0].mxu0
    %v1867 = vadd.f32 %v1662, %v1866
    %v1868 = vpop.f32.mrb[0].mxu0
    %v1869 = vpop.f32.mrb[0].mxu0
    %v1870 = vpop.f32.mrb[0].mxu0
    %1871 = vdwg.mxu0
    %v1872 = vadd.f32 %v1573, %v1826
    %v1873 = vsub.f32 0.0, %v1872
    %v1874 = vmul.f32 %v1873, 1.442695
    %v1875 = vpow.pop %v1874
    %v1876 = vadd.f32 %v1875, 1.0
    %v1877 = vrcp.pop %v1876
    %v1878 = vadd.f32 %v1575, %v1828
    %v1879 = vsub.f32 0.0, %v1878
    %v1880 = vmul.f32 %v1879, 1.442695
    %v1881 = vpow.pop %v1880
    %v1882 = vadd.f32 %v1881, 1.0
    %v1883 = vrcp.pop %v1882
    %v1884 = vmul.f32 %v1877, %v1867
    %v1885 = vadd.f32 %v1614, %v1884
    %v1886 = vtanh.pop %v1885
    %v1887 = vsub.f32 1.0, %v1883
    %v1888 = vmul.f32 %v1887, %v1886
    %v1889 = vmul.f32 %v1883, 0.0
    %v1890 = vadd.f32 %v1888, %v1889
    %1891 = vst [vmem:[#allocation2] sm:$0x3] %v1890
    %v1892 = vpack.c.bf16 %v1890, %v1890
    %1893 = vmatprep.subr.bf16.mxu0 %v1744
    %1894 = vmatpush1.bf16.msra.mxu0 %v1743
    %1895 = vmatprep.subr.bf16.mxu0 %v1747
    %1896 = vmatpush1.bf16.msra.mxu0 %v1746
    %1897 = vmatprep.subr.bf16.mxu0 %v1750
    %1898 = vmatpush1.bf16.msra.mxu0 %v1749
    %1899 = vmatprep.subr.bf16.mxu0 %v1753
    %1900 = vmatpush1.bf16.msra.mxu0 %v1752
    %1901 = vmatprep.subr.bf16.mxu0 %v1756
    %1902 = vmatpush1.bf16.msra.mxu0 %v1755
    %1903 = vmatprep.subr.bf16.mxu0 %v1759
    %1904 = vmatpush1.bf16.msra.mxu0 %v1758
    %1905 = vmatprep.subr.bf16.mxu0 %v1762
    %1906 = vmatpush1.bf16.msra.mxu0 %v1761
    %1907 = vmatprep.subr.bf16.mxu0 %v1765
    %1908 = vmatpush1.bf16.msra.mxu0 %v1764
    %1909 = vmatprep.subr.bf16.mxu0 0
    %1910 = vmatpush1.bf16.msra.mxu0 0
    %1911 = vmatprep.subr.bf16.mxu0 0
    %1912 = vmatpush1.bf16.msra.mxu0 0
    %1913 = vmatprep.subr.bf16.mxu0 0
    %1914 = vmatpush1.bf16.msra.mxu0 0
    %1915 = vmatprep.subr.bf16.mxu0 0
    %1916 = vmatpush1.bf16.msra.mxu0 0
    %1917 = vmatprep.subr.bf16.mxu0 0
    %1918 = vmatpush1.bf16.msra.mxu0 0
    %1919 = vmatprep.subr.bf16.mxu0 0
    %1920 = vmatpush1.bf16.msra.mxu0 0
    %1921 = vmatprep.subr.bf16.mxu0 0
    %1922 = vmatpush1.bf16.msra.mxu0 0
    %1923 = vmatprep.subr.bf16.mxu0 0
    %1924 = vmatpush1.bf16.msra.mxu0 0
    %1925 = vmatprep.mubr.bf16.mxu0 0
    %1926 = vmatmul.mubr.bf16.gmra.mrb[0].mxu0 %v1892
    %v1927 = vpop.f32.mrb[0].mxu0
    %v1928 = vadd.f32 %v1654, %v1927
    %v1929 = vpop.f32.mrb[0].mxu0
    %v1930 = vadd.f32 %v1658, %v1929
    %v1931 = vpop.f32.mrb[0].mxu0
    %v1932 = vpop.f32.mrb[0].mxu0
    %1933 = vdwg.mxu0
    %1934 = vmatprep.subr.bf16.mxu0 0
    %1935 = vmatpush1.bf16.msra.mxu0 %v1745
    %1936 = vmatprep.subr.bf16.mxu0 0
    %1937 = vmatpush1.bf16.msra.mxu0 %v1748
    %1938 = vmatprep.subr.bf16.mxu0 0
    %1939 = vmatpush1.bf16.msra.mxu0 %v1751
    %1940 = vmatprep.subr.bf16.mxu0 0
    %1941 = vmatpush1.bf16.msra.mxu0 %v1754
    %1942 = vmatprep.subr.bf16.mxu0 0
    %1943 = vmatpush1.bf16.msra.mxu0 %v1757
    %1944 = vmatprep.subr.bf16.mxu0 0
    %1945 = vmatpush1.bf16.msra.mxu0 %v1760
    %1946 = vmatprep.subr.bf16.mxu0 0
    %1947 = vmatpush1.bf16.msra.mxu0 %v1763
    %1948 = vmatprep.subr.bf16.mxu0 0
    %1949 = vmatpush1.bf16.msra.mxu0 %v1766
    %1950 = vmatprep.subr.bf16.mxu0 0
    %1951 = vmatpush1.bf16.msra.mxu0 0
    %1952 = vmatprep.subr.bf16.mxu0 0
    %1953 = vmatpush1.bf16.msra.mxu0 0
    %1954 = vmatprep.subr.bf16.mxu0 0
    %1955 = vmatpush1.bf16.msra.mxu0 0
    %1956 = vmatprep.subr.bf16.mxu0 0
    %1957 = vmatpush1.bf16.msra.mxu0 0
    %1958 = vmatprep.subr.bf16.mxu0 0
    %1959 = vmatpush1.bf16.msra.mxu0 0
    %1960 = vmatprep.subr.bf16.mxu0 0
    %1961 = vmatpush1.bf16.msra.mxu0 0
    %1962 = vmatprep.subr.bf16.mxu0 0
    %1963 = vmatpush1.bf16.msra.mxu0 0
    %1964 = vmatprep.subr.bf16.mxu0 0
    %1965 = vmatpush1.bf16.msra.mxu0 0
    %1966 = vmatprep.mubr.bf16.mxu0 0
    %1967 = vmatmul.mubr.bf16.gmra.mrb[0].mxu0 %v1892
    %v1968 = vpop.f32.mrb[0].mxu0
    %v1969 = vadd.f32 %v1662, %v1968
    %v1970 = vpop.f32.mrb[0].mxu0
    %v1971 = vpop.f32.mrb[0].mxu0
    %v1972 = vpop.f32.mrb[0].mxu0
    %1973 = vdwg.mxu0
    %v1974 = vadd.f32 %v1573, %v1928
    %v1975 = vsub.f32 0.0, %v1974
    %v1976 = vmul.f32 %v1975, 1.442695
    %v1977 = vpow.pop %v1976
    %v1978 = vadd.f32 %v1977, 1.0
    %v1979 = vrcp.pop %v1978
    %v1980 = vadd.f32 %v1575, %v1930
    %v1981 = vsub.f32 0.0, %v1980
    %v1982 = vmul.f32 %v1981, 1.442695
    %v1983 = vpow.pop %v1982
    %v1984 = vadd.f32 %v1983, 1.0
    %v1985 = vrcp.pop %v1984
    %v1986 = vmul.f32 %v1979, %v1969
    %v1987 = vadd.f32 %v1614, %v1986
    %v1988 = vtanh.pop %v1987
    %v1989 = vsub.f32 1.0, %v1985
    %v1990 = vmul.f32 %v1989, %v1988
    %v1991 = vmul.f32 %v1985, %v1890
    %v1992 = vadd.f32 %v1990, %v1991
    %1993 = vst [vmem:[#allocation2 + $0x2] sm:$0x3] %v1992
    %v1994 = vpack.c.bf16 %v1992, %v1992
    %1995 = vmatprep.subr.bf16.mxu0 %v1744
    %1996 = vmatpush1.bf16.msra.mxu0 %v1743
    %1997 = vmatprep.subr.bf16.mxu0 %v1747
    %1998 = vmatpush1.bf16.msra.mxu0 %v1746
    %1999 = vmatprep.subr.bf16.mxu0 %v1750
    %2000 = vmatpush1.bf16.msra.mxu0 %v1749
    %2001 = vmatprep.subr.bf16.mxu0 %v1753
    %2002 = vmatpush1.bf16.msra.mxu0 %v1752
    %2003 = vmatprep.subr.bf16.mxu0 %v1756
    %2004 = vmatpush1.bf16.msra.mxu0 %v1755
    %2005 = vmatprep.subr.bf16.mxu0 %v1759
    %2006 = vmatpush1.bf16.msra.mxu0 %v1758
    %2007 = vmatprep.subr.bf16.mxu0 %v1762
    %2008 = vmatpush1.bf16.msra.mxu0 %v1761
    %2009 = vmatprep.subr.bf16.mxu0 %v1765
    %2010 = vmatpush1.bf16.msra.mxu0 %v1764
    %2011 = vmatprep.subr.bf16.mxu0 0
    %2012 = vmatpush1.bf16.msra.mxu0 0
    %2013 = vmatprep.subr.bf16.mxu0 0
    %2014 = vmatpush1.bf16.msra.mxu0 0
    %2015 = vmatprep.subr.bf16.mxu0 0
    %2016 = vmatpush1.bf16.msra.mxu0 0
    %2017 = vmatprep.subr.bf16.mxu0 0
    %2018 = vmatpush1.bf16.msra.mxu0 0
    %2019 = vmatprep.subr.bf16.mxu0 0
    %2020 = vmatpush1.bf16.msra.mxu0 0
    %2021 = vmatprep.subr.bf16.mxu0 0
    %2022 = vmatpush1.bf16.msra.mxu0 0
    %2023 = vmatprep.subr.bf16.mxu0 0
    %2024 = vmatpush1.bf16.msra.mxu0 0
    %2025 = vmatprep.subr.bf16.mxu0 0
    %2026 = vmatpush1.bf16.msra.mxu0 0
    %2027 = vmatprep.mubr.bf16.mxu0 0
    %2028 = vmatmul.mubr.bf16.gmra.mrb[0].mxu0 %v1994
    %v2029 = vpop.f32.mrb[0].mxu0
    %v2030 = vadd.f32 %v1654, %v2029
    %v2031 = vpop.f32.mrb[0].mxu0
    %v2032 = vadd.f32 %v1658, %v2031
    %v2033 = vpop.f32.mrb[0].mxu0
    %v2034 = vpop.f32.mrb[0].mxu0
    %2035 = vdwg.mxu0
    %2036 = vmatprep.subr.bf16.mxu0 0
    %2037 = vmatpush1.bf16.msra.mxu0 %v1745
    %2038 = vmatprep.subr.bf16.mxu0 0
    %2039 = vmatpush1.bf16.msra.mxu0 %v1748
    %2040 = vmatprep.subr.bf16.mxu0 0
    %2041 = vmatpush1.bf16.msra.mxu0 %v1751
    %2042 = vmatprep.subr.bf16.mxu0 0
    %2043 = vmatpush1.bf16.msra.mxu0 %v1754
    %2044 = vmatprep.subr.bf16.mxu0 0
    %2045 = vmatpush1.bf16.msra.mxu0 %v1757
    %2046 = vmatprep.subr.bf16.mxu0 0
    %2047 = vmatpush1.bf16.msra.mxu0 %v1760
    %2048 = vmatprep.subr.bf16.mxu0 0
    %2049 = vmatpush1.bf16.msra.mxu0 %v1763
    %2050 = vmatprep.subr.bf16.mxu0 0
    %2051 = vmatpush1.bf16.msra.mxu0 %v1766
    %2052 = vmatprep.subr.bf16.mxu0 0
    %2053 = vmatpush1.bf16.msra.mxu0 0
    %2054 = vmatprep.subr.bf16.mxu0 0
    %2055 = vmatpush1.bf16.msra.mxu0 0
    %2056 = vmatprep.subr.bf16.mxu0 0
    %2057 = vmatpush1.bf16.msra.mxu0 0
    %2058 = vmatprep.subr.bf16.mxu0 0
    %2059 = vmatpush1.bf16.msra.mxu0 0
    %2060 = vmatprep.subr.bf16.mxu0 0
    %2061 = vmatpush1.bf16.msra.mxu0 0
    %2062 = vmatprep.subr.bf16.mxu0 0
    %2063 = vmatpush1.bf16.msra.mxu0 0
    %2064 = vmatprep.subr.bf16.mxu0 0
    %2065 = vmatpush1.bf16.msra.mxu0 0
    %2066 = vmatprep.subr.bf16.mxu0 0
    %2067 = vmatpush1.bf16.msra.mxu0 0
    %2068 = vmatprep.mubr.bf16.mxu0 0
    %2069 = vmatmul.mubr.bf16.gmra.mrb[0].mxu0 %v1994
    %v2070 = vpop.f32.mrb[0].mxu0
    %v2071 = vadd.f32 %v1662, %v2070
    %v2072 = vpop.f32.mrb[0].mxu0
    %v2073 = vpop.f32.mrb[0].mxu0
    %v2074 = vpop.f32.mrb[0].mxu0
    %2075 = vdwg.mxu0
    %v2076 = vadd.f32 %v1573, %v2030
    %v2077 = vsub.f32 0.0, %v2076
    %v2078 = vmul.f32 %v2077, 1.442695
    %v2079 = vpow.pop %v2078
    %v2080 = vadd.f32 %v2079, 1.0
    %v2081 = vrcp.pop %v2080
    %v2082 = vadd.f32 %v1575, %v2032
    %v2083 = vsub.f32 0.0, %v2082
    %v2084 = vmul.f32 %v2083, 1.442695
    %v2085 = vpow.pop %v2084
    %v2086 = vadd.f32 %v2085, 1.0
    %v2087 = vrcp.pop %v2086
    %v2088 = vmul.f32 %v2081, %v2071
    %v2089 = vadd.f32 %v1614, %v2088
    %v2090 = vtanh.pop %v2089
    %v2091 = vsub.f32 1.0, %v2087
    %v2092 = vmul.f32 %v2091, %v2090
    %v2093 = vmul.f32 %v2087, %v1992
    %v2094 = vadd.f32 %v2092, %v2093
    %2095 = vst [vmem:[#allocation2 + $0x4] sm:$0x3] %v2094
    %v2096 = vpack.c.bf16 %v2094, %v2094
    %2097 = vmatprep.subr.bf16.mxu0 %v1744
    %2098 = vmatpush1.bf16.msra.mxu0 %v1743
    %2099 = vmatprep.subr.bf16.mxu0 %v1747
    %2100 = vmatpush1.bf16.msra.mxu0 %v1746
    %2101 = vmatprep.subr.bf16.mxu0 %v1750
    %2102 = vmatpush1.bf16.msra.mxu0 %v1749
    %2103 = vmatprep.subr.bf16.mxu0 %v1753
    %2104 = vmatpush1.bf16.msra.mxu0 %v1752
    %2105 = vmatprep.subr.bf16.mxu0 %v1756
    %2106 = vmatpush1.bf16.msra.mxu0 %v1755
    %2107 = vmatprep.subr.bf16.mxu0 %v1759
    %2108 = vmatpush1.bf16.msra.mxu0 %v1758
    %2109 = vmatprep.subr.bf16.mxu0 %v1762
    %2110 = vmatpush1.bf16.msra.mxu0 %v1761
    %2111 = vmatprep.subr.bf16.mxu0 %v1765
    %2112 = vmatpush1.bf16.msra.mxu0 %v1764
    %2113 = vmatprep.subr.bf16.mxu0 0
    %2114 = vmatpush1.bf16.msra.mxu0 0
    %2115 = vmatprep.subr.bf16.mxu0 0
    %2116 = vmatpush1.bf16.msra.mxu0 0
    %2117 = vmatprep.subr.bf16.mxu0 0
    %2118 = vmatpush1.bf16.msra.mxu0 0
    %2119 = vmatprep.subr.bf16.mxu0 0
    %2120 = vmatpush1.bf16.msra.mxu0 0
    %2121 = vmatprep.subr.bf16.mxu0 0
    %2122 = vmatpush1.bf16.msra.mxu0 0
    %2123 = vmatprep.subr.bf16.mxu0 0
    %2124 = vmatpush1.bf16.msra.mxu0 0
    %2125 = vmatprep.subr.bf16.mxu0 0
    %2126 = vmatpush1.bf16.msra.mxu0 0
    %2127 = vmatprep.subr.bf16.mxu0 0
    %2128 = vmatpush1.bf16.msra.mxu0 0
    %2129 = vmatprep.mubr.bf16.mxu0 0
    %2130 = vmatmul.mubr.bf16.gmra.mrb[0].mxu0 %v2096
    %v2131 = vpop.f32.mrb[0].mxu0
    %v2132 = vadd.f32 %v1654, %v2131
    %v2133 = vpop.f32.mrb[0].mxu0
    %v2134 = vadd.f32 %v1658, %v2133
    %v2135 = vpop.f32.mrb[0].mxu0
    %v2136 = vpop.f32.mrb[0].mxu0
    %2137 = vdwg.mxu0
    %2138 = vmatprep.subr.bf16.mxu0 0
    %2139 = vmatpush1.bf16.msra.mxu0 %v1745
    %2140 = vmatprep.subr.bf16.mxu0 0
    %2141 = vmatpush1.bf16.msra.mxu0 %v1748
    %2142 = vmatprep.subr.bf16.mxu0 0
    %2143 = vmatpush1.bf16.msra.mxu0 %v1751
    %2144 = vmatprep.subr.bf16.mxu0 0
    %2145 = vmatpush1.bf16.msra.mxu0 %v1754
    %2146 = vmatprep.subr.bf16.mxu0 0
    %2147 = vmatpush1.bf16.msra.mxu0 %v1757
    %2148 = vmatprep.subr.bf16.mxu0 0
    %2149 = vmatpush1.bf16.msra.mxu0 %v1760
    %2150 = vmatprep.subr.bf16.mxu0 0
    %2151 = vmatpush1.bf16.msra.mxu0 %v1763
    %2152 = vmatprep.subr.bf16.mxu0 0
    %2153 = vmatpush1.bf16.msra.mxu0 %v1766
    %2154 = vmatprep.subr.bf16.mxu0 0
    %2155 = vmatpush1.bf16.msra.mxu0 0
    %2156 = vmatprep.subr.bf16.mxu0 0
    %2157 = vmatpush1.bf16.msra.mxu0 0
    %2158 = vmatprep.subr.bf16.mxu0 0
    %2159 = vmatpush1.bf16.msra.mxu0 0
    %2160 = vmatprep.subr.bf16.mxu0 0
    %2161 = vmatpush1.bf16.msra.mxu0 0
    %2162 = vmatprep.subr.bf16.mxu0 0
    %2163 = vmatpush1.bf16.msra.mxu0 0
    %2164 = vmatprep.subr.bf16.mxu0 0
    %2165 = vmatpush1.bf16.msra.mxu0 0
    %2166 = vmatprep.subr.bf16.mxu0 0
    %2167 = vmatpush1.bf16.msra.mxu0 0
    %2168 = vmatprep.subr.bf16.mxu0 0
    %2169 = vmatpush1.bf16.msra.mxu0 0
    %2170 = vmatprep.mubr.bf16.mxu0 0
    %2171 = vmatmul.mubr.bf16.gmra.mrb[0].mxu0 %v2096
    %v2172 = vpop.f32.mrb[0].mxu0
    %v2173 = vadd.f32 %v1662, %v2172
    %v2174 = vpop.f32.mrb[0].mxu0
    %v2175 = vpop.f32.mrb[0].mxu0
    %v2176 = vpop.f32.mrb[0].mxu0
    %2177 = vdwg.mxu0
    %v2178 = vadd.f32 %v1573, %v2132
    %v2179 = vsub.f32 0.0, %v2178
    %v2180 = vmul.f32 %v2179, 1.442695
    %v2181 = vpow.pop %v2180
    %v2182 = vadd.f32 %v2181, 1.0
    %v2183 = vrcp.pop %v2182
    %v2184 = vadd.f32 %v1575, %v2134
    %v2185 = vsub.f32 0.0, %v2184
    %v2186 = vmul.f32 %v2185, 1.442695
    %v2187 = vpow.pop %v2186
    %v2188 = vadd.f32 %v2187, 1.0
    %v2189 = vrcp.pop %v2188
    %v2190 = vmul.f32 %v2183, %v2173
    %v2191 = vadd.f32 %v1614, %v2190
    %v2192 = vtanh.pop %v2191
    %v2193 = vsub.f32 1.0, %v2189
    %v2194 = vmul.f32 %v2193, %v2192
    %v2195 = vmul.f32 %v2189, %v2094
    %v2196 = vadd.f32 %v2194, %v2195
    %2197 = vst [vmem:[#allocation2 + $0x6] sm:$0x3] %v2196
    %v2198 = vpack.c.bf16 %v2196, %v2196
    %2199 = vmatprep.subr.bf16.mxu0 %v1744
    %2200 = vmatpush1.bf16.msra.mxu0 %v1743
    %2201 = vmatprep.subr.bf16.mxu0 %v1747
    %2202 = vmatpush1.bf16.msra.mxu0 %v1746
    %2203 = vmatprep.subr.bf16.mxu0 %v1750
    %2204 = vmatpush1.bf16.msra.mxu0 %v1749
    %2205 = vmatprep.subr.bf16.mxu0 %v1753
    %2206 = vmatpush1.bf16.msra.mxu0 %v1752
    %2207 = vmatprep.subr.bf16.mxu0 %v1756
    %2208 = vmatpush1.bf16.msra.mxu0 %v1755
    %2209 = vmatprep.subr.bf16.mxu0 %v1759
    %2210 = vmatpush1.bf16.msra.mxu0 %v1758
    %2211 = vmatprep.subr.bf16.mxu0 %v1762
    %2212 = vmatpush1.bf16.msra.mxu0 %v1761
    %2213 = vmatprep.subr.bf16.mxu0 %v1765
    %2214 = vmatpush1.bf16.msra.mxu0 %v1764
    %2215 = vmatprep.subr.bf16.mxu0 0
    %2216 = vmatpush1.bf16.msra.mxu0 0
    %2217 = vmatprep.subr.bf16.mxu0 0
    %2218 = vmatpush1.bf16.msra.mxu0 0
    %2219 = vmatprep.subr.bf16.mxu0 0
    %2220 = vmatpush1.bf16.msra.mxu0 0
    %2221 = vmatprep.subr.bf16.mxu0 0
    %2222 = vmatpush1.bf16.msra.mxu0 0
    %2223 = vmatprep.subr.bf16.mxu0 0
    %2224 = vmatpush1.bf16.msra.mxu0 0
    %2225 = vmatprep.subr.bf16.mxu0 0
    %2226 = vmatpush1.bf16.msra.mxu0 0
    %2227 = vmatprep.subr.bf16.mxu0 0
    %2228 = vmatpush1.bf16.msra.mxu0 0
    %2229 = vmatprep.subr.bf16.mxu0 0
    %2230 = vmatpush1.bf16.msra.mxu0 0
    %2231 = vmatprep.mubr.bf16.mxu0 0
    %2232 = vmatmul.mubr.bf16.gmra.mrb[0].mxu0 %v2198
    %v2233 = vpop.f32.mrb[0].mxu0
    %v2234 = vadd.f32 %v1654, %v2233
    %v2235 = vpop.f32.mrb[0].mxu0
    %v2236 = vadd.f32 %v1658, %v2235
    %v2237 = vpop.f32.mrb[0].mxu0
    %v2238 = vpop.f32.mrb[0].mxu0
    %2239 = vdwg.mxu0
    %2240 = vmatprep.subr.bf16.mxu0 0
    %2241 = vmatpush1.bf16.msra.mxu0 %v1745
    %2242 = vmatprep.subr.bf16.mxu0 0
    %2243 = vmatpush1.bf16.msra.mxu0 %v1748
    %2244 = vmatprep.subr.bf16.mxu0 0
    %2245 = vmatpush1.bf16.msra.mxu0 %v1751
    %2246 = vmatprep.subr.bf16.mxu0 0
    %2247 = vmatpush1.bf16.msra.mxu0 %v1754
    %2248 = vmatprep.subr.bf16.mxu0 0
    %2249 = vmatpush1.bf16.msra.mxu0 %v1757
    %2250 = vmatprep.subr.bf16.mxu0 0
    %2251 = vmatpush1.bf16.msra.mxu0 %v1760
    %2252 = vmatprep.subr.bf16.mxu0 0
    %2253 = vmatpush1.bf16.msra.mxu0 %v1763
    %2254 = vmatprep.subr.bf16.mxu0 0
    %2255 = vmatpush1.bf16.msra.mxu0 %v1766
    %2256 = vmatprep.subr.bf16.mxu0 0
    %2257 = vmatpush1.bf16.msra.mxu0 0
    %2258 = vmatprep.subr.bf16.mxu0 0
    %2259 = vmatpush1.bf16.msra.mxu0 0
    %2260 = vmatprep.subr.bf16.mxu0 0
    %2261 = vmatpush1.bf16.msra.mxu0 0
    %2262 = vmatprep.subr.bf16.mxu0 0
    %2263 = vmatpush1.bf16.msra.mxu0 0
    %2264 = vmatprep.subr.bf16.mxu0 0
    %2265 = vmatpush1.bf16.msra.mxu0 0
    %2266 = vmatprep.subr.bf16.mxu0 0
    %2267 = vmatpush1.bf16.msra.mxu0 0
    %2268 = vmatprep.subr.bf16.mxu0 0
    %2269 = vmatpush1.bf16.msra.mxu0 0
    %2270 = vmatprep.subr.bf16.mxu0 0
    %2271 = vmatpush1.bf16.msra.mxu0 0
    %2272 = vmatprep.mubr.bf16.mxu0 0
    %2273 = vmatmul.mubr.bf16.gmra.mrb[0].mxu0 %v2198
    %v2274 = vpop.f32.mrb[0].mxu0
    %v2275 = vadd.f32 %v1662, %v2274
    %v2276 = vpop.f32.mrb[0].mxu0
    %v2277 = vpop.f32.mrb[0].mxu0
    %v2278 = vpop.f32.mrb[0].mxu0
    %2279 = vdwg.mxu0
    %v2280 = vadd.f32 %v1573, %v2234
    %v2281 = vsub.f32 0.0, %v2280
    %v2282 = vmul.f32 %v2281, 1.442695
    %v2283 = vpow.pop %v2282
    %v2284 = vadd.f32 %v2283, 1.0
    %v2285 = vrcp.pop %v2284
    %v2286 = vadd.f32 %v1575, %v2236
    %v2287 = vsub.f32 0.0, %v2286
    %v2288 = vmul.f32 %v2287, 1.442695
    %v2289 = vpow.pop %v2288
    %v2290 = vadd.f32 %v2289, 1.0
    %v2291 = vrcp.pop %v2290
    %v2292 = vmul.f32 %v2285, %v2275
    %v2293 = vadd.f32 %v1614, %v2292
    %v2294 = vtanh.pop %v2293
    %v2295 = vsub.f32 1.0, %v2291
    %v2296 = vmul.f32 %v2295, %v2294
    %v2297 = vmul.f32 %v2291, %v2196
    %v2298 = vadd.f32 %v2296, %v2297
    %2299 = vst [vmem:[#allocation2 + $0x8] sm:$0x3] %v2298
    %v2300 = vpack.c.bf16 %v2298, %v2298
    %2301 = vmatprep.subr.bf16.mxu0 %v1744
    %2302 = vmatpush1.bf16.msra.mxu0 %v1743
    %2303 = vmatprep.subr.bf16.mxu0 %v1747
    %2304 = vmatpush1.bf16.msra.mxu0 %v1746
    %2305 = vmatprep.subr.bf16.mxu0 %v1750
    %2306 = vmatpush1.bf16.msra.mxu0 %v1749
    %2307 = vmatprep.subr.bf16.mxu0 %v1753
    %2308 = vmatpush1.bf16.msra.mxu0 %v1752
    %2309 = vmatprep.subr.bf16.mxu0 %v1756
    %2310 = vmatpush1.bf16.msra.mxu0 %v1755
    %2311 = vmatprep.subr.bf16.mxu0 %v1759
    %2312 = vmatpush1.bf16.msra.mxu0 %v1758
    %2313 = vmatprep.subr.bf16.mxu0 %v1762
    %2314 = vmatpush1.bf16.msra.mxu0 %v1761
    %2315 = vmatprep.subr.bf16.mxu0 %v1765
    %2316 = vmatpush1.bf16.msra.mxu0 %v1764
    %2317 = vmatprep.subr.bf16.mxu0 0
    %2318 = vmatpush1.bf16.msra.mxu0 0
    %2319 = vmatprep.subr.bf16.mxu0 0
    %2320 = vmatpush1.bf16.msra.mxu0 0
    %2321 = vmatprep.subr.bf16.mxu0 0
    %2322 = vmatpush1.bf16.msra.mxu0 0
    %2323 = vmatprep.subr.bf16.mxu0 0
    %2324 = vmatpush1.bf16.msra.mxu0 0
    %2325 = vmatprep.subr.bf16.mxu0 0
    %2326 = vmatpush1.bf16.msra.mxu0 0
    %2327 = vmatprep.subr.bf16.mxu0 0
    %2328 = vmatpush1.bf16.msra.mxu0 0
    %2329 = vmatprep.subr.bf16.mxu0 0
    %2330 = vmatpush1.bf16.msra.mxu0 0
    %2331 = vmatprep.subr.bf16.mxu0 0
    %2332 = vmatpush1.bf16.msra.mxu0 0
    %2333 = vmatprep.mubr.bf16.mxu0 0
    %2334 = vmatmul.mubr.bf16.gmra.mrb[0].mxu0 %v2300
    %v2335 = vpop.f32.mrb[0].mxu0
    %v2336 = vadd.f32 %v1654, %v2335
    %v2337 = vpop.f32.mrb[0].mxu0
    %v2338 = vadd.f32 %v1658, %v2337
    %v2339 = vpop.f32.mrb[0].mxu0
    %v2340 = vpop.f32.mrb[0].mxu0
    %2341 = vdwg.mxu0
    %2342 = vmatprep.subr.bf16.mxu0 0
    %2343 = vmatpush1.bf16.msra.mxu0 %v1745
    %2344 = vmatprep.subr.bf16.mxu0 0
    %2345 = vmatpush1.bf16.msra.mxu0 %v1748
    %2346 = vmatprep.subr.bf16.mxu0 0
    %2347 = vmatpush1.bf16.msra.mxu0 %v1751
    %2348 = vmatprep.subr.bf16.mxu0 0
    %2349 = vmatpush1.bf16.msra.mxu0 %v1754
    %2350 = vmatprep.subr.bf16.mxu0 0
    %2351 = vmatpush1.bf16.msra.mxu0 %v1757
    %2352 = vmatprep.subr.bf16.mxu0 0
    %2353 = vmatpush1.bf16.msra.mxu0 %v1760
    %2354 = vmatprep.subr.bf16.mxu0 0
    %2355 = vmatpush1.bf16.msra.mxu0 %v1763
    %2356 = vmatprep.subr.bf16.mxu0 0
    %2357 = vmatpush1.bf16.msra.mxu0 %v1766
    %2358 = vmatprep.subr.bf16.mxu0 0
    %2359 = vmatpush1.bf16.msra.mxu0 0
    %2360 = vmatprep.subr.bf16.mxu0 0
    %2361 = vmatpush1.bf16.msra.mxu0 0
    %2362 = vmatprep.subr.bf16.mxu0 0
    %2363 = vmatpush1.bf16.msra.mxu0 0
    %2364 = vmatprep.subr.bf16.mxu0 0
    %2365 = vmatpush1.bf16.msra.mxu0 0
    %2366 = vmatprep.subr.bf16.mxu0 0
    %2367 = vmatpush1.bf16.msra.mxu0 0
    %2368 = vmatprep.subr.bf16.mxu0 0
    %2369 = vmatpush1.bf16.msra.mxu0 0
    %2370 = vmatprep.subr.bf16.mxu0 0
    %2371 = vmatpush1.bf16.msra.mxu0 0
    %2372 = vmatprep.subr.bf16.mxu0 0
    %2373 = vmatpush1.bf16.msra.mxu0 0
    %2374 = vmatprep.mubr.bf16.mxu0 0
    %2375 = vmatmul.mubr.bf16.gmra.mrb[0].mxu0 %v2300
    %v2376 = vpop.f32.mrb[0].mxu0
    %v2377 = vadd.f32 %v1662, %v2376
    %v2378 = vpop.f32.mrb[0].mxu0
    %v2379 = vpop.f32.mrb[0].mxu0
    %v2380 = vpop.f32.mrb[0].mxu0
    %2381 = vdwg.mxu0
    %v2382 = vadd.f32 %v1573, %v2336
    %v2383 = vsub.f32 0.0, %v2382
    %v2384 = vmul.f32 %v2383, 1.442695
    %v2385 = vpow.pop %v2384
    %v2386 = vadd.f32 %v2385, 1.0
    %v2387 = vrcp.pop %v2386
    %v2388 = vadd.f32 %v1575, %v2338
    %v2389 = vsub.f32 0.0, %v2388
    %v2390 = vmul.f32 %v2389, 1.442695
    %v2391 = vpow.pop %v2390
    %v2392 = vadd.f32 %v2391, 1.0
    %v2393 = vrcp.pop %v2392
    %v2394 = vmul.f32 %v2387, %v2377
    %v2395 = vadd.f32 %v1614, %v2394
    %v2396 = vtanh.pop %v2395
    %v2397 = vsub.f32 1.0, %v2393
    %v2398 = vmul.f32 %v2397, %v2396
    %v2399 = vmul.f32 %v2393, %v2298
    %v2400 = vadd.f32 %v2398, %v2399
    %2401 = vst [vmem:[#allocation2 + $0xa] sm:$0x3] %v2400
    %v2402 = vpack.c.bf16 %v2400, %v2400
    %2403 = vmatprep.subr.bf16.mxu0 %v1744
    %2404 = vmatpush1.bf16.msra.mxu0 %v1743
    %2405 = vmatprep.subr.bf16.mxu0 %v1747
    %2406 = vmatpush1.bf16.msra.mxu0 %v1746
    %2407 = vmatprep.subr.bf16.mxu0 %v1750
    %2408 = vmatpush1.bf16.msra.mxu0 %v1749
    %2409 = vmatprep.subr.bf16.mxu0 %v1753
    %2410 = vmatpush1.bf16.msra.mxu0 %v1752
    %2411 = vmatprep.subr.bf16.mxu0 %v1756
    %2412 = vmatpush1.bf16.msra.mxu0 %v1755
    %2413 = vmatprep.subr.bf16.mxu0 %v1759
    %2414 = vmatpush1.bf16.msra.mxu0 %v1758
    %2415 = vmatprep.subr.bf16.mxu0 %v1762
    %2416 = vmatpush1.bf16.msra.mxu0 %v1761
    %2417 = vmatprep.subr.bf16.mxu0 %v1765
    %2418 = vmatpush1.bf16.msra.mxu0 %v1764
    %2419 = vmatprep.subr.bf16.mxu0 0
    %2420 = vmatpush1.bf16.msra.mxu0 0
    %2421 = vmatprep.subr.bf16.mxu0 0
    %2422 = vmatpush1.bf16.msra.mxu0 0
    %2423 = vmatprep.subr.bf16.mxu0 0
    %2424 = vmatpush1.bf16.msra.mxu0 0
    %2425 = vmatprep.subr.bf16.mxu0 0
    %2426 = vmatpush1.bf16.msra.mxu0 0
    %2427 = vmatprep.subr.bf16.mxu0 0
    %2428 = vmatpush1.bf16.msra.mxu0 0
    %2429 = vmatprep.subr.bf16.mxu0 0
    %2430 = vmatpush1.bf16.msra.mxu0 0
    %2431 = vmatprep.subr.bf16.mxu0 0
    %2432 = vmatpush1.bf16.msra.mxu0 0
    %2433 = vmatprep.subr.bf16.mxu0 0
    %2434 = vmatpush1.bf16.msra.mxu0 0
    %2435 = vmatprep.mubr.bf16.mxu0 0
    %2436 = vmatmul.mubr.bf16.gmra.mrb[0].mxu0 %v2402
    %v2437 = vpop.f32.mrb[0].mxu0
    %v2438 = vadd.f32 %v1654, %v2437
    %v2439 = vpop.f32.mrb[0].mxu0
    %v2440 = vadd.f32 %v1658, %v2439
    %v2441 = vpop.f32.mrb[0].mxu0
    %v2442 = vpop.f32.mrb[0].mxu0
    %2443 = vdwg.mxu0
    %2444 = vmatprep.subr.bf16.mxu0 0
    %2445 = vmatpush1.bf16.msra.mxu0 %v1745
    %2446 = vmatprep.subr.bf16.mxu0 0
    %2447 = vmatpush1.bf16.msra.mxu0 %v1748
    %2448 = vmatprep.subr.bf16.mxu0 0
    %2449 = vmatpush1.bf16.msra.mxu0 %v1751
    %2450 = vmatprep.subr.bf16.mxu0 0
    %2451 = vmatpush1.bf16.msra.mxu0 %v1754
    %2452 = vmatprep.subr.bf16.mxu0 0
    %2453 = vmatpush1.bf16.msra.mxu0 %v1757
    %2454 = vmatprep.subr.bf16.mxu0 0
    %2455 = vmatpush1.bf16.msra.mxu0 %v1760
    %2456 = vmatprep.subr.bf16.mxu0 0
    %2457 = vmatpush1.bf16.msra.mxu0 %v1763
    %2458 = vmatprep.subr.bf16.mxu0 0
    %2459 = vmatpush1.bf16.msra.mxu0 %v1766
    %2460 = vmatprep.subr.bf16.mxu0 0
    %2461 = vmatpush1.bf16.msra.mxu0 0
    %2462 = vmatprep.subr.bf16.mxu0 0
    %2463 = vmatpush1.bf16.msra.mxu0 0
    %2464 = vmatprep.subr.bf16.mxu0 0
    %2465 = vmatpush1.bf16.msra.mxu0 0
    %2466 = vmatprep.subr.bf16.mxu0 0
    %2467 = vmatpush1.bf16.msra.mxu0 0
    %2468 = vmatprep.subr.bf16.mxu0 0
    %2469 = vmatpush1.bf16.msra.mxu0 0
    %2470 = vmatprep.subr.bf16.mxu0 0
    %2471 = vmatpush1.bf16.msra.mxu0 0
    %2472 = vmatprep.subr.bf16.mxu0 0
    %2473 = vmatpush1.bf16.msra.mxu0 0
    %2474 = vmatprep.subr.bf16.mxu0 0
    %2475 = vmatpush1.bf16.msra.mxu0 0
    %2476 = vmatprep.mubr.bf16.mxu0 0
    %2477 = vmatmul.mubr.bf16.gmra.mrb[0].mxu0 %v2402
    %v2478 = vpop.f32.mrb[0].mxu0
    %v2479 = vadd.f32 %v1662, %v2478
    %v2480 = vpop.f32.mrb[0].mxu0
    %v2481 = vpop.f32.mrb[0].mxu0
    %v2482 = vpop.f32.mrb[0].mxu0
    %2483 = vdwg.mxu0
    %v2484 = vadd.f32 %v1573, %v2438
    %v2485 = vsub.f32 0.0, %v2484
    %v2486 = vmul.f32 %v2485, 1.442695
    %v2487 = vpow.pop %v2486
    %v2488 = vadd.f32 %v2487, 1.0
    %v2489 = vrcp.pop %v2488
    %v2490 = vadd.f32 %v1575, %v2440
    %v2491 = vsub.f32 0.0, %v2490
    %v2492 = vmul.f32 %v2491, 1.442695
    %v2493 = vpow.pop %v2492
    %v2494 = vadd.f32 %v2493, 1.0
    %v2495 = vrcp.pop %v2494
    %v2496 = vmul.f32 %v2489, %v2479
    %v2497 = vadd.f32 %v1614, %v2496
    %v2498 = vtanh.pop %v2497
    %v2499 = vsub.f32 1.0, %v2495
    %v2500 = vmul.f32 %v2499, %v2498
    %v2501 = vmul.f32 %v2495, %v2400
    %v2502 = vadd.f32 %v2500, %v2501
    %2503 = vst [vmem:[#allocation2 + $0xc] sm:$0x3] %v2502
    %v2504 = vpack.c.bf16 %v2502, %v2502
    %2505 = vmatprep.subr.bf16.mxu0 %v1744
    %2506 = vmatpush1.bf16.msra.mxu0 %v1743
    %2507 = vmatprep.subr.bf16.mxu0 %v1747
    %2508 = vmatpush1.bf16.msra.mxu0 %v1746
    %2509 = vmatprep.subr.bf16.mxu0 %v1750
    %2510 = vmatpush1.bf16.msra.mxu0 %v1749
    %2511 = vmatprep.subr.bf16.mxu0 %v1753
    %2512 = vmatpush1.bf16.msra.mxu0 %v1752
    %2513 = vmatprep.subr.bf16.mxu0 %v1756
    %2514 = vmatpush1.bf16.msra.mxu0 %v1755
    %2515 = vmatprep.subr.bf16.mxu0 %v1759
    %2516 = vmatpush1.bf16.msra.mxu0 %v1758
    %2517 = vmatprep.subr.bf16.mxu0 %v1762
    %2518 = vmatpush1.bf16.msra.mxu0 %v1761
    %2519 = vmatprep.subr.bf16.mxu0 %v1765
    %2520 = vmatpush1.bf16.msra.mxu0 %v1764
    %2521 = vmatprep.subr.bf16.mxu0 0
    %2522 = vmatpush1.bf16.msra.mxu0 0
    %2523 = vmatprep.subr.bf16.mxu0 0
    %2524 = vmatpush1.bf16.msra.mxu0 0
    %2525 = vmatprep.subr.bf16.mxu0 0
    %2526 = vmatpush1.bf16.msra.mxu0 0
    %2527 = vmatprep.subr.bf16.mxu0 0
    %2528 = vmatpush1.bf16.msra.mxu0 0
    %2529 = vmatprep.subr.bf16.mxu0 0
    %2530 = vmatpush1.bf16.msra.mxu0 0
    %2531 = vmatprep.subr.bf16.mxu0 0
    %2532 = vmatpush1.bf16.msra.mxu0 0
    %2533 = vmatprep.subr.bf16.mxu0 0
    %2534 = vmatpush1.bf16.msra.mxu0 0
    %2535 = vmatprep.subr.bf16.mxu0 0
    %2536 = vmatpush1.bf16.msra.mxu0 0
    %2537 = vmatprep.mubr.bf16.mxu0 0
    %2538 = vmatmul.mubr.bf16.gmra.mrb[0].mxu0 %v2504
    %v2539 = vpop.f32.mrb[0].mxu0
    %v2540 = vadd.f32 %v1654, %v2539
    %v2541 = vpop.f32.mrb[0].mxu0
    %v2542 = vadd.f32 %v1658, %v2541
    %v2543 = vpop.f32.mrb[0].mxu0
    %v2544 = vpop.f32.mrb[0].mxu0
    %2545 = vdwg.mxu0
    %2546 = vmatprep.subr.bf16.mxu0 0
    %2547 = vmatpush1.bf16.msra.mxu0 %v1745
    %2548 = vmatprep.subr.bf16.mxu0 0
    %2549 = vmatpush1.bf16.msra.mxu0 %v1748
    %2550 = vmatprep.subr.bf16.mxu0 0
    %2551 = vmatpush1.bf16.msra.mxu0 %v1751
    %2552 = vmatprep.subr.bf16.mxu0 0
    %2553 = vmatpush1.bf16.msra.mxu0 %v1754
    %2554 = vmatprep.subr.bf16.mxu0 0
    %2555 = vmatpush1.bf16.msra.mxu0 %v1757
    %2556 = vmatprep.subr.bf16.mxu0 0
    %2557 = vmatpush1.bf16.msra.mxu0 %v1760
    %2558 = vmatprep.subr.bf16.mxu0 0
    %2559 = vmatpush1.bf16.msra.mxu0 %v1763
    %2560 = vmatprep.subr.bf16.mxu0 0
    %2561 = vmatpush1.bf16.msra.mxu0 %v1766
    %2562 = vmatprep.subr.bf16.mxu0 0
    %2563 = vmatpush1.bf16.msra.mxu0 0
    %2564 = vmatprep.subr.bf16.mxu0 0
    %2565 = vmatpush1.bf16.msra.mxu0 0
    %2566 = vmatprep.subr.bf16.mxu0 0
    %2567 = vmatpush1.bf16.msra.mxu0 0
    %2568 = vmatprep.subr.bf16.mxu0 0
    %2569 = vmatpush1.bf16.msra.mxu0 0
    %2570 = vmatprep.subr.bf16.mxu0 0
    %2571 = vmatpush1.bf16.msra.mxu0 0
    %2572 = vmatprep.subr.bf16.mxu0 0
    %2573 = vmatpush1.bf16.msra.mxu0 0
    %2574 = vmatprep.subr.bf16.mxu0 0
    %2575 = vmatpush1.bf16.msra.mxu0 0
    %2576 = vmatprep.subr.bf16.mxu0 0
    %2577 = vmatpush1.bf16.msra.mxu0 0
    %2578 = vmatprep.mubr.bf16.mxu0 0
    %2579 = vmatmul.mubr.bf16.gmra.mrb[0].mxu0 %v2504
    %v2580 = vpop.f32.mrb[0].mxu0
    %v2581 = vadd.f32 %v1662, %v2580
    %v2582 = vpop.f32.mrb[0].mxu0
    %v2583 = vpop.f32.mrb[0].mxu0
    %v2584 = vpop.f32.mrb[0].mxu0
    %2585 = vdwg.mxu0
    %v2586 = vadd.f32 %v1573, %v2540
    %v2587 = vsub.f32 0.0, %v2586
    %v2588 = vmul.f32 %v2587, 1.442695
    %v2589 = vpow.pop %v2588
    %v2590 = vadd.f32 %v2589, 1.0
    %v2591 = vrcp.pop %v2590
    %v2592 = vadd.f32 %v1575, %v2542
    %v2593 = vsub.f32 0.0, %v2592
    %v2594 = vmul.f32 %v2593, 1.442695
    %v2595 = vpow.pop %v2594
    %v2596 = vadd.f32 %v2595, 1.0
    %v2597 = vrcp.pop %v2596
    %v2598 = vmul.f32 %v2591, %v2581
    %v2599 = vadd.f32 %v1614, %v2598
    %v2600 = vtanh.pop %v2599
    %v2601 = vsub.f32 1.0, %v2597
    %v2602 = vmul.f32 %v2601, %v2600
    %v2603 = vmul.f32 %v2597, %v2502
    %v2604 = vadd.f32 %v2602, %v2603
    %2605 = vst [vmem:[#allocation2 + $0xe] sm:$0x3] %v2604
    %v2606 = vpack.c.bf16 %v2604, %v2604
    %2607 = vmatprep.subr.bf16.mxu0 %v1744
    %2608 = vmatpush1.bf16.msra.mxu0 %v1743
    %2609 = vmatprep.subr.bf16.mxu0 %v1747
    %2610 = vmatpush1.bf16.msra.mxu0 %v1746
    %2611 = vmatprep.subr.bf16.mxu0 %v1750
    %2612 = vmatpush1.bf16.msra.mxu0 %v1749
    %2613 = vmatprep.subr.bf16.mxu0 %v1753
    %2614 = vmatpush1.bf16.msra.mxu0 %v1752
    %2615 = vmatprep.subr.bf16.mxu0 %v1756
    %2616 = vmatpush1.bf16.msra.mxu0 %v1755
    %2617 = vmatprep.subr.bf16.mxu0 %v1759
    %2618 = vmatpush1.bf16.msra.mxu0 %v1758
    %2619 = vmatprep.subr.bf16.mxu0 %v1762
    %2620 = vmatpush1.bf16.msra.mxu0 %v1761
    %2621 = vmatprep.subr.bf16.mxu0 %v1765
    %2622 = vmatpush1.bf16.msra.mxu0 %v1764
    %2623 = vmatprep.subr.bf16.mxu0 0
    %2624 = vmatpush1.bf16.msra.mxu0 0
    %2625 = vmatprep.subr.bf16.mxu0 0
    %2626 = vmatpush1.bf16.msra.mxu0 0
    %2627 = vmatprep.subr.bf16.mxu0 0
    %2628 = vmatpush1.bf16.msra.mxu0 0
    %2629 = vmatprep.subr.bf16.mxu0 0
    %2630 = vmatpush1.bf16.msra.mxu0 0
    %2631 = vmatprep.subr.bf16.mxu0 0
    %2632 = vmatpush1.bf16.msra.mxu0 0
    %2633 = vmatprep.subr.bf16.mxu0 0
    %2634 = vmatpush1.bf16.msra.mxu0 0
    %2635 = vmatprep.subr.bf16.mxu0 0
    %2636 = vmatpush1.bf16.msra.mxu0 0
    %2637 = vmatprep.subr.bf16.mxu0 0
    %2638 = vmatpush1.bf16.msra.mxu0 0
    %2639 = vmatprep.mubr.bf16.mxu0 0
    %2640 = vmatmul.mubr.bf16.gmra.mrb[0].mxu0 %v2606
    %v2641 = vpop.f32.mrb[0].mxu0
    %v2642 = vadd.f32 %v1654, %v2641
    %v2643 = vpop.f32.mrb[0].mxu0
    %v2644 = vadd.f32 %v1658, %v2643
    %v2645 = vpop.f32.mrb[0].mxu0
    %v2646 = vpop.f32.mrb[0].mxu0
    %2647 = vdwg.mxu0
    %2648 = vmatprep.subr.bf16.mxu0 0
    %2649 = vmatpush1.bf16.msra.mxu0 %v1745
    %2650 = vmatprep.subr.bf16.mxu0 0
    %2651 = vmatpush1.bf16.msra.mxu0 %v1748
    %2652 = vmatprep.subr.bf16.mxu0 0
    %2653 = vmatpush1.bf16.msra.mxu0 %v1751
    %2654 = vmatprep.subr.bf16.mxu0 0
    %2655 = vmatpush1.bf16.msra.mxu0 %v1754
    %2656 = vmatprep.subr.bf16.mxu0 0
    %2657 = vmatpush1.bf16.msra.mxu0 %v1757
    %2658 = vmatprep.subr.bf16.mxu0 0
    %2659 = vmatpush1.bf16.msra.mxu0 %v1760
    %2660 = vmatprep.subr.bf16.mxu0 0
    %2661 = vmatpush1.bf16.msra.mxu0 %v1763
    %2662 = vmatprep.subr.bf16.mxu0 0
    %2663 = vmatpush1.bf16.msra.mxu0 %v1766
    %2664 = vmatprep.subr.bf16.mxu0 0
    %2665 = vmatpush1.bf16.msra.mxu0 0
    %2666 = vmatprep.subr.bf16.mxu0 0
    %2667 = vmatpush1.bf16.msra.mxu0 0
    %2668 = vmatprep.subr.bf16.mxu0 0
    %2669 = vmatpush1.bf16.msra.mxu0 0
    %2670 = vmatprep.subr.bf16.mxu0 0
    %2671 = vmatpush1.bf16.msra.mxu0 0
    %2672 = vmatprep.subr.bf16.mxu0 0
    %2673 = vmatpush1.bf16.msra.mxu0 0
    %2674 = vmatprep.subr.bf16.mxu0 0
    %2675 = vmatpush1.bf16.msra.mxu0 0
    %2676 = vmatprep.subr.bf16.mxu0 0
    %2677 = vmatpush1.bf16.msra.mxu0 0
    %2678 = vmatprep.subr.bf16.mxu0 0
    %2679 = vmatpush1.bf16.msra.mxu0 0
    %2680 = vmatprep.mubr.bf16.mxu0 0
    %2681 = vmatmul.mubr.bf16.gmra.mrb[0].mxu0 %v2606
    %v2682 = vpop.f32.mrb[0].mxu0
    %v2683 = vadd.f32 %v1662, %v2682
    %v2684 = vpop.f32.mrb[0].mxu0
    %v2685 = vpop.f32.mrb[0].mxu0
    %v2686 = vpop.f32.mrb[0].mxu0
    %2687 = vdwg.mxu0
    %v2688 = vadd.f32 %v1573, %v2642
    %v2689 = vsub.f32 0.0, %v2688
    %v2690 = vmul.f32 %v2689, 1.442695
    %v2691 = vpow.pop %v2690
    %v2692 = vadd.f32 %v2691, 1.0
    %v2693 = vrcp.pop %v2692
    %v2694 = vadd.f32 %v1575, %v2644
    %v2695 = vsub.f32 0.0, %v2694
    %v2696 = vmul.f32 %v2695, 1.442695
    %v2697 = vpow.pop %v2696
    %v2698 = vadd.f32 %v2697, 1.0
    %v2699 = vrcp.pop %v2698
    %v2700 = vmul.f32 %v2693, %v2683
    %v2701 = vadd.f32 %v1614, %v2700
    %v2702 = vtanh.pop %v2701
    %v2703 = vsub.f32 1.0, %v2699
    %v2704 = vmul.f32 %v2703, %v2702
    %v2705 = vmul.f32 %v2699, %v2604
    %v2706 = vadd.f32 %v2704, %v2705
    %2707 = vst [vmem:[#allocation2 + $0x10] sm:$0x3] %v2706
    %v2708 = vpack.c.bf16 %v2706, %v2706
    %2709 = vmatprep.subr.bf16.mxu0 %v1744
    %2710 = vmatpush1.bf16.msra.mxu0 %v1743
    %2711 = vmatprep.subr.bf16.mxu0 %v1747
    %2712 = vmatpush1.bf16.msra.mxu0 %v1746
    %2713 = vmatprep.subr.bf16.mxu0 %v1750
    %2714 = vmatpush1.bf16.msra.mxu0 %v1749
    %2715 = vmatprep.subr.bf16.mxu0 %v1753
    %2716 = vmatpush1.bf16.msra.mxu0 %v1752
    %2717 = vmatprep.subr.bf16.mxu0 %v1756
    %2718 = vmatpush1.bf16.msra.mxu0 %v1755
    %2719 = vmatprep.subr.bf16.mxu0 %v1759
    %2720 = vmatpush1.bf16.msra.mxu0 %v1758
    %2721 = vmatprep.subr.bf16.mxu0 %v1762
    %2722 = vmatpush1.bf16.msra.mxu0 %v1761
    %2723 = vmatprep.subr.bf16.mxu0 %v1765
    %2724 = vmatpush1.bf16.msra.mxu0 %v1764
    %2725 = vmatprep.subr.bf16.mxu0 0
    %2726 = vmatpush1.bf16.msra.mxu0 0
    %2727 = vmatprep.subr.bf16.mxu0 0
    %2728 = vmatpush1.bf16.msra.mxu0 0
    %2729 = vmatprep.subr.bf16.mxu0 0
    %2730 = vmatpush1.bf16.msra.mxu0 0
    %2731 = vmatprep.subr.bf16.mxu0 0
    %2732 = vmatpush1.bf16.msra.mxu0 0
    %2733 = vmatprep.subr.bf16.mxu0 0
    %2734 = vmatpush1.bf16.msra.mxu0 0
    %2735 = vmatprep.subr.bf16.mxu0 0
    %2736 = vmatpush1.bf16.msra.mxu0 0
    %2737 = vmatprep.subr.bf16.mxu0 0
    %2738 = vmatpush1.bf16.msra.mxu0 0
    %2739 = vmatprep.subr.bf16.mxu0 0
    %2740 = vmatpush1.bf16.msra.mxu0 0
    %2741 = vmatprep.mubr.bf16.mxu0 0
    %2742 = vmatmul.mubr.bf16.gmra.mrb[0].mxu0 %v2708
    %v2743 = vpop.f32.mrb[0].mxu0
    %v2744 = vadd.f32 %v1654, %v2743
    %v2745 = vpop.f32.mrb[0].mxu0
    %v2746 = vadd.f32 %v1658, %v2745
    %v2747 = vpop.f32.mrb[0].mxu0
    %v2748 = vpop.f32.mrb[0].mxu0
    %2749 = vdwg.mxu0
    %2750 = vmatprep.subr.bf16.mxu0 0
    %2751 = vmatpush1.bf16.msra.mxu0 %v1745
    %2752 = vmatprep.subr.bf16.mxu0 0
    %2753 = vmatpush1.bf16.msra.mxu0 %v1748
    %2754 = vmatprep.subr.bf16.mxu0 0
    %2755 = vmatpush1.bf16.msra.mxu0 %v1751
    %2756 = vmatprep.subr.bf16.mxu0 0
    %2757 = vmatpush1.bf16.msra.mxu0 %v1754
    %2758 = vmatprep.subr.bf16.mxu0 0
    %2759 = vmatpush1.bf16.msra.mxu0 %v1757
    %2760 = vmatprep.subr.bf16.mxu0 0
    %2761 = vmatpush1.bf16.msra.mxu0 %v1760
    %2762 = vmatprep.subr.bf16.mxu0 0
    %2763 = vmatpush1.bf16.msra.mxu0 %v1763
    %2764 = vmatprep.subr.bf16.mxu0 0
    %2765 = vmatpush1.bf16.msra.mxu0 %v1766
    %2766 = vmatprep.subr.bf16.mxu0 0
    %2767 = vmatpush1.bf16.msra.mxu0 0
    %2768 = vmatprep.subr.bf16.mxu0 0
    %2769 = vmatpush1.bf16.msra.mxu0 0
    %2770 = vmatprep.subr.bf16.mxu0 0
    %2771 = vmatpush1.bf16.msra.mxu0 0
    %2772 = vmatprep.subr.bf16.mxu0 0
    %2773 = vmatpush1.bf16.msra.mxu0 0
    %2774 = vmatprep.subr.bf16.mxu0 0
    %2775 = vmatpush1.bf16.msra.mxu0 0
    %2776 = vmatprep.subr.bf16.mxu0 0
    %2777 = vmatpush1.bf16.msra.mxu0 0
    %2778 = vmatprep.subr.bf16.mxu0 0
    %2779 = vmatpush1.bf16.msra.mxu0 0
    %2780 = vmatprep.subr.bf16.mxu0 0
    %2781 = vmatpush1.bf16.msra.mxu0 0
    %2782 = vmatprep.mubr.bf16.mxu0 0
    %2783 = vmatmul.mubr.bf16.gmra.mrb[0].mxu0 %v2708
    %v2784 = vpop.f32.mrb[0].mxu0
    %v2785 = vadd.f32 %v1662, %v2784
    %v2786 = vpop.f32.mrb[0].mxu0
    %v2787 = vpop.f32.mrb[0].mxu0
    %v2788 = vpop.f32.mrb[0].mxu0
    %2789 = vdwg.mxu0
    %v2790 = vadd.f32 %v1573, %v2744
    %v2791 = vsub.f32 0.0, %v2790
    %v2792 = vmul.f32 %v2791, 1.442695
    %v2793 = vpow.pop %v2792
    %v2794 = vadd.f32 %v2793, 1.0
    %v2795 = vrcp.pop %v2794
    %v2796 = vadd.f32 %v1575, %v2746
    %v2797 = vsub.f32 0.0, %v2796
    %v2798 = vmul.f32 %v2797, 1.442695
    %v2799 = vpow.pop %v2798
    %v2800 = vadd.f32 %v2799, 1.0
    %v2801 = vrcp.pop %v2800
    %v2802 = vmul.f32 %v2795, %v2785
    %v2803 = vadd.f32 %v1614, %v2802
    %v2804 = vtanh.pop %v2803
    %v2805 = vsub.f32 1.0, %v2801
    %v2806 = vmul.f32 %v2805, %v2804
    %v2807 = vmul.f32 %v2801, %v2706
    %v2808 = vadd.f32 %v2806, %v2807
    %2809 = vst [vmem:[#allocation2 + $0x12] sm:$0x3] %v2808
    %v2810 = vpack.c.bf16 %v2808, %v2808
    %2811 = vmatprep.subr.bf16.mxu0 %v1744
    %2812 = vmatpush1.bf16.msra.mxu0 %v1743
    %2813 = vmatprep.subr.bf16.mxu0 %v1747
    %2814 = vmatpush1.bf16.msra.mxu0 %v1746
    %2815 = vmatprep.subr.bf16.mxu0 %v1750
    %2816 = vmatpush1.bf16.msra.mxu0 %v1749
    %2817 = vmatprep.subr.bf16.mxu0 %v1753
    %2818 = vmatpush1.bf16.msra.mxu0 %v1752
    %2819 = vmatprep.subr.bf16.mxu0 %v1756
    %2820 = vmatpush1.bf16.msra.mxu0 %v1755
    %2821 = vmatprep.subr.bf16.mxu0 %v1759
    %2822 = vmatpush1.bf16.msra.mxu0 %v1758
    %2823 = vmatprep.subr.bf16.mxu0 %v1762
    %2824 = vmatpush1.bf16.msra.mxu0 %v1761
    %2825 = vmatprep.subr.bf16.mxu0 %v1765
    %2826 = vmatpush1.bf16.msra.mxu0 %v1764
    %2827 = vmatprep.subr.bf16.mxu0 0
    %2828 = vmatpush1.bf16.msra.mxu0 0
    %2829 = vmatprep.subr.bf16.mxu0 0
    %2830 = vmatpush1.bf16.msra.mxu0 0
    %2831 = vmatprep.subr.bf16.mxu0 0
    %2832 = vmatpush1.bf16.msra.mxu0 0
    %2833 = vmatprep.subr.bf16.mxu0 0
    %2834 = vmatpush1.bf16.msra.mxu0 0
    %2835 = vmatprep.subr.bf16.mxu0 0
    %2836 = vmatpush1.bf16.msra.mxu0 0
    %2837 = vmatprep.subr.bf16.mxu0 0
    %2838 = vmatpush1.bf16.msra.mxu0 0
    %2839 = vmatprep.subr.bf16.mxu0 0
    %2840 = vmatpush1.bf16.msra.mxu0 0
    %2841 = vmatprep.subr.bf16.mxu0 0
    %2842 = vmatpush1.bf16.msra.mxu0 0
    %2843 = vmatprep.mubr.bf16.mxu0 0
    %2844 = vmatmul.mubr.bf16.gmra.mrb[0].mxu0 %v2810
    %v2845 = vpop.f32.mrb[0].mxu0
    %v2846 = vadd.f32 %v1654, %v2845
    %v2847 = vpop.f32.mrb[0].mxu0
    %v2848 = vadd.f32 %v1658, %v2847
    %v2849 = vpop.f32.mrb[0].mxu0
    %v2850 = vpop.f32.mrb[0].mxu0
    %2851 = vdwg.mxu0
    %2852 = vmatprep.subr.bf16.mxu0 0
    %2853 = vmatpush1.bf16.msra.mxu0 %v1745
    %2854 = vmatprep.subr.bf16.mxu0 0
    %2855 = vmatpush1.bf16.msra.mxu0 %v1748
    %2856 = vmatprep.subr.bf16.mxu0 0
    %2857 = vmatpush1.bf16.msra.mxu0 %v1751
    %2858 = vmatprep.subr.bf16.mxu0 0
    %2859 = vmatpush1.bf16.msra.mxu0 %v1754
    %2860 = vmatprep.subr.bf16.mxu0 0
    %2861 = vmatpush1.bf16.msra.mxu0 %v1757
    %2862 = vmatprep.subr.bf16.mxu0 0
    %2863 = vmatpush1.bf16.msra.mxu0 %v1760
    %2864 = vmatprep.subr.bf16.mxu0 0
    %2865 = vmatpush1.bf16.msra.mxu0 %v1763
    %2866 = vmatprep.subr.bf16.mxu0 0
    %2867 = vmatpush1.bf16.msra.mxu0 %v1766
    %2868 = vmatprep.subr.bf16.mxu0 0
    %2869 = vmatpush1.bf16.msra.mxu0 0
    %2870 = vmatprep.subr.bf16.mxu0 0
    %2871 = vmatpush1.bf16.msra.mxu0 0
    %2872 = vmatprep.subr.bf16.mxu0 0
    %2873 = vmatpush1.bf16.msra.mxu0 0
    %2874 = vmatprep.subr.bf16.mxu0 0
    %2875 = vmatpush1.bf16.msra.mxu0 0
    %2876 = vmatprep.subr.bf16.mxu0 0
    %2877 = vmatpush1.bf16.msra.mxu0 0
    %2878 = vmatprep.subr.bf16.mxu0 0
    %2879 = vmatpush1.bf16.msra.mxu0 0
    %2880 = vmatprep.subr.bf16.mxu0 0
    %2881 = vmatpush1.bf16.msra.mxu0 0
    %2882 = vmatprep.subr.bf16.mxu0 0
    %2883 = vmatpush1.bf16.msra.mxu0 0
    %2884 = vmatprep.mubr.bf16.mxu0 0
    %2885 = vmatmul.mubr.bf16.gmra.mrb[0].mxu0 %v2810
    %v2886 = vpop.f32.mrb[0].mxu0
    %v2887 = vadd.f32 %v1662, %v2886
    %v2888 = vpop.f32.mrb[0].mxu0
    %v2889 = vpop.f32.mrb[0].mxu0
    %v2890 = vpop.f32.mrb[0].mxu0
    %2891 = vdwg.mxu0
    %v2892 = vadd.f32 %v1573, %v2846
    %v2893 = vsub.f32 0.0, %v2892
    %v2894 = vmul.f32 %v2893, 1.442695
    %v2895 = vpow.pop %v2894
    %v2896 = vadd.f32 %v2895, 1.0
    %v2897 = vrcp.pop %v2896
    %v2898 = vadd.f32 %v1575, %v2848
    %v2899 = vsub.f32 0.0, %v2898
    %v2900 = vmul.f32 %v2899, 1.442695
    %v2901 = vpow.pop %v2900
    %v2902 = vadd.f32 %v2901, 1.0
    %v2903 = vrcp.pop %v2902
    %v2904 = vmul.f32 %v2897, %v2887
    %v2905 = vadd.f32 %v1614, %v2904
    %v2906 = vtanh.pop %v2905
    %v2907 = vsub.f32 1.0, %v2903
    %v2908 = vmul.f32 %v2907, %v2906
    %v2909 = vmul.f32 %v2903, %v2808
    %v2910 = vadd.f32 %v2908, %v2909
    %2911 = vst [vmem:[#allocation2 + $0x14] sm:$0x3] %v2910
    %v2912 = vpack.c.bf16 %v2910, %v2910
    %2913 = vmatprep.subr.bf16.mxu0 %v1744
    %2914 = vmatpush1.bf16.msra.mxu0 %v1743
    %2915 = vmatprep.subr.bf16.mxu0 %v1747
    %2916 = vmatpush1.bf16.msra.mxu0 %v1746
    %2917 = vmatprep.subr.bf16.mxu0 %v1750
    %2918 = vmatpush1.bf16.msra.mxu0 %v1749
    %2919 = vmatprep.subr.bf16.mxu0 %v1753
    %2920 = vmatpush1.bf16.msra.mxu0 %v1752
    %2921 = vmatprep.subr.bf16.mxu0 %v1756
    %2922 = vmatpush1.bf16.msra.mxu0 %v1755
    %2923 = vmatprep.subr.bf16.mxu0 %v1759
    %2924 = vmatpush1.bf16.msra.mxu0 %v1758
    %2925 = vmatprep.subr.bf16.mxu0 %v1762
    %2926 = vmatpush1.bf16.msra.mxu0 %v1761
    %2927 = vmatprep.subr.bf16.mxu0 %v1765
    %2928 = vmatpush1.bf16.msra.mxu0 %v1764
    %2929 = vmatprep.subr.bf16.mxu0 0
    %2930 = vmatpush1.bf16.msra.mxu0 0
    %2931 = vmatprep.subr.bf16.mxu0 0
    %2932 = vmatpush1.bf16.msra.mxu0 0
    %2933 = vmatprep.subr.bf16.mxu0 0
    %2934 = vmatpush1.bf16.msra.mxu0 0
    %2935 = vmatprep.subr.bf16.mxu0 0
    %2936 = vmatpush1.bf16.msra.mxu0 0
    %2937 = vmatprep.subr.bf16.mxu0 0
    %2938 = vmatpush1.bf16.msra.mxu0 0
    %2939 = vmatprep.subr.bf16.mxu0 0
    %2940 = vmatpush1.bf16.msra.mxu0 0
    %2941 = vmatprep.subr.bf16.mxu0 0
    %2942 = vmatpush1.bf16.msra.mxu0 0
    %2943 = vmatprep.subr.bf16.mxu0 0
    %2944 = vmatpush1.bf16.msra.mxu0 0
    %2945 = vmatprep.mubr.bf16.mxu0 0
    %2946 = vmatmul.mubr.bf16.gmra.mrb[0].mxu0 %v2912
    %v2947 = vpop.f32.mrb[0].mxu0
    %v2948 = vadd.f32 %v1654, %v2947
    %v2949 = vpop.f32.mrb[0].mxu0
    %v2950 = vadd.f32 %v1658, %v2949
    %v2951 = vpop.f32.mrb[0].mxu0
    %v2952 = vpop.f32.mrb[0].mxu0
    %2953 = vdwg.mxu0
    %2954 = vmatprep.subr.bf16.mxu0 0
    %2955 = vmatpush1.bf16.msra.mxu0 %v1745
    %2956 = vmatprep.subr.bf16.mxu0 0
    %2957 = vmatpush1.bf16.msra.mxu0 %v1748
    %2958 = vmatprep.subr.bf16.mxu0 0
    %2959 = vmatpush1.bf16.msra.mxu0 %v1751
    %2960 = vmatprep.subr.bf16.mxu0 0
    %2961 = vmatpush1.bf16.msra.mxu0 %v1754
    %2962 = vmatprep.subr.bf16.mxu0 0
    %2963 = vmatpush1.bf16.msra.mxu0 %v1757
    %2964 = vmatprep.subr.bf16.mxu0 0
    %2965 = vmatpush1.bf16.msra.mxu0 %v1760
    %2966 = vmatprep.subr.bf16.mxu0 0
    %2967 = vmatpush1.bf16.msra.mxu0 %v1763
    %2968 = vmatprep.subr.bf16.mxu0 0
    %2969 = vmatpush1.bf16.msra.mxu0 %v1766
    %2970 = vmatprep.subr.bf16.mxu0 0
    %2971 = vmatpush1.bf16.msra.mxu0 0
    %2972 = vmatprep.subr.bf16.mxu0 0
    %2973 = vmatpush1.bf16.msra.mxu0 0
    %2974 = vmatprep.subr.bf16.mxu0 0
    %2975 = vmatpush1.bf16.msra.mxu0 0
    %2976 = vmatprep.subr.bf16.mxu0 0
    %2977 = vmatpush1.bf16.msra.mxu0 0
    %2978 = vmatprep.subr.bf16.mxu0 0
    %2979 = vmatpush1.bf16.msra.mxu0 0
    %2980 = vmatprep.subr.bf16.mxu0 0
    %2981 = vmatpush1.bf16.msra.mxu0 0
    %2982 = vmatprep.subr.bf16.mxu0 0
    %2983 = vmatpush1.bf16.msra.mxu0 0
    %2984 = vmatprep.subr.bf16.mxu0 0
    %2985 = vmatpush1.bf16.msra.mxu0 0
    %2986 = vmatprep.mubr.bf16.mxu0 0
    %2987 = vmatmul.mubr.bf16.gmra.mrb[0].mxu0 %v2912
    %v2988 = vpop.f32.mrb[0].mxu0
    %v2989 = vadd.f32 %v1662, %v2988
    %v2990 = vpop.f32.mrb[0].mxu0
    %v2991 = vpop.f32.mrb[0].mxu0
    %v2992 = vpop.f32.mrb[0].mxu0
    %2993 = vdwg.mxu0
    %v2994 = vadd.f32 %v1573, %v2948
    %v2995 = vsub.f32 0.0, %v2994
    %v2996 = vmul.f32 %v2995, 1.442695
    %v2997 = vpow.pop %v2996
    %v2998 = vadd.f32 %v2997, 1.0
    %v2999 = vrcp.pop %v2998
    %v3000 = vadd.f32 %v1575, %v2950
    %v3001 = vsub.f32 0.0, %v3000
    %v3002 = vmul.f32 %v3001, 1.442695
    %v3003 = vpow.pop %v3002
    %v3004 = vadd.f32 %v3003, 1.0
    %v3005 = vrcp.pop %v3004
    %v3006 = vmul.f32 %v2999, %v2989
    %v3007 = vadd.f32 %v1614, %v3006
    %v3008 = vtanh.pop %v3007
    %v3009 = vsub.f32 1.0, %v3005
    %v3010 = vmul.f32 %v3009, %v3008
    %v3011 = vmul.f32 %v3005, %v2910
    %v3012 = vadd.f32 %v3010, %v3011
    %3013 = vst [vmem:[#allocation2 + $0x16] sm:$0x3] %v3012
    %v3014 = vpack.c.bf16 %v3012, %v3012
    %3015 = vmatprep.subr.bf16.mxu0 %v1744
    %3016 = vmatpush1.bf16.msra.mxu0 %v1743
    %3017 = vmatprep.subr.bf16.mxu0 %v1747
    %3018 = vmatpush1.bf16.msra.mxu0 %v1746
    %3019 = vmatprep.subr.bf16.mxu0 %v1750
    %3020 = vmatpush1.bf16.msra.mxu0 %v1749
    %3021 = vmatprep.subr.bf16.mxu0 %v1753
    %3022 = vmatpush1.bf16.msra.mxu0 %v1752
    %3023 = vmatprep.subr.bf16.mxu0 %v1756
    %3024 = vmatpush1.bf16.msra.mxu0 %v1755
    %3025 = vmatprep.subr.bf16.mxu0 %v1759
    %3026 = vmatpush1.bf16.msra.mxu0 %v1758
    %3027 = vmatprep.subr.bf16.mxu0 %v1762
    %3028 = vmatpush1.bf16.msra.mxu0 %v1761
    %3029 = vmatprep.subr.bf16.mxu0 %v1765
    %3030 = vmatpush1.bf16.msra.mxu0 %v1764
    %3031 = vmatprep.subr.bf16.mxu0 0
    %3032 = vmatpush1.bf16.msra.mxu0 0
    %3033 = vmatprep.subr.bf16.mxu0 0
    %3034 = vmatpush1.bf16.msra.mxu0 0
    %3035 = vmatprep.subr.bf16.mxu0 0
    %3036 = vmatpush1.bf16.msra.mxu0 0
    %3037 = vmatprep.subr.bf16.mxu0 0
    %3038 = vmatpush1.bf16.msra.mxu0 0
    %3039 = vmatprep.subr.bf16.mxu0 0
    %3040 = vmatpush1.bf16.msra.mxu0 0
    %3041 = vmatprep.subr.bf16.mxu0 0
    %3042 = vmatpush1.bf16.msra.mxu0 0
    %3043 = vmatprep.subr.bf16.mxu0 0
    %3044 = vmatpush1.bf16.msra.mxu0 0
    %3045 = vmatprep.subr.bf16.mxu0 0
    %3046 = vmatpush1.bf16.msra.mxu0 0
    %3047 = vmatprep.mubr.bf16.mxu0 0
    %3048 = vmatmul.mubr.bf16.gmra.mrb[0].mxu0 %v3014
    %v3049 = vpop.f32.mrb[0].mxu0
    %v3050 = vadd.f32 %v1654, %v3049
    %v3051 = vpop.f32.mrb[0].mxu0
    %v3052 = vadd.f32 %v1658, %v3051
    %v3053 = vpop.f32.mrb[0].mxu0
    %v3054 = vpop.f32.mrb[0].mxu0
    %3055 = vdwg.mxu0
    %3056 = vmatprep.subr.bf16.mxu0 0
    %3057 = vmatpush1.bf16.msra.mxu0 %v1745
    %3058 = vmatprep.subr.bf16.mxu0 0
    %3059 = vmatpush1.bf16.msra.mxu0 %v1748
    %3060 = vmatprep.subr.bf16.mxu0 0
    %3061 = vmatpush1.bf16.msra.mxu0 %v1751
    %3062 = vmatprep.subr.bf16.mxu0 0
    %3063 = vmatpush1.bf16.msra.mxu0 %v1754
    %3064 = vmatprep.subr.bf16.mxu0 0
    %3065 = vmatpush1.bf16.msra.mxu0 %v1757
    %3066 = vmatprep.subr.bf16.mxu0 0
    %3067 = vmatpush1.bf16.msra.mxu0 %v1760
    %3068 = vmatprep.subr.bf16.mxu0 0
    %3069 = vmatpush1.bf16.msra.mxu0 %v1763
    %3070 = vmatprep.subr.bf16.mxu0 0
    %3071 = vmatpush1.bf16.msra.mxu0 %v1766
    %3072 = vmatprep.subr.bf16.mxu0 0
    %3073 = vmatpush1.bf16.msra.mxu0 0
    %3074 = vmatprep.subr.bf16.mxu0 0
    %3075 = vmatpush1.bf16.msra.mxu0 0
    %3076 = vmatprep.subr.bf16.mxu0 0
    %3077 = vmatpush1.bf16.msra.mxu0 0
    %3078 = vmatprep.subr.bf16.mxu0 0
    %3079 = vmatpush1.bf16.msra.mxu0 0
    %3080 = vmatprep.subr.bf16.mxu0 0
    %3081 = vmatpush1.bf16.msra.mxu0 0
    %3082 = vmatprep.subr.bf16.mxu0 0
    %3083 = vmatpush1.bf16.msra.mxu0 0
    %3084 = vmatprep.subr.bf16.mxu0 0
    %3085 = vmatpush1.bf16.msra.mxu0 0
    %3086 = vmatprep.subr.bf16.mxu0 0
    %3087 = vmatpush1.bf16.msra.mxu0 0
    %3088 = vmatprep.mubr.bf16.mxu0 0
    %3089 = vmatmul.mubr.bf16.gmra.mrb[0].mxu0 %v3014
    %v3090 = vpop.f32.mrb[0].mxu0
    %v3091 = vadd.f32 %v1662, %v3090
    %v3092 = vpop.f32.mrb[0].mxu0
    %v3093 = vpop.f32.mrb[0].mxu0
    %v3094 = vpop.f32.mrb[0].mxu0
    %3095 = vdwg.mxu0
    %v3096 = vadd.f32 %v1573, %v3050
    %v3097 = vsub.f32 0.0, %v3096
    %v3098 = vmul.f32 %v3097, 1.442695
    %v3099 = vpow.pop %v3098
    %v3100 = vadd.f32 %v3099, 1.0
    %v3101 = vrcp.pop %v3100
    %v3102 = vadd.f32 %v1575, %v3052
    %v3103 = vsub.f32 0.0, %v3102
    %v3104 = vmul.f32 %v3103, 1.442695
    %v3105 = vpow.pop %v3104
    %v3106 = vadd.f32 %v3105, 1.0
    %v3107 = vrcp.pop %v3106
    %v3108 = vmul.f32 %v3101, %v3091
    %v3109 = vadd.f32 %v1614, %v3108
    %v3110 = vtanh.pop %v3109
    %v3111 = vsub.f32 1.0, %v3107
    %v3112 = vmul.f32 %v3111, %v3110
    %v3113 = vmul.f32 %v3107, %v3012
    %v3114 = vadd.f32 %v3112, %v3113
    %3115 = vst [vmem:[#allocation2 + $0x18] sm:$0x3] %v3114
    %v3116 = vpack.c.bf16 %v3114, %v3114
    %3117 = vmatprep.subr.bf16.mxu0 %v1744
    %3118 = vmatpush1.bf16.msra.mxu0 %v1743
    %3119 = vmatprep.subr.bf16.mxu0 %v1747
    %3120 = vmatpush1.bf16.msra.mxu0 %v1746
    %3121 = vmatprep.subr.bf16.mxu0 %v1750
    %3122 = vmatpush1.bf16.msra.mxu0 %v1749
    %3123 = vmatprep.subr.bf16.mxu0 %v1753
    %3124 = vmatpush1.bf16.msra.mxu0 %v1752
    %3125 = vmatprep.subr.bf16.mxu0 %v1756
    %3126 = vmatpush1.bf16.msra.mxu0 %v1755
    %3127 = vmatprep.subr.bf16.mxu0 %v1759
    %3128 = vmatpush1.bf16.msra.mxu0 %v1758
    %3129 = vmatprep.subr.bf16.mxu0 %v1762
    %3130 = vmatpush1.bf16.msra.mxu0 %v1761
    %3131 = vmatprep.subr.bf16.mxu0 %v1765
    %3132 = vmatpush1.bf16.msra.mxu0 %v1764
    %3133 = vmatprep.subr.bf16.mxu0 0
    %3134 = vmatpush1.bf16.msra.mxu0 0
    %3135 = vmatprep.subr.bf16.mxu0 0
    %3136 = vmatpush1.bf16.msra.mxu0 0
    %3137 = vmatprep.subr.bf16.mxu0 0
    %3138 = vmatpush1.bf16.msra.mxu0 0
    %3139 = vmatprep.subr.bf16.mxu0 0
    %3140 = vmatpush1.bf16.msra.mxu0 0
    %3141 = vmatprep.subr.bf16.mxu0 0
    %3142 = vmatpush1.bf16.msra.mxu0 0
    %3143 = vmatprep.subr.bf16.mxu0 0
    %3144 = vmatpush1.bf16.msra.mxu0 0
    %3145 = vmatprep.subr.bf16.mxu0 0
    %3146 = vmatpush1.bf16.msra.mxu0 0
    %3147 = vmatprep.subr.bf16.mxu0 0
    %3148 = vmatpush1.bf16.msra.mxu0 0
    %3149 = vmatprep.mubr.bf16.mxu0 0
    %3150 = vmatmul.mubr.bf16.gmra.mrb[0].mxu0 %v3116
    %v3151 = vpop.f32.mrb[0].mxu0
    %v3152 = vadd.f32 %v1654, %v3151
    %v3153 = vpop.f32.mrb[0].mxu0
    %v3154 = vadd.f32 %v1658, %v3153
    %v3155 = vpop.f32.mrb[0].mxu0
    %v3156 = vpop.f32.mrb[0].mxu0
    %3157 = vdwg.mxu0
    %3158 = vmatprep.subr.bf16.mxu0 0
    %3159 = vmatpush1.bf16.msra.mxu0 %v1745
    %3160 = vmatprep.subr.bf16.mxu0 0
    %3161 = vmatpush1.bf16.msra.mxu0 %v1748
    %3162 = vmatprep.subr.bf16.mxu0 0
    %3163 = vmatpush1.bf16.msra.mxu0 %v1751
    %3164 = vmatprep.subr.bf16.mxu0 0
    %3165 = vmatpush1.bf16.msra.mxu0 %v1754
    %3166 = vmatprep.subr.bf16.mxu0 0
    %3167 = vmatpush1.bf16.msra.mxu0 %v1757
    %3168 = vmatprep.subr.bf16.mxu0 0
    %3169 = vmatpush1.bf16.msra.mxu0 %v1760
    %3170 = vmatprep.subr.bf16.mxu0 0
    %3171 = vmatpush1.bf16.msra.mxu0 %v1763
    %3172 = vmatprep.subr.bf16.mxu0 0
    %3173 = vmatpush1.bf16.msra.mxu0 %v1766
    %3174 = vmatprep.subr.bf16.mxu0 0
    %3175 = vmatpush1.bf16.msra.mxu0 0
    %3176 = vmatprep.subr.bf16.mxu0 0
    %3177 = vmatpush1.bf16.msra.mxu0 0
    %3178 = vmatprep.subr.bf16.mxu0 0
    %3179 = vmatpush1.bf16.msra.mxu0 0
    %3180 = vmatprep.subr.bf16.mxu0 0
    %3181 = vmatpush1.bf16.msra.mxu0 0
    %3182 = vmatprep.subr.bf16.mxu0 0
    %3183 = vmatpush1.bf16.msra.mxu0 0
    %3184 = vmatprep.subr.bf16.mxu0 0
    %3185 = vmatpush1.bf16.msra.mxu0 0
    %3186 = vmatprep.subr.bf16.mxu0 0
    %3187 = vmatpush1.bf16.msra.mxu0 0
    %3188 = vmatprep.subr.bf16.mxu0 0
    %3189 = vmatpush1.bf16.msra.mxu0 0
    %3190 = vmatprep.mubr.bf16.mxu0 0
    %3191 = vmatmul.mubr.bf16.gmra.mrb[0].mxu0 %v3116
    %v3192 = vpop.f32.mrb[0].mxu0
    %v3193 = vadd.f32 %v1662, %v3192
    %v3194 = vpop.f32.mrb[0].mxu0
    %v3195 = vpop.f32.mrb[0].mxu0
    %v3196 = vpop.f32.mrb[0].mxu0
    %3197 = vdwg.mxu0
    %v3198 = vadd.f32 %v1573, %v3152
    %v3199 = vsub.f32 0.0, %v3198
    %v3200 = vmul.f32 %v3199, 1.442695
    %v3201 = vpow.pop %v3200
    %v3202 = vadd.f32 %v3201, 1.0
    %v3203 = vrcp.pop %v3202
    %v3204 = vadd.f32 %v1575, %v3154
    %v3205 = vsub.f32 0.0, %v3204
    %v3206 = vmul.f32 %v3205, 1.442695
    %v3207 = vpow.pop %v3206
    %v3208 = vadd.f32 %v3207, 1.0
    %v3209 = vrcp.pop %v3208
    %v3210 = vmul.f32 %v3203, %v3193
    %v3211 = vadd.f32 %v1614, %v3210
    %v3212 = vtanh.pop %v3211
    %v3213 = vsub.f32 1.0, %v3209
    %v3214 = vmul.f32 %v3213, %v3212
    %v3215 = vmul.f32 %v3209, %v3114
    %v3216 = vadd.f32 %v3214, %v3215
    %3217 = vst [vmem:[#allocation2 + $0x1a] sm:$0x3] %v3216
    %v3218 = vpack.c.bf16 %v3216, %v3216
    %3219 = vmatprep.subr.bf16.mxu0 %v1744
    %3220 = vmatpush1.bf16.msra.mxu0 %v1743
    %3221 = vmatprep.subr.bf16.mxu0 %v1747
    %3222 = vmatpush1.bf16.msra.mxu0 %v1746
    %3223 = vmatprep.subr.bf16.mxu0 %v1750
    %3224 = vmatpush1.bf16.msra.mxu0 %v1749
    %3225 = vmatprep.subr.bf16.mxu0 %v1753
    %3226 = vmatpush1.bf16.msra.mxu0 %v1752
    %3227 = vmatprep.subr.bf16.mxu0 %v1756
    %3228 = vmatpush1.bf16.msra.mxu0 %v1755
    %3229 = vmatprep.subr.bf16.mxu0 %v1759
    %3230 = vmatpush1.bf16.msra.mxu0 %v1758
    %3231 = vmatprep.subr.bf16.mxu0 %v1762
    %3232 = vmatpush1.bf16.msra.mxu0 %v1761
    %3233 = vmatprep.subr.bf16.mxu0 %v1765
    %3234 = vmatpush1.bf16.msra.mxu0 %v1764
    %3235 = vmatprep.subr.bf16.mxu0 0
    %3236 = vmatpush1.bf16.msra.mxu0 0
    %3237 = vmatprep.subr.bf16.mxu0 0
    %3238 = vmatpush1.bf16.msra.mxu0 0
    %3239 = vmatprep.subr.bf16.mxu0 0
    %3240 = vmatpush1.bf16.msra.mxu0 0
    %3241 = vmatprep.subr.bf16.mxu0 0
    %3242 = vmatpush1.bf16.msra.mxu0 0
    %3243 = vmatprep.subr.bf16.mxu0 0
    %3244 = vmatpush1.bf16.msra.mxu0 0
    %3245 = vmatprep.subr.bf16.mxu0 0
    %3246 = vmatpush1.bf16.msra.mxu0 0
    %3247 = vmatprep.subr.bf16.mxu0 0
    %3248 = vmatpush1.bf16.msra.mxu0 0
    %3249 = vmatprep.subr.bf16.mxu0 0
    %3250 = vmatpush1.bf16.msra.mxu0 0
    %3251 = vmatprep.mubr.bf16.mxu0 0
    %3252 = vmatmul.mubr.bf16.gmra.mrb[0].mxu0 %v3218
    %v3253 = vpop.f32.mrb[0].mxu0
    %v3254 = vadd.f32 %v1654, %v3253
    %v3255 = vpop.f32.mrb[0].mxu0
    %v3256 = vadd.f32 %v1658, %v3255
    %v3257 = vpop.f32.mrb[0].mxu0
    %v3258 = vpop.f32.mrb[0].mxu0
    %3259 = vdwg.mxu0
    %3260 = vmatprep.subr.bf16.mxu0 0
    %3261 = vmatpush1.bf16.msra.mxu0 %v1745
    %3262 = vmatprep.subr.bf16.mxu0 0
    %3263 = vmatpush1.bf16.msra.mxu0 %v1748
    %3264 = vmatprep.subr.bf16.mxu0 0
    %3265 = vmatpush1.bf16.msra.mxu0 %v1751
    %3266 = vmatprep.subr.bf16.mxu0 0
    %3267 = vmatpush1.bf16.msra.mxu0 %v1754
    %3268 = vmatprep.subr.bf16.mxu0 0
    %3269 = vmatpush1.bf16.msra.mxu0 %v1757
    %3270 = vmatprep.subr.bf16.mxu0 0
    %3271 = vmatpush1.bf16.msra.mxu0 %v1760
    %3272 = vmatprep.subr.bf16.mxu0 0
    %3273 = vmatpush1.bf16.msra.mxu0 %v1763
    %3274 = vmatprep.subr.bf16.mxu0 0
    %3275 = vmatpush1.bf16.msra.mxu0 %v1766
    %3276 = vmatprep.subr.bf16.mxu0 0
    %3277 = vmatpush1.bf16.msra.mxu0 0
    %3278 = vmatprep.subr.bf16.mxu0 0
    %3279 = vmatpush1.bf16.msra.mxu0 0
    %3280 = vmatprep.subr.bf16.mxu0 0
    %3281 = vmatpush1.bf16.msra.mxu0 0
    %3282 = vmatprep.subr.bf16.mxu0 0
    %3283 = vmatpush1.bf16.msra.mxu0 0
    %3284 = vmatprep.subr.bf16.mxu0 0
    %3285 = vmatpush1.bf16.msra.mxu0 0
    %3286 = vmatprep.subr.bf16.mxu0 0
    %3287 = vmatpush1.bf16.msra.mxu0 0
    %3288 = vmatprep.subr.bf16.mxu0 0
    %3289 = vmatpush1.bf16.msra.mxu0 0
    %3290 = vmatprep.subr.bf16.mxu0 0
    %3291 = vmatpush1.bf16.msra.mxu0 0
    %3292 = vmatprep.mubr.bf16.mxu0 0
    %3293 = vmatmul.mubr.bf16.gmra.mrb[0].mxu0 %v3218
    %v3294 = vpop.f32.mrb[0].mxu0
    %v3295 = vadd.f32 %v1662, %v3294
    %v3296 = vpop.f32.mrb[0].mxu0
    %v3297 = vpop.f32.mrb[0].mxu0
    %v3298 = vpop.f32.mrb[0].mxu0
    %3299 = vdwg.mxu0
    %v3300 = vadd.f32 %v1573, %v3254
    %v3301 = vsub.f32 0.0, %v3300
    %v3302 = vmul.f32 %v3301, 1.442695
    %v3303 = vpow.pop %v3302
    %v3304 = vadd.f32 %v3303, 1.0
    %v3305 = vrcp.pop %v3304
    %v3306 = vadd.f32 %v1575, %v3256
    %v3307 = vsub.f32 0.0, %v3306
    %v3308 = vmul.f32 %v3307, 1.442695
    %v3309 = vpow.pop %v3308
    %v3310 = vadd.f32 %v3309, 1.0
    %v3311 = vrcp.pop %v3310
    %v3312 = vmul.f32 %v3305, %v3295
    %v3313 = vadd.f32 %v1614, %v3312
    %v3314 = vtanh.pop %v3313
    %v3315 = vsub.f32 1.0, %v3311
    %v3316 = vmul.f32 %v3315, %v3314
    %v3317 = vmul.f32 %v3311, %v3216
    %v3318 = vadd.f32 %v3316, %v3317
    %3319 = vst [vmem:[#allocation2 + $0x1c] sm:$0x3] %v3318
    %v3320 = vld [vmem:[#allocation2] sm:$0xff]
    %v3321 = vld [vmem:[#allocation2 + $0x8] sm:$0xff]
    %v3322 = vld [vmem:[#allocation2 + $0x10] sm:$0xff]
    %v3323 = vld [vmem:[#allocation2 + $0x18] sm:$0x3f]
    %v3324 = vpack.c.bf16 %v3321, %v3320
    %v3325 = vpack.c.bf16 %v3323, %v3322
    %s3326 = scalar_lea.vmem [#allocation8], 192
    %v3327 = vld [vmem:[%s3326] sm:$0xff]
    %v3328 = vld [vmem:[%s3326 + $0x8] sm:$0xf]
    %v3329 = vld [vmem:[%s3326 + $0xc] sm:$0xff]
    %v3330 = vld [vmem:[%s3326 + $0x14] sm:$0xf]
    %v3331 = vld [vmem:[%s3326 + $0x18] sm:$0xff]
    %v3332 = vld [vmem:[%s3326 + $0x20] sm:$0xf]
    %v3333 = vld [vmem:[%s3326 + $0x24] sm:$0xff]
    %v3334 = vld [vmem:[%s3326 + $0x2c] sm:$0xf]
    %v3335 = vld [vmem:[%s3326 + $0x30] sm:$0xff]
    %v3336 = vld [vmem:[%s3326 + $0x38] sm:$0xf]
    %v3337 = vld [vmem:[%s3326 + $0x3c] sm:$0xff]
    %v3338 = vld [vmem:[%s3326 + $0x44] sm:$0xf]
    %v3339 = vld [vmem:[%s3326 + $0x48] sm:$0xff]
    %v3340 = vld [vmem:[%s3326 + $0x50] sm:$0xf]
    %v3341 = vld [vmem:[%s3326 + $0x54] sm:$0xff]
    %v3342 = vld [vmem:[%s3326 + $0x5c] sm:$0xf]
    %v3343 = vld [vmem:[%s3326 + $0x60] sm:$0xff]
    %v3344 = vld [vmem:[%s3326 + $0x68] sm:$0xf]
    %v3345 = vld [vmem:[%s3326 + $0x6c] sm:$0xff]
    %v3346 = vld [vmem:[%s3326 + $0x74] sm:$0xf]
    %v3347 = vld [vmem:[%s3326 + $0x78] sm:$0xff]
    %v3348 = vld [vmem:[%s3326 + $0x80] sm:$0xf]
    %v3349 = vld [vmem:[%s3326 + $0x84] sm:$0xff]
    %v3350 = vld [vmem:[%s3326 + $0x8c] sm:$0xf]
    %v3351 = vld [vmem:[%s3326 + $0x90] sm:$0xff]
    %v3352 = vld [vmem:[%s3326 + $0x98] sm:$0xf]
    %v3353 = vld [vmem:[%s3326 + $0x9c] sm:$0xff]
    %v3354 = vld [vmem:[%s3326 + $0xa4] sm:$0xf]
    %v3355 = vld [vmem:[%s3326 + $0xa8] sm:$0xff]
    %v3356 = vld [vmem:[%s3326 + $0xb0] sm:$0xf]
    %v3357 = vld [vmem:[%s3326 + $0xb4] sm:$0xff]
    %v3358 = vld [vmem:[%s3326 + $0xbc] sm:$0xf]
    %v3359 = vlaneseq
    %v3360 = vshrl.u32 %v3359, 7
    %v3361 = vsub.s32 1, %v3360
    %v3362 = vrot.slane %v1362, %v3361
    %v3363 = vlaneseq
    %v3364 = vshrl.u32 %v3363, 7
    %v3365 = vsub.s32 1, %v3364
    %v3366 = vrot.slane %v1363, %v3365
    %v3367 = vlaneseq
    %v3368 = vshrl.u32 %v3367, 7
    %v3369 = vsub.s32 1, %v3368
    %v3370 = vrot.slane %v1364, %v3369
    %v3403 = vunpack.c.l.b16 %v3327
    %v3404 = vunpack.c.h.b16 %v3327
    %v3405 = vunpack.c.l.b16 %v3328
    %v3406 = vunpack.c.l.b16 %v3329
    %v3407 = vunpack.c.h.b16 %v3329
    %v3408 = vunpack.c.l.b16 %v3330
    %v3409 = vunpack.c.l.b16 %v3331
    %v3410 = vunpack.c.h.b16 %v3331
    %v3411 = vunpack.c.l.b16 %v3332
    %v3412 = vunpack.c.l.b16 %v3333
    %v3413 = vunpack.c.h.b16 %v3333
    %v3414 = vunpack.c.l.b16 %v3334
    %v3415 = vunpack.c.l.b16 %v3335
    %v3416 = vunpack.c.h.b16 %v3335
    %v3417 = vunpack.c.l.b16 %v3336
    %v3418 = vunpack.c.l.b16 %v3337
    %v3419 = vunpack.c.h.b16 %v3337
    %v3420 = vunpack.c.l.b16 %v3338
    %v3421 = vunpack.c.l.b16 %v3339
    %v3422 = vunpack.c.h.b16 %v3339
    %v3423 = vunpack.c.l.b16 %v3340
    %v3424 = vunpack.c.l.b16 %v3341
    %v3425 = vunpack.c.h.b16 %v3341
    %v3426 = vunpack.c.l.b16 %v3342
    %v3427 = vunpack.c.l.b16 %v3343
    %v3428 = vunpack.c.h.b16 %v3343
    %v3429 = vunpack.c.l.b16 %v3344
    %v3430 = vunpack.c.l.b16 %v3345
    %v3431 = vunpack.c.h.b16 %v3345
    %v3432 = vunpack.c.l.b16 %v3346
    %v3433 = vunpack.c.l.b16 %v3347
    %v3434 = vunpack.c.h.b16 %v3347
    %v3435 = vunpack.c.l.b16 %v3348
    %v3436 = vunpack.c.l.b16 %v3349
    %v3437 = vunpack.c.h.b16 %v3349
    %v3438 = vunpack.c.l.b16 %v3350
    %v3439 = vunpack.c.l.b16 %v3351
    %v3440 = vunpack.c.h.b16 %v3351
    %v3441 = vunpack.c.l.b16 %v3352
    %v3442 = vunpack.c.l.b16 %v3353
    %v3443 = vunpack.c.h.b16 %v3353
    %v3444 = vunpack.c.l.b16 %v3354
    %v3445 = vunpack.c.l.b16 %v3355
    %v3446 = vunpack.c.h.b16 %v3355
    %v3447 = vunpack.c.l.b16 %v3356
    %v3448 = vunpack.c.l.b16 %v3357
    %v3449 = vunpack.c.h.b16 %v3357
    %v3450 = vunpack.c.l.b16 %v3358
    %v3451 = vpack.c.b16 %v3406, %v3403
    %v3452 = vpack.c.b16 %v3407, %v3404
    %v3453 = vpack.c.b16 %v3408, %v3405
    %v3454 = vpack.c.b16 %v3412, %v3409
    %v3455 = vpack.c.b16 %v3413, %v3410
    %v3456 = vpack.c.b16 %v3414, %v3411
    %v3457 = vpack.c.b16 %v3418, %v3415
    %v3458 = vpack.c.b16 %v3419, %v3416
    %v3459 = vpack.c.b16 %v3420, %v3417
    %v3460 = vpack.c.b16 %v3424, %v3421
    %v3461 = vpack.c.b16 %v3425, %v3422
    %v3462 = vpack.c.b16 %v3426, %v3423
    %v3463 = vpack.c.b16 %v3430, %v3427
    %v3464 = vpack.c.b16 %v3431, %v3428
    %v3465 = vpack.c.b16 %v3432, %v3429
    %v3466 = vpack.c.b16 %v3436, %v3433
    %v3467 = vpack.c.b16 %v3437, %v3434
    %v3468 = vpack.c.b16 %v3438, %v3435
    %v3469 = vpack.c.b16 %v3442, %v3439
    %v3470 = vpack.c.b16 %v3443, %v3440
    %v3471 = vpack.c.b16 %v3444, %v3441
    %v3472 = vpack.c.b16 %v3448, %v3445
    %v3473 = vpack.c.b16 %v3449, %v3446
    %v3474 = vpack.c.b16 %v3450, %v3447
    %3499 = vmatprep.subr.bf16.mxu0 %v3452
    %3500 = vmatpush1.bf16.msra.mxu0 %v3451
    %3501 = vmatprep.subr.bf16.mxu0 %v3455
    %3502 = vmatpush1.bf16.msra.mxu0 %v3454
    %3503 = vmatprep.subr.bf16.mxu0 %v3458
    %3504 = vmatpush1.bf16.msra.mxu0 %v3457
    %3505 = vmatprep.subr.bf16.mxu0 %v3461
    %3506 = vmatpush1.bf16.msra.mxu0 %v3460
    %3507 = vmatprep.subr.bf16.mxu0 %v3464
    %3508 = vmatpush1.bf16.msra.mxu0 %v3463
    %3509 = vmatprep.subr.bf16.mxu0 %v3467
    %3510 = vmatpush1.bf16.msra.mxu0 %v3466
    %3511 = vmatprep.subr.bf16.mxu0 %v3470
    %3512 = vmatpush1.bf16.msra.mxu0 %v3469
    %3513 = vmatprep.subr.bf16.mxu0 %v3473
    %3514 = vmatpush1.bf16.msra.mxu0 %v3472
    %3515 = vmatprep.subr.bf16.mxu0 0
    %3516 = vmatpush1.bf16.msra.mxu0 0
    %3517 = vmatprep.subr.bf16.mxu0 0
    %3518 = vmatpush1.bf16.msra.mxu0 0
    %3519 = vmatprep.subr.bf16.mxu0 0
    %3520 = vmatpush1.bf16.msra.mxu0 0
    %3521 = vmatprep.subr.bf16.mxu0 0
    %3522 = vmatpush1.bf16.msra.mxu0 0
    %3523 = vmatprep.subr.bf16.mxu0 0
    %3524 = vmatpush1.bf16.msra.mxu0 0
    %3525 = vmatprep.subr.bf16.mxu0 0
    %3526 = vmatpush1.bf16.msra.mxu0 0
    %3527 = vmatprep.subr.bf16.mxu0 0
    %3528 = vmatpush1.bf16.msra.mxu0 0
    %3529 = vmatprep.subr.bf16.mxu0 0
    %3530 = vmatpush1.bf16.msra.mxu0 0
    %3531 = vmatprep.mubr.bf16.mxu0 0
    %3532 = vmatmul.mubr.bf16.gmra.mrb[0].mxu0 %v3324
    %v3533 = vpop.f32.mrb[0].mxu0
    %v3534 = vadd.f32 %v3362, %v3533
    %v3535 = vpop.f32.mrb[0].mxu0
    %v3536 = vadd.f32 %v3366, %v3535
    %v3537 = vpop.f32.mrb[0].mxu0
    %v3538 = vadd.f32 %v3362, %v3537
    %v3539 = vpop.f32.mrb[0].mxu0
    %v3540 = vadd.f32 %v3366, %v3539
    %3541 = vmatprep.mubr.bf16.mxu0 0
    %3542 = vmatmul.mubr.bf16.gmra.mrb[0].mxu0 %v3325
    %v3543 = vpop.f32.mrb[0].mxu0
    %v3544 = vadd.f32 %v3362, %v3543
    %v3545 = vpop.f32.mrb[0].mxu0
    %v3546 = vadd.f32 %v3366, %v3545
    %v3547 = vpop.f32.mrb[0].mxu0
    %v3548 = vadd.f32 %v3362, %v3547
    %v3549 = vpop.f32.mrb[0].mxu0
    %v3550 = vadd.f32 %v3366, %v3549
    %3551 = vdwg.mxu0
    %3552 = vmatprep.subr.bf16.mxu0 0
    %3553 = vmatpush1.bf16.msra.mxu0 %v3453
    %3554 = vmatprep.subr.bf16.mxu0 0
    %3555 = vmatpush1.bf16.msra.mxu0 %v3456
    %3556 = vmatprep.subr.bf16.mxu0 0
    %3557 = vmatpush1.bf16.msra.mxu0 %v3459
    %3558 = vmatprep.subr.bf16.mxu0 0
    %3559 = vmatpush1.bf16.msra.mxu0 %v3462
    %3560 = vmatprep.subr.bf16.mxu0 0
    %3561 = vmatpush1.bf16.msra.mxu0 %v3465
    %3562 = vmatprep.subr.bf16.mxu0 0
    %3563 = vmatpush1.bf16.msra.mxu0 %v3468
    %3564 = vmatprep.subr.bf16.mxu0 0
    %3565 = vmatpush1.bf16.msra.mxu0 %v3471
    %3566 = vmatprep.subr.bf16.mxu0 0
    %3567 = vmatpush1.bf16.msra.mxu0 %v3474
    %3568 = vmatprep.subr.bf16.mxu0 0
    %3569 = vmatpush1.bf16.msra.mxu0 0
    %3570 = vmatprep.subr.bf16.mxu0 0
    %3571 = vmatpush1.bf16.msra.mxu0 0
    %3572 = vmatprep.subr.bf16.mxu0 0
    %3573 = vmatpush1.bf16.msra.mxu0 0
    %3574 = vmatprep.subr.bf16.mxu0 0
    %3575 = vmatpush1.bf16.msra.mxu0 0
    %3576 = vmatprep.subr.bf16.mxu0 0
    %3577 = vmatpush1.bf16.msra.mxu0 0
    %3578 = vmatprep.subr.bf16.mxu0 0
    %3579 = vmatpush1.bf16.msra.mxu0 0
    %3580 = vmatprep.subr.bf16.mxu0 0
    %3581 = vmatpush1.bf16.msra.mxu0 0
    %3582 = vmatprep.subr.bf16.mxu0 0
    %3583 = vmatpush1.bf16.msra.mxu0 0
    %3584 = vmatprep.mubr.bf16.mxu0 0
    %3585 = vmatmul.mubr.bf16.gmra.mrb[0].mxu0 %v3324
    %v3586 = vpop.f32.mrb[0].mxu0
    %v3587 = vadd.f32 %v3370, %v3586
    %v3588 = vpop.f32.mrb[0].mxu0
    %v3589 = vpop.f32.mrb[0].mxu0
    %v3590 = vadd.f32 %v3370, %v3589
    %v3591 = vpop.f32.mrb[0].mxu0
    %3592 = vmatprep.mubr.bf16.mxu0 0
    %3593 = vmatmul.mubr.bf16.gmra.mrb[0].mxu0 %v3325
    %v3594 = vpop.f32.mrb[0].mxu0
    %v3595 = vadd.f32 %v3370, %v3594
    %v3596 = vpop.f32.mrb[0].mxu0
    %v3597 = vpop.f32.mrb[0].mxu0
    %v3598 = vadd.f32 %v3370, %v3597
    %v3599 = vpop.f32.mrb[0].mxu0
    %3600 = vdwg.mxu0
    %s3601 = scalar_lea.vmem [#allocation9], 192
    %v3602 = vld [vmem:[%s3601] sm:$0xff]
    %v3603 = vld [vmem:[%s3601 + $0x8] sm:$0xf]
    %v3604 = vld [vmem:[%s3601 + $0xc] sm:$0xff]
    %v3605 = vld [vmem:[%s3601 + $0x14] sm:$0xf]
    %v3606 = vld [vmem:[%s3601 + $0x18] sm:$0xff]
    %v3607 = vld [vmem:[%s3601 + $0x20] sm:$0xf]
    %v3608 = vld [vmem:[%s3601 + $0x24] sm:$0xff]
    %v3609 = vld [vmem:[%s3601 + $0x2c] sm:$0xf]
    %v3610 = vld [vmem:[%s3601 + $0x30] sm:$0xff]
    %v3611 = vld [vmem:[%s3601 + $0x38] sm:$0xf]
    %v3612 = vld [vmem:[%s3601 + $0x3c] sm:$0xff]
    %v3613 = vld [vmem:[%s3601 + $0x44] sm:$0xf]
    %v3614 = vld [vmem:[%s3601 + $0x48] sm:$0xff]
    %v3615 = vld [vmem:[%s3601 + $0x50] sm:$0xf]
    %v3616 = vld [vmem:[%s3601 + $0x54] sm:$0xff]
    %v3617 = vld [vmem:[%s3601 + $0x5c] sm:$0xf]
    %v3618 = vld [vmem:[%s3601 + $0x60] sm:$0xff]
    %v3619 = vld [vmem:[%s3601 + $0x68] sm:$0xf]
    %v3620 = vld [vmem:[%s3601 + $0x6c] sm:$0xff]
    %v3621 = vld [vmem:[%s3601 + $0x74] sm:$0xf]
    %v3622 = vld [vmem:[%s3601 + $0x78] sm:$0xff]
    %v3623 = vld [vmem:[%s3601 + $0x80] sm:$0xf]
    %v3624 = vld [vmem:[%s3601 + $0x84] sm:$0xff]
    %v3625 = vld [vmem:[%s3601 + $0x8c] sm:$0xf]
    %v3626 = vld [vmem:[%s3601 + $0x90] sm:$0xff]
    %v3627 = vld [vmem:[%s3601 + $0x98] sm:$0xf]
    %v3628 = vld [vmem:[%s3601 + $0x9c] sm:$0xff]
    %v3629 = vld [vmem:[%s3601 + $0xa4] sm:$0xf]
    %v3630 = vld [vmem:[%s3601 + $0xa8] sm:$0xff]
    %v3631 = vld [vmem:[%s3601 + $0xb0] sm:$0xf]
    %v3632 = vld [vmem:[%s3601 + $0xb4] sm:$0xff]
    %v3633 = vld [vmem:[%s3601 + $0xbc] sm:$0xf]
    %v3634 = vlaneseq
    %v3635 = vshrl.u32 %v3634, 7
    %v3636 = vsub.s32 4, %v3635
    %v3637 = vrot.slane %v1362, %v3636
    %v3638 = vlaneseq
    %v3639 = vshrl.u32 %v3638, 7
    %v3640 = vsub.s32 4, %v3639
    %v3641 = vrot.slane %v1363, %v3640
    %v3642 = vlaneseq
    %v3643 = vshrl.u32 %v3642, 7
    %v3644 = vsub.s32 4, %v3643
    %v3645 = vrot.slane %v1364, %v3644
    %v3678 = vunpack.c.l.b16 %v3602
    %v3679 = vunpack.c.h.b16 %v3602
    %v3680 = vunpack.c.l.b16 %v3603
    %v3681 = vunpack.c.l.b16 %v3604
    %v3682 = vunpack.c.h.b16 %v3604
    %v3683 = vunpack.c.l.b16 %v3605
    %v3684 = vunpack.c.l.b16 %v3606
    %v3685 = vunpack.c.h.b16 %v3606
    %v3686 = vunpack.c.l.b16 %v3607
    %v3687 = vunpack.c.l.b16 %v3608
    %v3688 = vunpack.c.h.b16 %v3608
    %v3689 = vunpack.c.l.b16 %v3609
    %v3690 = vunpack.c.l.b16 %v3610
    %v3691 = vunpack.c.h.b16 %v3610
    %v3692 = vunpack.c.l.b16 %v3611
    %v3693 = vunpack.c.l.b16 %v3612
    %v3694 = vunpack.c.h.b16 %v3612
    %v3695 = vunpack.c.l.b16 %v3613
    %v3696 = vunpack.c.l.b16 %v3614
    %v3697 = vunpack.c.h.b16 %v3614
    %v3698 = vunpack.c.l.b16 %v3615
    %v3699 = vunpack.c.l.b16 %v3616
    %v3700 = vunpack.c.h.b16 %v3616
    %v3701 = vunpack.c.l.b16 %v3617
    %v3702 = vunpack.c.l.b16 %v3618
    %v3703 = vunpack.c.h.b16 %v3618
    %v3704 = vunpack.c.l.b16 %v3619
    %v3705 = vunpack.c.l.b16 %v3620
    %v3706 = vunpack.c.h.b16 %v3620
    %v3707 = vunpack.c.l.b16 %v3621
    %v3708 = vunpack.c.l.b16 %v3622
    %v3709 = vunpack.c.h.b16 %v3622
    %v3710 = vunpack.c.l.b16 %v3623
    %v3711 = vunpack.c.l.b16 %v3624
    %v3712 = vunpack.c.h.b16 %v3624
    %v3713 = vunpack.c.l.b16 %v3625
    %v3714 = vunpack.c.l.b16 %v3626
    %v3715 = vunpack.c.h.b16 %v3626
    %v3716 = vunpack.c.l.b16 %v3627
    %v3717 = vunpack.c.l.b16 %v3628
    %v3718 = vunpack.c.h.b16 %v3628
    %v3719 = vunpack.c.l.b16 %v3629
    %v3720 = vunpack.c.l.b16 %v3630
    %v3721 = vunpack.c.h.b16 %v3630
    %v3722 = vunpack.c.l.b16 %v3631
    %v3723 = vunpack.c.l.b16 %v3632
    %v3724 = vunpack.c.h.b16 %v3632
    %v3725 = vunpack.c.l.b16 %v3633
    %v3726 = vpack.c.b16 %v3681, %v3678
    %v3727 = vpack.c.b16 %v3682, %v3679
    %v3728 = vpack.c.b16 %v3683, %v3680
    %v3729 = vpack.c.b16 %v3687, %v3684
    %v3730 = vpack.c.b16 %v3688, %v3685
    %v3731 = vpack.c.b16 %v3689, %v3686
    %v3732 = vpack.c.b16 %v3693, %v3690
    %v3733 = vpack.c.b16 %v3694, %v3691
    %v3734 = vpack.c.b16 %v3695, %v3692
    %v3735 = vpack.c.b16 %v3699, %v3696
    %v3736 = vpack.c.b16 %v3700, %v3697
    %v3737 = vpack.c.b16 %v3701, %v3698
    %v3738 = vpack.c.b16 %v3705, %v3702
    %v3739 = vpack.c.b16 %v3706, %v3703
    %v3740 = vpack.c.b16 %v3707, %v3704
    %v3741 = vpack.c.b16 %v3711, %v3708
    %v3742 = vpack.c.b16 %v3712, %v3709
    %v3743 = vpack.c.b16 %v3713, %v3710
    %v3744 = vpack.c.b16 %v3717, %v3714
    %v3745 = vpack.c.b16 %v3718, %v3715
    %v3746 = vpack.c.b16 %v3719, %v3716
    %v3747 = vpack.c.b16 %v3723, %v3720
    %v3748 = vpack.c.b16 %v3724, %v3721
    %v3749 = vpack.c.b16 %v3725, %v3722
    %3774 = vmatprep.subr.bf16.mxu0 %v3727
    %3775 = vmatpush1.bf16.msra.mxu0 %v3726
    %3776 = vmatprep.subr.bf16.mxu0 %v3730
    %3777 = vmatpush1.bf16.msra.mxu0 %v3729
    %3778 = vmatprep.subr.bf16.mxu0 %v3733
    %3779 = vmatpush1.bf16.msra.mxu0 %v3732
    %3780 = vmatprep.subr.bf16.mxu0 %v3736
    %3781 = vmatpush1.bf16.msra.mxu0 %v3735
    %3782 = vmatprep.subr.bf16.mxu0 %v3739
    %3783 = vmatpush1.bf16.msra.mxu0 %v3738
    %3784 = vmatprep.subr.bf16.mxu0 %v3742
    %3785 = vmatpush1.bf16.msra.mxu0 %v3741
    %3786 = vmatprep.subr.bf16.mxu0 %v3745
    %3787 = vmatpush1.bf16.msra.mxu0 %v3744
    %3788 = vmatprep.subr.bf16.mxu0 %v3748
    %3789 = vmatpush1.bf16.msra.mxu0 %v3747
    %3790 = vmatprep.subr.bf16.mxu0 0
    %3791 = vmatpush1.bf16.msra.mxu0 0
    %3792 = vmatprep.subr.bf16.mxu0 0
    %3793 = vmatpush1.bf16.msra.mxu0 0
    %3794 = vmatprep.subr.bf16.mxu0 0
    %3795 = vmatpush1.bf16.msra.mxu0 0
    %3796 = vmatprep.subr.bf16.mxu0 0
    %3797 = vmatpush1.bf16.msra.mxu0 0
    %3798 = vmatprep.subr.bf16.mxu0 0
    %3799 = vmatpush1.bf16.msra.mxu0 0
    %3800 = vmatprep.subr.bf16.mxu0 0
    %3801 = vmatpush1.bf16.msra.mxu0 0
    %3802 = vmatprep.subr.bf16.mxu0 0
    %3803 = vmatpush1.bf16.msra.mxu0 0
    %3804 = vmatprep.subr.bf16.mxu0 0
    %3805 = vmatpush1.bf16.msra.mxu0 0
    %3806 = vmatprep.mubr.bf16.mxu0 0
    %3807 = vmatmul.mubr.bf16.gmra.mrb[0].mxu0 0
    %v3808 = vpop.f32.mrb[0].mxu0
    %v3809 = vadd.f32 %v3637, %v3808
    %v3810 = vpop.f32.mrb[0].mxu0
    %v3811 = vadd.f32 %v3641, %v3810
    %v3812 = vpop.f32.mrb[0].mxu0
    %v3813 = vpop.f32.mrb[0].mxu0
    %3814 = vdwg.mxu0
    %3815 = vmatprep.subr.bf16.mxu0 0
    %3816 = vmatpush1.bf16.msra.mxu0 %v3728
    %3817 = vmatprep.subr.bf16.mxu0 0
    %3818 = vmatpush1.bf16.msra.mxu0 %v3731
    %3819 = vmatprep.subr.bf16.mxu0 0
    %3820 = vmatpush1.bf16.msra.mxu0 %v3734
    %3821 = vmatprep.subr.bf16.mxu0 0
    %3822 = vmatpush1.bf16.msra.mxu0 %v3737
    %3823 = vmatprep.subr.bf16.mxu0 0
    %3824 = vmatpush1.bf16.msra.mxu0 %v3740
    %3825 = vmatprep.subr.bf16.mxu0 0
    %3826 = vmatpush1.bf16.msra.mxu0 %v3743
    %3827 = vmatprep.subr.bf16.mxu0 0
    %3828 = vmatpush1.bf16.msra.mxu0 %v3746
    %3829 = vmatprep.subr.bf16.mxu0 0
    %3830 = vmatpush1.bf16.msra.mxu0 %v3749
    %3831 = vmatprep.subr.bf16.mxu0 0
    %3832 = vmatpush1.bf16.msra.mxu0 0
    %3833 = vmatprep.subr.bf16.mxu0 0
    %3834 = vmatpush1.bf16.msra.mxu0 0
    %3835 = vmatprep.subr.bf16.mxu0 0
    %3836 = vmatpush1.bf16.msra.mxu0 0
    %3837 = vmatprep.subr.bf16.mxu0 0
    %3838 = vmatpush1.bf16.msra.mxu0 0
    %3839 = vmatprep.subr.bf16.mxu0 0
    %3840 = vmatpush1.bf16.msra.mxu0 0
    %3841 = vmatprep.subr.bf16.mxu0 0
    %3842 = vmatpush1.bf16.msra.mxu0 0
    %3843 = vmatprep.subr.bf16.mxu0 0
    %3844 = vmatpush1.bf16.msra.mxu0 0
    %3845 = vmatprep.subr.bf16.mxu0 0
    %3846 = vmatpush1.bf16.msra.mxu0 0
    %3847 = vmatprep.mubr.bf16.mxu0 0
    %3848 = vmatmul.mubr.bf16.gmra.mrb[0].mxu0 0
    %v3849 = vpop.f32.mrb[0].mxu0
    %v3850 = vadd.f32 %v3645, %v3849
    %v3851 = vpop.f32.mrb[0].mxu0
    %v3852 = vpop.f32.mrb[0].mxu0
    %v3853 = vpop.f32.mrb[0].mxu0
    %3854 = vdwg.mxu0
    %v3855 = vadd.f32 %v3534, %v3809
    %v3856 = vsub.f32 0.0, %v3855
    %v3857 = vmul.f32 %v3856, 1.442695
    %v3858 = vpow.pop %v3857
    %v3859 = vadd.f32 %v3858, 1.0
    %v3860 = vrcp.pop %v3859
    %v3861 = vadd.f32 %v3536, %v3811
    %v3862 = vsub.f32 0.0, %v3861
    %v3863 = vmul.f32 %v3862, 1.442695
    %v3864 = vpow.pop %v3863
    %v3865 = vadd.f32 %v3864, 1.0
    %v3866 = vrcp.pop %v3865
    %v3867 = vmul.f32 %v3860, %v3850
    %v3868 = vadd.f32 %v3587, %v3867
    %v3869 = vtanh.pop %v3868
    %v3870 = vsub.f32 1.0, %v3866
    %v3871 = vmul.f32 %v3870, %v3869
    %v3872 = vmul.f32 %v3866, 0.0
    %v3873 = vadd.f32 %v3871, %v3872
    %3874 = vst [vmem:[#allocation2] sm:$0x3] %v3873
    %v3875 = vpack.c.bf16 %v3873, %v3873
    %3876 = vmatprep.subr.bf16.mxu0 %v3727
    %3877 = vmatpush1.bf16.msra.mxu0 %v3726
    %3878 = vmatprep.subr.bf16.mxu0 %v3730
    %3879 = vmatpush1.bf16.msra.mxu0 %v3729
    %3880 = vmatprep.subr.bf16.mxu0 %v3733
    %3881 = vmatpush1.bf16.msra.mxu0 %v3732
    %3882 = vmatprep.subr.bf16.mxu0 %v3736
    %3883 = vmatpush1.bf16.msra.mxu0 %v3735
    %3884 = vmatprep.subr.bf16.mxu0 %v3739
    %3885 = vmatpush1.bf16.msra.mxu0 %v3738
    %3886 = vmatprep.subr.bf16.mxu0 %v3742
    %3887 = vmatpush1.bf16.msra.mxu0 %v3741
    %3888 = vmatprep.subr.bf16.mxu0 %v3745
    %3889 = vmatpush1.bf16.msra.mxu0 %v3744
    %3890 = vmatprep.subr.bf16.mxu0 %v3748
    %3891 = vmatpush1.bf16.msra.mxu0 %v3747
    %3892 = vmatprep.subr.bf16.mxu0 0
    %3893 = vmatpush1.bf16.msra.mxu0 0
    %3894 = vmatprep.subr.bf16.mxu0 0
    %3895 = vmatpush1.bf16.msra.mxu0 0
    %3896 = vmatprep.subr.bf16.mxu0 0
    %3897 = vmatpush1.bf16.msra.mxu0 0
    %3898 = vmatprep.subr.bf16.mxu0 0
    %3899 = vmatpush1.bf16.msra.mxu0 0
    %3900 = vmatprep.subr.bf16.mxu0 0
    %3901 = vmatpush1.bf16.msra.mxu0 0
    %3902 = vmatprep.subr.bf16.mxu0 0
    %3903 = vmatpush1.bf16.msra.mxu0 0
    %3904 = vmatprep.subr.bf16.mxu0 0
    %3905 = vmatpush1.bf16.msra.mxu0 0
    %3906 = vmatprep.subr.bf16.mxu0 0
    %3907 = vmatpush1.bf16.msra.mxu0 0
    %3908 = vmatprep.mubr.bf16.mxu0 0
    %3909 = vmatmul.mubr.bf16.gmra.mrb[0].mxu0 %v3875
    %v3910 = vpop.f32.mrb[0].mxu0
    %v3911 = vadd.f32 %v3637, %v3910
    %v3912 = vpop.f32.mrb[0].mxu0
    %v3913 = vadd.f32 %v3641, %v3912
    %v3914 = vpop.f32.mrb[0].mxu0
    %v3915 = vpop.f32.mrb[0].mxu0
    %3916 = vdwg.mxu0
    %3917 = vmatprep.subr.bf16.mxu0 0
    %3918 = vmatpush1.bf16.msra.mxu0 %v3728
    %3919 = vmatprep.subr.bf16.mxu0 0
    %3920 = vmatpush1.bf16.msra.mxu0 %v3731
    %3921 = vmatprep.subr.bf16.mxu0 0
    %3922 = vmatpush1.bf16.msra.mxu0 %v3734
    %3923 = vmatprep.subr.bf16.mxu0 0
    %3924 = vmatpush1.bf16.msra.mxu0 %v3737
    %3925 = vmatprep.subr.bf16.mxu0 0
    %3926 = vmatpush1.bf16.msra.mxu0 %v3740
    %3927 = vmatprep.subr.bf16.mxu0 0
    %3928 = vmatpush1.bf16.msra.mxu0 %v3743
    %3929 = vmatprep.subr.bf16.mxu0 0
    %3930 = vmatpush1.bf16.msra.mxu0 %v3746
    %3931 = vmatprep.subr.bf16.mxu0 0
    %3932 = vmatpush1.bf16.msra.mxu0 %v3749
    %3933 = vmatprep.subr.bf16.mxu0 0
    %3934 = vmatpush1.bf16.msra.mxu0 0
    %3935 = vmatprep.subr.bf16.mxu0 0
    %3936 = vmatpush1.bf16.msra.mxu0 0
    %3937 = vmatprep.subr.bf16.mxu0 0
    %3938 = vmatpush1.bf16.msra.mxu0 0
    %3939 = vmatprep.subr.bf16.mxu0 0
    %3940 = vmatpush1.bf16.msra.mxu0 0
    %3941 = vmatprep.subr.bf16.mxu0 0
    %3942 = vmatpush1.bf16.msra.mxu0 0
    %3943 = vmatprep.subr.bf16.mxu0 0
    %3944 = vmatpush1.bf16.msra.mxu0 0
    %3945 = vmatprep.subr.bf16.mxu0 0
    %3946 = vmatpush1.bf16.msra.mxu0 0
    %3947 = vmatprep.subr.bf16.mxu0 0
    %3948 = vmatpush1.bf16.msra.mxu0 0
    %3949 = vmatprep.mubr.bf16.mxu0 0
    %3950 = vmatmul.mubr.bf16.gmra.mrb[0].mxu0 %v3875
    %v3951 = vpop.f32.mrb[0].mxu0
    %v3952 = vadd.f32 %v3645, %v3951
    %v3953 = vpop.f32.mrb[0].mxu0
    %v3954 = vpop.f32.mrb[0].mxu0
    %v3955 = vpop.f32.mrb[0].mxu0
    %3956 = vdwg.mxu0
    %v3958 = vrot.slane %v3911, 6
    %v3960 = vadd.f32 %v3534, %v3958
    %v3961 = vsub.f32 0.0, %v3960
    %v3962 = vmul.f32 %v3961, 1.442695
    %v3963 = vpow.pop %v3962
    %v3964 = vadd.f32 %v3963, 1.0
    %v3965 = vrcp.pop %v3964
    %v3967 = vrot.slane %v3913, 6
    %v3969 = vadd.f32 %v3536, %v3967
    %v3970 = vsub.f32 0.0, %v3969
    %v3971 = vmul.f32 %v3970, 1.442695
    %v3972 = vpow.pop %v3971
    %v3973 = vadd.f32 %v3972, 1.0
    %v3974 = vrcp.pop %v3973
    %v3976 = vrot.slane %v3952, 6
    %v3978 = vmul.f32 %v3965, %v3976
    %v3979 = vadd.f32 %v3587, %v3978
    %v3980 = vtanh.pop %v3979
    %v3981 = vsub.f32 1.0, %v3974
    %v3982 = vmul.f32 %v3981, %v3980
    %v3984 = vrot.slane %v3873, 6
    %v3986 = vmul.f32 %v3974, %v3984
    %v3987 = vadd.f32 %v3982, %v3986
    %3988 = vst [vmem:[#allocation2] sm:$0xc] %v3987
    %v3989 = vpack.c.bf16 %v3987, %v3987
    %v3991 = vrot.slane %v3989, 1
    %3993 = vmatprep.subr.bf16.mxu0 %v3727
    %3994 = vmatpush1.bf16.msra.mxu0 %v3726
    %3995 = vmatprep.subr.bf16.mxu0 %v3730
    %3996 = vmatpush1.bf16.msra.mxu0 %v3729
    %3997 = vmatprep.subr.bf16.mxu0 %v3733
    %3998 = vmatpush1.bf16.msra.mxu0 %v3732
    %3999 = vmatprep.subr.bf16.mxu0 %v3736
    %4000 = vmatpush1.bf16.msra.mxu0 %v3735
    %4001 = vmatprep.subr.bf16.mxu0 %v3739
    %4002 = vmatpush1.bf16.msra.mxu0 %v3738
    %4003 = vmatprep.subr.bf16.mxu0 %v3742
    %4004 = vmatpush1.bf16.msra.mxu0 %v3741
    %4005 = vmatprep.subr.bf16.mxu0 %v3745
    %4006 = vmatpush1.bf16.msra.mxu0 %v3744
    %4007 = vmatprep.subr.bf16.mxu0 %v3748
    %4008 = vmatpush1.bf16.msra.mxu0 %v3747
    %4009 = vmatprep.subr.bf16.mxu0 0
    %4010 = vmatpush1.bf16.msra.mxu0 0
    %4011 = vmatprep.subr.bf16.mxu0 0
    %4012 = vmatpush1.bf16.msra.mxu0 0
    %4013 = vmatprep.subr.bf16.mxu0 0
    %4014 = vmatpush1.bf16.msra.mxu0 0
    %4015 = vmatprep.subr.bf16.mxu0 0
    %4016 = vmatpush1.bf16.msra.mxu0 0
    %4017 = vmatprep.subr.bf16.mxu0 0
    %4018 = vmatpush1.bf16.msra.mxu0 0
    %4019 = vmatprep.subr.bf16.mxu0 0
    %4020 = vmatpush1.bf16.msra.mxu0 0
    %4021 = vmatprep.subr.bf16.mxu0 0
    %4022 = vmatpush1.bf16.msra.mxu0 0
    %4023 = vmatprep.subr.bf16.mxu0 0
    %4024 = vmatpush1.bf16.msra.mxu0 0
    %4025 = vmatprep.mubr.bf16.mxu0 0
    %4026 = vmatmul.mubr.bf16.gmra.mrb[0].mxu0 %v3991
    %v4027 = vpop.f32.mrb[0].mxu0
    %v4028 = vadd.f32 %v3637, %v4027
    %v4029 = vpop.f32.mrb[0].mxu0
    %v4030 = vadd.f32 %v3641, %v4029
    %v4031 = vpop.f32.mrb[0].mxu0
    %v4032 = vpop.f32.mrb[0].mxu0
    %4033 = vdwg.mxu0
    %4034 = vmatprep.subr.bf16.mxu0 0
    %4035 = vmatpush1.bf16.msra.mxu0 %v3728
    %4036 = vmatprep.subr.bf16.mxu0 0
    %4037 = vmatpush1.bf16.msra.mxu0 %v3731
    %4038 = vmatprep.subr.bf16.mxu0 0
    %4039 = vmatpush1.bf16.msra.mxu0 %v3734
    %4040 = vmatprep.subr.bf16.mxu0 0
    %4041 = vmatpush1.bf16.msra.mxu0 %v3737
    %4042 = vmatprep.subr.bf16.mxu0 0
    %4043 = vmatpush1.bf16.msra.mxu0 %v3740
    %4044 = vmatprep.subr.bf16.mxu0 0
    %4045 = vmatpush1.bf16.msra.mxu0 %v3743
    %4046 = vmatprep.subr.bf16.mxu0 0
    %4047 = vmatpush1.bf16.msra.mxu0 %v3746
    %4048 = vmatprep.subr.bf16.mxu0 0
    %4049 = vmatpush1.bf16.msra.mxu0 %v3749
    %4050 = vmatprep.subr.bf16.mxu0 0
    %4051 = vmatpush1.bf16.msra.mxu0 0
    %4052 = vmatprep.subr.bf16.mxu0 0
    %4053 = vmatpush1.bf16.msra.mxu0 0
    %4054 = vmatprep.subr.bf16.mxu0 0
    %4055 = vmatpush1.bf16.msra.mxu0 0
    %4056 = vmatprep.subr.bf16.mxu0 0
    %4057 = vmatpush1.bf16.msra.mxu0 0
    %4058 = vmatprep.subr.bf16.mxu0 0
    %4059 = vmatpush1.bf16.msra.mxu0 0
    %4060 = vmatprep.subr.bf16.mxu0 0
    %4061 = vmatpush1.bf16.msra.mxu0 0
    %4062 = vmatprep.subr.bf16.mxu0 0
    %4063 = vmatpush1.bf16.msra.mxu0 0
    %4064 = vmatprep.subr.bf16.mxu0 0
    %4065 = vmatpush1.bf16.msra.mxu0 0
    %4066 = vmatprep.mubr.bf16.mxu0 0
    %4067 = vmatmul.mubr.bf16.gmra.mrb[0].mxu0 %v3991
    %v4068 = vpop.f32.mrb[0].mxu0
    %v4069 = vadd.f32 %v3645, %v4068
    %v4070 = vpop.f32.mrb[0].mxu0
    %v4071 = vpop.f32.mrb[0].mxu0
    %v4072 = vpop.f32.mrb[0].mxu0
    %4073 = vdwg.mxu0
    %v4075 = vrot.slane %v4028, 4
    %v4077 = vadd.f32 %v3534, %v4075
    %v4078 = vsub.f32 0.0, %v4077
    %v4079 = vmul.f32 %v4078, 1.442695
    %v4080 = vpow.pop %v4079
    %v4081 = vadd.f32 %v4080, 1.0
    %v4082 = vrcp.pop %v4081
    %v4084 = vrot.slane %v4030, 4
    %v4086 = vadd.f32 %v3536, %v4084
    %v4087 = vsub.f32 0.0, %v4086
    %v4088 = vmul.f32 %v4087, 1.442695
    %v4089 = vpow.pop %v4088
    %v4090 = vadd.f32 %v4089, 1.0
    %v4091 = vrcp.pop %v4090
    %v4093 = vrot.slane %v4069, 4
    %v4095 = vmul.f32 %v4082, %v4093
    %v4096 = vadd.f32 %v3587, %v4095
    %v4097 = vtanh.pop %v4096
    %v4098 = vsub.f32 1.0, %v4091
    %v4099 = vmul.f32 %v4098, %v4097
    %v4101 = vrot.slane %v3987, 6
    %v4103 = vmul.f32 %v4091, %v4101
    %v4104 = vadd.f32 %v4099, %v4103
    %4105 = vst [vmem:[#allocation2] sm:$0x30] %v4104
    %v4106 = vpack.c.bf16 %v4104, %v4104
    %v4108 = vrot.slane %v4106, 2
    %4110 = vmatprep.subr.bf16.mxu0 %v3727
    %4111 = vmatpush1.bf16.msra.mxu0 %v3726
    %4112 = vmatprep.subr.bf16.mxu0 %v3730
    %4113 = vmatpush1.bf16.msra.mxu0 %v3729
    %4114 = vmatprep.subr.bf16.mxu0 %v3733
    %4115 = vmatpush1.bf16.msra.mxu0 %v3732
    %4116 = vmatprep.subr.bf16.mxu0 %v3736
    %4117 = vmatpush1.bf16.msra.mxu0 %v3735
    %4118 = vmatprep.subr.bf16.mxu0 %v3739
    %4119 = vmatpush1.bf16.msra.mxu0 %v3738
    %4120 = vmatprep.subr.bf16.mxu0 %v3742
    %4121 = vmatpush1.bf16.msra.mxu0 %v3741
    %4122 = vmatprep.subr.bf16.mxu0 %v3745
    %4123 = vmatpush1.bf16.msra.mxu0 %v3744
    %4124 = vmatprep.subr.bf16.mxu0 %v3748
    %4125 = vmatpush1.bf16.msra.mxu0 %v3747
    %4126 = vmatprep.subr.bf16.mxu0 0
    %4127 = vmatpush1.bf16.msra.mxu0 0
    %4128 = vmatprep.subr.bf16.mxu0 0
    %4129 = vmatpush1.bf16.msra.mxu0 0
    %4130 = vmatprep.subr.bf16.mxu0 0
    %4131 = vmatpush1.bf16.msra.mxu0 0
    %4132 = vmatprep.subr.bf16.mxu0 0
    %4133 = vmatpush1.bf16.msra.mxu0 0
    %4134 = vmatprep.subr.bf16.mxu0 0
    %4135 = vmatpush1.bf16.msra.mxu0 0
    %4136 = vmatprep.subr.bf16.mxu0 0
    %4137 = vmatpush1.bf16.msra.mxu0 0
    %4138 = vmatprep.subr.bf16.mxu0 0
    %4139 = vmatpush1.bf16.msra.mxu0 0
    %4140 = vmatprep.subr.bf16.mxu0 0
    %4141 = vmatpush1.bf16.msra.mxu0 0
    %4142 = vmatprep.mubr.bf16.mxu0 0
    %4143 = vmatmul.mubr.bf16.gmra.mrb[0].mxu0 %v4108
    %v4144 = vpop.f32.mrb[0].mxu0
    %v4145 = vadd.f32 %v3637, %v4144
    %v4146 = vpop.f32.mrb[0].mxu0
    %v4147 = vadd.f32 %v3641, %v4146
    %v4148 = vpop.f32.mrb[0].mxu0
    %v4149 = vpop.f32.mrb[0].mxu0
    %4150 = vdwg.mxu0
    %4151 = vmatprep.subr.bf16.mxu0 0
    %4152 = vmatpush1.bf16.msra.mxu0 %v3728
    %4153 = vmatprep.subr.bf16.mxu0 0
    %4154 = vmatpush1.bf16.msra.mxu0 %v3731
    %4155 = vmatprep.subr.bf16.mxu0 0
    %4156 = vmatpush1.bf16.msra.mxu0 %v3734
    %4157 = vmatprep.subr.bf16.mxu0 0
    %4158 = vmatpush1.bf16.msra.mxu0 %v3737
    %4159 = vmatprep.subr.bf16.mxu0 0
    %4160 = vmatpush1.bf16.msra.mxu0 %v3740
    %4161 = vmatprep.subr.bf16.mxu0 0
    %4162 = vmatpush1.bf16.msra.mxu0 %v3743
    %4163 = vmatprep.subr.bf16.mxu0 0
    %4164 = vmatpush1.bf16.msra.mxu0 %v3746
    %4165 = vmatprep.subr.bf16.mxu0 0
    %4166 = vmatpush1.bf16.msra.mxu0 %v3749
    %4167 = vmatprep.subr.bf16.mxu0 0
    %4168 = vmatpush1.bf16.msra.mxu0 0
    %4169 = vmatprep.subr.bf16.mxu0 0
    %4170 = vmatpush1.bf16.msra.mxu0 0
    %4171 = vmatprep.subr.bf16.mxu0 0
    %4172 = vmatpush1.bf16.msra.mxu0 0
    %4173 = vmatprep.subr.bf16.mxu0 0
    %4174 = vmatpush1.bf16.msra.mxu0 0
    %4175 = vmatprep.subr.bf16.mxu0 0
    %4176 = vmatpush1.bf16.msra.mxu0 0
    %4177 = vmatprep.subr.bf16.mxu0 0
    %4178 = vmatpush1.bf16.msra.mxu0 0
    %4179 = vmatprep.subr.bf16.mxu0 0
    %4180 = vmatpush1.bf16.msra.mxu0 0
    %4181 = vmatprep.subr.bf16.mxu0 0
    %4182 = vmatpush1.bf16.msra.mxu0 0
    %4183 = vmatprep.mubr.bf16.mxu0 0
    %4184 = vmatmul.mubr.bf16.gmra.mrb[0].mxu0 %v4108
    %v4185 = vpop.f32.mrb[0].mxu0
    %v4186 = vadd.f32 %v3645, %v4185
    %v4187 = vpop.f32.mrb[0].mxu0
    %v4188 = vpop.f32.mrb[0].mxu0
    %v4189 = vpop.f32.mrb[0].mxu0
    %4190 = vdwg.mxu0
    %v4192 = vrot.slane %v4145, 2
    %v4194 = vadd.f32 %v3534, %v4192
    %v4195 = vsub.f32 0.0, %v4194
    %v4196 = vmul.f32 %v4195, 1.442695
    %v4197 = vpow.pop %v4196
    %v4198 = vadd.f32 %v4197, 1.0
    %v4199 = vrcp.pop %v4198
    %v4201 = vrot.slane %v4147, 2
    %v4203 = vadd.f32 %v3536, %v4201
    %v4204 = vsub.f32 0.0, %v4203
    %v4205 = vmul.f32 %v4204, 1.442695
    %v4206 = vpow.pop %v4205
    %v4207 = vadd.f32 %v4206, 1.0
    %v4208 = vrcp.pop %v4207
    %v4210 = vrot.slane %v4186, 2
    %v4212 = vmul.f32 %v4199, %v4210
    %v4213 = vadd.f32 %v3587, %v4212
    %v4214 = vtanh.pop %v4213
    %v4215 = vsub.f32 1.0, %v4208
    %v4216 = vmul.f32 %v4215, %v4214
    %v4218 = vrot.slane %v4104, 6
    %v4220 = vmul.f32 %v4208, %v4218
    %v4221 = vadd.f32 %v4216, %v4220
    %4222 = vst [vmem:[#allocation2] sm:$0xc0] %v4221
    %v4223 = vpack.c.bf16 %v4221, %v4221
    %v4225 = vrot.slane %v4223, 3
    %4227 = vmatprep.subr.bf16.mxu0 %v3727
    %4228 = vmatpush1.bf16.msra.mxu0 %v3726
    %4229 = vmatprep.subr.bf16.mxu0 %v3730
    %4230 = vmatpush1.bf16.msra.mxu0 %v3729
    %4231 = vmatprep.subr.bf16.mxu0 %v3733
    %4232 = vmatpush1.bf16.msra.mxu0 %v3732
    %4233 = vmatprep.subr.bf16.mxu0 %v3736
    %4234 = vmatpush1.bf16.msra.mxu0 %v3735
    %4235 = vmatprep.subr.bf16.mxu0 %v3739
    %4236 = vmatpush1.bf16.msra.mxu0 %v3738
    %4237 = vmatprep.subr.bf16.mxu0 %v3742
    %4238 = vmatpush1.bf16.msra.mxu0 %v3741
    %4239 = vmatprep.subr.bf16.mxu0 %v3745
    %4240 = vmatpush1.bf16.msra.mxu0 %v3744
    %4241 = vmatprep.subr.bf16.mxu0 %v3748
    %4242 = vmatpush1.bf16.msra.mxu0 %v3747
    %4243 = vmatprep.subr.bf16.mxu0 0
    %4244 = vmatpush1.bf16.msra.mxu0 0
    %4245 = vmatprep.subr.bf16.mxu0 0
    %4246 = vmatpush1.bf16.msra.mxu0 0
    %4247 = vmatprep.subr.bf16.mxu0 0
    %4248 = vmatpush1.bf16.msra.mxu0 0
    %4249 = vmatprep.subr.bf16.mxu0 0
    %4250 = vmatpush1.bf16.msra.mxu0 0
    %4251 = vmatprep.subr.bf16.mxu0 0
    %4252 = vmatpush1.bf16.msra.mxu0 0
    %4253 = vmatprep.subr.bf16.mxu0 0
    %4254 = vmatpush1.bf16.msra.mxu0 0
    %4255 = vmatprep.subr.bf16.mxu0 0
    %4256 = vmatpush1.bf16.msra.mxu0 0
    %4257 = vmatprep.subr.bf16.mxu0 0
    %4258 = vmatpush1.bf16.msra.mxu0 0
    %4259 = vmatprep.mubr.bf16.mxu0 0
    %4260 = vmatmul.mubr.bf16.gmra.mrb[0].mxu0 %v4225
    %v4261 = vpop.f32.mrb[0].mxu0
    %v4262 = vadd.f32 %v3637, %v4261
    %v4263 = vpop.f32.mrb[0].mxu0
    %v4264 = vadd.f32 %v3641, %v4263
    %v4265 = vpop.f32.mrb[0].mxu0
    %v4266 = vpop.f32.mrb[0].mxu0
    %4267 = vdwg.mxu0
    %4268 = vmatprep.subr.bf16.mxu0 0
    %4269 = vmatpush1.bf16.msra.mxu0 %v3728
    %4270 = vmatprep.subr.bf16.mxu0 0
    %4271 = vmatpush1.bf16.msra.mxu0 %v3731
    %4272 = vmatprep.subr.bf16.mxu0 0
    %4273 = vmatpush1.bf16.msra.mxu0 %v3734
    %4274 = vmatprep.subr.bf16.mxu0 0
    %4275 = vmatpush1.bf16.msra.mxu0 %v3737
    %4276 = vmatprep.subr.bf16.mxu0 0
    %4277 = vmatpush1.bf16.msra.mxu0 %v3740
    %4278 = vmatprep.subr.bf16.mxu0 0
    %4279 = vmatpush1.bf16.msra.mxu0 %v3743
    %4280 = vmatprep.subr.bf16.mxu0 0
    %4281 = vmatpush1.bf16.msra.mxu0 %v3746
    %4282 = vmatprep.subr.bf16.mxu0 0
    %4283 = vmatpush1.bf16.msra.mxu0 %v3749
    %4284 = vmatprep.subr.bf16.mxu0 0
    %4285 = vmatpush1.bf16.msra.mxu0 0
    %4286 = vmatprep.subr.bf16.mxu0 0
    %4287 = vmatpush1.bf16.msra.mxu0 0
    %4288 = vmatprep.subr.bf16.mxu0 0
    %4289 = vmatpush1.bf16.msra.mxu0 0
    %4290 = vmatprep.subr.bf16.mxu0 0
    %4291 = vmatpush1.bf16.msra.mxu0 0
    %4292 = vmatprep.subr.bf16.mxu0 0
    %4293 = vmatpush1.bf16.msra.mxu0 0
    %4294 = vmatprep.subr.bf16.mxu0 0
    %4295 = vmatpush1.bf16.msra.mxu0 0
    %4296 = vmatprep.subr.bf16.mxu0 0
    %4297 = vmatpush1.bf16.msra.mxu0 0
    %4298 = vmatprep.subr.bf16.mxu0 0
    %4299 = vmatpush1.bf16.msra.mxu0 0
    %4300 = vmatprep.mubr.bf16.mxu0 0
    %4301 = vmatmul.mubr.bf16.gmra.mrb[0].mxu0 %v4225
    %v4302 = vpop.f32.mrb[0].mxu0
    %v4303 = vadd.f32 %v3645, %v4302
    %v4304 = vpop.f32.mrb[0].mxu0
    %v4305 = vpop.f32.mrb[0].mxu0
    %v4306 = vpop.f32.mrb[0].mxu0
    %4307 = vdwg.mxu0
    %v4308 = vadd.f32 %v3538, %v4262
    %v4309 = vsub.f32 0.0, %v4308
    %v4310 = vmul.f32 %v4309, 1.442695
    %v4311 = vpow.pop %v4310
    %v4312 = vadd.f32 %v4311, 1.0
    %v4313 = vrcp.pop %v4312
    %v4314 = vadd.f32 %v3540, %v4264
    %v4315 = vsub.f32 0.0, %v4314
    %v4316 = vmul.f32 %v4315, 1.442695
    %v4317 = vpow.pop %v4316
    %v4318 = vadd.f32 %v4317, 1.0
    %v4319 = vrcp.pop %v4318
    %v4320 = vmul.f32 %v4313, %v4303
    %v4321 = vadd.f32 %v3590, %v4320
    %v4322 = vtanh.pop %v4321
    %v4323 = vsub.f32 1.0, %v4319
    %v4324 = vmul.f32 %v4323, %v4322
    %v4326 = vrot.slane %v4221, 6
    %v4328 = vmul.f32 %v4319, %v4326
    %v4329 = vadd.f32 %v4324, %v4328
    %4330 = vst [vmem:[#allocation2 + $0x8] sm:$0x3] %v4329
    %v4331 = vpack.c.bf16 %v4329, %v4329
    %4332 = vmatprep.subr.bf16.mxu0 %v3727
    %4333 = vmatpush1.bf16.msra.mxu0 %v3726
    %4334 = vmatprep.subr.bf16.mxu0 %v3730
    %4335 = vmatpush1.bf16.msra.mxu0 %v3729
    %4336 = vmatprep.subr.bf16.mxu0 %v3733
    %4337 = vmatpush1.bf16.msra.mxu0 %v3732
    %4338 = vmatprep.subr.bf16.mxu0 %v3736
    %4339 = vmatpush1.bf16.msra.mxu0 %v3735
    %4340 = vmatprep.subr.bf16.mxu0 %v3739
    %4341 = vmatpush1.bf16.msra.mxu0 %v3738
    %4342 = vmatprep.subr.bf16.mxu0 %v3742
    %4343 = vmatpush1.bf16.msra.mxu0 %v3741
    %4344 = vmatprep.subr.bf16.mxu0 %v3745
    %4345 = vmatpush1.bf16.msra.mxu0 %v3744
    %4346 = vmatprep.subr.bf16.mxu0 %v3748
    %4347 = vmatpush1.bf16.msra.mxu0 %v3747
    %4348 = vmatprep.subr.bf16.mxu0 0
    %4349 = vmatpush1.bf16.msra.mxu0 0
    %4350 = vmatprep.subr.bf16.mxu0 0
    %4351 = vmatpush1.bf16.msra.mxu0 0
    %4352 = vmatprep.subr.bf16.mxu0 0
    %4353 = vmatpush1.bf16.msra.mxu0 0
    %4354 = vmatprep.subr.bf16.mxu0 0
    %4355 = vmatpush1.bf16.msra.mxu0 0
    %4356 = vmatprep.subr.bf16.mxu0 0
    %4357 = vmatpush1.bf16.msra.mxu0 0
    %4358 = vmatprep.subr.bf16.mxu0 0
    %4359 = vmatpush1.bf16.msra.mxu0 0
    %4360 = vmatprep.subr.bf16.mxu0 0
    %4361 = vmatpush1.bf16.msra.mxu0 0
    %4362 = vmatprep.subr.bf16.mxu0 0
    %4363 = vmatpush1.bf16.msra.mxu0 0
    %4364 = vmatprep.mubr.bf16.mxu0 0
    %4365 = vmatmul.mubr.bf16.gmra.mrb[0].mxu0 %v4331
    %v4366 = vpop.f32.mrb[0].mxu0
    %v4367 = vadd.f32 %v3637, %v4366
    %v4368 = vpop.f32.mrb[0].mxu0
    %v4369 = vadd.f32 %v3641, %v4368
    %v4370 = vpop.f32.mrb[0].mxu0
    %v4371 = vpop.f32.mrb[0].mxu0
    %4372 = vdwg.mxu0
    %4373 = vmatprep.subr.bf16.mxu0 0
    %4374 = vmatpush1.bf16.msra.mxu0 %v3728
    %4375 = vmatprep.subr.bf16.mxu0 0
    %4376 = vmatpush1.bf16.msra.mxu0 %v3731
    %4377 = vmatprep.subr.bf16.mxu0 0
    %4378 = vmatpush1.bf16.msra.mxu0 %v3734
    %4379 = vmatprep.subr.bf16.mxu0 0
    %4380 = vmatpush1.bf16.msra.mxu0 %v3737
    %4381 = vmatprep.subr.bf16.mxu0 0
    %4382 = vmatpush1.bf16.msra.mxu0 %v3740
    %4383 = vmatprep.subr.bf16.mxu0 0
    %4384 = vmatpush1.bf16.msra.mxu0 %v3743
    %4385 = vmatprep.subr.bf16.mxu0 0
    %4386 = vmatpush1.bf16.msra.mxu0 %v3746
    %4387 = vmatprep.subr.bf16.mxu0 0
    %4388 = vmatpush1.bf16.msra.mxu0 %v3749
    %4389 = vmatprep.subr.bf16.mxu0 0
    %4390 = vmatpush1.bf16.msra.mxu0 0
    %4391 = vmatprep.subr.bf16.mxu0 0
    %4392 = vmatpush1.bf16.msra.mxu0 0
    %4393 = vmatprep.subr.bf16.mxu0 0
    %4394 = vmatpush1.bf16.msra.mxu0 0
    %4395 = vmatprep.subr.bf16.mxu0 0
    %4396 = vmatpush1.bf16.msra.mxu0 0
    %4397 = vmatprep.subr.bf16.mxu0 0
    %4398 = vmatpush1.bf16.msra.mxu0 0
    %4399 = vmatprep.subr.bf16.mxu0 0
    %4400 = vmatpush1.bf16.msra.mxu0 0
    %4401 = vmatprep.subr.bf16.mxu0 0
    %4402 = vmatpush1.bf16.msra.mxu0 0
    %4403 = vmatprep.subr.bf16.mxu0 0
    %4404 = vmatpush1.bf16.msra.mxu0 0
    %4405 = vmatprep.mubr.bf16.mxu0 0
    %4406 = vmatmul.mubr.bf16.gmra.mrb[0].mxu0 %v4331
    %v4407 = vpop.f32.mrb[0].mxu0
    %v4408 = vadd.f32 %v3645, %v4407
    %v4409 = vpop.f32.mrb[0].mxu0
    %v4410 = vpop.f32.mrb[0].mxu0
    %v4411 = vpop.f32.mrb[0].mxu0
    %4412 = vdwg.mxu0
    %v4414 = vrot.slane %v4367, 6
    %v4416 = vadd.f32 %v3538, %v4414
    %v4417 = vsub.f32 0.0, %v4416
    %v4418 = vmul.f32 %v4417, 1.442695
    %v4419 = vpow.pop %v4418
    %v4420 = vadd.f32 %v4419, 1.0
    %v4421 = vrcp.pop %v4420
    %v4423 = vrot.slane %v4369, 6
    %v4425 = vadd.f32 %v3540, %v4423
    %v4426 = vsub.f32 0.0, %v4425
    %v4427 = vmul.f32 %v4426, 1.442695
    %v4428 = vpow.pop %v4427
    %v4429 = vadd.f32 %v4428, 1.0
    %v4430 = vrcp.pop %v4429
    %v4432 = vrot.slane %v4408, 6
    %v4434 = vmul.f32 %v4421, %v4432
    %v4435 = vadd.f32 %v3590, %v4434
    %v4436 = vtanh.pop %v4435
    %v4437 = vsub.f32 1.0, %v4430
    %v4438 = vmul.f32 %v4437, %v4436
    %v4440 = vrot.slane %v4329, 6
    %v4442 = vmul.f32 %v4430, %v4440
    %v4443 = vadd.f32 %v4438, %v4442
    %4444 = vst [vmem:[#allocation2 + $0x8] sm:$0xc] %v4443
    %v4445 = vpack.c.bf16 %v4443, %v4443
    %v4447 = vrot.slane %v4445, 1
    %4449 = vmatprep.subr.bf16.mxu0 %v3727
    %4450 = vmatpush1.bf16.msra.mxu0 %v3726
    %4451 = vmatprep.subr.bf16.mxu0 %v3730
    %4452 = vmatpush1.bf16.msra.mxu0 %v3729
    %4453 = vmatprep.subr.bf16.mxu0 %v3733
    %4454 = vmatpush1.bf16.msra.mxu0 %v3732
    %4455 = vmatprep.subr.bf16.mxu0 %v3736
    %4456 = vmatpush1.bf16.msra.mxu0 %v3735
    %4457 = vmatprep.subr.bf16.mxu0 %v3739
    %4458 = vmatpush1.bf16.msra.mxu0 %v3738
    %4459 = vmatprep.subr.bf16.mxu0 %v3742
    %4460 = vmatpush1.bf16.msra.mxu0 %v3741
    %4461 = vmatprep.subr.bf16.mxu0 %v3745
    %4462 = vmatpush1.bf16.msra.mxu0 %v3744
    %4463 = vmatprep.subr.bf16.mxu0 %v3748
    %4464 = vmatpush1.bf16.msra.mxu0 %v3747
    %4465 = vmatprep.subr.bf16.mxu0 0
    %4466 = vmatpush1.bf16.msra.mxu0 0
    %4467 = vmatprep.subr.bf16.mxu0 0
    %4468 = vmatpush1.bf16.msra.mxu0 0
    %4469 = vmatprep.subr.bf16.mxu0 0
    %4470 = vmatpush1.bf16.msra.mxu0 0
    %4471 = vmatprep.subr.bf16.mxu0 0
    %4472 = vmatpush1.bf16.msra.mxu0 0
    %4473 = vmatprep.subr.bf16.mxu0 0
    %4474 = vmatpush1.bf16.msra.mxu0 0
    %4475 = vmatprep.subr.bf16.mxu0 0
    %4476 = vmatpush1.bf16.msra.mxu0 0
    %4477 = vmatprep.subr.bf16.mxu0 0
    %4478 = vmatpush1.bf16.msra.mxu0 0
    %4479 = vmatprep.subr.bf16.mxu0 0
    %4480 = vmatpush1.bf16.msra.mxu0 0
    %4481 = vmatprep.mubr.bf16.mxu0 0
    %4482 = vmatmul.mubr.bf16.gmra.mrb[0].mxu0 %v4447
    %v4483 = vpop.f32.mrb[0].mxu0
    %v4484 = vadd.f32 %v3637, %v4483
    %v4485 = vpop.f32.mrb[0].mxu0
    %v4486 = vadd.f32 %v3641, %v4485
    %v4487 = vpop.f32.mrb[0].mxu0
    %v4488 = vpop.f32.mrb[0].mxu0
    %4489 = vdwg.mxu0
    %4490 = vmatprep.subr.bf16.mxu0 0
    %4491 = vmatpush1.bf16.msra.mxu0 %v3728
    %4492 = vmatprep.subr.bf16.mxu0 0
    %4493 = vmatpush1.bf16.msra.mxu0 %v3731
    %4494 = vmatprep.subr.bf16.mxu0 0
    %4495 = vmatpush1.bf16.msra.mxu0 %v3734
    %4496 = vmatprep.subr.bf16.mxu0 0
    %4497 = vmatpush1.bf16.msra.mxu0 %v3737
    %4498 = vmatprep.subr.bf16.mxu0 0
    %4499 = vmatpush1.bf16.msra.mxu0 %v3740
    %4500 = vmatprep.subr.bf16.mxu0 0
    %4501 = vmatpush1.bf16.msra.mxu0 %v3743
    %4502 = vmatprep.subr.bf16.mxu0 0
    %4503 = vmatpush1.bf16.msra.mxu0 %v3746
    %4504 = vmatprep.subr.bf16.mxu0 0
    %4505 = vmatpush1.bf16.msra.mxu0 %v3749
    %4506 = vmatprep.subr.bf16.mxu0 0
    %4507 = vmatpush1.bf16.msra.mxu0 0
    %4508 = vmatprep.subr.bf16.mxu0 0
    %4509 = vmatpush1.bf16.msra.mxu0 0
    %4510 = vmatprep.subr.bf16.mxu0 0
    %4511 = vmatpush1.bf16.msra.mxu0 0
    %4512 = vmatprep.subr.bf16.mxu0 0
    %4513 = vmatpush1.bf16.msra.mxu0 0
    %4514 = vmatprep.subr.bf16.mxu0 0
    %4515 = vmatpush1.bf16.msra.mxu0 0
    %4516 = vmatprep.subr.bf16.mxu0 0
    %4517 = vmatpush1.bf16.msra.mxu0 0
    %4518 = vmatprep.subr.bf16.mxu0 0
    %4519 = vmatpush1.bf16.msra.mxu0 0
    %4520 = vmatprep.subr.bf16.mxu0 0
    %4521 = vmatpush1.bf16.msra.mxu0 0
    %4522 = vmatprep.mubr.bf16.mxu0 0
    %4523 = vmatmul.mubr.bf16.gmra.mrb[0].mxu0 %v4447
    %v4524 = vpop.f32.mrb[0].mxu0
    %v4525 = vadd.f32 %v3645, %v4524
    %v4526 = vpop.f32.mrb[0].mxu0
    %v4527 = vpop.f32.mrb[0].mxu0
    %v4528 = vpop.f32.mrb[0].mxu0
    %4529 = vdwg.mxu0
    %v4531 = vrot.slane %v4484, 4
    %v4533 = vadd.f32 %v3538, %v4531
    %v4534 = vsub.f32 0.0, %v4533
    %v4535 = vmul.f32 %v4534, 1.442695
    %v4536 = vpow.pop %v4535
    %v4537 = vadd.f32 %v4536, 1.0
    %v4538 = vrcp.pop %v4537
    %v4540 = vrot.slane %v4486, 4
    %v4542 = vadd.f32 %v3540, %v4540
    %v4543 = vsub.f32 0.0, %v4542
    %v4544 = vmul.f32 %v4543, 1.442695
    %v4545 = vpow.pop %v4544
    %v4546 = vadd.f32 %v4545, 1.0
    %v4547 = vrcp.pop %v4546
    %v4549 = vrot.slane %v4525, 4
    %v4551 = vmul.f32 %v4538, %v4549
    %v4552 = vadd.f32 %v3590, %v4551
    %v4553 = vtanh.pop %v4552
    %v4554 = vsub.f32 1.0, %v4547
    %v4555 = vmul.f32 %v4554, %v4553
    %v4557 = vrot.slane %v4443, 6
    %v4559 = vmul.f32 %v4547, %v4557
    %v4560 = vadd.f32 %v4555, %v4559
    %4561 = vst [vmem:[#allocation2 + $0x8] sm:$0x30] %v4560
    %v4562 = vpack.c.bf16 %v4560, %v4560
    %v4564 = vrot.slane %v4562, 2
    %4566 = vmatprep.subr.bf16.mxu0 %v3727
    %4567 = vmatpush1.bf16.msra.mxu0 %v3726
    %4568 = vmatprep.subr.bf16.mxu0 %v3730
    %4569 = vmatpush1.bf16.msra.mxu0 %v3729
    %4570 = vmatprep.subr.bf16.mxu0 %v3733
    %4571 = vmatpush1.bf16.msra.mxu0 %v3732
    %4572 = vmatprep.subr.bf16.mxu0 %v3736
    %4573 = vmatpush1.bf16.msra.mxu0 %v3735
    %4574 = vmatprep.subr.bf16.mxu0 %v3739
    %4575 = vmatpush1.bf16.msra.mxu0 %v3738
    %4576 = vmatprep.subr.bf16.mxu0 %v3742
    %4577 = vmatpush1.bf16.msra.mxu0 %v3741
    %4578 = vmatprep.subr.bf16.mxu0 %v3745
    %4579 = vmatpush1.bf16.msra.mxu0 %v3744
    %4580 = vmatprep.subr.bf16.mxu0 %v3748
    %4581 = vmatpush1.bf16.msra.mxu0 %v3747
    %4582 = vmatprep.subr.bf16.mxu0 0
    %4583 = vmatpush1.bf16.msra.mxu0 0
    %4584 = vmatprep.subr.bf16.mxu0 0
    %4585 = vmatpush1.bf16.msra.mxu0 0
    %4586 = vmatprep.subr.bf16.mxu0 0
    %4587 = vmatpush1.bf16.msra.mxu0 0
    %4588 = vmatprep.subr.bf16.mxu0 0
    %4589 = vmatpush1.bf16.msra.mxu0 0
    %4590 = vmatprep.subr.bf16.mxu0 0
    %4591 = vmatpush1.bf16.msra.mxu0 0
    %4592 = vmatprep.subr.bf16.mxu0 0
    %4593 = vmatpush1.bf16.msra.mxu0 0
    %4594 = vmatprep.subr.bf16.mxu0 0
    %4595 = vmatpush1.bf16.msra.mxu0 0
    %4596 = vmatprep.subr.bf16.mxu0 0
    %4597 = vmatpush1.bf16.msra.mxu0 0
    %4598 = vmatprep.mubr.bf16.mxu0 0
    %4599 = vmatmul.mubr.bf16.gmra.mrb[0].mxu0 %v4564
    %v4600 = vpop.f32.mrb[0].mxu0
    %v4601 = vadd.f32 %v3637, %v4600
    %v4602 = vpop.f32.mrb[0].mxu0
    %v4603 = vadd.f32 %v3641, %v4602
    %v4604 = vpop.f32.mrb[0].mxu0
    %v4605 = vpop.f32.mrb[0].mxu0
    %4606 = vdwg.mxu0
    %4607 = vmatprep.subr.bf16.mxu0 0
    %4608 = vmatpush1.bf16.msra.mxu0 %v3728
    %4609 = vmatprep.subr.bf16.mxu0 0
    %4610 = vmatpush1.bf16.msra.mxu0 %v3731
    %4611 = vmatprep.subr.bf16.mxu0 0
    %4612 = vmatpush1.bf16.msra.mxu0 %v3734
    %4613 = vmatprep.subr.bf16.mxu0 0
    %4614 = vmatpush1.bf16.msra.mxu0 %v3737
    %4615 = vmatprep.subr.bf16.mxu0 0
    %4616 = vmatpush1.bf16.msra.mxu0 %v3740
    %4617 = vmatprep.subr.bf16.mxu0 0
    %4618 = vmatpush1.bf16.msra.mxu0 %v3743
    %4619 = vmatprep.subr.bf16.mxu0 0
    %4620 = vmatpush1.bf16.msra.mxu0 %v3746
    %4621 = vmatprep.subr.bf16.mxu0 0
    %4622 = vmatpush1.bf16.msra.mxu0 %v3749
    %4623 = vmatprep.subr.bf16.mxu0 0
    %4624 = vmatpush1.bf16.msra.mxu0 0
    %4625 = vmatprep.subr.bf16.mxu0 0
    %4626 = vmatpush1.bf16.msra.mxu0 0
    %4627 = vmatprep.subr.bf16.mxu0 0
    %4628 = vmatpush1.bf16.msra.mxu0 0
    %4629 = vmatprep.subr.bf16.mxu0 0
    %4630 = vmatpush1.bf16.msra.mxu0 0
    %4631 = vmatprep.subr.bf16.mxu0 0
    %4632 = vmatpush1.bf16.msra.mxu0 0
    %4633 = vmatprep.subr.bf16.mxu0 0
    %4634 = vmatpush1.bf16.msra.mxu0 0
    %4635 = vmatprep.subr.bf16.mxu0 0
    %4636 = vmatpush1.bf16.msra.mxu0 0
    %4637 = vmatprep.subr.bf16.mxu0 0
    %4638 = vmatpush1.bf16.msra.mxu0 0
    %4639 = vmatprep.mubr.bf16.mxu0 0
    %4640 = vmatmul.mubr.bf16.gmra.mrb[0].mxu0 %v4564
    %v4641 = vpop.f32.mrb[0].mxu0
    %v4642 = vadd.f32 %v3645, %v4641
    %v4643 = vpop.f32.mrb[0].mxu0
    %v4644 = vpop.f32.mrb[0].mxu0
    %v4645 = vpop.f32.mrb[0].mxu0
    %4646 = vdwg.mxu0
    %v4648 = vrot.slane %v4601, 2
    %v4650 = vadd.f32 %v3538, %v4648
    %v4651 = vsub.f32 0.0, %v4650
    %v4652 = vmul.f32 %v4651, 1.442695
    %v4653 = vpow.pop %v4652
    %v4654 = vadd.f32 %v4653, 1.0
    %v4655 = vrcp.pop %v4654
    %v4657 = vrot.slane %v4603, 2
    %v4659 = vadd.f32 %v3540, %v4657
    %v4660 = vsub.f32 0.0, %v4659
    %v4661 = vmul.f32 %v4660, 1.442695
    %v4662 = vpow.pop %v4661
    %v4663 = vadd.f32 %v4662, 1.0
    %v4664 = vrcp.pop %v4663
    %v4666 = vrot.slane %v4642, 2
    %v4668 = vmul.f32 %v4655, %v4666
    %v4669 = vadd.f32 %v3590, %v4668
    %v4670 = vtanh.pop %v4669
    %v4671 = vsub.f32 1.0, %v4664
    %v4672 = vmul.f32 %v4671, %v4670
    %v4674 = vrot.slane %v4560, 6
    %v4676 = vmul.f32 %v4664, %v4674
    %v4677 = vadd.f32 %v4672, %v4676
    %4678 = vst [vmem:[#allocation2 + $0x8] sm:$0xc0] %v4677
    %v4679 = vpack.c.bf16 %v4677, %v4677
    %v4681 = vrot.slane %v4679, 3
    %4683 = vmatprep.subr.bf16.mxu0 %v3727
    %4684 = vmatpush1.bf16.msra.mxu0 %v3726
    %4685 = vmatprep.subr.bf16.mxu0 %v3730
    %4686 = vmatpush1.bf16.msra.mxu0 %v3729
    %4687 = vmatprep.subr.bf16.mxu0 %v3733
    %4688 = vmatpush1.bf16.msra.mxu0 %v3732
    %4689 = vmatprep.subr.bf16.mxu0 %v3736
    %4690 = vmatpush1.bf16.msra.mxu0 %v3735
    %4691 = vmatprep.subr.bf16.mxu0 %v3739
    %4692 = vmatpush1.bf16.msra.mxu0 %v3738
    %4693 = vmatprep.subr.bf16.mxu0 %v3742
    %4694 = vmatpush1.bf16.msra.mxu0 %v3741
    %4695 = vmatprep.subr.bf16.mxu0 %v3745
    %4696 = vmatpush1.bf16.msra.mxu0 %v3744
    %4697 = vmatprep.subr.bf16.mxu0 %v3748
    %4698 = vmatpush1.bf16.msra.mxu0 %v3747
    %4699 = vmatprep.subr.bf16.mxu0 0
    %4700 = vmatpush1.bf16.msra.mxu0 0
    %4701 = vmatprep.subr.bf16.mxu0 0
    %4702 = vmatpush1.bf16.msra.mxu0 0
    %4703 = vmatprep.subr.bf16.mxu0 0
    %4704 = vmatpush1.bf16.msra.mxu0 0
    %4705 = vmatprep.subr.bf16.mxu0 0
    %4706 = vmatpush1.bf16.msra.mxu0 0
    %4707 = vmatprep.subr.bf16.mxu0 0
    %4708 = vmatpush1.bf16.msra.mxu0 0
    %4709 = vmatprep.subr.bf16.mxu0 0
    %4710 = vmatpush1.bf16.msra.mxu0 0
    %4711 = vmatprep.subr.bf16.mxu0 0
    %4712 = vmatpush1.bf16.msra.mxu0 0
    %4713 = vmatprep.subr.bf16.mxu0 0
    %4714 = vmatpush1.bf16.msra.mxu0 0
    %4715 = vmatprep.mubr.bf16.mxu0 0
    %4716 = vmatmul.mubr.bf16.gmra.mrb[0].mxu0 %v4681
    %v4717 = vpop.f32.mrb[0].mxu0
    %v4718 = vadd.f32 %v3637, %v4717
    %v4719 = vpop.f32.mrb[0].mxu0
    %v4720 = vadd.f32 %v3641, %v4719
    %v4721 = vpop.f32.mrb[0].mxu0
    %v4722 = vpop.f32.mrb[0].mxu0
    %4723 = vdwg.mxu0
    %4724 = vmatprep.subr.bf16.mxu0 0
    %4725 = vmatpush1.bf16.msra.mxu0 %v3728
    %4726 = vmatprep.subr.bf16.mxu0 0
    %4727 = vmatpush1.bf16.msra.mxu0 %v3731
    %4728 = vmatprep.subr.bf16.mxu0 0
    %4729 = vmatpush1.bf16.msra.mxu0 %v3734
    %4730 = vmatprep.subr.bf16.mxu0 0
    %4731 = vmatpush1.bf16.msra.mxu0 %v3737
    %4732 = vmatprep.subr.bf16.mxu0 0
    %4733 = vmatpush1.bf16.msra.mxu0 %v3740
    %4734 = vmatprep.subr.bf16.mxu0 0
    %4735 = vmatpush1.bf16.msra.mxu0 %v3743
    %4736 = vmatprep.subr.bf16.mxu0 0
    %4737 = vmatpush1.bf16.msra.mxu0 %v3746
    %4738 = vmatprep.subr.bf16.mxu0 0
    %4739 = vmatpush1.bf16.msra.mxu0 %v3749
    %4740 = vmatprep.subr.bf16.mxu0 0
    %4741 = vmatpush1.bf16.msra.mxu0 0
    %4742 = vmatprep.subr.bf16.mxu0 0
    %4743 = vmatpush1.bf16.msra.mxu0 0
    %4744 = vmatprep.subr.bf16.mxu0 0
    %4745 = vmatpush1.bf16.msra.mxu0 0
    %4746 = vmatprep.subr.bf16.mxu0 0
    %4747 = vmatpush1.bf16.msra.mxu0 0
    %4748 = vmatprep.subr.bf16.mxu0 0
    %4749 = vmatpush1.bf16.msra.mxu0 0
    %4750 = vmatprep.subr.bf16.mxu0 0
    %4751 = vmatpush1.bf16.msra.mxu0 0
    %4752 = vmatprep.subr.bf16.mxu0 0
    %4753 = vmatpush1.bf16.msra.mxu0 0
    %4754 = vmatprep.subr.bf16.mxu0 0
    %4755 = vmatpush1.bf16.msra.mxu0 0
    %4756 = vmatprep.mubr.bf16.mxu0 0
    %4757 = vmatmul.mubr.bf16.gmra.mrb[0].mxu0 %v4681
    %v4758 = vpop.f32.mrb[0].mxu0
    %v4759 = vadd.f32 %v3645, %v4758
    %v4760 = vpop.f32.mrb[0].mxu0
    %v4761 = vpop.f32.mrb[0].mxu0
    %v4762 = vpop.f32.mrb[0].mxu0
    %4763 = vdwg.mxu0
    %v4764 = vadd.f32 %v3544, %v4718
    %v4765 = vsub.f32 0.0, %v4764
    %v4766 = vmul.f32 %v4765, 1.442695
    %v4767 = vpow.pop %v4766
    %v4768 = vadd.f32 %v4767, 1.0
    %v4769 = vrcp.pop %v4768
    %v4770 = vadd.f32 %v3546, %v4720
    %v4771 = vsub.f32 0.0, %v4770
    %v4772 = vmul.f32 %v4771, 1.442695
    %v4773 = vpow.pop %v4772
    %v4774 = vadd.f32 %v4773, 1.0
    %v4775 = vrcp.pop %v4774
    %v4776 = vmul.f32 %v4769, %v4759
    %v4777 = vadd.f32 %v3595, %v4776
    %v4778 = vtanh.pop %v4777
    %v4779 = vsub.f32 1.0, %v4775
    %v4780 = vmul.f32 %v4779, %v4778
    %v4782 = vrot.slane %v4677, 6
    %v4784 = vmul.f32 %v4775, %v4782
    %v4785 = vadd.f32 %v4780, %v4784
    %4786 = vst [vmem:[#allocation2 + $0x10] sm:$0x3] %v4785
    %v4787 = vpack.c.bf16 %v4785, %v4785
    %4788 = vmatprep.subr.bf16.mxu0 %v3727
    %4789 = vmatpush1.bf16.msra.mxu0 %v3726
    %4790 = vmatprep.subr.bf16.mxu0 %v3730
    %4791 = vmatpush1.bf16.msra.mxu0 %v3729
    %4792 = vmatprep.subr.bf16.mxu0 %v3733
    %4793 = vmatpush1.bf16.msra.mxu0 %v3732
    %4794 = vmatprep.subr.bf16.mxu0 %v3736
    %4795 = vmatpush1.bf16.msra.mxu0 %v3735
    %4796 = vmatprep.subr.bf16.mxu0 %v3739
    %4797 = vmatpush1.bf16.msra.mxu0 %v3738
    %4798 = vmatprep.subr.bf16.mxu0 %v3742
    %4799 = vmatpush1.bf16.msra.mxu0 %v3741
    %4800 = vmatprep.subr.bf16.mxu0 %v3745
    %4801 = vmatpush1.bf16.msra.mxu0 %v3744
    %4802 = vmatprep.subr.bf16.mxu0 %v3748
    %4803 = vmatpush1.bf16.msra.mxu0 %v3747
    %4804 = vmatprep.subr.bf16.mxu0 0
    %4805 = vmatpush1.bf16.msra.mxu0 0
    %4806 = vmatprep.subr.bf16.mxu0 0
    %4807 = vmatpush1.bf16.msra.mxu0 0
    %4808 = vmatprep.subr.bf16.mxu0 0
    %4809 = vmatpush1.bf16.msra.mxu0 0
    %4810 = vmatprep.subr.bf16.mxu0 0
    %4811 = vmatpush1.bf16.msra.mxu0 0
    %4812 = vmatprep.subr.bf16.mxu0 0
    %4813 = vmatpush1.bf16.msra.mxu0 0
    %4814 = vmatprep.subr.bf16.mxu0 0
    %4815 = vmatpush1.bf16.msra.mxu0 0
    %4816 = vmatprep.subr.bf16.mxu0 0
    %4817 = vmatpush1.bf16.msra.mxu0 0
    %4818 = vmatprep.subr.bf16.mxu0 0
    %4819 = vmatpush1.bf16.msra.mxu0 0
    %4820 = vmatprep.mubr.bf16.mxu0 0
    %4821 = vmatmul.mubr.bf16.gmra.mrb[0].mxu0 %v4787
    %v4822 = vpop.f32.mrb[0].mxu0
    %v4823 = vadd.f32 %v3637, %v4822
    %v4824 = vpop.f32.mrb[0].mxu0
    %v4825 = vadd.f32 %v3641, %v4824
    %v4826 = vpop.f32.mrb[0].mxu0
    %v4827 = vpop.f32.mrb[0].mxu0
    %4828 = vdwg.mxu0
    %4829 = vmatprep.subr.bf16.mxu0 0
    %4830 = vmatpush1.bf16.msra.mxu0 %v3728
    %4831 = vmatprep.subr.bf16.mxu0 0
    %4832 = vmatpush1.bf16.msra.mxu0 %v3731
    %4833 = vmatprep.subr.bf16.mxu0 0
    %4834 = vmatpush1.bf16.msra.mxu0 %v3734
    %4835 = vmatprep.subr.bf16.mxu0 0
    %4836 = vmatpush1.bf16.msra.mxu0 %v3737
    %4837 = vmatprep.subr.bf16.mxu0 0
    %4838 = vmatpush1.bf16.msra.mxu0 %v3740
    %4839 = vmatprep.subr.bf16.mxu0 0
    %4840 = vmatpush1.bf16.msra.mxu0 %v3743
    %4841 = vmatprep.subr.bf16.mxu0 0
    %4842 = vmatpush1.bf16.msra.mxu0 %v3746
    %4843 = vmatprep.subr.bf16.mxu0 0
    %4844 = vmatpush1.bf16.msra.mxu0 %v3749
    %4845 = vmatprep.subr.bf16.mxu0 0
    %4846 = vmatpush1.bf16.msra.mxu0 0
    %4847 = vmatprep.subr.bf16.mxu0 0
    %4848 = vmatpush1.bf16.msra.mxu0 0
    %4849 = vmatprep.subr.bf16.mxu0 0
    %4850 = vmatpush1.bf16.msra.mxu0 0
    %4851 = vmatprep.subr.bf16.mxu0 0
    %4852 = vmatpush1.bf16.msra.mxu0 0
    %4853 = vmatprep.subr.bf16.mxu0 0
    %4854 = vmatpush1.bf16.msra.mxu0 0
    %4855 = vmatprep.subr.bf16.mxu0 0
    %4856 = vmatpush1.bf16.msra.mxu0 0
    %4857 = vmatprep.subr.bf16.mxu0 0
    %4858 = vmatpush1.bf16.msra.mxu0 0
    %4859 = vmatprep.subr.bf16.mxu0 0
    %4860 = vmatpush1.bf16.msra.mxu0 0
    %4861 = vmatprep.mubr.bf16.mxu0 0
    %4862 = vmatmul.mubr.bf16.gmra.mrb[0].mxu0 %v4787
    %v4863 = vpop.f32.mrb[0].mxu0
    %v4864 = vadd.f32 %v3645, %v4863
    %v4865 = vpop.f32.mrb[0].mxu0
    %v4866 = vpop.f32.mrb[0].mxu0
    %v4867 = vpop.f32.mrb[0].mxu0
    %4868 = vdwg.mxu0
    %v4870 = vrot.slane %v4823, 6
    %v4872 = vadd.f32 %v3544, %v4870
    %v4873 = vsub.f32 0.0, %v4872
    %v4874 = vmul.f32 %v4873, 1.442695
    %v4875 = vpow.pop %v4874
    %v4876 = vadd.f32 %v4875, 1.0
    %v4877 = vrcp.pop %v4876
    %v4879 = vrot.slane %v4825, 6
    %v4881 = vadd.f32 %v3546, %v4879
    %v4882 = vsub.f32 0.0, %v4881
    %v4883 = vmul.f32 %v4882, 1.442695
    %v4884 = vpow.pop %v4883
    %v4885 = vadd.f32 %v4884, 1.0
    %v4886 = vrcp.pop %v4885
    %v4888 = vrot.slane %v4864, 6
    %v4890 = vmul.f32 %v4877, %v4888
    %v4891 = vadd.f32 %v3595, %v4890
    %v4892 = vtanh.pop %v4891
    %v4893 = vsub.f32 1.0, %v4886
    %v4894 = vmul.f32 %v4893, %v4892
    %v4896 = vrot.slane %v4785, 6
    %v4898 = vmul.f32 %v4886, %v4896
    %v4899 = vadd.f32 %v4894, %v4898
    %4900 = vst [vmem:[#allocation2 + $0x10] sm:$0xc] %v4899
    %v4901 = vpack.c.bf16 %v4899, %v4899
    %v4903 = vrot.slane %v4901, 1
    %4905 = vmatprep.subr.bf16.mxu0 %v3727
    %4906 = vmatpush1.bf16.msra.mxu0 %v3726
    %4907 = vmatprep.subr.bf16.mxu0 %v3730
    %4908 = vmatpush1.bf16.msra.mxu0 %v3729
    %4909 = vmatprep.subr.bf16.mxu0 %v3733
    %4910 = vmatpush1.bf16.msra.mxu0 %v3732
    %4911 = vmatprep.subr.bf16.mxu0 %v3736
    %4912 = vmatpush1.bf16.msra.mxu0 %v3735
    %4913 = vmatprep.subr.bf16.mxu0 %v3739
    %4914 = vmatpush1.bf16.msra.mxu0 %v3738
    %4915 = vmatprep.subr.bf16.mxu0 %v3742
    %4916 = vmatpush1.bf16.msra.mxu0 %v3741
    %4917 = vmatprep.subr.bf16.mxu0 %v3745
    %4918 = vmatpush1.bf16.msra.mxu0 %v3744
    %4919 = vmatprep.subr.bf16.mxu0 %v3748
    %4920 = vmatpush1.bf16.msra.mxu0 %v3747
    %4921 = vmatprep.subr.bf16.mxu0 0
    %4922 = vmatpush1.bf16.msra.mxu0 0
    %4923 = vmatprep.subr.bf16.mxu0 0
    %4924 = vmatpush1.bf16.msra.mxu0 0
    %4925 = vmatprep.subr.bf16.mxu0 0
    %4926 = vmatpush1.bf16.msra.mxu0 0
    %4927 = vmatprep.subr.bf16.mxu0 0
    %4928 = vmatpush1.bf16.msra.mxu0 0
    %4929 = vmatprep.subr.bf16.mxu0 0
    %4930 = vmatpush1.bf16.msra.mxu0 0
    %4931 = vmatprep.subr.bf16.mxu0 0
    %4932 = vmatpush1.bf16.msra.mxu0 0
    %4933 = vmatprep.subr.bf16.mxu0 0
    %4934 = vmatpush1.bf16.msra.mxu0 0
    %4935 = vmatprep.subr.bf16.mxu0 0
    %4936 = vmatpush1.bf16.msra.mxu0 0
    %4937 = vmatprep.mubr.bf16.mxu0 0
    %4938 = vmatmul.mubr.bf16.gmra.mrb[0].mxu0 %v4903
    %v4939 = vpop.f32.mrb[0].mxu0
    %v4940 = vadd.f32 %v3637, %v4939
    %v4941 = vpop.f32.mrb[0].mxu0
    %v4942 = vadd.f32 %v3641, %v4941
    %v4943 = vpop.f32.mrb[0].mxu0
    %v4944 = vpop.f32.mrb[0].mxu0
    %4945 = vdwg.mxu0
    %4946 = vmatprep.subr.bf16.mxu0 0
    %4947 = vmatpush1.bf16.msra.mxu0 %v3728
    %4948 = vmatprep.subr.bf16.mxu0 0
    %4949 = vmatpush1.bf16.msra.mxu0 %v3731
    %4950 = vmatprep.subr.bf16.mxu0 0
    %4951 = vmatpush1.bf16.msra.mxu0 %v3734
    %4952 = vmatprep.subr.bf16.mxu0 0
    %4953 = vmatpush1.bf16.msra.mxu0 %v3737
    %4954 = vmatprep.subr.bf16.mxu0 0
    %4955 = vmatpush1.bf16.msra.mxu0 %v3740
    %4956 = vmatprep.subr.bf16.mxu0 0
    %4957 = vmatpush1.bf16.msra.mxu0 %v3743
    %4958 = vmatprep.subr.bf16.mxu0 0
    %4959 = vmatpush1.bf16.msra.mxu0 %v3746
    %4960 = vmatprep.subr.bf16.mxu0 0
    %4961 = vmatpush1.bf16.msra.mxu0 %v3749
    %4962 = vmatprep.subr.bf16.mxu0 0
    %4963 = vmatpush1.bf16.msra.mxu0 0
    %4964 = vmatprep.subr.bf16.mxu0 0
    %4965 = vmatpush1.bf16.msra.mxu0 0
    %4966 = vmatprep.subr.bf16.mxu0 0
    %4967 = vmatpush1.bf16.msra.mxu0 0
    %4968 = vmatprep.subr.bf16.mxu0 0
    %4969 = vmatpush1.bf16.msra.mxu0 0
    %4970 = vmatprep.subr.bf16.mxu0 0
    %4971 = vmatpush1.bf16.msra.mxu0 0
    %4972 = vmatprep.subr.bf16.mxu0 0
    %4973 = vmatpush1.bf16.msra.mxu0 0
    %4974 = vmatprep.subr.bf16.mxu0 0
    %4975 = vmatpush1.bf16.msra.mxu0 0
    %4976 = vmatprep.subr.bf16.mxu0 0
    %4977 = vmatpush1.bf16.msra.mxu0 0
    %4978 = vmatprep.mubr.bf16.mxu0 0
    %4979 = vmatmul.mubr.bf16.gmra.mrb[0].mxu0 %v4903
    %v4980 = vpop.f32.mrb[0].mxu0
    %v4981 = vadd.f32 %v3645, %v4980
    %v4982 = vpop.f32.mrb[0].mxu0
    %v4983 = vpop.f32.mrb[0].mxu0
    %v4984 = vpop.f32.mrb[0].mxu0
    %4985 = vdwg.mxu0
    %v4987 = vrot.slane %v4940, 4
    %v4989 = vadd.f32 %v3544, %v4987
    %v4990 = vsub.f32 0.0, %v4989
    %v4991 = vmul.f32 %v4990, 1.442695
    %v4992 = vpow.pop %v4991
    %v4993 = vadd.f32 %v4992, 1.0
    %v4994 = vrcp.pop %v4993
    %v4996 = vrot.slane %v4942, 4
    %v4998 = vadd.f32 %v3546, %v4996
    %v4999 = vsub.f32 0.0, %v4998
    %v5000 = vmul.f32 %v4999, 1.442695
    %v5001 = vpow.pop %v5000
    %v5002 = vadd.f32 %v5001, 1.0
    %v5003 = vrcp.pop %v5002
    %v5005 = vrot.slane %v4981, 4
    %v5007 = vmul.f32 %v4994, %v5005
    %v5008 = vadd.f32 %v3595, %v5007
    %v5009 = vtanh.pop %v5008
    %v5010 = vsub.f32 1.0, %v5003
    %v5011 = vmul.f32 %v5010, %v5009
    %v5013 = vrot.slane %v4899, 6
    %v5015 = vmul.f32 %v5003, %v5013
    %v5016 = vadd.f32 %v5011, %v5015
    %5017 = vst [vmem:[#allocation2 + $0x10] sm:$0x30] %v5016
    %v5018 = vpack.c.bf16 %v5016, %v5016
    %v5020 = vrot.slane %v5018, 2
    %5022 = vmatprep.subr.bf16.mxu0 %v3727
    %5023 = vmatpush1.bf16.msra.mxu0 %v3726
    %5024 = vmatprep.subr.bf16.mxu0 %v3730
    %5025 = vmatpush1.bf16.msra.mxu0 %v3729
    %5026 = vmatprep.subr.bf16.mxu0 %v3733
    %5027 = vmatpush1.bf16.msra.mxu0 %v3732
    %5028 = vmatprep.subr.bf16.mxu0 %v3736
    %5029 = vmatpush1.bf16.msra.mxu0 %v3735
    %5030 = vmatprep.subr.bf16.mxu0 %v3739
    %5031 = vmatpush1.bf16.msra.mxu0 %v3738
    %5032 = vmatprep.subr.bf16.mxu0 %v3742
    %5033 = vmatpush1.bf16.msra.mxu0 %v3741
    %5034 = vmatprep.subr.bf16.mxu0 %v3745
    %5035 = vmatpush1.bf16.msra.mxu0 %v3744
    %5036 = vmatprep.subr.bf16.mxu0 %v3748
    %5037 = vmatpush1.bf16.msra.mxu0 %v3747
    %5038 = vmatprep.subr.bf16.mxu0 0
    %5039 = vmatpush1.bf16.msra.mxu0 0
    %5040 = vmatprep.subr.bf16.mxu0 0
    %5041 = vmatpush1.bf16.msra.mxu0 0
    %5042 = vmatprep.subr.bf16.mxu0 0
    %5043 = vmatpush1.bf16.msra.mxu0 0
    %5044 = vmatprep.subr.bf16.mxu0 0
    %5045 = vmatpush1.bf16.msra.mxu0 0
    %5046 = vmatprep.subr.bf16.mxu0 0
    %5047 = vmatpush1.bf16.msra.mxu0 0
    %5048 = vmatprep.subr.bf16.mxu0 0
    %5049 = vmatpush1.bf16.msra.mxu0 0
    %5050 = vmatprep.subr.bf16.mxu0 0
    %5051 = vmatpush1.bf16.msra.mxu0 0
    %5052 = vmatprep.subr.bf16.mxu0 0
    %5053 = vmatpush1.bf16.msra.mxu0 0
    %5054 = vmatprep.mubr.bf16.mxu0 0
    %5055 = vmatmul.mubr.bf16.gmra.mrb[0].mxu0 %v5020
    %v5056 = vpop.f32.mrb[0].mxu0
    %v5057 = vadd.f32 %v3637, %v5056
    %v5058 = vpop.f32.mrb[0].mxu0
    %v5059 = vadd.f32 %v3641, %v5058
    %v5060 = vpop.f32.mrb[0].mxu0
    %v5061 = vpop.f32.mrb[0].mxu0
    %5062 = vdwg.mxu0
    %5063 = vmatprep.subr.bf16.mxu0 0
    %5064 = vmatpush1.bf16.msra.mxu0 %v3728
    %5065 = vmatprep.subr.bf16.mxu0 0
    %5066 = vmatpush1.bf16.msra.mxu0 %v3731
    %5067 = vmatprep.subr.bf16.mxu0 0
    %5068 = vmatpush1.bf16.msra.mxu0 %v3734
    %5069 = vmatprep.subr.bf16.mxu0 0
    %5070 = vmatpush1.bf16.msra.mxu0 %v3737
    %5071 = vmatprep.subr.bf16.mxu0 0
    %5072 = vmatpush1.bf16.msra.mxu0 %v3740
    %5073 = vmatprep.subr.bf16.mxu0 0
    %5074 = vmatpush1.bf16.msra.mxu0 %v3743
    %5075 = vmatprep.subr.bf16.mxu0 0
    %5076 = vmatpush1.bf16.msra.mxu0 %v3746
    %5077 = vmatprep.subr.bf16.mxu0 0
    %5078 = vmatpush1.bf16.msra.mxu0 %v3749
    %5079 = vmatprep.subr.bf16.mxu0 0
    %5080 = vmatpush1.bf16.msra.mxu0 0
    %5081 = vmatprep.subr.bf16.mxu0 0
    %5082 = vmatpush1.bf16.msra.mxu0 0
    %5083 = vmatprep.subr.bf16.mxu0 0
    %5084 = vmatpush1.bf16.msra.mxu0 0
    %5085 = vmatprep.subr.bf16.mxu0 0
    %5086 = vmatpush1.bf16.msra.mxu0 0
    %5087 = vmatprep.subr.bf16.mxu0 0
    %5088 = vmatpush1.bf16.msra.mxu0 0
    %5089 = vmatprep.subr.bf16.mxu0 0
    %5090 = vmatpush1.bf16.msra.mxu0 0
    %5091 = vmatprep.subr.bf16.mxu0 0
    %5092 = vmatpush1.bf16.msra.mxu0 0
    %5093 = vmatprep.subr.bf16.mxu0 0
    %5094 = vmatpush1.bf16.msra.mxu0 0
    %5095 = vmatprep.mubr.bf16.mxu0 0
    %5096 = vmatmul.mubr.bf16.gmra.mrb[0].mxu0 %v5020
    %v5097 = vpop.f32.mrb[0].mxu0
    %v5098 = vadd.f32 %v3645, %v5097
    %v5099 = vpop.f32.mrb[0].mxu0
    %v5100 = vpop.f32.mrb[0].mxu0
    %v5101 = vpop.f32.mrb[0].mxu0
    %5102 = vdwg.mxu0
    %v5104 = vrot.slane %v5057, 2
    %v5106 = vadd.f32 %v3544, %v5104
    %v5107 = vsub.f32 0.0, %v5106
    %v5108 = vmul.f32 %v5107, 1.442695
    %v5109 = vpow.pop %v5108
    %v5110 = vadd.f32 %v5109, 1.0
    %v5111 = vrcp.pop %v5110
    %v5113 = vrot.slane %v5059, 2
    %v5115 = vadd.f32 %v3546, %v5113
    %v5116 = vsub.f32 0.0, %v5115
    %v5117 = vmul.f32 %v5116, 1.442695
    %v5118 = vpow.pop %v5117
    %v5119 = vadd.f32 %v5118, 1.0
    %v5120 = vrcp.pop %v5119
    %v5122 = vrot.slane %v5098, 2
    %v5124 = vmul.f32 %v5111, %v5122
    %v5125 = vadd.f32 %v3595, %v5124
    %v5126 = vtanh.pop %v5125
    %v5127 = vsub.f32 1.0, %v5120
    %v5128 = vmul.f32 %v5127, %v5126
    %v5130 = vrot.slane %v5016, 6
    %v5132 = vmul.f32 %v5120, %v5130
    %v5133 = vadd.f32 %v5128, %v5132
    %5134 = vst [vmem:[#allocation2 + $0x10] sm:$0xc0] %v5133
    %v5135 = vpack.c.bf16 %v5133, %v5133
    %v5137 = vrot.slane %v5135, 3
    %5139 = vmatprep.subr.bf16.mxu0 %v3727
    %5140 = vmatpush1.bf16.msra.mxu0 %v3726
    %5141 = vmatprep.subr.bf16.mxu0 %v3730
    %5142 = vmatpush1.bf16.msra.mxu0 %v3729
    %5143 = vmatprep.subr.bf16.mxu0 %v3733
    %5144 = vmatpush1.bf16.msra.mxu0 %v3732
    %5145 = vmatprep.subr.bf16.mxu0 %v3736
    %5146 = vmatpush1.bf16.msra.mxu0 %v3735
    %5147 = vmatprep.subr.bf16.mxu0 %v3739
    %5148 = vmatpush1.bf16.msra.mxu0 %v3738
    %5149 = vmatprep.subr.bf16.mxu0 %v3742
    %5150 = vmatpush1.bf16.msra.mxu0 %v3741
    %5151 = vmatprep.subr.bf16.mxu0 %v3745
    %5152 = vmatpush1.bf16.msra.mxu0 %v3744
    %5153 = vmatprep.subr.bf16.mxu0 %v3748
    %5154 = vmatpush1.bf16.msra.mxu0 %v3747
    %5155 = vmatprep.subr.bf16.mxu0 0
    %5156 = vmatpush1.bf16.msra.mxu0 0
    %5157 = vmatprep.subr.bf16.mxu0 0
    %5158 = vmatpush1.bf16.msra.mxu0 0
    %5159 = vmatprep.subr.bf16.mxu0 0
    %5160 = vmatpush1.bf16.msra.mxu0 0
    %5161 = vmatprep.subr.bf16.mxu0 0
    %5162 = vmatpush1.bf16.msra.mxu0 0
    %5163 = vmatprep.subr.bf16.mxu0 0
    %5164 = vmatpush1.bf16.msra.mxu0 0
    %5165 = vmatprep.subr.bf16.mxu0 0
    %5166 = vmatpush1.bf16.msra.mxu0 0
    %5167 = vmatprep.subr.bf16.mxu0 0
    %5168 = vmatpush1.bf16.msra.mxu0 0
    %5169 = vmatprep.subr.bf16.mxu0 0
    %5170 = vmatpush1.bf16.msra.mxu0 0
    %5171 = vmatprep.mubr.bf16.mxu0 0
    %5172 = vmatmul.mubr.bf16.gmra.mrb[0].mxu0 %v5137
    %v5173 = vpop.f32.mrb[0].mxu0
    %v5174 = vadd.f32 %v3637, %v5173
    %v5175 = vpop.f32.mrb[0].mxu0
    %v5176 = vadd.f32 %v3641, %v5175
    %v5177 = vpop.f32.mrb[0].mxu0
    %v5178 = vpop.f32.mrb[0].mxu0
    %5179 = vdwg.mxu0
    %5180 = vmatprep.subr.bf16.mxu0 0
    %5181 = vmatpush1.bf16.msra.mxu0 %v3728
    %5182 = vmatprep.subr.bf16.mxu0 0
    %5183 = vmatpush1.bf16.msra.mxu0 %v3731
    %5184 = vmatprep.subr.bf16.mxu0 0
    %5185 = vmatpush1.bf16.msra.mxu0 %v3734
    %5186 = vmatprep.subr.bf16.mxu0 0
    %5187 = vmatpush1.bf16.msra.mxu0 %v3737
    %5188 = vmatprep.subr.bf16.mxu0 0
    %5189 = vmatpush1.bf16.msra.mxu0 %v3740
    %5190 = vmatprep.subr.bf16.mxu0 0
    %5191 = vmatpush1.bf16.msra.mxu0 %v3743
    %5192 = vmatprep.subr.bf16.mxu0 0
    %5193 = vmatpush1.bf16.msra.mxu0 %v3746
    %5194 = vmatprep.subr.bf16.mxu0 0
    %5195 = vmatpush1.bf16.msra.mxu0 %v3749
    %5196 = vmatprep.subr.bf16.mxu0 0
    %5197 = vmatpush1.bf16.msra.mxu0 0
    %5198 = vmatprep.subr.bf16.mxu0 0
    %5199 = vmatpush1.bf16.msra.mxu0 0
    %5200 = vmatprep.subr.bf16.mxu0 0
    %5201 = vmatpush1.bf16.msra.mxu0 0
    %5202 = vmatprep.subr.bf16.mxu0 0
    %5203 = vmatpush1.bf16.msra.mxu0 0
    %5204 = vmatprep.subr.bf16.mxu0 0
    %5205 = vmatpush1.bf16.msra.mxu0 0
    %5206 = vmatprep.subr.bf16.mxu0 0
    %5207 = vmatpush1.bf16.msra.mxu0 0
    %5208 = vmatprep.subr.bf16.mxu0 0
    %5209 = vmatpush1.bf16.msra.mxu0 0
    %5210 = vmatprep.subr.bf16.mxu0 0
    %5211 = vmatpush1.bf16.msra.mxu0 0
    %5212 = vmatprep.mubr.bf16.mxu0 0
    %5213 = vmatmul.mubr.bf16.gmra.mrb[0].mxu0 %v5137
    %v5214 = vpop.f32.mrb[0].mxu0
    %v5215 = vadd.f32 %v3645, %v5214
    %v5216 = vpop.f32.mrb[0].mxu0
    %v5217 = vpop.f32.mrb[0].mxu0
    %v5218 = vpop.f32.mrb[0].mxu0
    %5219 = vdwg.mxu0
    %v5220 = vadd.f32 %v3548, %v5174
    %v5221 = vsub.f32 0.0, %v5220
    %v5222 = vmul.f32 %v5221, 1.442695
    %v5223 = vpow.pop %v5222
    %v5224 = vadd.f32 %v5223, 1.0
    %v5225 = vrcp.pop %v5224
    %v5226 = vadd.f32 %v3550, %v5176
    %v5227 = vsub.f32 0.0, %v5226
    %v5228 = vmul.f32 %v5227, 1.442695
    %v5229 = vpow.pop %v5228
    %v5230 = vadd.f32 %v5229, 1.0
    %v5231 = vrcp.pop %v5230
    %v5232 = vmul.f32 %v5225, %v5215
    %v5233 = vadd.f32 %v3598, %v5232
    %v5234 = vtanh.pop %v5233
    %v5235 = vsub.f32 1.0, %v5231
    %v5236 = vmul.f32 %v5235, %v5234
    %v5238 = vrot.slane %v5133, 6
    %v5240 = vmul.f32 %v5231, %v5238
    %v5241 = vadd.f32 %v5236, %v5240
    %5242 = vst [vmem:[#allocation2 + $0x18] sm:$0x3] %v5241
    %v5243 = vpack.c.bf16 %v5241, %v5241
    %5244 = vmatprep.subr.bf16.mxu0 %v3727
    %5245 = vmatpush1.bf16.msra.mxu0 %v3726
    %5246 = vmatprep.subr.bf16.mxu0 %v3730
    %5247 = vmatpush1.bf16.msra.mxu0 %v3729
    %5248 = vmatprep.subr.bf16.mxu0 %v3733
    %5249 = vmatpush1.bf16.msra.mxu0 %v3732
    %5250 = vmatprep.subr.bf16.mxu0 %v3736
    %5251 = vmatpush1.bf16.msra.mxu0 %v3735
    %5252 = vmatprep.subr.bf16.mxu0 %v3739
    %5253 = vmatpush1.bf16.msra.mxu0 %v3738
    %5254 = vmatprep.subr.bf16.mxu0 %v3742
    %5255 = vmatpush1.bf16.msra.mxu0 %v3741
    %5256 = vmatprep.subr.bf16.mxu0 %v3745
    %5257 = vmatpush1.bf16.msra.mxu0 %v3744
    %5258 = vmatprep.subr.bf16.mxu0 %v3748
    %5259 = vmatpush1.bf16.msra.mxu0 %v3747
    %5260 = vmatprep.subr.bf16.mxu0 0
    %5261 = vmatpush1.bf16.msra.mxu0 0
    %5262 = vmatprep.subr.bf16.mxu0 0
    %5263 = vmatpush1.bf16.msra.mxu0 0
    %5264 = vmatprep.subr.bf16.mxu0 0
    %5265 = vmatpush1.bf16.msra.mxu0 0
    %5266 = vmatprep.subr.bf16.mxu0 0
    %5267 = vmatpush1.bf16.msra.mxu0 0
    %5268 = vmatprep.subr.bf16.mxu0 0
    %5269 = vmatpush1.bf16.msra.mxu0 0
    %5270 = vmatprep.subr.bf16.mxu0 0
    %5271 = vmatpush1.bf16.msra.mxu0 0
    %5272 = vmatprep.subr.bf16.mxu0 0
    %5273 = vmatpush1.bf16.msra.mxu0 0
    %5274 = vmatprep.subr.bf16.mxu0 0
    %5275 = vmatpush1.bf16.msra.mxu0 0
    %5276 = vmatprep.mubr.bf16.mxu0 0
    %5277 = vmatmul.mubr.bf16.gmra.mrb[0].mxu0 %v5243
    %v5278 = vpop.f32.mrb[0].mxu0
    %v5279 = vadd.f32 %v3637, %v5278
    %v5280 = vpop.f32.mrb[0].mxu0
    %v5281 = vadd.f32 %v3641, %v5280
    %v5282 = vpop.f32.mrb[0].mxu0
    %v5283 = vpop.f32.mrb[0].mxu0
    %5284 = vdwg.mxu0
    %5285 = vmatprep.subr.bf16.mxu0 0
    %5286 = vmatpush1.bf16.msra.mxu0 %v3728
    %5287 = vmatprep.subr.bf16.mxu0 0
    %5288 = vmatpush1.bf16.msra.mxu0 %v3731
    %5289 = vmatprep.subr.bf16.mxu0 0
    %5290 = vmatpush1.bf16.msra.mxu0 %v3734
    %5291 = vmatprep.subr.bf16.mxu0 0
    %5292 = vmatpush1.bf16.msra.mxu0 %v3737
    %5293 = vmatprep.subr.bf16.mxu0 0
    %5294 = vmatpush1.bf16.msra.mxu0 %v3740
    %5295 = vmatprep.subr.bf16.mxu0 0
    %5296 = vmatpush1.bf16.msra.mxu0 %v3743
    %5297 = vmatprep.subr.bf16.mxu0 0
    %5298 = vmatpush1.bf16.msra.mxu0 %v3746
    %5299 = vmatprep.subr.bf16.mxu0 0
    %5300 = vmatpush1.bf16.msra.mxu0 %v3749
    %5301 = vmatprep.subr.bf16.mxu0 0
    %5302 = vmatpush1.bf16.msra.mxu0 0
    %5303 = vmatprep.subr.bf16.mxu0 0
    %5304 = vmatpush1.bf16.msra.mxu0 0
    %5305 = vmatprep.subr.bf16.mxu0 0
    %5306 = vmatpush1.bf16.msra.mxu0 0
    %5307 = vmatprep.subr.bf16.mxu0 0
    %5308 = vmatpush1.bf16.msra.mxu0 0
    %5309 = vmatprep.subr.bf16.mxu0 0
    %5310 = vmatpush1.bf16.msra.mxu0 0
    %5311 = vmatprep.subr.bf16.mxu0 0
    %5312 = vmatpush1.bf16.msra.mxu0 0
    %5313 = vmatprep.subr.bf16.mxu0 0
    %5314 = vmatpush1.bf16.msra.mxu0 0
    %5315 = vmatprep.subr.bf16.mxu0 0
    %5316 = vmatpush1.bf16.msra.mxu0 0
    %5317 = vmatprep.mubr.bf16.mxu0 0
    %5318 = vmatmul.mubr.bf16.gmra.mrb[0].mxu0 %v5243
    %v5319 = vpop.f32.mrb[0].mxu0
    %v5320 = vadd.f32 %v3645, %v5319
    %v5321 = vpop.f32.mrb[0].mxu0
    %v5322 = vpop.f32.mrb[0].mxu0
    %v5323 = vpop.f32.mrb[0].mxu0
    %5324 = vdwg.mxu0
    %v5326 = vrot.slane %v5279, 6
    %v5328 = vadd.f32 %v3548, %v5326
    %v5329 = vsub.f32 0.0, %v5328
    %v5330 = vmul.f32 %v5329, 1.442695
    %v5331 = vpow.pop %v5330
    %v5332 = vadd.f32 %v5331, 1.0
    %v5333 = vrcp.pop %v5332
    %v5335 = vrot.slane %v5281, 6
    %v5337 = vadd.f32 %v3550, %v5335
    %v5338 = vsub.f32 0.0, %v5337
    %v5339 = vmul.f32 %v5338, 1.442695
    %v5340 = vpow.pop %v5339
    %v5341 = vadd.f32 %v5340, 1.0
    %v5342 = vrcp.pop %v5341
    %v5344 = vrot.slane %v5320, 6
    %v5346 = vmul.f32 %v5333, %v5344
    %v5347 = vadd.f32 %v3598, %v5346
    %v5348 = vtanh.pop %v5347
    %v5349 = vsub.f32 1.0, %v5342
    %v5350 = vmul.f32 %v5349, %v5348
    %v5352 = vrot.slane %v5241, 6
    %v5354 = vmul.f32 %v5342, %v5352
    %v5355 = vadd.f32 %v5350, %v5354
    %5356 = vst [vmem:[#allocation2 + $0x18] sm:$0xc] %v5355
    %v5357 = vpack.c.bf16 %v5355, %v5355
    %v5359 = vrot.slane %v5357, 1
    %5361 = vmatprep.subr.bf16.mxu0 %v3727
    %5362 = vmatpush1.bf16.msra.mxu0 %v3726
    %5363 = vmatprep.subr.bf16.mxu0 %v3730
    %5364 = vmatpush1.bf16.msra.mxu0 %v3729
    %5365 = vmatprep.subr.bf16.mxu0 %v3733
    %5366 = vmatpush1.bf16.msra.mxu0 %v3732
    %5367 = vmatprep.subr.bf16.mxu0 %v3736
    %5368 = vmatpush1.bf16.msra.mxu0 %v3735
    %5369 = vmatprep.subr.bf16.mxu0 %v3739
    %5370 = vmatpush1.bf16.msra.mxu0 %v3738
    %5371 = vmatprep.subr.bf16.mxu0 %v3742
    %5372 = vmatpush1.bf16.msra.mxu0 %v3741
    %5373 = vmatprep.subr.bf16.mxu0 %v3745
    %5374 = vmatpush1.bf16.msra.mxu0 %v3744
    %5375 = vmatprep.subr.bf16.mxu0 %v3748
    %5376 = vmatpush1.bf16.msra.mxu0 %v3747
    %5377 = vmatprep.subr.bf16.mxu0 0
    %5378 = vmatpush1.bf16.msra.mxu0 0
    %5379 = vmatprep.subr.bf16.mxu0 0
    %5380 = vmatpush1.bf16.msra.mxu0 0
    %5381 = vmatprep.subr.bf16.mxu0 0
    %5382 = vmatpush1.bf16.msra.mxu0 0
    %5383 = vmatprep.subr.bf16.mxu0 0
    %5384 = vmatpush1.bf16.msra.mxu0 0
    %5385 = vmatprep.subr.bf16.mxu0 0
    %5386 = vmatpush1.bf16.msra.mxu0 0
    %5387 = vmatprep.subr.bf16.mxu0 0
    %5388 = vmatpush1.bf16.msra.mxu0 0
    %5389 = vmatprep.subr.bf16.mxu0 0
    %5390 = vmatpush1.bf16.msra.mxu0 0
    %5391 = vmatprep.subr.bf16.mxu0 0
    %5392 = vmatpush1.bf16.msra.mxu0 0
    %5393 = vmatprep.mubr.bf16.mxu0 0
    %5394 = vmatmul.mubr.bf16.gmra.mrb[0].mxu0 %v5359
    %v5395 = vpop.f32.mrb[0].mxu0
    %v5396 = vadd.f32 %v3637, %v5395
    %v5397 = vpop.f32.mrb[0].mxu0
    %v5398 = vadd.f32 %v3641, %v5397
    %v5399 = vpop.f32.mrb[0].mxu0
    %v5400 = vpop.f32.mrb[0].mxu0
    %5401 = vdwg.mxu0
    %5402 = vmatprep.subr.bf16.mxu0 0
    %5403 = vmatpush1.bf16.msra.mxu0 %v3728
    %5404 = vmatprep.subr.bf16.mxu0 0
    %5405 = vmatpush1.bf16.msra.mxu0 %v3731
    %5406 = vmatprep.subr.bf16.mxu0 0
    %5407 = vmatpush1.bf16.msra.mxu0 %v3734
    %5408 = vmatprep.subr.bf16.mxu0 0
    %5409 = vmatpush1.bf16.msra.mxu0 %v3737
    %5410 = vmatprep.subr.bf16.mxu0 0
    %5411 = vmatpush1.bf16.msra.mxu0 %v3740
    %5412 = vmatprep.subr.bf16.mxu0 0
    %5413 = vmatpush1.bf16.msra.mxu0 %v3743
    %5414 = vmatprep.subr.bf16.mxu0 0
    %5415 = vmatpush1.bf16.msra.mxu0 %v3746
    %5416 = vmatprep.subr.bf16.mxu0 0
    %5417 = vmatpush1.bf16.msra.mxu0 %v3749
    %5418 = vmatprep.subr.bf16.mxu0 0
    %5419 = vmatpush1.bf16.msra.mxu0 0
    %5420 = vmatprep.subr.bf16.mxu0 0
    %5421 = vmatpush1.bf16.msra.mxu0 0
    %5422 = vmatprep.subr.bf16.mxu0 0
    %5423 = vmatpush1.bf16.msra.mxu0 0
    %5424 = vmatprep.subr.bf16.mxu0 0
    %5425 = vmatpush1.bf16.msra.mxu0 0
    %5426 = vmatprep.subr.bf16.mxu0 0
    %5427 = vmatpush1.bf16.msra.mxu0 0
    %5428 = vmatprep.subr.bf16.mxu0 0
    %5429 = vmatpush1.bf16.msra.mxu0 0
    %5430 = vmatprep.subr.bf16.mxu0 0
    %5431 = vmatpush1.bf16.msra.mxu0 0
    %5432 = vmatprep.subr.bf16.mxu0 0
    %5433 = vmatpush1.bf16.msra.mxu0 0
    %5434 = vmatprep.mubr.bf16.mxu0 0
    %5435 = vmatmul.mubr.bf16.gmra.mrb[0].mxu0 %v5359
    %v5436 = vpop.f32.mrb[0].mxu0
    %v5437 = vadd.f32 %v3645, %v5436
    %v5438 = vpop.f32.mrb[0].mxu0
    %v5439 = vpop.f32.mrb[0].mxu0
    %v5440 = vpop.f32.mrb[0].mxu0
    %5441 = vdwg.mxu0
    %v5443 = vrot.slane %v5396, 4
    %v5445 = vadd.f32 %v3548, %v5443
    %v5446 = vsub.f32 0.0, %v5445
    %v5447 = vmul.f32 %v5446, 1.442695
    %v5448 = vpow.pop %v5447
    %v5449 = vadd.f32 %v5448, 1.0
    %v5450 = vrcp.pop %v5449
    %v5452 = vrot.slane %v5398, 4
    %v5454 = vadd.f32 %v3550, %v5452
    %v5455 = vsub.f32 0.0, %v5454
    %v5456 = vmul.f32 %v5455, 1.442695
    %v5457 = vpow.pop %v5456
    %v5458 = vadd.f32 %v5457, 1.0
    %v5459 = vrcp.pop %v5458
    %v5461 = vrot.slane %v5437, 4
    %v5463 = vmul.f32 %v5450, %v5461
    %v5464 = vadd.f32 %v3598, %v5463
    %v5465 = vtanh.pop %v5464
    %v5466 = vsub.f32 1.0, %v5459
    %v5467 = vmul.f32 %v5466, %v5465
    %v5469 = vrot.slane %v5355, 6
    %v5471 = vmul.f32 %v5459, %v5469
    %v5472 = vadd.f32 %v5467, %v5471
    %5473 = vst [vmem:[#allocation2 + $0x18] sm:$0x30] %v5472
    %v5474 = vld [vmem:[#allocation2] sm:$0xff]
    %v5475 = vld [vmem:[#allocation2 + $0x8] sm:$0xff]
    %v5476 = vld [vmem:[#allocation2 + $0x10] sm:$0xff]
    %v5477 = vld [vmem:[#allocation2 + $0x18] sm:$0x3f]
    %v5478 = vpack.c.bf16 %v5475, %v5474
    %v5479 = vpack.c.bf16 %v5477, %v5476
    %s5480 = scalar_lea.vmem [#allocation8], 384
    %v5481 = vld [vmem:[%s5480] sm:$0xff]
    %v5482 = vld [vmem:[%s5480 + $0x8] sm:$0xf]
    %v5483 = vld [vmem:[%s5480 + $0xc] sm:$0xff]
    %v5484 = vld [vmem:[%s5480 + $0x14] sm:$0xf]
    %v5485 = vld [vmem:[%s5480 + $0x18] sm:$0xff]
    %v5486 = vld [vmem:[%s5480 + $0x20] sm:$0xf]
    %v5487 = vld [vmem:[%s5480 + $0x24] sm:$0xff]
    %v5488 = vld [vmem:[%s5480 + $0x2c] sm:$0xf]
    %v5489 = vld [vmem:[%s5480 + $0x30] sm:$0xff]
    %v5490 = vld [vmem:[%s5480 + $0x38] sm:$0xf]
    %v5491 = vld [vmem:[%s5480 + $0x3c] sm:$0xff]
    %v5492 = vld [vmem:[%s5480 + $0x44] sm:$0xf]
    %v5493 = vld [vmem:[%s5480 + $0x48] sm:$0xff]
    %v5494 = vld [vmem:[%s5480 + $0x50] sm:$0xf]
    %v5495 = vld [vmem:[%s5480 + $0x54] sm:$0xff]
    %v5496 = vld [vmem:[%s5480 + $0x5c] sm:$0xf]
    %v5497 = vld [vmem:[%s5480 + $0x60] sm:$0xff]
    %v5498 = vld [vmem:[%s5480 + $0x68] sm:$0xf]
    %v5499 = vld [vmem:[%s5480 + $0x6c] sm:$0xff]
    %v5500 = vld [vmem:[%s5480 + $0x74] sm:$0xf]
    %v5501 = vld [vmem:[%s5480 + $0x78] sm:$0xff]
    %v5502 = vld [vmem:[%s5480 + $0x80] sm:$0xf]
    %v5503 = vld [vmem:[%s5480 + $0x84] sm:$0xff]
    %v5504 = vld [vmem:[%s5480 + $0x8c] sm:$0xf]
    %v5505 = vld [vmem:[%s5480 + $0x90] sm:$0xff]
    %v5506 = vld [vmem:[%s5480 + $0x98] sm:$0xf]
    %v5507 = vld [vmem:[%s5480 + $0x9c] sm:$0xff]
    %v5508 = vld [vmem:[%s5480 + $0xa4] sm:$0xf]
    %v5509 = vld [vmem:[%s5480 + $0xa8] sm:$0xff]
    %v5510 = vld [vmem:[%s5480 + $0xb0] sm:$0xf]
    %v5511 = vld [vmem:[%s5480 + $0xb4] sm:$0xff]
    %v5512 = vld [vmem:[%s5480 + $0xbc] sm:$0xf]
    %v5513 = vlaneseq
    %v5514 = vshrl.u32 %v5513, 7
    %v5515 = vsub.s32 2, %v5514
    %v5516 = vrot.slane %v1362, %v5515
    %v5517 = vlaneseq
    %v5518 = vshrl.u32 %v5517, 7
    %v5519 = vsub.s32 2, %v5518
    %v5520 = vrot.slane %v1363, %v5519
    %v5521 = vlaneseq
    %v5522 = vshrl.u32 %v5521, 7
    %v5523 = vsub.s32 2, %v5522
    %v5524 = vrot.slane %v1364, %v5523
    %v5557 = vunpack.c.l.b16 %v5481
    %v5558 = vunpack.c.h.b16 %v5481
    %v5559 = vunpack.c.l.b16 %v5482
    %v5560 = vunpack.c.l.b16 %v5483
    %v5561 = vunpack.c.h.b16 %v5483
    %v5562 = vunpack.c.l.b16 %v5484
    %v5563 = vunpack.c.l.b16 %v5485
    %v5564 = vunpack.c.h.b16 %v5485
    %v5565 = vunpack.c.l.b16 %v5486
    %v5566 = vunpack.c.l.b16 %v5487
    %v5567 = vunpack.c.h.b16 %v5487
    %v5568 = vunpack.c.l.b16 %v5488
    %v5569 = vunpack.c.l.b16 %v5489
    %v5570 = vunpack.c.h.b16 %v5489
    %v5571 = vunpack.c.l.b16 %v5490
    %v5572 = vunpack.c.l.b16 %v5491
    %v5573 = vunpack.c.h.b16 %v5491
    %v5574 = vunpack.c.l.b16 %v5492
    %v5575 = vunpack.c.l.b16 %v5493
    %v5576 = vunpack.c.h.b16 %v5493
    %v5577 = vunpack.c.l.b16 %v5494
    %v5578 = vunpack.c.l.b16 %v5495
    %v5579 = vunpack.c.h.b16 %v5495
    %v5580 = vunpack.c.l.b16 %v5496
    %v5581 = vunpack.c.l.b16 %v5497
    %v5582 = vunpack.c.h.b16 %v5497
    %v5583 = vunpack.c.l.b16 %v5498
    %v5584 = vunpack.c.l.b16 %v5499
    %v5585 = vunpack.c.h.b16 %v5499
    %v5586 = vunpack.c.l.b16 %v5500
    %v5587 = vunpack.c.l.b16 %v5501
    %v5588 = vunpack.c.h.b16 %v5501
    %v5589 = vunpack.c.l.b16 %v5502
    %v5590 = vunpack.c.l.b16 %v5503
    %v5591 = vunpack.c.h.b16 %v5503
    %v5592 = vunpack.c.l.b16 %v5504
    %v5593 = vunpack.c.l.b16 %v5505
    %v5594 = vunpack.c.h.b16 %v5505
    %v5595 = vunpack.c.l.b16 %v5506
    %v5596 = vunpack.c.l.b16 %v5507
    %v5597 = vunpack.c.h.b16 %v5507
    %v5598 = vunpack.c.l.b16 %v5508
    %v5599 = vunpack.c.l.b16 %v5509
    %v5600 = vunpack.c.h.b16 %v5509
    %v5601 = vunpack.c.l.b16 %v5510
    %v5602 = vunpack.c.l.b16 %v5511
    %v5603 = vunpack.c.h.b16 %v5511
    %v5604 = vunpack.c.l.b16 %v5512
    %v5605 = vpack.c.b16 %v5560, %v5557
    %v5606 = vpack.c.b16 %v5561, %v5558
    %v5607 = vpack.c.b16 %v5562, %v5559
    %v5608 = vpack.c.b16 %v5566, %v5563
    %v5609 = vpack.c.b16 %v5567, %v5564
    %v5610 = vpack.c.b16 %v5568, %v5565
    %v5611 = vpack.c.b16 %v5572, %v5569
    %v5612 = vpack.c.b16 %v5573, %v5570
    %v5613 = vpack.c.b16 %v5574, %v5571
    %v5614 = vpack.c.b16 %v5578, %v5575
    %v5615 = vpack.c.b16 %v5579, %v5576
    %v5616 = vpack.c.b16 %v5580, %v5577
    %v5617 = vpack.c.b16 %v5584, %v5581
    %v5618 = vpack.c.b16 %v5585, %v5582
    %v5619 = vpack.c.b16 %v5586, %v5583
    %v5620 = vpack.c.b16 %v5590, %v5587
    %v5621 = vpack.c.b16 %v5591, %v5588
    %v5622 = vpack.c.b16 %v5592, %v5589
    %v5623 = vpack.c.b16 %v5596, %v5593
    %v5624 = vpack.c.b16 %v5597, %v5594
    %v5625 = vpack.c.b16 %v5598, %v5595
    %v5626 = vpack.c.b16 %v5602, %v5599
    %v5627 = vpack.c.b16 %v5603, %v5600
    %v5628 = vpack.c.b16 %v5604, %v5601
    %5653 = vmatprep.subr.bf16.mxu0 %v5606
    %5654 = vmatpush1.bf16.msra.mxu0 %v5605
    %5655 = vmatprep.subr.bf16.mxu0 %v5609
    %5656 = vmatpush1.bf16.msra.mxu0 %v5608
    %5657 = vmatprep.subr.bf16.mxu0 %v5612
    %5658 = vmatpush1.bf16.msra.mxu0 %v5611
    %5659 = vmatprep.subr.bf16.mxu0 %v5615
    %5660 = vmatpush1.bf16.msra.mxu0 %v5614
    %5661 = vmatprep.subr.bf16.mxu0 %v5618
    %5662 = vmatpush1.bf16.msra.mxu0 %v5617
    %5663 = vmatprep.subr.bf16.mxu0 %v5621
    %5664 = vmatpush1.bf16.msra.mxu0 %v5620
    %5665 = vmatprep.subr.bf16.mxu0 %v5624
    %5666 = vmatpush1.bf16.msra.mxu0 %v5623
    %5667 = vmatprep.subr.bf16.mxu0 %v5627
    %5668 = vmatpush1.bf16.msra.mxu0 %v5626
    %5669 = vmatprep.subr.bf16.mxu0 0
    %5670 = vmatpush1.bf16.msra.mxu0 0
    %5671 = vmatprep.subr.bf16.mxu0 0
    %5672 = vmatpush1.bf16.msra.mxu0 0
    %5673 = vmatprep.subr.bf16.mxu0 0
    %5674 = vmatpush1.bf16.msra.mxu0 0
    %5675 = vmatprep.subr.bf16.mxu0 0
    %5676 = vmatpush1.bf16.msra.mxu0 0
    %5677 = vmatprep.subr.bf16.mxu0 0
    %5678 = vmatpush1.bf16.msra.mxu0 0
    %5679 = vmatprep.subr.bf16.mxu0 0
    %5680 = vmatpush1.bf16.msra.mxu0 0
    %5681 = vmatprep.subr.bf16.mxu0 0
    %5682 = vmatpush1.bf16.msra.mxu0 0
    %5683 = vmatprep.subr.bf16.mxu0 0
    %5684 = vmatpush1.bf16.msra.mxu0 0
    %5685 = vmatprep.mubr.bf16.mxu0 0
    %5686 = vmatmul.mubr.bf16.gmra.mrb[0].mxu0 %v5478
    %v5687 = vpop.f32.mrb[0].mxu0
    %v5688 = vadd.f32 %v5516, %v5687
    %v5689 = vpop.f32.mrb[0].mxu0
    %v5690 = vadd.f32 %v5520, %v5689
    %v5691 = vpop.f32.mrb[0].mxu0
    %v5692 = vadd.f32 %v5516, %v5691
    %v5693 = vpop.f32.mrb[0].mxu0
    %v5694 = vadd.f32 %v5520, %v5693
    %5695 = vmatprep.mubr.bf16.mxu0 0
    %5696 = vmatmul.mubr.bf16.gmra.mrb[0].mxu0 %v5479
    %v5697 = vpop.f32.mrb[0].mxu0
    %v5698 = vadd.f32 %v5516, %v5697
    %v5699 = vpop.f32.mrb[0].mxu0
    %v5700 = vadd.f32 %v5520, %v5699
    %v5701 = vpop.f32.mrb[0].mxu0
    %v5702 = vadd.f32 %v5516, %v5701
    %v5703 = vpop.f32.mrb[0].mxu0
    %v5704 = vadd.f32 %v5520, %v5703
    %5705 = vdwg.mxu0
    %5706 = vmatprep.subr.bf16.mxu0 0
    %5707 = vmatpush1.bf16.msra.mxu0 %v5607
    %5708 = vmatprep.subr.bf16.mxu0 0
    %5709 = vmatpush1.bf16.msra.mxu0 %v5610
    %5710 = vmatprep.subr.bf16.mxu0 0
    %5711 = vmatpush1.bf16.msra.mxu0 %v5613
    %5712 = vmatprep.subr.bf16.mxu0 0
    %5713 = vmatpush1.bf16.msra.mxu0 %v5616
    %5714 = vmatprep.subr.bf16.mxu0 0
    %5715 = vmatpush1.bf16.msra.mxu0 %v5619
    %5716 = vmatprep.subr.bf16.mxu0 0
    %5717 = vmatpush1.bf16.msra.mxu0 %v5622
    %5718 = vmatprep.subr.bf16.mxu0 0
    %5719 = vmatpush1.bf16.msra.mxu0 %v5625
    %5720 = vmatprep.subr.bf16.mxu0 0
    %5721 = vmatpush1.bf16.msra.mxu0 %v5628
    %5722 = vmatprep.subr.bf16.mxu0 0
    %5723 = vmatpush1.bf16.msra.mxu0 0
    %5724 = vmatprep.subr.bf16.mxu0 0
    %5725 = vmatpush1.bf16.msra.mxu0 0
    %5726 = vmatprep.subr.bf16.mxu0 0
    %5727 = vmatpush1.bf16.msra.mxu0 0
    %5728 = vmatprep.subr.bf16.mxu0 0
    %5729 = vmatpush1.bf16.msra.mxu0 0
    %5730 = vmatprep.subr.bf16.mxu0 0
    %5731 = vmatpush1.bf16.msra.mxu0 0
    %5732 = vmatprep.subr.bf16.mxu0 0
    %5733 = vmatpush1.bf16.msra.mxu0 0
    %5734 = vmatprep.subr.bf16.mxu0 0
    %5735 = vmatpush1.bf16.msra.mxu0 0
    %5736 = vmatprep.subr.bf16.mxu0 0
    %5737 = vmatpush1.bf16.msra.mxu0 0
    %5738 = vmatprep.mubr.bf16.mxu0 0
    %5739 = vmatmul.mubr.bf16.gmra.mrb[0].mxu0 %v5478
    %v5740 = vpop.f32.mrb[0].mxu0
    %v5741 = vadd.f32 %v5524, %v5740
    %v5742 = vpop.f32.mrb[0].mxu0
    %v5743 = vpop.f32.mrb[0].mxu0
    %v5744 = vadd.f32 %v5524, %v5743
    %v5745 = vpop.f32.mrb[0].mxu0
    %5746 = vmatprep.mubr.bf16.mxu0 0
    %5747 = vmatmul.mubr.bf16.gmra.mrb[0].mxu0 %v5479
    %v5748 = vpop.f32.mrb[0].mxu0
    %v5749 = vadd.f32 %v5524, %v5748
    %v5750 = vpop.f32.mrb[0].mxu0
    %v5751 = vpop.f32.mrb[0].mxu0
    %v5752 = vadd.f32 %v5524, %v5751
    %v5753 = vpop.f32.mrb[0].mxu0
    %5754 = vdwg.mxu0
    %s5755 = scalar_lea.vmem [#allocation9], 384
    %v5756 = vld [vmem:[%s5755] sm:$0xff]
    %v5757 = vld [vmem:[%s5755 + $0x8] sm:$0xf]
    %v5758 = vld [vmem:[%s5755 + $0xc] sm:$0xff]
    %v5759 = vld [vmem:[%s5755 + $0x14] sm:$0xf]
    %v5760 = vld [vmem:[%s5755 + $0x18] sm:$0xff]
    %v5761 = vld [vmem:[%s5755 + $0x20] sm:$0xf]
    %v5762 = vld [vmem:[%s5755 + $0x24] sm:$0xff]
    %v5763 = vld [vmem:[%s5755 + $0x2c] sm:$0xf]
    %v5764 = vld [vmem:[%s5755 + $0x30] sm:$0xff]
    %v5765 = vld [vmem:[%s5755 + $0x38] sm:$0xf]
    %v5766 = vld [vmem:[%s5755 + $0x3c] sm:$0xff]
    %v5767 = vld [vmem:[%s5755 + $0x44] sm:$0xf]
    %v5768 = vld [vmem:[%s5755 + $0x48] sm:$0xff]
    %v5769 = vld [vmem:[%s5755 + $0x50] sm:$0xf]
    %v5770 = vld [vmem:[%s5755 + $0x54] sm:$0xff]
    %v5771 = vld [vmem:[%s5755 + $0x5c] sm:$0xf]
    %v5772 = vld [vmem:[%s5755 + $0x60] sm:$0xff]
    %v5773 = vld [vmem:[%s5755 + $0x68] sm:$0xf]
    %v5774 = vld [vmem:[%s5755 + $0x6c] sm:$0xff]
    %v5775 = vld [vmem:[%s5755 + $0x74] sm:$0xf]
    %v5776 = vld [vmem:[%s5755 + $0x78] sm:$0xff]
    %v5777 = vld [vmem:[%s5755 + $0x80] sm:$0xf]
    %v5778 = vld [vmem:[%s5755 + $0x84] sm:$0xff]
    %v5779 = vld [vmem:[%s5755 + $0x8c] sm:$0xf]
    %v5780 = vld [vmem:[%s5755 + $0x90] sm:$0xff]
    %v5781 = vld [vmem:[%s5755 + $0x98] sm:$0xf]
    %v5782 = vld [vmem:[%s5755 + $0x9c] sm:$0xff]
    %v5783 = vld [vmem:[%s5755 + $0xa4] sm:$0xf]
    %v5784 = vld [vmem:[%s5755 + $0xa8] sm:$0xff]
    %v5785 = vld [vmem:[%s5755 + $0xb0] sm:$0xf]
    %v5786 = vld [vmem:[%s5755 + $0xb4] sm:$0xff]
    %v5787 = vld [vmem:[%s5755 + $0xbc] sm:$0xf]
    %v5788 = vlaneseq
    %v5789 = vshrl.u32 %v5788, 7
    %v5790 = vsub.s32 5, %v5789
    %v5791 = vrot.slane %v1362, %v5790
    %v5792 = vlaneseq
    %v5793 = vshrl.u32 %v5792, 7
    %v5794 = vsub.s32 5, %v5793
    %v5795 = vrot.slane %v1363, %v5794
    %v5796 = vlaneseq
    %v5797 = vshrl.u32 %v5796, 7
    %v5798 = vsub.s32 5, %v5797
    %v5799 = vrot.slane %v1364, %v5798
    %v5832 = vunpack.c.l.b16 %v5756
    %v5833 = vunpack.c.h.b16 %v5756
    %v5834 = vunpack.c.l.b16 %v5757
    %v5835 = vunpack.c.l.b16 %v5758
    %v5836 = vunpack.c.h.b16 %v5758
    %v5837 = vunpack.c.l.b16 %v5759
    %v5838 = vunpack.c.l.b16 %v5760
    %v5839 = vunpack.c.h.b16 %v5760
    %v5840 = vunpack.c.l.b16 %v5761
    %v5841 = vunpack.c.l.b16 %v5762
    %v5842 = vunpack.c.h.b16 %v5762
    %v5843 = vunpack.c.l.b16 %v5763
    %v5844 = vunpack.c.l.b16 %v5764
    %v5845 = vunpack.c.h.b16 %v5764
    %v5846 = vunpack.c.l.b16 %v5765
    %v5847 = vunpack.c.l.b16 %v5766
    %v5848 = vunpack.c.h.b16 %v5766
    %v5849 = vunpack.c.l.b16 %v5767
    %v5850 = vunpack.c.l.b16 %v5768
    %v5851 = vunpack.c.h.b16 %v5768
    %v5852 = vunpack.c.l.b16 %v5769
    %v5853 = vunpack.c.l.b16 %v5770
    %v5854 = vunpack.c.h.b16 %v5770
    %v5855 = vunpack.c.l.b16 %v5771
    %v5856 = vunpack.c.l.b16 %v5772
    %v5857 = vunpack.c.h.b16 %v5772
    %v5858 = vunpack.c.l.b16 %v5773
    %v5859 = vunpack.c.l.b16 %v5774
    %v5860 = vunpack.c.h.b16 %v5774
    %v5861 = vunpack.c.l.b16 %v5775
    %v5862 = vunpack.c.l.b16 %v5776
    %v5863 = vunpack.c.h.b16 %v5776
    %v5864 = vunpack.c.l.b16 %v5777
    %v5865 = vunpack.c.l.b16 %v5778
    %v5866 = vunpack.c.h.b16 %v5778
    %v5867 = vunpack.c.l.b16 %v5779
    %v5868 = vunpack.c.l.b16 %v5780
    %v5869 = vunpack.c.h.b16 %v5780
    %v5870 = vunpack.c.l.b16 %v5781
    %v5871 = vunpack.c.l.b16 %v5782
    %v5872 = vunpack.c.h.b16 %v5782
    %v5873 = vunpack.c.l.b16 %v5783
    %v5874 = vunpack.c.l.b16 %v5784
    %v5875 = vunpack.c.h.b16 %v5784
    %v5876 = vunpack.c.l.b16 %v5785
    %v5877 = vunpack.c.l.b16 %v5786
    %v5878 = vunpack.c.h.b16 %v5786
    %v5879 = vunpack.c.l.b16 %v5787
    %v5880 = vpack.c.b16 %v5835, %v5832
    %v5881 = vpack.c.b16 %v5836, %v5833
    %v5882 = vpack.c.b16 %v5837, %v5834
    %v5883 = vpack.c.b16 %v5841, %v5838
    %v5884 = vpack.c.b16 %v5842, %v5839
    %v5885 = vpack.c.b16 %v5843, %v5840
    %v5886 = vpack.c.b16 %v5847, %v5844
    %v5887 = vpack.c.b16 %v5848, %v5845
    %v5888 = vpack.c.b16 %v5849, %v5846
    %v5889 = vpack.c.b16 %v5853, %v5850
    %v5890 = vpack.c.b16 %v5854, %v5851
    %v5891 = vpack.c.b16 %v5855, %v5852
    %v5892 = vpack.c.b16 %v5859, %v5856
    %v5893 = vpack.c.b16 %v5860, %v5857
    %v5894 = vpack.c.b16 %v5861, %v5858
    %v5895 = vpack.c.b16 %v5865, %v5862
    %v5896 = vpack.c.b16 %v5866, %v5863
    %v5897 = vpack.c.b16 %v5867, %v5864
    %v5898 = vpack.c.b16 %v5871, %v5868
    %v5899 = vpack.c.b16 %v5872, %v5869
    %v5900 = vpack.c.b16 %v5873, %v5870
    %v5901 = vpack.c.b16 %v5877, %v5874
    %v5902 = vpack.c.b16 %v5878, %v5875
    %v5903 = vpack.c.b16 %v5879, %v5876
    %5928 = vmatprep.subr.bf16.mxu0 %v5881
    %5929 = vmatpush1.bf16.msra.mxu0 %v5880
    %5930 = vmatprep.subr.bf16.mxu0 %v5884
    %5931 = vmatpush1.bf16.msra.mxu0 %v5883
    %5932 = vmatprep.subr.bf16.mxu0 %v5887
    %5933 = vmatpush1.bf16.msra.mxu0 %v5886
    %5934 = vmatprep.subr.bf16.mxu0 %v5890
    %5935 = vmatpush1.bf16.msra.mxu0 %v5889
    %5936 = vmatprep.subr.bf16.mxu0 %v5893
    %5937 = vmatpush1.bf16.msra.mxu0 %v5892
    %5938 = vmatprep.subr.bf16.mxu0 %v5896
    %5939 = vmatpush1.bf16.msra.mxu0 %v5895
    %5940 = vmatprep.subr.bf16.mxu0 %v5899
    %5941 = vmatpush1.bf16.msra.mxu0 %v5898
    %5942 = vmatprep.subr.bf16.mxu0 %v5902
    %5943 = vmatpush1.bf16.msra.mxu0 %v5901
    %5944 = vmatprep.subr.bf16.mxu0 0
    %5945 = vmatpush1.bf16.msra.mxu0 0
    %5946 = vmatprep.subr.bf16.mxu0 0
    %5947 = vmatpush1.bf16.msra.mxu0 0
    %5948 = vmatprep.subr.bf16.mxu0 0
    %5949 = vmatpush1.bf16.msra.mxu0 0
    %5950 = vmatprep.subr.bf16.mxu0 0
    %5951 = vmatpush1.bf16.msra.mxu0 0
    %5952 = vmatprep.subr.bf16.mxu0 0
    %5953 = vmatpush1.bf16.msra.mxu0 0
    %5954 = vmatprep.subr.bf16.mxu0 0
    %5955 = vmatpush1.bf16.msra.mxu0 0
    %5956 = vmatprep.subr.bf16.mxu0 0
    %5957 = vmatpush1.bf16.msra.mxu0 0
    %5958 = vmatprep.subr.bf16.mxu0 0
    %5959 = vmatpush1.bf16.msra.mxu0 0
    %5960 = vmatprep.mubr.bf16.mxu0 0
    %5961 = vmatmul.mubr.bf16.gmra.mrb[0].mxu0 0
    %v5962 = vpop.f32.mrb[0].mxu0
    %v5963 = vadd.f32 %v5791, %v5962
    %v5964 = vpop.f32.mrb[0].mxu0
    %v5965 = vadd.f32 %v5795, %v5964
    %v5966 = vpop.f32.mrb[0].mxu0
    %v5967 = vpop.f32.mrb[0].mxu0
    %5968 = vdwg.mxu0
    %5969 = vmatprep.subr.bf16.mxu0 0
    %5970 = vmatpush1.bf16.msra.mxu0 %v5882
    %5971 = vmatprep.subr.bf16.mxu0 0
    %5972 = vmatpush1.bf16.msra.mxu0 %v5885
    %5973 = vmatprep.subr.bf16.mxu0 0
    %5974 = vmatpush1.bf16.msra.mxu0 %v5888
    %5975 = vmatprep.subr.bf16.mxu0 0
    %5976 = vmatpush1.bf16.msra.mxu0 %v5891
    %5977 = vmatprep.subr.bf16.mxu0 0
    %5978 = vmatpush1.bf16.msra.mxu0 %v5894
    %5979 = vmatprep.subr.bf16.mxu0 0
    %5980 = vmatpush1.bf16.msra.mxu0 %v5897
    %5981 = vmatprep.subr.bf16.mxu0 0
    %5982 = vmatpush1.bf16.msra.mxu0 %v5900
    %5983 = vmatprep.subr.bf16.mxu0 0
    %5984 = vmatpush1.bf16.msra.mxu0 %v5903
    %5985 = vmatprep.subr.bf16.mxu0 0
    %5986 = vmatpush1.bf16.msra.mxu0 0
    %5987 = vmatprep.subr.bf16.mxu0 0
    %5988 = vmatpush1.bf16.msra.mxu0 0
    %5989 = vmatprep.subr.bf16.mxu0 0
    %5990 = vmatpush1.bf16.msra.mxu0 0
    %5991 = vmatprep.subr.bf16.mxu0 0
    %5992 = vmatpush1.bf16.msra.mxu0 0
    %5993 = vmatprep.subr.bf16.mxu0 0
    %5994 = vmatpush1.bf16.msra.mxu0 0
    %5995 = vmatprep.subr.bf16.mxu0 0
    %5996 = vmatpush1.bf16.msra.mxu0 0
    %5997 = vmatprep.subr.bf16.mxu0 0
    %5998 = vmatpush1.bf16.msra.mxu0 0
    %5999 = vmatprep.subr.bf16.mxu0 0
    %6000 = vmatpush1.bf16.msra.mxu0 0
    %6001 = vmatprep.mubr.bf16.mxu0 0
    %6002 = vmatmul.mubr.bf16.gmra.mrb[0].mxu0 0
    %v6003 = vpop.f32.mrb[0].mxu0
    %v6004 = vadd.f32 %v5799, %v6003
    %v6005 = vpop.f32.mrb[0].mxu0
    %v6006 = vpop.f32.mrb[0].mxu0
    %v6007 = vpop.f32.mrb[0].mxu0
    %6008 = vdwg.mxu0
    %v6009 = vadd.f32 %v5688, %v5963
    %v6010 = vsub.f32 0.0, %v6009
    %v6011 = vmul.f32 %v6010, 1.442695
    %v6012 = vpow.pop %v6011
    %v6013 = vadd.f32 %v6012, 1.0
    %v6014 = vrcp.pop %v6013
    %v6015 = vadd.f32 %v5690, %v5965
    %v6016 = vsub.f32 0.0, %v6015
    %v6017 = vmul.f32 %v6016, 1.442695
    %v6018 = vpow.pop %v6017
    %v6019 = vadd.f32 %v6018, 1.0
    %v6020 = vrcp.pop %v6019
    %v6021 = vmul.f32 %v6014, %v6004
    %v6022 = vadd.f32 %v5741, %v6021
    %v6023 = vtanh.pop %v6022
    %v6024 = vsub.f32 1.0, %v6020
    %v6025 = vmul.f32 %v6024, %v6023
    %v6026 = vmul.f32 %v6020, 0.0
    %v6027 = vadd.f32 %v6025, %v6026
    %6028 = vst [vmem:[#allocation2] sm:$0x3] %v6027
    %v6029 = vpack.c.bf16 %v6027, %v6027
    %6030 = vmatprep.subr.bf16.mxu0 %v5881
    %6031 = vmatpush1.bf16.msra.mxu0 %v5880
    %6032 = vmatprep.subr.bf16.mxu0 %v5884
    %6033 = vmatpush1.bf16.msra.mxu0 %v5883
    %6034 = vmatprep.subr.bf16.mxu0 %v5887
    %6035 = vmatpush1.bf16.msra.mxu0 %v5886
    %6036 = vmatprep.subr.bf16.mxu0 %v5890
    %6037 = vmatpush1.bf16.msra.mxu0 %v5889
    %6038 = vmatprep.subr.bf16.mxu0 %v5893
    %6039 = vmatpush1.bf16.msra.mxu0 %v5892
    %6040 = vmatprep.subr.bf16.mxu0 %v5896
    %6041 = vmatpush1.bf16.msra.mxu0 %v5895
    %6042 = vmatprep.subr.bf16.mxu0 %v5899
    %6043 = vmatpush1.bf16.msra.mxu0 %v5898
    %6044 = vmatprep.subr.bf16.mxu0 %v5902
    %6045 = vmatpush1.bf16.msra.mxu0 %v5901
    %6046 = vmatprep.subr.bf16.mxu0 0
    %6047 = vmatpush1.bf16.msra.mxu0 0
    %6048 = vmatprep.subr.bf16.mxu0 0
    %6049 = vmatpush1.bf16.msra.mxu0 0
    %6050 = vmatprep.subr.bf16.mxu0 0
    %6051 = vmatpush1.bf16.msra.mxu0 0
    %6052 = vmatprep.subr.bf16.mxu0 0
    %6053 = vmatpush1.bf16.msra.mxu0 0
    %6054 = vmatprep.subr.bf16.mxu0 0
    %6055 = vmatpush1.bf16.msra.mxu0 0
    %6056 = vmatprep.subr.bf16.mxu0 0
    %6057 = vmatpush1.bf16.msra.mxu0 0
    %6058 = vmatprep.subr.bf16.mxu0 0
    %6059 = vmatpush1.bf16.msra.mxu0 0
    %6060 = vmatprep.subr.bf16.mxu0 0
    %6061 = vmatpush1.bf16.msra.mxu0 0
    %6062 = vmatprep.mubr.bf16.mxu0 0
    %6063 = vmatmul.mubr.bf16.gmra.mrb[0].mxu0 %v6029
    %v6064 = vpop.f32.mrb[0].mxu0
    %v6065 = vadd.f32 %v5791, %v6064
    %v6066 = vpop.f32.mrb[0].mxu0
    %v6067 = vadd.f32 %v5795, %v6066
    %v6068 = vpop.f32.mrb[0].mxu0
    %v6069 = vpop.f32.mrb[0].mxu0
    %6070 = vdwg.mxu0
    %6071 = vmatprep.subr.bf16.mxu0 0
    %6072 = vmatpush1.bf16.msra.mxu0 %v5882
    %6073 = vmatprep.subr.bf16.mxu0 0
    %6074 = vmatpush1.bf16.msra.mxu0 %v5885
    %6075 = vmatprep.subr.bf16.mxu0 0
    %6076 = vmatpush1.bf16.msra.mxu0 %v5888
    %6077 = vmatprep.subr.bf16.mxu0 0
    %6078 = vmatpush1.bf16.msra.mxu0 %v5891
    %6079 = vmatprep.subr.bf16.mxu0 0
    %6080 = vmatpush1.bf16.msra.mxu0 %v5894
    %6081 = vmatprep.subr.bf16.mxu0 0
    %6082 = vmatpush1.bf16.msra.mxu0 %v5897
    %6083 = vmatprep.subr.bf16.mxu0 0
    %6084 = vmatpush1.bf16.msra.mxu0 %v5900
    %6085 = vmatprep.subr.bf16.mxu0 0
    %6086 = vmatpush1.bf16.msra.mxu0 %v5903
    %6087 = vmatprep.subr.bf16.mxu0 0
    %6088 = vmatpush1.bf16.msra.mxu0 0
    %6089 = vmatprep.subr.bf16.mxu0 0
    %6090 = vmatpush1.bf16.msra.mxu0 0
    %6091 = vmatprep.subr.bf16.mxu0 0
    %6092 = vmatpush1.bf16.msra.mxu0 0
    %6093 = vmatprep.subr.bf16.mxu0 0
    %6094 = vmatpush1.bf16.msra.mxu0 0
    %6095 = vmatprep.subr.bf16.mxu0 0
    %6096 = vmatpush1.bf16.msra.mxu0 0
    %6097 = vmatprep.subr.bf16.mxu0 0
    %6098 = vmatpush1.bf16.msra.mxu0 0
    %6099 = vmatprep.subr.bf16.mxu0 0
    %6100 = vmatpush1.bf16.msra.mxu0 0
    %6101 = vmatprep.subr.bf16.mxu0 0
    %6102 = vmatpush1.bf16.msra.mxu0 0
    %6103 = vmatprep.mubr.bf16.mxu0 0
    %6104 = vmatmul.mubr.bf16.gmra.mrb[0].mxu0 %v6029
    %v6105 = vpop.f32.mrb[0].mxu0
    %v6106 = vadd.f32 %v5799, %v6105
    %v6107 = vpop.f32.mrb[0].mxu0
    %v6108 = vpop.f32.mrb[0].mxu0
    %v6109 = vpop.f32.mrb[0].mxu0
    %6110 = vdwg.mxu0
    %v6112 = vrot.slane %v6065, 6
    %v6114 = vadd.f32 %v5688, %v6112
    %v6115 = vsub.f32 0.0, %v6114
    %v6116 = vmul.f32 %v6115, 1.442695
    %v6117 = vpow.pop %v6116
    %v6118 = vadd.f32 %v6117, 1.0
    %v6119 = vrcp.pop %v6118
    %v6121 = vrot.slane %v6067, 6
    %v6123 = vadd.f32 %v5690, %v6121
    %v6124 = vsub.f32 0.0, %v6123
    %v6125 = vmul.f32 %v6124, 1.442695
    %v6126 = vpow.pop %v6125
    %v6127 = vadd.f32 %v6126, 1.0
    %v6128 = vrcp.pop %v6127
    %v6130 = vrot.slane %v6106, 6
    %v6132 = vmul.f32 %v6119, %v6130
    %v6133 = vadd.f32 %v5741, %v6132
    %v6134 = vtanh.pop %v6133
    %v6135 = vsub.f32 1.0, %v6128
    %v6136 = vmul.f32 %v6135, %v6134
    %v6138 = vrot.slane %v6027, 6
    %v6140 = vmul.f32 %v6128, %v6138
    %v6141 = vadd.f32 %v6136, %v6140
    %6142 = vst [vmem:[#allocation2] sm:$0xc] %v6141
    %v6143 = vpack.c.bf16 %v6141, %v6141
    %v6145 = vrot.slane %v6143, 1
    %6147 = vmatprep.subr.bf16.mxu0 %v5881
    %6148 = vmatpush1.bf16.msra.mxu0 %v5880
    %6149 = vmatprep.subr.bf16.mxu0 %v5884
    %6150 = vmatpush1.bf16.msra.mxu0 %v5883
    %6151 = vmatprep.subr.bf16.mxu0 %v5887
    %6152 = vmatpush1.bf16.msra.mxu0 %v5886
    %6153 = vmatprep.subr.bf16.mxu0 %v5890
    %6154 = vmatpush1.bf16.msra.mxu0 %v5889
    %6155 = vmatprep.subr.bf16.mxu0 %v5893
    %6156 = vmatpush1.bf16.msra.mxu0 %v5892
    %6157 = vmatprep.subr.bf16.mxu0 %v5896
    %6158 = vmatpush1.bf16.msra.mxu0 %v5895
    %6159 = vmatprep.subr.bf16.mxu0 %v5899
    %6160 = vmatpush1.bf16.msra.mxu0 %v5898
    %6161 = vmatprep.subr.bf16.mxu0 %v5902
    %6162 = vmatpush1.bf16.msra.mxu0 %v5901
    %6163 = vmatprep.subr.bf16.mxu0 0
    %6164 = vmatpush1.bf16.msra.mxu0 0
    %6165 = vmatprep.subr.bf16.mxu0 0
    %6166 = vmatpush1.bf16.msra.mxu0 0
    %6167 = vmatprep.subr.bf16.mxu0 0
    %6168 = vmatpush1.bf16.msra.mxu0 0
    %6169 = vmatprep.subr.bf16.mxu0 0
    %6170 = vmatpush1.bf16.msra.mxu0 0
    %6171 = vmatprep.subr.bf16.mxu0 0
    %6172 = vmatpush1.bf16.msra.mxu0 0
    %6173 = vmatprep.subr.bf16.mxu0 0
    %6174 = vmatpush1.bf16.msra.mxu0 0
    %6175 = vmatprep.subr.bf16.mxu0 0
    %6176 = vmatpush1.bf16.msra.mxu0 0
    %6177 = vmatprep.subr.bf16.mxu0 0
    %6178 = vmatpush1.bf16.msra.mxu0 0
    %6179 = vmatprep.mubr.bf16.mxu0 0
    %6180 = vmatmul.mubr.bf16.gmra.mrb[0].mxu0 %v6145
    %v6181 = vpop.f32.mrb[0].mxu0
    %v6182 = vadd.f32 %v5791, %v6181
    %v6183 = vpop.f32.mrb[0].mxu0
    %v6184 = vadd.f32 %v5795, %v6183
    %v6185 = vpop.f32.mrb[0].mxu0
    %v6186 = vpop.f32.mrb[0].mxu0
    %6187 = vdwg.mxu0
    %6188 = vmatprep.subr.bf16.mxu0 0
    %6189 = vmatpush1.bf16.msra.mxu0 %v5882
    %6190 = vmatprep.subr.bf16.mxu0 0
    %6191 = vmatpush1.bf16.msra.mxu0 %v5885
    %6192 = vmatprep.subr.bf16.mxu0 0
    %6193 = vmatpush1.bf16.msra.mxu0 %v5888
    %6194 = vmatprep.subr.bf16.mxu0 0
    %6195 = vmatpush1.bf16.msra.mxu0 %v5891
    %6196 = vmatprep.subr.bf16.mxu0 0
    %6197 = vmatpush1.bf16.msra.mxu0 %v5894
    %6198 = vmatprep.subr.bf16.mxu0 0
    %6199 = vmatpush1.bf16.msra.mxu0 %v5897
    %6200 = vmatprep.subr.bf16.mxu0 0
    %6201 = vmatpush1.bf16.msra.mxu0 %v5900
    %6202 = vmatprep.subr.bf16.mxu0 0
    %6203 = vmatpush1.bf16.msra.mxu0 %v5903
    %6204 = vmatprep.subr.bf16.mxu0 0
    %6205 = vmatpush1.bf16.msra.mxu0 0
    %6206 = vmatprep.subr.bf16.mxu0 0
    %6207 = vmatpush1.bf16.msra.mxu0 0
    %6208 = vmatprep.subr.bf16.mxu0 0
    %6209 = vmatpush1.bf16.msra.mxu0 0
    %6210 = vmatprep.subr.bf16.mxu0 0
    %6211 = vmatpush1.bf16.msra.mxu0 0
    %6212 = vmatprep.subr.bf16.mxu0 0
    %6213 = vmatpush1.bf16.msra.mxu0 0
    %6214 = vmatprep.subr.bf16.mxu0 0
    %6215 = vmatpush1.bf16.msra.mxu0 0
    %6216 = vmatprep.subr.bf16.mxu0 0
    %6217 = vmatpush1.bf16.msra.mxu0 0
    %6218 = vmatprep.subr.bf16.mxu0 0
    %6219 = vmatpush1.bf16.msra.mxu0 0
    %6220 = vmatprep.mubr.bf16.mxu0 0
    %6221 = vmatmul.mubr.bf16.gmra.mrb[0].mxu0 %v6145
    %v6222 = vpop.f32.mrb[0].mxu0
    %v6223 = vadd.f32 %v5799, %v6222
    %v6224 = vpop.f32.mrb[0].mxu0
    %v6225 = vpop.f32.mrb[0].mxu0
    %v6226 = vpop.f32.mrb[0].mxu0
    %6227 = vdwg.mxu0
    %v6229 = vrot.slane %v6182, 4
    %v6231 = vadd.f32 %v5688, %v6229
    %v6232 = vsub.f32 0.0, %v6231
    %v6233 = vmul.f32 %v6232, 1.442695
    %v6234 = vpow.pop %v6233
    %v6235 = vadd.f32 %v6234, 1.0
    %v6236 = vrcp.pop %v6235
    %v6238 = vrot.slane %v6184, 4
    %v6240 = vadd.f32 %v5690, %v6238
    %v6241 = vsub.f32 0.0, %v6240
    %v6242 = vmul.f32 %v6241, 1.442695
    %v6243 = vpow.pop %v6242
    %v6244 = vadd.f32 %v6243, 1.0
    %v6245 = vrcp.pop %v6244
    %v6247 = vrot.slane %v6223, 4
    %v6249 = vmul.f32 %v6236, %v6247
    %v6250 = vadd.f32 %v5741, %v6249
    %v6251 = vtanh.pop %v6250
    %v6252 = vsub.f32 1.0, %v6245
    %v6253 = vmul.f32 %v6252, %v6251
    %v6255 = vrot.slane %v6141, 6
    %v6257 = vmul.f32 %v6245, %v6255
    %v6258 = vadd.f32 %v6253, %v6257
    %6259 = vst [vmem:[#allocation2] sm:$0x30] %v6258
    %v6260 = vpack.c.bf16 %v6258, %v6258
    %v6262 = vrot.slane %v6260, 2
    %6264 = vmatprep.subr.bf16.mxu0 %v5881
    %6265 = vmatpush1.bf16.msra.mxu0 %v5880
    %6266 = vmatprep.subr.bf16.mxu0 %v5884
    %6267 = vmatpush1.bf16.msra.mxu0 %v5883
    %6268 = vmatprep.subr.bf16.mxu0 %v5887
    %6269 = vmatpush1.bf16.msra.mxu0 %v5886
    %6270 = vmatprep.subr.bf16.mxu0 %v5890
    %6271 = vmatpush1.bf16.msra.mxu0 %v5889
    %6272 = vmatprep.subr.bf16.mxu0 %v5893
    %6273 = vmatpush1.bf16.msra.mxu0 %v5892
    %6274 = vmatprep.subr.bf16.mxu0 %v5896
    %6275 = vmatpush1.bf16.msra.mxu0 %v5895
    %6276 = vmatprep.subr.bf16.mxu0 %v5899
    %6277 = vmatpush1.bf16.msra.mxu0 %v5898
    %6278 = vmatprep.subr.bf16.mxu0 %v5902
    %6279 = vmatpush1.bf16.msra.mxu0 %v5901
    %6280 = vmatprep.subr.bf16.mxu0 0
    %6281 = vmatpush1.bf16.msra.mxu0 0
    %6282 = vmatprep.subr.bf16.mxu0 0
    %6283 = vmatpush1.bf16.msra.mxu0 0
    %6284 = vmatprep.subr.bf16.mxu0 0
    %6285 = vmatpush1.bf16.msra.mxu0 0
    %6286 = vmatprep.subr.bf16.mxu0 0
    %6287 = vmatpush1.bf16.msra.mxu0 0
    %6288 = vmatprep.subr.bf16.mxu0 0
    %6289 = vmatpush1.bf16.msra.mxu0 0
    %6290 = vmatprep.subr.bf16.mxu0 0
    %6291 = vmatpush1.bf16.msra.mxu0 0
    %6292 = vmatprep.subr.bf16.mxu0 0
    %6293 = vmatpush1.bf16.msra.mxu0 0
    %6294 = vmatprep.subr.bf16.mxu0 0
    %6295 = vmatpush1.bf16.msra.mxu0 0
    %6296 = vmatprep.mubr.bf16.mxu0 0
    %6297 = vmatmul.mubr.bf16.gmra.mrb[0].mxu0 %v6262
    %v6298 = vpop.f32.mrb[0].mxu0
    %v6299 = vadd.f32 %v5791, %v6298
    %v6300 = vpop.f32.mrb[0].mxu0
    %v6301 = vadd.f32 %v5795, %v6300
    %v6302 = vpop.f32.mrb[0].mxu0
    %v6303 = vpop.f32.mrb[0].mxu0
    %6304 = vdwg.mxu0
    %6305 = vmatprep.subr.bf16.mxu0 0
    %6306 = vmatpush1.bf16.msra.mxu0 %v5882
    %6307 = vmatprep.subr.bf16.mxu0 0
    %6308 = vmatpush1.bf16.msra.mxu0 %v5885
    %6309 = vmatprep.subr.bf16.mxu0 0
    %6310 = vmatpush1.bf16.msra.mxu0 %v5888
    %6311 = vmatprep.subr.bf16.mxu0 0
    %6312 = vmatpush1.bf16.msra.mxu0 %v5891
    %6313 = vmatprep.subr.bf16.mxu0 0
    %6314 = vmatpush1.bf16.msra.mxu0 %v5894
    %6315 = vmatprep.subr.bf16.mxu0 0
    %6316 = vmatpush1.bf16.msra.mxu0 %v5897
    %6317 = vmatprep.subr.bf16.mxu0 0
    %6318 = vmatpush1.bf16.msra.mxu0 %v5900
    %6319 = vmatprep.subr.bf16.mxu0 0
    %6320 = vmatpush1.bf16.msra.mxu0 %v5903
    %6321 = vmatprep.subr.bf16.mxu0 0
    %6322 = vmatpush1.bf16.msra.mxu0 0
    %6323 = vmatprep.subr.bf16.mxu0 0
    %6324 = vmatpush1.bf16.msra.mxu0 0
    %6325 = vmatprep.subr.bf16.mxu0 0
    %6326 = vmatpush1.bf16.msra.mxu0 0
    %6327 = vmatprep.subr.bf16.mxu0 0
    %6328 = vmatpush1.bf16.msra.mxu0 0
    %6329 = vmatprep.subr.bf16.mxu0 0
    %6330 = vmatpush1.bf16.msra.mxu0 0
    %6331 = vmatprep.subr.bf16.mxu0 0
    %6332 = vmatpush1.bf16.msra.mxu0 0
    %6333 = vmatprep.subr.bf16.mxu0 0
    %6334 = vmatpush1.bf16.msra.mxu0 0
    %6335 = vmatprep.subr.bf16.mxu0 0
    %6336 = vmatpush1.bf16.msra.mxu0 0
    %6337 = vmatprep.mubr.bf16.mxu0 0
    %6338 = vmatmul.mubr.bf16.gmra.mrb[0].mxu0 %v6262
    %v6339 = vpop.f32.mrb[0].mxu0
    %v6340 = vadd.f32 %v5799, %v6339
    %v6341 = vpop.f32.mrb[0].mxu0
    %v6342 = vpop.f32.mrb[0].mxu0
    %v6343 = vpop.f32.mrb[0].mxu0
    %6344 = vdwg.mxu0
    %v6346 = vrot.slane %v6299, 2
    %v6348 = vadd.f32 %v5688, %v6346
    %v6349 = vsub.f32 0.0, %v6348
    %v6350 = vmul.f32 %v6349, 1.442695
    %v6351 = vpow.pop %v6350
    %v6352 = vadd.f32 %v6351, 1.0
    %v6353 = vrcp.pop %v6352
    %v6355 = vrot.slane %v6301, 2
    %v6357 = vadd.f32 %v5690, %v6355
    %v6358 = vsub.f32 0.0, %v6357
    %v6359 = vmul.f32 %v6358, 1.442695
    %v6360 = vpow.pop %v6359
    %v6361 = vadd.f32 %v6360, 1.0
    %v6362 = vrcp.pop %v6361
    %v6364 = vrot.slane %v6340, 2
    %v6366 = vmul.f32 %v6353, %v6364
    %v6367 = vadd.f32 %v5741, %v6366
    %v6368 = vtanh.pop %v6367
    %v6369 = vsub.f32 1.0, %v6362
    %v6370 = vmul.f32 %v6369, %v6368
    %v6372 = vrot.slane %v6258, 6
    %v6374 = vmul.f32 %v6362, %v6372
    %v6375 = vadd.f32 %v6370, %v6374
    %6376 = vst [vmem:[#allocation2] sm:$0xc0] %v6375
    %v6377 = vpack.c.bf16 %v6375, %v6375
    %v6379 = vrot.slane %v6377, 3
    %6381 = vmatprep.subr.bf16.mxu0 %v5881
    %6382 = vmatpush1.bf16.msra.mxu0 %v5880
    %6383 = vmatprep.subr.bf16.mxu0 %v5884
    %6384 = vmatpush1.bf16.msra.mxu0 %v5883
    %6385 = vmatprep.subr.bf16.mxu0 %v5887
    %6386 = vmatpush1.bf16.msra.mxu0 %v5886
    %6387 = vmatprep.subr.bf16.mxu0 %v5890
    %6388 = vmatpush1.bf16.msra.mxu0 %v5889
    %6389 = vmatprep.subr.bf16.mxu0 %v5893
    %6390 = vmatpush1.bf16.msra.mxu0 %v5892
    %6391 = vmatprep.subr.bf16.mxu0 %v5896
    %6392 = vmatpush1.bf16.msra.mxu0 %v5895
    %6393 = vmatprep.subr.bf16.mxu0 %v5899
    %6394 = vmatpush1.bf16.msra.mxu0 %v5898
    %6395 = vmatprep.subr.bf16.mxu0 %v5902
    %6396 = vmatpush1.bf16.msra.mxu0 %v5901
    %6397 = vmatprep.subr.bf16.mxu0 0
    %6398 = vmatpush1.bf16.msra.mxu0 0
    %6399 = vmatprep.subr.bf16.mxu0 0
    %6400 = vmatpush1.bf16.msra.mxu0 0
    %6401 = vmatprep.subr.bf16.mxu0 0
    %6402 = vmatpush1.bf16.msra.mxu0 0
    %6403 = vmatprep.subr.bf16.mxu0 0
    %6404 = vmatpush1.bf16.msra.mxu0 0
    %6405 = vmatprep.subr.bf16.mxu0 0
    %6406 = vmatpush1.bf16.msra.mxu0 0
    %6407 = vmatprep.subr.bf16.mxu0 0
    %6408 = vmatpush1.bf16.msra.mxu0 0
    %6409 = vmatprep.subr.bf16.mxu0 0
    %6410 = vmatpush1.bf16.msra.mxu0 0
    %6411 = vmatprep.subr.bf16.mxu0 0
    %6412 = vmatpush1.bf16.msra.mxu0 0
    %6413 = vmatprep.mubr.bf16.mxu0 0
    %6414 = vmatmul.mubr.bf16.gmra.mrb[0].mxu0 %v6379
    %v6415 = vpop.f32.mrb[0].mxu0
    %v6416 = vadd.f32 %v5791, %v6415
    %v6417 = vpop.f32.mrb[0].mxu0
    %v6418 = vadd.f32 %v5795, %v6417
    %v6419 = vpop.f32.mrb[0].mxu0
    %v6420 = vpop.f32.mrb[0].mxu0
    %6421 = vdwg.mxu0
    %6422 = vmatprep.subr.bf16.mxu0 0
    %6423 = vmatpush1.bf16.msra.mxu0 %v5882
    %6424 = vmatprep.subr.bf16.mxu0 0
    %6425 = vmatpush1.bf16.msra.mxu0 %v5885
    %6426 = vmatprep.subr.bf16.mxu0 0
    %6427 = vmatpush1.bf16.msra.mxu0 %v5888
    %6428 = vmatprep.subr.bf16.mxu0 0
    %6429 = vmatpush1.bf16.msra.mxu0 %v5891
    %6430 = vmatprep.subr.bf16.mxu0 0
    %6431 = vmatpush1.bf16.msra.mxu0 %v5894
    %6432 = vmatprep.subr.bf16.mxu0 0
    %6433 = vmatpush1.bf16.msra.mxu0 %v5897
    %6434 = vmatprep.subr.bf16.mxu0 0
    %6435 = vmatpush1.bf16.msra.mxu0 %v5900
    %6436 = vmatprep.subr.bf16.mxu0 0
    %6437 = vmatpush1.bf16.msra.mxu0 %v5903
    %6438 = vmatprep.subr.bf16.mxu0 0
    %6439 = vmatpush1.bf16.msra.mxu0 0
    %6440 = vmatprep.subr.bf16.mxu0 0
    %6441 = vmatpush1.bf16.msra.mxu0 0
    %6442 = vmatprep.subr.bf16.mxu0 0
    %6443 = vmatpush1.bf16.msra.mxu0 0
    %6444 = vmatprep.subr.bf16.mxu0 0
    %6445 = vmatpush1.bf16.msra.mxu0 0
    %6446 = vmatprep.subr.bf16.mxu0 0
    %6447 = vmatpush1.bf16.msra.mxu0 0
    %6448 = vmatprep.subr.bf16.mxu0 0
    %6449 = vmatpush1.bf16.msra.mxu0 0
    %6450 = vmatprep.subr.bf16.mxu0 0
    %6451 = vmatpush1.bf16.msra.mxu0 0
    %6452 = vmatprep.subr.bf16.mxu0 0
    %6453 = vmatpush1.bf16.msra.mxu0 0
    %6454 = vmatprep.mubr.bf16.mxu0 0
    %6455 = vmatmul.mubr.bf16.gmra.mrb[0].mxu0 %v6379
    %v6456 = vpop.f32.mrb[0].mxu0
    %v6457 = vadd.f32 %v5799, %v6456
    %v6458 = vpop.f32.mrb[0].mxu0
    %v6459 = vpop.f32.mrb[0].mxu0
    %v6460 = vpop.f32.mrb[0].mxu0
    %6461 = vdwg.mxu0
    %v6462 = vadd.f32 %v5692, %v6416
    %v6463 = vsub.f32 0.0, %v6462
    %v6464 = vmul.f32 %v6463, 1.442695
    %v6465 = vpow.pop %v6464
    %v6466 = vadd.f32 %v6465, 1.0
    %v6467 = vrcp.pop %v6466
    %v6468 = vadd.f32 %v5694, %v6418
    %v6469 = vsub.f32 0.0, %v6468
    %v6470 = vmul.f32 %v6469, 1.442695
    %v6471 = vpow.pop %v6470
    %v6472 = vadd.f32 %v6471, 1.0
    %v6473 = vrcp.pop %v6472
    %v6474 = vmul.f32 %v6467, %v6457
    %v6475 = vadd.f32 %v5744, %v6474
    %v6476 = vtanh.pop %v6475
    %v6477 = vsub.f32 1.0, %v6473
    %v6478 = vmul.f32 %v6477, %v6476
    %v6480 = vrot.slane %v6375, 6
    %v6482 = vmul.f32 %v6473, %v6480
    %v6483 = vadd.f32 %v6478, %v6482
    %6484 = vst [vmem:[#allocation2 + $0x8] sm:$0x3] %v6483
    %v6485 = vpack.c.bf16 %v6483, %v6483
    %6486 = vmatprep.subr.bf16.mxu0 %v5881
    %6487 = vmatpush1.bf16.msra.mxu0 %v5880
    %6488 = vmatprep.subr.bf16.mxu0 %v5884
    %6489 = vmatpush1.bf16.msra.mxu0 %v5883
    %6490 = vmatprep.subr.bf16.mxu0 %v5887
    %6491 = vmatpush1.bf16.msra.mxu0 %v5886
    %6492 = vmatprep.subr.bf16.mxu0 %v5890
    %6493 = vmatpush1.bf16.msra.mxu0 %v5889
    %6494 = vmatprep.subr.bf16.mxu0 %v5893
    %6495 = vmatpush1.bf16.msra.mxu0 %v5892
    %6496 = vmatprep.subr.bf16.mxu0 %v5896
    %6497 = vmatpush1.bf16.msra.mxu0 %v5895
    %6498 = vmatprep.subr.bf16.mxu0 %v5899
    %6499 = vmatpush1.bf16.msra.mxu0 %v5898
    %6500 = vmatprep.subr.bf16.mxu0 %v5902
    %6501 = vmatpush1.bf16.msra.mxu0 %v5901
    %6502 = vmatprep.subr.bf16.mxu0 0
    %6503 = vmatpush1.bf16.msra.mxu0 0
    %6504 = vmatprep.subr.bf16.mxu0 0
    %6505 = vmatpush1.bf16.msra.mxu0 0
    %6506 = vmatprep.subr.bf16.mxu0 0
    %6507 = vmatpush1.bf16.msra.mxu0 0
    %6508 = vmatprep.subr.bf16.mxu0 0
    %6509 = vmatpush1.bf16.msra.mxu0 0
    %6510 = vmatprep.subr.bf16.mxu0 0
    %6511 = vmatpush1.bf16.msra.mxu0 0
    %6512 = vmatprep.subr.bf16.mxu0 0
    %6513 = vmatpush1.bf16.msra.mxu0 0
    %6514 = vmatprep.subr.bf16.mxu0 0
    %6515 = vmatpush1.bf16.msra.mxu0 0
    %6516 = vmatprep.subr.bf16.mxu0 0
    %6517 = vmatpush1.bf16.msra.mxu0 0
    %6518 = vmatprep.mubr.bf16.mxu0 0
    %6519 = vmatmul.mubr.bf16.gmra.mrb[0].mxu0 %v6485
    %v6520 = vpop.f32.mrb[0].mxu0
    %v6521 = vadd.f32 %v5791, %v6520
    %v6522 = vpop.f32.mrb[0].mxu0
    %v6523 = vadd.f32 %v5795, %v6522
    %v6524 = vpop.f32.mrb[0].mxu0
    %v6525 = vpop.f32.mrb[0].mxu0
    %6526 = vdwg.mxu0
    %6527 = vmatprep.subr.bf16.mxu0 0
    %6528 = vmatpush1.bf16.msra.mxu0 %v5882
    %6529 = vmatprep.subr.bf16.mxu0 0
    %6530 = vmatpush1.bf16.msra.mxu0 %v5885
    %6531 = vmatprep.subr.bf16.mxu0 0
    %6532 = vmatpush1.bf16.msra.mxu0 %v5888
    %6533 = vmatprep.subr.bf16.mxu0 0
    %6534 = vmatpush1.bf16.msra.mxu0 %v5891
    %6535 = vmatprep.subr.bf16.mxu0 0
    %6536 = vmatpush1.bf16.msra.mxu0 %v5894
    %6537 = vmatprep.subr.bf16.mxu0 0
    %6538 = vmatpush1.bf16.msra.mxu0 %v5897
    %6539 = vmatprep.subr.bf16.mxu0 0
    %6540 = vmatpush1.bf16.msra.mxu0 %v5900
    %6541 = vmatprep.subr.bf16.mxu0 0
    %6542 = vmatpush1.bf16.msra.mxu0 %v5903
    %6543 = vmatprep.subr.bf16.mxu0 0
    %6544 = vmatpush1.bf16.msra.mxu0 0
    %6545 = vmatprep.subr.bf16.mxu0 0
    %6546 = vmatpush1.bf16.msra.mxu0 0
    %6547 = vmatprep.subr.bf16.mxu0 0
    %6548 = vmatpush1.bf16.msra.mxu0 0
    %6549 = vmatprep.subr.bf16.mxu0 0
    %6550 = vmatpush1.bf16.msra.mxu0 0
    %6551 = vmatprep.subr.bf16.mxu0 0
    %6552 = vmatpush1.bf16.msra.mxu0 0
    %6553 = vmatprep.subr.bf16.mxu0 0
    %6554 = vmatpush1.bf16.msra.mxu0 0
    %6555 = vmatprep.subr.bf16.mxu0 0
    %6556 = vmatpush1.bf16.msra.mxu0 0
    %6557 = vmatprep.subr.bf16.mxu0 0
    %6558 = vmatpush1.bf16.msra.mxu0 0
    %6559 = vmatprep.mubr.bf16.mxu0 0
    %6560 = vmatmul.mubr.bf16.gmra.mrb[0].mxu0 %v6485
    %v6561 = vpop.f32.mrb[0].mxu0
    %v6562 = vadd.f32 %v5799, %v6561
    %v6563 = vpop.f32.mrb[0].mxu0
    %v6564 = vpop.f32.mrb[0].mxu0
    %v6565 = vpop.f32.mrb[0].mxu0
    %6566 = vdwg.mxu0
    %v6568 = vrot.slane %v6521, 6
    %v6570 = vadd.f32 %v5692, %v6568
    %v6571 = vsub.f32 0.0, %v6570
    %v6572 = vmul.f32 %v6571, 1.442695
    %v6573 = vpow.pop %v6572
    %v6574 = vadd.f32 %v6573, 1.0
    %v6575 = vrcp.pop %v6574
    %v6577 = vrot.slane %v6523, 6
    %v6579 = vadd.f32 %v5694, %v6577
    %v6580 = vsub.f32 0.0, %v6579
    %v6581 = vmul.f32 %v6580, 1.442695
    %v6582 = vpow.pop %v6581
    %v6583 = vadd.f32 %v6582, 1.0
    %v6584 = vrcp.pop %v6583
    %v6586 = vrot.slane %v6562, 6
    %v6588 = vmul.f32 %v6575, %v6586
    %v6589 = vadd.f32 %v5744, %v6588
    %v6590 = vtanh.pop %v6589
    %v6591 = vsub.f32 1.0, %v6584
    %v6592 = vmul.f32 %v6591, %v6590
    %v6594 = vrot.slane %v6483, 6
    %v6596 = vmul.f32 %v6584, %v6594
    %v6597 = vadd.f32 %v6592, %v6596
    %6598 = vst [vmem:[#allocation2 + $0x8] sm:$0xc] %v6597
    %v6599 = vpack.c.bf16 %v6597, %v6597
    %v6601 = vrot.slane %v6599, 1
    %6603 = vmatprep.subr.bf16.mxu0 %v5881
    %6604 = vmatpush1.bf16.msra.mxu0 %v5880
    %6605 = vmatprep.subr.bf16.mxu0 %v5884
    %6606 = vmatpush1.bf16.msra.mxu0 %v5883
    %6607 = vmatprep.subr.bf16.mxu0 %v5887
    %6608 = vmatpush1.bf16.msra.mxu0 %v5886
    %6609 = vmatprep.subr.bf16.mxu0 %v5890
    %6610 = vmatpush1.bf16.msra.mxu0 %v5889
    %6611 = vmatprep.subr.bf16.mxu0 %v5893
    %6612 = vmatpush1.bf16.msra.mxu0 %v5892
    %6613 = vmatprep.subr.bf16.mxu0 %v5896
    %6614 = vmatpush1.bf16.msra.mxu0 %v5895
    %6615 = vmatprep.subr.bf16.mxu0 %v5899
    %6616 = vmatpush1.bf16.msra.mxu0 %v5898
    %6617 = vmatprep.subr.bf16.mxu0 %v5902
    %6618 = vmatpush1.bf16.msra.mxu0 %v5901
    %6619 = vmatprep.subr.bf16.mxu0 0
    %6620 = vmatpush1.bf16.msra.mxu0 0
    %6621 = vmatprep.subr.bf16.mxu0 0
    %6622 = vmatpush1.bf16.msra.mxu0 0
    %6623 = vmatprep.subr.bf16.mxu0 0
    %6624 = vmatpush1.bf16.msra.mxu0 0
    %6625 = vmatprep.subr.bf16.mxu0 0
    %6626 = vmatpush1.bf16.msra.mxu0 0
    %6627 = vmatprep.subr.bf16.mxu0 0
    %6628 = vmatpush1.bf16.msra.mxu0 0
    %6629 = vmatprep.subr.bf16.mxu0 0
    %6630 = vmatpush1.bf16.msra.mxu0 0
    %6631 = vmatprep.subr.bf16.mxu0 0
    %6632 = vmatpush1.bf16.msra.mxu0 0
    %6633 = vmatprep.subr.bf16.mxu0 0
    %6634 = vmatpush1.bf16.msra.mxu0 0
    %6635 = vmatprep.mubr.bf16.mxu0 0
    %6636 = vmatmul.mubr.bf16.gmra.mrb[0].mxu0 %v6601
    %v6637 = vpop.f32.mrb[0].mxu0
    %v6638 = vadd.f32 %v5791, %v6637
    %v6639 = vpop.f32.mrb[0].mxu0
    %v6640 = vadd.f32 %v5795, %v6639
    %v6641 = vpop.f32.mrb[0].mxu0
    %v6642 = vpop.f32.mrb[0].mxu0
    %6643 = vdwg.mxu0
    %6644 = vmatprep.subr.bf16.mxu0 0
    %6645 = vmatpush1.bf16.msra.mxu0 %v5882
    %6646 = vmatprep.subr.bf16.mxu0 0
    %6647 = vmatpush1.bf16.msra.mxu0 %v5885
    %6648 = vmatprep.subr.bf16.mxu0 0
    %6649 = vmatpush1.bf16.msra.mxu0 %v5888
    %6650 = vmatprep.subr.bf16.mxu0 0
    %6651 = vmatpush1.bf16.msra.mxu0 %v5891
    %6652 = vmatprep.subr.bf16.mxu0 0
    %6653 = vmatpush1.bf16.msra.mxu0 %v5894
    %6654 = vmatprep.subr.bf16.mxu0 0
    %6655 = vmatpush1.bf16.msra.mxu0 %v5897
    %6656 = vmatprep.subr.bf16.mxu0 0
    %6657 = vmatpush1.bf16.msra.mxu0 %v5900
    %6658 = vmatprep.subr.bf16.mxu0 0
    %6659 = vmatpush1.bf16.msra.mxu0 %v5903
    %6660 = vmatprep.subr.bf16.mxu0 0
    %6661 = vmatpush1.bf16.msra.mxu0 0
    %6662 = vmatprep.subr.bf16.mxu0 0
    %6663 = vmatpush1.bf16.msra.mxu0 0
    %6664 = vmatprep.subr.bf16.mxu0 0
    %6665 = vmatpush1.bf16.msra.mxu0 0
    %6666 = vmatprep.subr.bf16.mxu0 0
    %6667 = vmatpush1.bf16.msra.mxu0 0
    %6668 = vmatprep.subr.bf16.mxu0 0
    %6669 = vmatpush1.bf16.msra.mxu0 0
    %6670 = vmatprep.subr.bf16.mxu0 0
    %6671 = vmatpush1.bf16.msra.mxu0 0
    %6672 = vmatprep.subr.bf16.mxu0 0
    %6673 = vmatpush1.bf16.msra.mxu0 0
    %6674 = vmatprep.subr.bf16.mxu0 0
    %6675 = vmatpush1.bf16.msra.mxu0 0
    %6676 = vmatprep.mubr.bf16.mxu0 0
    %6677 = vmatmul.mubr.bf16.gmra.mrb[0].mxu0 %v6601
    %v6678 = vpop.f32.mrb[0].mxu0
    %v6679 = vadd.f32 %v5799, %v6678
    %v6680 = vpop.f32.mrb[0].mxu0
    %v6681 = vpop.f32.mrb[0].mxu0
    %v6682 = vpop.f32.mrb[0].mxu0
    %6683 = vdwg.mxu0
    %v6685 = vrot.slane %v6638, 4
    %v6687 = vadd.f32 %v5692, %v6685
    %v6688 = vsub.f32 0.0, %v6687
    %v6689 = vmul.f32 %v6688, 1.442695
    %v6690 = vpow.pop %v6689
    %v6691 = vadd.f32 %v6690, 1.0
    %v6692 = vrcp.pop %v6691
    %v6694 = vrot.slane %v6640, 4
    %v6696 = vadd.f32 %v5694, %v6694
    %v6697 = vsub.f32 0.0, %v6696
    %v6698 = vmul.f32 %v6697, 1.442695
    %v6699 = vpow.pop %v6698
    %v6700 = vadd.f32 %v6699, 1.0
    %v6701 = vrcp.pop %v6700
    %v6703 = vrot.slane %v6679, 4
    %v6705 = vmul.f32 %v6692, %v6703
    %v6706 = vadd.f32 %v5744, %v6705
    %v6707 = vtanh.pop %v6706
    %v6708 = vsub.f32 1.0, %v6701
    %v6709 = vmul.f32 %v6708, %v6707
    %v6711 = vrot.slane %v6597, 6
    %v6713 = vmul.f32 %v6701, %v6711
    %v6714 = vadd.f32 %v6709, %v6713
    %6715 = vst [vmem:[#allocation2 + $0x8] sm:$0x30] %v6714
    %v6716 = vpack.c.bf16 %v6714, %v6714
    %v6718 = vrot.slane %v6716, 2
    %6720 = vmatprep.subr.bf16.mxu0 %v5881
    %6721 = vmatpush1.bf16.msra.mxu0 %v5880
    %6722 = vmatprep.subr.bf16.mxu0 %v5884
    %6723 = vmatpush1.bf16.msra.mxu0 %v5883
    %6724 = vmatprep.subr.bf16.mxu0 %v5887
    %6725 = vmatpush1.bf16.msra.mxu0 %v5886
    %6726 = vmatprep.subr.bf16.mxu0 %v5890
    %6727 = vmatpush1.bf16.msra.mxu0 %v5889
    %6728 = vmatprep.subr.bf16.mxu0 %v5893
    %6729 = vmatpush1.bf16.msra.mxu0 %v5892
    %6730 = vmatprep.subr.bf16.mxu0 %v5896
    %6731 = vmatpush1.bf16.msra.mxu0 %v5895
    %6732 = vmatprep.subr.bf16.mxu0 %v5899
    %6733 = vmatpush1.bf16.msra.mxu0 %v5898
    %6734 = vmatprep.subr.bf16.mxu0 %v5902
    %6735 = vmatpush1.bf16.msra.mxu0 %v5901
    %6736 = vmatprep.subr.bf16.mxu0 0
    %6737 = vmatpush1.bf16.msra.mxu0 0
    %6738 = vmatprep.subr.bf16.mxu0 0
    %6739 = vmatpush1.bf16.msra.mxu0 0
    %6740 = vmatprep.subr.bf16.mxu0 0
    %6741 = vmatpush1.bf16.msra.mxu0 0
    %6742 = vmatprep.subr.bf16.mxu0 0
    %6743 = vmatpush1.bf16.msra.mxu0 0
    %6744 = vmatprep.subr.bf16.mxu0 0
    %6745 = vmatpush1.bf16.msra.mxu0 0
    %6746 = vmatprep.subr.bf16.mxu0 0
    %6747 = vmatpush1.bf16.msra.mxu0 0
    %6748 = vmatprep.subr.bf16.mxu0 0
    %6749 = vmatpush1.bf16.msra.mxu0 0
    %6750 = vmatprep.subr.bf16.mxu0 0
    %6751 = vmatpush1.bf16.msra.mxu0 0
    %6752 = vmatprep.mubr.bf16.mxu0 0
    %6753 = vmatmul.mubr.bf16.gmra.mrb[0].mxu0 %v6718
    %v6754 = vpop.f32.mrb[0].mxu0
    %v6755 = vadd.f32 %v5791, %v6754
    %v6756 = vpop.f32.mrb[0].mxu0
    %v6757 = vadd.f32 %v5795, %v6756
    %v6758 = vpop.f32.mrb[0].mxu0
    %v6759 = vpop.f32.mrb[0].mxu0
    %6760 = vdwg.mxu0
    %6761 = vmatprep.subr.bf16.mxu0 0
    %6762 = vmatpush1.bf16.msra.mxu0 %v5882
    %6763 = vmatprep.subr.bf16.mxu0 0
    %6764 = vmatpush1.bf16.msra.mxu0 %v5885
    %6765 = vmatprep.subr.bf16.mxu0 0
    %6766 = vmatpush1.bf16.msra.mxu0 %v5888
    %6767 = vmatprep.subr.bf16.mxu0 0
    %6768 = vmatpush1.bf16.msra.mxu0 %v5891
    %6769 = vmatprep.subr.bf16.mxu0 0
    %6770 = vmatpush1.bf16.msra.mxu0 %v5894
    %6771 = vmatprep.subr.bf16.mxu0 0
    %6772 = vmatpush1.bf16.msra.mxu0 %v5897
    %6773 = vmatprep.subr.bf16.mxu0 0
    %6774 = vmatpush1.bf16.msra.mxu0 %v5900
    %6775 = vmatprep.subr.bf16.mxu0 0
    %6776 = vmatpush1.bf16.msra.mxu0 %v5903
    %6777 = vmatprep.subr.bf16.mxu0 0
    %6778 = vmatpush1.bf16.msra.mxu0 0
    %6779 = vmatprep.subr.bf16.mxu0 0
    %6780 = vmatpush1.bf16.msra.mxu0 0
    %6781 = vmatprep.subr.bf16.mxu0 0
    %6782 = vmatpush1.bf16.msra.mxu0 0
    %6783 = vmatprep.subr.bf16.mxu0 0
    %6784 = vmatpush1.bf16.msra.mxu0 0
    %6785 = vmatprep.subr.bf16.mxu0 0
    %6786 = vmatpush1.bf16.msra.mxu0 0
    %6787 = vmatprep.subr.bf16.mxu0 0
    %6788 = vmatpush1.bf16.msra.mxu0 0
    %6789 = vmatprep.subr.bf16.mxu0 0
    %6790 = vmatpush1.bf16.msra.mxu0 0
    %6791 = vmatprep.subr.bf16.mxu0 0
    %6792 = vmatpush1.bf16.msra.mxu0 0
    %6793 = vmatprep.mubr.bf16.mxu0 0
    %6794 = vmatmul.mubr.bf16.gmra.mrb[0].mxu0 %v6718
    %v6795 = vpop.f32.mrb[0].mxu0
    %v6796 = vadd.f32 %v5799, %v6795
    %v6797 = vpop.f32.mrb[0].mxu0
    %v6798 = vpop.f32.mrb[0].mxu0
    %v6799 = vpop.f32.mrb[0].mxu0
    %6800 = vdwg.mxu0
    %v6802 = vrot.slane %v6755, 2
    %v6804 = vadd.f32 %v5692, %v6802
    %v6805 = vsub.f32 0.0, %v6804
    %v6806 = vmul.f32 %v6805, 1.442695
    %v6807 = vpow.pop %v6806
    %v6808 = vadd.f32 %v6807, 1.0
    %v6809 = vrcp.pop %v6808
    %v6811 = vrot.slane %v6757, 2
    %v6813 = vadd.f32 %v5694, %v6811
    %v6814 = vsub.f32 0.0, %v6813
    %v6815 = vmul.f32 %v6814, 1.442695
    %v6816 = vpow.pop %v6815
    %v6817 = vadd.f32 %v6816, 1.0
    %v6818 = vrcp.pop %v6817
    %v6820 = vrot.slane %v6796, 2
    %v6822 = vmul.f32 %v6809, %v6820
    %v6823 = vadd.f32 %v5744, %v6822
    %v6824 = vtanh.pop %v6823
    %v6825 = vsub.f32 1.0, %v6818
    %v6826 = vmul.f32 %v6825, %v6824
    %v6828 = vrot.slane %v6714, 6
    %v6830 = vmul.f32 %v6818, %v6828
    %v6831 = vadd.f32 %v6826, %v6830
    %6832 = vst [vmem:[#allocation2 + $0x8] sm:$0xc0] %v6831
    %v6833 = vpack.c.bf16 %v6831, %v6831
    %v6835 = vrot.slane %v6833, 3
    %6837 = vmatprep.subr.bf16.mxu0 %v5881
    %6838 = vmatpush1.bf16.msra.mxu0 %v5880
    %6839 = vmatprep.subr.bf16.mxu0 %v5884
    %6840 = vmatpush1.bf16.msra.mxu0 %v5883
    %6841 = vmatprep.subr.bf16.mxu0 %v5887
    %6842 = vmatpush1.bf16.msra.mxu0 %v5886
    %6843 = vmatprep.subr.bf16.mxu0 %v5890
    %6844 = vmatpush1.bf16.msra.mxu0 %v5889
    %6845 = vmatprep.subr.bf16.mxu0 %v5893
    %6846 = vmatpush1.bf16.msra.mxu0 %v5892
    %6847 = vmatprep.subr.bf16.mxu0 %v5896
    %6848 = vmatpush1.bf16.msra.mxu0 %v5895
    %6849 = vmatprep.subr.bf16.mxu0 %v5899
    %6850 = vmatpush1.bf16.msra.mxu0 %v5898
    %6851 = vmatprep.subr.bf16.mxu0 %v5902
    %6852 = vmatpush1.bf16.msra.mxu0 %v5901
    %6853 = vmatprep.subr.bf16.mxu0 0
    %6854 = vmatpush1.bf16.msra.mxu0 0
    %6855 = vmatprep.subr.bf16.mxu0 0
    %6856 = vmatpush1.bf16.msra.mxu0 0
    %6857 = vmatprep.subr.bf16.mxu0 0
    %6858 = vmatpush1.bf16.msra.mxu0 0
    %6859 = vmatprep.subr.bf16.mxu0 0
    %6860 = vmatpush1.bf16.msra.mxu0 0
    %6861 = vmatprep.subr.bf16.mxu0 0
    %6862 = vmatpush1.bf16.msra.mxu0 0
    %6863 = vmatprep.subr.bf16.mxu0 0
    %6864 = vmatpush1.bf16.msra.mxu0 0
    %6865 = vmatprep.subr.bf16.mxu0 0
    %6866 = vmatpush1.bf16.msra.mxu0 0
    %6867 = vmatprep.subr.bf16.mxu0 0
    %6868 = vmatpush1.bf16.msra.mxu0 0
    %6869 = vmatprep.mubr.bf16.mxu0 0
    %6870 = vmatmul.mubr.bf16.gmra.mrb[0].mxu0 %v6835
    %v6871 = vpop.f32.mrb[0].mxu0
    %v6872 = vadd.f32 %v5791, %v6871
    %v6873 = vpop.f32.mrb[0].mxu0
    %v6874 = vadd.f32 %v5795, %v6873
    %v6875 = vpop.f32.mrb[0].mxu0
    %v6876 = vpop.f32.mrb[0].mxu0
    %6877 = vdwg.mxu0
    %6878 = vmatprep.subr.bf16.mxu0 0
    %6879 = vmatpush1.bf16.msra.mxu0 %v5882
    %6880 = vmatprep.subr.bf16.mxu0 0
    %6881 = vmatpush1.bf16.msra.mxu0 %v5885
    %6882 = vmatprep.subr.bf16.mxu0 0
    %6883 = vmatpush1.bf16.msra.mxu0 %v5888
    %6884 = vmatprep.subr.bf16.mxu0 0
    %6885 = vmatpush1.bf16.msra.mxu0 %v5891
    %6886 = vmatprep.subr.bf16.mxu0 0
    %6887 = vmatpush1.bf16.msra.mxu0 %v5894
    %6888 = vmatprep.subr.bf16.mxu0 0
    %6889 = vmatpush1.bf16.msra.mxu0 %v5897
    %6890 = vmatprep.subr.bf16.mxu0 0
    %6891 = vmatpush1.bf16.msra.mxu0 %v5900
    %6892 = vmatprep.subr.bf16.mxu0 0
    %6893 = vmatpush1.bf16.msra.mxu0 %v5903
    %6894 = vmatprep.subr.bf16.mxu0 0
    %6895 = vmatpush1.bf16.msra.mxu0 0
    %6896 = vmatprep.subr.bf16.mxu0 0
    %6897 = vmatpush1.bf16.msra.mxu0 0
    %6898 = vmatprep.subr.bf16.mxu0 0
    %6899 = vmatpush1.bf16.msra.mxu0 0
    %6900 = vmatprep.subr.bf16.mxu0 0
    %6901 = vmatpush1.bf16.msra.mxu0 0
    %6902 = vmatprep.subr.bf16.mxu0 0
    %6903 = vmatpush1.bf16.msra.mxu0 0
    %6904 = vmatprep.subr.bf16.mxu0 0
    %6905 = vmatpush1.bf16.msra.mxu0 0
    %6906 = vmatprep.subr.bf16.mxu0 0
    %6907 = vmatpush1.bf16.msra.mxu0 0
    %6908 = vmatprep.subr.bf16.mxu0 0
    %6909 = vmatpush1.bf16.msra.mxu0 0
    %6910 = vmatprep.mubr.bf16.mxu0 0
    %6911 = vmatmul.mubr.bf16.gmra.mrb[0].mxu0 %v6835
    %v6912 = vpop.f32.mrb[0].mxu0
    %v6913 = vadd.f32 %v5799, %v6912
    %v6914 = vpop.f32.mrb[0].mxu0
    %v6915 = vpop.f32.mrb[0].mxu0
    %v6916 = vpop.f32.mrb[0].mxu0
    %6917 = vdwg.mxu0
    %v6918 = vadd.f32 %v5698, %v6872
    %v6919 = vsub.f32 0.0, %v6918
    %v6920 = vmul.f32 %v6919, 1.442695
    %v6921 = vpow.pop %v6920
    %v6922 = vadd.f32 %v6921, 1.0
    %v6923 = vrcp.pop %v6922
    %v6924 = vadd.f32 %v5700, %v6874
    %v6925 = vsub.f32 0.0, %v6924
    %v6926 = vmul.f32 %v6925, 1.442695
    %v6927 = vpow.pop %v6926
    %v6928 = vadd.f32 %v6927, 1.0
    %v6929 = vrcp.pop %v6928
    %v6930 = vmul.f32 %v6923, %v6913
    %v6931 = vadd.f32 %v5749, %v6930
    %v6932 = vtanh.pop %v6931
    %v6933 = vsub.f32 1.0, %v6929
    %v6934 = vmul.f32 %v6933, %v6932
    %v6936 = vrot.slane %v6831, 6
    %v6938 = vmul.f32 %v6929, %v6936
    %v6939 = vadd.f32 %v6934, %v6938
    %6940 = vst [vmem:[#allocation2 + $0x10] sm:$0x3] %v6939
    %v6941 = vpack.c.bf16 %v6939, %v6939
    %6942 = vmatprep.subr.bf16.mxu0 %v5881
    %6943 = vmatpush1.bf16.msra.mxu0 %v5880
    %6944 = vmatprep.subr.bf16.mxu0 %v5884
    %6945 = vmatpush1.bf16.msra.mxu0 %v5883
    %6946 = vmatprep.subr.bf16.mxu0 %v5887
    %6947 = vmatpush1.bf16.msra.mxu0 %v5886
    %6948 = vmatprep.subr.bf16.mxu0 %v5890
    %6949 = vmatpush1.bf16.msra.mxu0 %v5889
    %6950 = vmatprep.subr.bf16.mxu0 %v5893
    %6951 = vmatpush1.bf16.msra.mxu0 %v5892
    %6952 = vmatprep.subr.bf16.mxu0 %v5896
    %6953 = vmatpush1.bf16.msra.mxu0 %v5895
    %6954 = vmatprep.subr.bf16.mxu0 %v5899
    %6955 = vmatpush1.bf16.msra.mxu0 %v5898
    %6956 = vmatprep.subr.bf16.mxu0 %v5902
    %6957 = vmatpush1.bf16.msra.mxu0 %v5901
    %6958 = vmatprep.subr.bf16.mxu0 0
    %6959 = vmatpush1.bf16.msra.mxu0 0
    %6960 = vmatprep.subr.bf16.mxu0 0
    %6961 = vmatpush1.bf16.msra.mxu0 0
    %6962 = vmatprep.subr.bf16.mxu0 0
    %6963 = vmatpush1.bf16.msra.mxu0 0
    %6964 = vmatprep.subr.bf16.mxu0 0
    %6965 = vmatpush1.bf16.msra.mxu0 0
    %6966 = vmatprep.subr.bf16.mxu0 0
    %6967 = vmatpush1.bf16.msra.mxu0 0
    %6968 = vmatprep.subr.bf16.mxu0 0
    %6969 = vmatpush1.bf16.msra.mxu0 0
    %6970 = vmatprep.subr.bf16.mxu0 0
    %6971 = vmatpush1.bf16.msra.mxu0 0
    %6972 = vmatprep.subr.bf16.mxu0 0
    %6973 = vmatpush1.bf16.msra.mxu0 0
    %6974 = vmatprep.mubr.bf16.mxu0 0
    %6975 = vmatmul.mubr.bf16.gmra.mrb[0].mxu0 %v6941
    %v6976 = vpop.f32.mrb[0].mxu0
    %v6977 = vadd.f32 %v5791, %v6976
    %v6978 = vpop.f32.mrb[0].mxu0
    %v6979 = vadd.f32 %v5795, %v6978
    %v6980 = vpop.f32.mrb[0].mxu0
    %v6981 = vpop.f32.mrb[0].mxu0
    %6982 = vdwg.mxu0
    %6983 = vmatprep.subr.bf16.mxu0 0
    %6984 = vmatpush1.bf16.msra.mxu0 %v5882
    %6985 = vmatprep.subr.bf16.mxu0 0
    %6986 = vmatpush1.bf16.msra.mxu0 %v5885
    %6987 = vmatprep.subr.bf16.mxu0 0
    %6988 = vmatpush1.bf16.msra.mxu0 %v5888
    %6989 = vmatprep.subr.bf16.mxu0 0
    %6990 = vmatpush1.bf16.msra.mxu0 %v5891
    %6991 = vmatprep.subr.bf16.mxu0 0
    %6992 = vmatpush1.bf16.msra.mxu0 %v5894
    %6993 = vmatprep.subr.bf16.mxu0 0
    %6994 = vmatpush1.bf16.msra.mxu0 %v5897
    %6995 = vmatprep.subr.bf16.mxu0 0
    %6996 = vmatpush1.bf16.msra.mxu0 %v5900
    %6997 = vmatprep.subr.bf16.mxu0 0
    %6998 = vmatpush1.bf16.msra.mxu0 %v5903
    %6999 = vmatprep.subr.bf16.mxu0 0
    %7000 = vmatpush1.bf16.msra.mxu0 0
    %7001 = vmatprep.subr.bf16.mxu0 0
    %7002 = vmatpush1.bf16.msra.mxu0 0
    %7003 = vmatprep.subr.bf16.mxu0 0
    %7004 = vmatpush1.bf16.msra.mxu0 0
    %7005 = vmatprep.subr.bf16.mxu0 0
    %7006 = vmatpush1.bf16.msra.mxu0 0
    %7007 = vmatprep.subr.bf16.mxu0 0
    %7008 = vmatpush1.bf16.msra.mxu0 0
    %7009 = vmatprep.subr.bf16.mxu0 0
    %7010 = vmatpush1.bf16.msra.mxu0 0
    %7011 = vmatprep.subr.bf16.mxu0 0
    %7012 = vmatpush1.bf16.msra.mxu0 0
    %7013 = vmatprep.subr.bf16.mxu0 0
    %7014 = vmatpush1.bf16.msra.mxu0 0
    %7015 = vmatprep.mubr.bf16.mxu0 0
    %7016 = vmatmul.mubr.bf16.gmra.mrb[0].mxu0 %v6941
    %v7017 = vpop.f32.mrb[0].mxu0
    %v7018 = vadd.f32 %v5799, %v7017
    %v7019 = vpop.f32.mrb[0].mxu0
    %v7020 = vpop.f32.mrb[0].mxu0
    %v7021 = vpop.f32.mrb[0].mxu0
    %7022 = vdwg.mxu0
    %v7024 = vrot.slane %v6977, 6
    %v7026 = vadd.f32 %v5698, %v7024
    %v7027 = vsub.f32 0.0, %v7026
    %v7028 = vmul.f32 %v7027, 1.442695
    %v7029 = vpow.pop %v7028
    %v7030 = vadd.f32 %v7029, 1.0
    %v7031 = vrcp.pop %v7030
    %v7033 = vrot.slane %v6979, 6
    %v7035 = vadd.f32 %v5700, %v7033
    %v7036 = vsub.f32 0.0, %v7035
    %v7037 = vmul.f32 %v7036, 1.442695
    %v7038 = vpow.pop %v7037
    %v7039 = vadd.f32 %v7038, 1.0
    %v7040 = vrcp.pop %v7039
    %v7042 = vrot.slane %v7018, 6
    %v7044 = vmul.f32 %v7031, %v7042
    %v7045 = vadd.f32 %v5749, %v7044
    %v7046 = vtanh.pop %v7045
    %v7047 = vsub.f32 1.0, %v7040
    %v7048 = vmul.f32 %v7047, %v7046
    %v7050 = vrot.slane %v6939, 6
    %v7052 = vmul.f32 %v7040, %v7050
    %v7053 = vadd.f32 %v7048, %v7052
    %7054 = vst [vmem:[#allocation2 + $0x10] sm:$0xc] %v7053
    %v7055 = vpack.c.bf16 %v7053, %v7053
    %v7057 = vrot.slane %v7055, 1
    %7059 = vmatprep.subr.bf16.mxu0 %v5881
    %7060 = vmatpush1.bf16.msra.mxu0 %v5880
    %7061 = vmatprep.subr.bf16.mxu0 %v5884
    %7062 = vmatpush1.bf16.msra.mxu0 %v5883
    %7063 = vmatprep.subr.bf16.mxu0 %v5887
    %7064 = vmatpush1.bf16.msra.mxu0 %v5886
    %7065 = vmatprep.subr.bf16.mxu0 %v5890
    %7066 = vmatpush1.bf16.msra.mxu0 %v5889
    %7067 = vmatprep.subr.bf16.mxu0 %v5893
    %7068 = vmatpush1.bf16.msra.mxu0 %v5892
    %7069 = vmatprep.subr.bf16.mxu0 %v5896
    %7070 = vmatpush1.bf16.msra.mxu0 %v5895
    %7071 = vmatprep.subr.bf16.mxu0 %v5899
    %7072 = vmatpush1.bf16.msra.mxu0 %v5898
    %7073 = vmatprep.subr.bf16.mxu0 %v5902
    %7074 = vmatpush1.bf16.msra.mxu0 %v5901
    %7075 = vmatprep.subr.bf16.mxu0 0
    %7076 = vmatpush1.bf16.msra.mxu0 0
    %7077 = vmatprep.subr.bf16.mxu0 0
    %7078 = vmatpush1.bf16.msra.mxu0 0
    %7079 = vmatprep.subr.bf16.mxu0 0
    %7080 = vmatpush1.bf16.msra.mxu0 0
    %7081 = vmatprep.subr.bf16.mxu0 0
    %7082 = vmatpush1.bf16.msra.mxu0 0
    %7083 = vmatprep.subr.bf16.mxu0 0
    %7084 = vmatpush1.bf16.msra.mxu0 0
    %7085 = vmatprep.subr.bf16.mxu0 0
    %7086 = vmatpush1.bf16.msra.mxu0 0
    %7087 = vmatprep.subr.bf16.mxu0 0
    %7088 = vmatpush1.bf16.msra.mxu0 0
    %7089 = vmatprep.subr.bf16.mxu0 0
    %7090 = vmatpush1.bf16.msra.mxu0 0
    %7091 = vmatprep.mubr.bf16.mxu0 0
    %7092 = vmatmul.mubr.bf16.gmra.mrb[0].mxu0 %v7057
    %v7093 = vpop.f32.mrb[0].mxu0
    %v7094 = vadd.f32 %v5791, %v7093
    %v7095 = vpop.f32.mrb[0].mxu0
    %v7096 = vadd.f32 %v5795, %v7095
    %v7097 = vpop.f32.mrb[0].mxu0
    %v7098 = vpop.f32.mrb[0].mxu0
    %7099 = vdwg.mxu0
    %7100 = vmatprep.subr.bf16.mxu0 0
    %7101 = vmatpush1.bf16.msra.mxu0 %v5882
    %7102 = vmatprep.subr.bf16.mxu0 0
    %7103 = vmatpush1.bf16.msra.mxu0 %v5885
    %7104 = vmatprep.subr.bf16.mxu0 0
    %7105 = vmatpush1.bf16.msra.mxu0 %v5888
    %7106 = vmatprep.subr.bf16.mxu0 0
    %7107 = vmatpush1.bf16.msra.mxu0 %v5891
    %7108 = vmatprep.subr.bf16.mxu0 0
    %7109 = vmatpush1.bf16.msra.mxu0 %v5894
    %7110 = vmatprep.subr.bf16.mxu0 0
    %7111 = vmatpush1.bf16.msra.mxu0 %v5897
    %7112 = vmatprep.subr.bf16.mxu0 0
    %7113 = vmatpush1.bf16.msra.mxu0 %v5900
    %7114 = vmatprep.subr.bf16.mxu0 0
    %7115 = vmatpush1.bf16.msra.mxu0 %v5903
    %7116 = vmatprep.subr.bf16.mxu0 0
    %7117 = vmatpush1.bf16.msra.mxu0 0
    %7118 = vmatprep.subr.bf16.mxu0 0
    %7119 = vmatpush1.bf16.msra.mxu0 0
    %7120 = vmatprep.subr.bf16.mxu0 0
    %7121 = vmatpush1.bf16.msra.mxu0 0
    %7122 = vmatprep.subr.bf16.mxu0 0
    %7123 = vmatpush1.bf16.msra.mxu0 0
    %7124 = vmatprep.subr.bf16.mxu0 0
    %7125 = vmatpush1.bf16.msra.mxu0 0
    %7126 = vmatprep.subr.bf16.mxu0 0
    %7127 = vmatpush1.bf16.msra.mxu0 0
    %7128 = vmatprep.subr.bf16.mxu0 0
    %7129 = vmatpush1.bf16.msra.mxu0 0
    %7130 = vmatprep.subr.bf16.mxu0 0
    %7131 = vmatpush1.bf16.msra.mxu0 0
    %7132 = vmatprep.mubr.bf16.mxu0 0
    %7133 = vmatmul.mubr.bf16.gmra.mrb[0].mxu0 %v7057
    %v7134 = vpop.f32.mrb[0].mxu0
    %v7135 = vadd.f32 %v5799, %v7134
    %v7136 = vpop.f32.mrb[0].mxu0
    %v7137 = vpop.f32.mrb[0].mxu0
    %v7138 = vpop.f32.mrb[0].mxu0
    %7139 = vdwg.mxu0
    %v7141 = vrot.slane %v7094, 4
    %v7143 = vadd.f32 %v5698, %v7141
    %v7144 = vsub.f32 0.0, %v7143
    %v7145 = vmul.f32 %v7144, 1.442695
    %v7146 = vpow.pop %v7145
    %v7147 = vadd.f32 %v7146, 1.0
    %v7148 = vrcp.pop %v7147
    %v7150 = vrot.slane %v7096, 4
    %v7152 = vadd.f32 %v5700, %v7150
    %v7153 = vsub.f32 0.0, %v7152
    %v7154 = vmul.f32 %v7153, 1.442695
    %v7155 = vpow.pop %v7154
    %v7156 = vadd.f32 %v7155, 1.0
    %v7157 = vrcp.pop %v7156
    %v7159 = vrot.slane %v7135, 4
    %v7161 = vmul.f32 %v7148, %v7159
    %v7162 = vadd.f32 %v5749, %v7161
    %v7163 = vtanh.pop %v7162
    %v7164 = vsub.f32 1.0, %v7157
    %v7165 = vmul.f32 %v7164, %v7163
    %v7167 = vrot.slane %v7053, 6
    %v7169 = vmul.f32 %v7157, %v7167
    %v7170 = vadd.f32 %v7165, %v7169
    %7171 = vst [vmem:[#allocation2 + $0x10] sm:$0x30] %v7170
    %v7172 = vpack.c.bf16 %v7170, %v7170
    %v7174 = vrot.slane %v7172, 2
    %7176 = vmatprep.subr.bf16.mxu0 %v5881
    %7177 = vmatpush1.bf16.msra.mxu0 %v5880
    %7178 = vmatprep.subr.bf16.mxu0 %v5884
    %7179 = vmatpush1.bf16.msra.mxu0 %v5883
    %7180 = vmatprep.subr.bf16.mxu0 %v5887
    %7181 = vmatpush1.bf16.msra.mxu0 %v5886
    %7182 = vmatprep.subr.bf16.mxu0 %v5890
    %7183 = vmatpush1.bf16.msra.mxu0 %v5889
    %7184 = vmatprep.subr.bf16.mxu0 %v5893
    %7185 = vmatpush1.bf16.msra.mxu0 %v5892
    %7186 = vmatprep.subr.bf16.mxu0 %v5896
    %7187 = vmatpush1.bf16.msra.mxu0 %v5895
    %7188 = vmatprep.subr.bf16.mxu0 %v5899
    %7189 = vmatpush1.bf16.msra.mxu0 %v5898
    %7190 = vmatprep.subr.bf16.mxu0 %v5902
    %7191 = vmatpush1.bf16.msra.mxu0 %v5901
    %7192 = vmatprep.subr.bf16.mxu0 0
    %7193 = vmatpush1.bf16.msra.mxu0 0
    %7194 = vmatprep.subr.bf16.mxu0 0
    %7195 = vmatpush1.bf16.msra.mxu0 0
    %7196 = vmatprep.subr.bf16.mxu0 0
    %7197 = vmatpush1.bf16.msra.mxu0 0
    %7198 = vmatprep.subr.bf16.mxu0 0
    %7199 = vmatpush1.bf16.msra.mxu0 0
    %7200 = vmatprep.subr.bf16.mxu0 0
    %7201 = vmatpush1.bf16.msra.mxu0 0
    %7202 = vmatprep.subr.bf16.mxu0 0
    %7203 = vmatpush1.bf16.msra.mxu0 0
    %7204 = vmatprep.subr.bf16.mxu0 0
    %7205 = vmatpush1.bf16.msra.mxu0 0
    %7206 = vmatprep.subr.bf16.mxu0 0
    %7207 = vmatpush1.bf16.msra.mxu0 0
    %7208 = vmatprep.mubr.bf16.mxu0 0
    %7209 = vmatmul.mubr.bf16.gmra.mrb[0].mxu0 %v7174
    %v7210 = vpop.f32.mrb[0].mxu0
    %v7211 = vadd.f32 %v5791, %v7210
    %v7212 = vpop.f32.mrb[0].mxu0
    %v7213 = vadd.f32 %v5795, %v7212
    %v7214 = vpop.f32.mrb[0].mxu0
    %v7215 = vpop.f32.mrb[0].mxu0
    %7216 = vdwg.mxu0
    %7217 = vmatprep.subr.bf16.mxu0 0
    %7218 = vmatpush1.bf16.msra.mxu0 %v5882
    %7219 = vmatprep.subr.bf16.mxu0 0
    %7220 = vmatpush1.bf16.msra.mxu0 %v5885
    %7221 = vmatprep.subr.bf16.mxu0 0
    %7222 = vmatpush1.bf16.msra.mxu0 %v5888
    %7223 = vmatprep.subr.bf16.mxu0 0
    %7224 = vmatpush1.bf16.msra.mxu0 %v5891
    %7225 = vmatprep.subr.bf16.mxu0 0
    %7226 = vmatpush1.bf16.msra.mxu0 %v5894
    %7227 = vmatprep.subr.bf16.mxu0 0
    %7228 = vmatpush1.bf16.msra.mxu0 %v5897
    %7229 = vmatprep.subr.bf16.mxu0 0
    %7230 = vmatpush1.bf16.msra.mxu0 %v5900
    %7231 = vmatprep.subr.bf16.mxu0 0
    %7232 = vmatpush1.bf16.msra.mxu0 %v5903
    %7233 = vmatprep.subr.bf16.mxu0 0
    %7234 = vmatpush1.bf16.msra.mxu0 0
    %7235 = vmatprep.subr.bf16.mxu0 0
    %7236 = vmatpush1.bf16.msra.mxu0 0
    %7237 = vmatprep.subr.bf16.mxu0 0
    %7238 = vmatpush1.bf16.msra.mxu0 0
    %7239 = vmatprep.subr.bf16.mxu0 0
    %7240 = vmatpush1.bf16.msra.mxu0 0
    %7241 = vmatprep.subr.bf16.mxu0 0
    %7242 = vmatpush1.bf16.msra.mxu0 0
    %7243 = vmatprep.subr.bf16.mxu0 0
    %7244 = vmatpush1.bf16.msra.mxu0 0
    %7245 = vmatprep.subr.bf16.mxu0 0
    %7246 = vmatpush1.bf16.msra.mxu0 0
    %7247 = vmatprep.subr.bf16.mxu0 0
    %7248 = vmatpush1.bf16.msra.mxu0 0
    %7249 = vmatprep.mubr.bf16.mxu0 0
    %7250 = vmatmul.mubr.bf16.gmra.mrb[0].mxu0 %v7174
    %v7251 = vpop.f32.mrb[0].mxu0
    %v7252 = vadd.f32 %v5799, %v7251
    %v7253 = vpop.f32.mrb[0].mxu0
    %v7254 = vpop.f32.mrb[0].mxu0
    %v7255 = vpop.f32.mrb[0].mxu0
    %7256 = vdwg.mxu0
    %v7258 = vrot.slane %v7211, 2
    %v7260 = vadd.f32 %v5698, %v7258
    %v7261 = vsub.f32 0.0, %v7260
    %v7262 = vmul.f32 %v7261, 1.442695
    %v7263 = vpow.pop %v7262
    %v7264 = vadd.f32 %v7263, 1.0
    %v7265 = vrcp.pop %v7264
    %v7267 = vrot.slane %v7213, 2
    %v7269 = vadd.f32 %v5700, %v7267
    %v7270 = vsub.f32 0.0, %v7269
    %v7271 = vmul.f32 %v7270, 1.442695
    %v7272 = vpow.pop %v7271
    %v7273 = vadd.f32 %v7272, 1.0
    %v7274 = vrcp.pop %v7273
    %v7276 = vrot.slane %v7252, 2
    %v7278 = vmul.f32 %v7265, %v7276
    %v7279 = vadd.f32 %v5749, %v7278
    %v7280 = vtanh.pop %v7279
    %v7281 = vsub.f32 1.0, %v7274
    %v7282 = vmul.f32 %v7281, %v7280
    %v7284 = vrot.slane %v7170, 6
    %v7286 = vmul.f32 %v7274, %v7284
    %v7287 = vadd.f32 %v7282, %v7286
    %7288 = vst [vmem:[#allocation2 + $0x10] sm:$0xc0] %v7287
    %v7289 = vpack.c.bf16 %v7287, %v7287
    %v7291 = vrot.slane %v7289, 3
    %7293 = vmatprep.subr.bf16.mxu0 %v5881
    %7294 = vmatpush1.bf16.msra.mxu0 %v5880
    %7295 = vmatprep.subr.bf16.mxu0 %v5884
    %7296 = vmatpush1.bf16.msra.mxu0 %v5883
    %7297 = vmatprep.subr.bf16.mxu0 %v5887
    %7298 = vmatpush1.bf16.msra.mxu0 %v5886
    %7299 = vmatprep.subr.bf16.mxu0 %v5890
    %7300 = vmatpush1.bf16.msra.mxu0 %v5889
    %7301 = vmatprep.subr.bf16.mxu0 %v5893
    %7302 = vmatpush1.bf16.msra.mxu0 %v5892
    %7303 = vmatprep.subr.bf16.mxu0 %v5896
    %7304 = vmatpush1.bf16.msra.mxu0 %v5895
    %7305 = vmatprep.subr.bf16.mxu0 %v5899
    %7306 = vmatpush1.bf16.msra.mxu0 %v5898
    %7307 = vmatprep.subr.bf16.mxu0 %v5902
    %7308 = vmatpush1.bf16.msra.mxu0 %v5901
    %7309 = vmatprep.subr.bf16.mxu0 0
    %7310 = vmatpush1.bf16.msra.mxu0 0
    %7311 = vmatprep.subr.bf16.mxu0 0
    %7312 = vmatpush1.bf16.msra.mxu0 0
    %7313 = vmatprep.subr.bf16.mxu0 0
    %7314 = vmatpush1.bf16.msra.mxu0 0
    %7315 = vmatprep.subr.bf16.mxu0 0
    %7316 = vmatpush1.bf16.msra.mxu0 0
    %7317 = vmatprep.subr.bf16.mxu0 0
    %7318 = vmatpush1.bf16.msra.mxu0 0
    %7319 = vmatprep.subr.bf16.mxu0 0
    %7320 = vmatpush1.bf16.msra.mxu0 0
    %7321 = vmatprep.subr.bf16.mxu0 0
    %7322 = vmatpush1.bf16.msra.mxu0 0
    %7323 = vmatprep.subr.bf16.mxu0 0
    %7324 = vmatpush1.bf16.msra.mxu0 0
    %7325 = vmatprep.mubr.bf16.mxu0 0
    %7326 = vmatmul.mubr.bf16.gmra.mrb[0].mxu0 %v7291
    %v7327 = vpop.f32.mrb[0].mxu0
    %v7328 = vadd.f32 %v5791, %v7327
    %v7329 = vpop.f32.mrb[0].mxu0
    %v7330 = vadd.f32 %v5795, %v7329
    %v7331 = vpop.f32.mrb[0].mxu0
    %v7332 = vpop.f32.mrb[0].mxu0
    %7333 = vdwg.mxu0
    %7334 = vmatprep.subr.bf16.mxu0 0
    %7335 = vmatpush1.bf16.msra.mxu0 %v5882
    %7336 = vmatprep.subr.bf16.mxu0 0
    %7337 = vmatpush1.bf16.msra.mxu0 %v5885
    %7338 = vmatprep.subr.bf16.mxu0 0
    %7339 = vmatpush1.bf16.msra.mxu0 %v5888
    %7340 = vmatprep.subr.bf16.mxu0 0
    %7341 = vmatpush1.bf16.msra.mxu0 %v5891
    %7342 = vmatprep.subr.bf16.mxu0 0
    %7343 = vmatpush1.bf16.msra.mxu0 %v5894
    %7344 = vmatprep.subr.bf16.mxu0 0
    %7345 = vmatpush1.bf16.msra.mxu0 %v5897
    %7346 = vmatprep.subr.bf16.mxu0 0
    %7347 = vmatpush1.bf16.msra.mxu0 %v5900
    %7348 = vmatprep.subr.bf16.mxu0 0
    %7349 = vmatpush1.bf16.msra.mxu0 %v5903
    %7350 = vmatprep.subr.bf16.mxu0 0
    %7351 = vmatpush1.bf16.msra.mxu0 0
    %7352 = vmatprep.subr.bf16.mxu0 0
    %7353 = vmatpush1.bf16.msra.mxu0 0
    %7354 = vmatprep.subr.bf16.mxu0 0
    %7355 = vmatpush1.bf16.msra.mxu0 0
    %7356 = vmatprep.subr.bf16.mxu0 0
    %7357 = vmatpush1.bf16.msra.mxu0 0
    %7358 = vmatprep.subr.bf16.mxu0 0
    %7359 = vmatpush1.bf16.msra.mxu0 0
    %7360 = vmatprep.subr.bf16.mxu0 0
    %7361 = vmatpush1.bf16.msra.mxu0 0
    %7362 = vmatprep.subr.bf16.mxu0 0
    %7363 = vmatpush1.bf16.msra.mxu0 0
    %7364 = vmatprep.subr.bf16.mxu0 0
    %7365 = vmatpush1.bf16.msra.mxu0 0
    %7366 = vmatprep.mubr.bf16.mxu0 0
    %7367 = vmatmul.mubr.bf16.gmra.mrb[0].mxu0 %v7291
    %v7368 = vpop.f32.mrb[0].mxu0
    %v7369 = vadd.f32 %v5799, %v7368
    %v7370 = vpop.f32.mrb[0].mxu0
    %v7371 = vpop.f32.mrb[0].mxu0
    %v7372 = vpop.f32.mrb[0].mxu0
    %7373 = vdwg.mxu0
    %v7374 = vadd.f32 %v5702, %v7328
    %v7375 = vsub.f32 0.0, %v7374
    %v7376 = vmul.f32 %v7375, 1.442695
    %v7377 = vpow.pop %v7376
    %v7378 = vadd.f32 %v7377, 1.0
    %v7379 = vrcp.pop %v7378
    %v7380 = vadd.f32 %v5704, %v7330
    %v7381 = vsub.f32 0.0, %v7380
    %v7382 = vmul.f32 %v7381, 1.442695
    %v7383 = vpow.pop %v7382
    %v7384 = vadd.f32 %v7383, 1.0
    %v7385 = vrcp.pop %v7384
    %v7386 = vmul.f32 %v7379, %v7369
    %v7387 = vadd.f32 %v5752, %v7386
    %v7388 = vtanh.pop %v7387
    %v7389 = vsub.f32 1.0, %v7385
    %v7390 = vmul.f32 %v7389, %v7388
    %v7392 = vrot.slane %v7287, 6
    %v7394 = vmul.f32 %v7385, %v7392
    %v7395 = vadd.f32 %v7390, %v7394
    %7396 = vst [vmem:[#allocation2 + $0x18] sm:$0x3] %v7395
    %v7397 = vpack.c.bf16 %v7395, %v7395
    %7398 = vmatprep.subr.bf16.mxu0 %v5881
    %7399 = vmatpush1.bf16.msra.mxu0 %v5880
    %7400 = vmatprep.subr.bf16.mxu0 %v5884
    %7401 = vmatpush1.bf16.msra.mxu0 %v5883
    %7402 = vmatprep.subr.bf16.mxu0 %v5887
    %7403 = vmatpush1.bf16.msra.mxu0 %v5886
    %7404 = vmatprep.subr.bf16.mxu0 %v5890
    %7405 = vmatpush1.bf16.msra.mxu0 %v5889
    %7406 = vmatprep.subr.bf16.mxu0 %v5893
    %7407 = vmatpush1.bf16.msra.mxu0 %v5892
    %7408 = vmatprep.subr.bf16.mxu0 %v5896
    %7409 = vmatpush1.bf16.msra.mxu0 %v5895
    %7410 = vmatprep.subr.bf16.mxu0 %v5899
    %7411 = vmatpush1.bf16.msra.mxu0 %v5898
    %7412 = vmatprep.subr.bf16.mxu0 %v5902
    %7413 = vmatpush1.bf16.msra.mxu0 %v5901
    %7414 = vmatprep.subr.bf16.mxu0 0
    %7415 = vmatpush1.bf16.msra.mxu0 0
    %7416 = vmatprep.subr.bf16.mxu0 0
    %7417 = vmatpush1.bf16.msra.mxu0 0
    %7418 = vmatprep.subr.bf16.mxu0 0
    %7419 = vmatpush1.bf16.msra.mxu0 0
    %7420 = vmatprep.subr.bf16.mxu0 0
    %7421 = vmatpush1.bf16.msra.mxu0 0
    %7422 = vmatprep.subr.bf16.mxu0 0
    %7423 = vmatpush1.bf16.msra.mxu0 0
    %7424 = vmatprep.subr.bf16.mxu0 0
    %7425 = vmatpush1.bf16.msra.mxu0 0
    %7426 = vmatprep.subr.bf16.mxu0 0
    %7427 = vmatpush1.bf16.msra.mxu0 0
    %7428 = vmatprep.subr.bf16.mxu0 0
    %7429 = vmatpush1.bf16.msra.mxu0 0
    %7430 = vmatprep.mubr.bf16.mxu0 0
    %7431 = vmatmul.mubr.bf16.gmra.mrb[0].mxu0 %v7397
    %v7432 = vpop.f32.mrb[0].mxu0
    %v7433 = vadd.f32 %v5791, %v7432
    %v7434 = vpop.f32.mrb[0].mxu0
    %v7435 = vadd.f32 %v5795, %v7434
    %v7436 = vpop.f32.mrb[0].mxu0
    %v7437 = vpop.f32.mrb[0].mxu0
    %7438 = vdwg.mxu0
    %7439 = vmatprep.subr.bf16.mxu0 0
    %7440 = vmatpush1.bf16.msra.mxu0 %v5882
    %7441 = vmatprep.subr.bf16.mxu0 0
    %7442 = vmatpush1.bf16.msra.mxu0 %v5885
    %7443 = vmatprep.subr.bf16.mxu0 0
    %7444 = vmatpush1.bf16.msra.mxu0 %v5888
    %7445 = vmatprep.subr.bf16.mxu0 0
    %7446 = vmatpush1.bf16.msra.mxu0 %v5891
    %7447 = vmatprep.subr.bf16.mxu0 0
    %7448 = vmatpush1.bf16.msra.mxu0 %v5894
    %7449 = vmatprep.subr.bf16.mxu0 0
    %7450 = vmatpush1.bf16.msra.mxu0 %v5897
    %7451 = vmatprep.subr.bf16.mxu0 0
    %7452 = vmatpush1.bf16.msra.mxu0 %v5900
    %7453 = vmatprep.subr.bf16.mxu0 0
    %7454 = vmatpush1.bf16.msra.mxu0 %v5903
    %7455 = vmatprep.subr.bf16.mxu0 0
    %7456 = vmatpush1.bf16.msra.mxu0 0
    %7457 = vmatprep.subr.bf16.mxu0 0
    %7458 = vmatpush1.bf16.msra.mxu0 0
    %7459 = vmatprep.subr.bf16.mxu0 0
    %7460 = vmatpush1.bf16.msra.mxu0 0
    %7461 = vmatprep.subr.bf16.mxu0 0
    %7462 = vmatpush1.bf16.msra.mxu0 0
    %7463 = vmatprep.subr.bf16.mxu0 0
    %7464 = vmatpush1.bf16.msra.mxu0 0
    %7465 = vmatprep.subr.bf16.mxu0 0
    %7466 = vmatpush1.bf16.msra.mxu0 0
    %7467 = vmatprep.subr.bf16.mxu0 0
    %7468 = vmatpush1.bf16.msra.mxu0 0
    %7469 = vmatprep.subr.bf16.mxu0 0
    %7470 = vmatpush1.bf16.msra.mxu0 0
    %7471 = vmatprep.mubr.bf16.mxu0 0
    %7472 = vmatmul.mubr.bf16.gmra.mrb[0].mxu0 %v7397
    %v7473 = vpop.f32.mrb[0].mxu0
    %v7474 = vadd.f32 %v5799, %v7473
    %v7475 = vpop.f32.mrb[0].mxu0
    %v7476 = vpop.f32.mrb[0].mxu0
    %v7477 = vpop.f32.mrb[0].mxu0
    %7478 = vdwg.mxu0
    %v7480 = vrot.slane %v7433, 6
    %v7482 = vadd.f32 %v5702, %v7480
    %v7483 = vsub.f32 0.0, %v7482
    %v7484 = vmul.f32 %v7483, 1.442695
    %v7485 = vpow.pop %v7484
    %v7486 = vadd.f32 %v7485, 1.0
    %v7487 = vrcp.pop %v7486
    %v7489 = vrot.slane %v7435, 6
    %v7491 = vadd.f32 %v5704, %v7489
    %v7492 = vsub.f32 0.0, %v7491
    %v7493 = vmul.f32 %v7492, 1.442695
    %v7494 = vpow.pop %v7493
    %v7495 = vadd.f32 %v7494, 1.0
    %v7496 = vrcp.pop %v7495
    %v7498 = vrot.slane %v7474, 6
    %v7500 = vmul.f32 %v7487, %v7498
    %v7501 = vadd.f32 %v5752, %v7500
    %v7502 = vtanh.pop %v7501
    %v7503 = vsub.f32 1.0, %v7496
    %v7504 = vmul.f32 %v7503, %v7502
    %v7506 = vrot.slane %v7395, 6
    %v7508 = vmul.f32 %v7496, %v7506
    %v7509 = vadd.f32 %v7504, %v7508
    %7510 = vst [vmem:[#allocation2 + $0x18] sm:$0xc] %v7509
    %v7511 = vpack.c.bf16 %v7509, %v7509
    %v7513 = vrot.slane %v7511, 1
    %7515 = vmatprep.subr.bf16.mxu0 %v5881
    %7516 = vmatpush1.bf16.msra.mxu0 %v5880
    %7517 = vmatprep.subr.bf16.mxu0 %v5884
    %7518 = vmatpush1.bf16.msra.mxu0 %v5883
    %7519 = vmatprep.subr.bf16.mxu0 %v5887
    %7520 = vmatpush1.bf16.msra.mxu0 %v5886
    %7521 = vmatprep.subr.bf16.mxu0 %v5890
    %7522 = vmatpush1.bf16.msra.mxu0 %v5889
    %7523 = vmatprep.subr.bf16.mxu0 %v5893
    %7524 = vmatpush1.bf16.msra.mxu0 %v5892
    %7525 = vmatprep.subr.bf16.mxu0 %v5896
    %7526 = vmatpush1.bf16.msra.mxu0 %v5895
    %7527 = vmatprep.subr.bf16.mxu0 %v5899
    %7528 = vmatpush1.bf16.msra.mxu0 %v5898
    %7529 = vmatprep.subr.bf16.mxu0 %v5902
    %7530 = vmatpush1.bf16.msra.mxu0 %v5901
    %7531 = vmatprep.subr.bf16.mxu0 0
    %7532 = vmatpush1.bf16.msra.mxu0 0
    %7533 = vmatprep.subr.bf16.mxu0 0
    %7534 = vmatpush1.bf16.msra.mxu0 0
    %7535 = vmatprep.subr.bf16.mxu0 0
    %7536 = vmatpush1.bf16.msra.mxu0 0
    %7537 = vmatprep.subr.bf16.mxu0 0
    %7538 = vmatpush1.bf16.msra.mxu0 0
    %7539 = vmatprep.subr.bf16.mxu0 0
    %7540 = vmatpush1.bf16.msra.mxu0 0
    %7541 = vmatprep.subr.bf16.mxu0 0
    %7542 = vmatpush1.bf16.msra.mxu0 0
    %7543 = vmatprep.subr.bf16.mxu0 0
    %7544 = vmatpush1.bf16.msra.mxu0 0
    %7545 = vmatprep.subr.bf16.mxu0 0
    %7546 = vmatpush1.bf16.msra.mxu0 0
    %7547 = vmatprep.mubr.bf16.mxu0 0
    %7548 = vmatmul.mubr.bf16.gmra.mrb[0].mxu0 %v7513
    %v7549 = vpop.f32.mrb[0].mxu0
    %v7550 = vadd.f32 %v5791, %v7549
    %v7551 = vpop.f32.mrb[0].mxu0
    %v7552 = vadd.f32 %v5795, %v7551
    %v7553 = vpop.f32.mrb[0].mxu0
    %v7554 = vpop.f32.mrb[0].mxu0
    %7555 = vdwg.mxu0
    %7556 = vmatprep.subr.bf16.mxu0 0
    %7557 = vmatpush1.bf16.msra.mxu0 %v5882
    %7558 = vmatprep.subr.bf16.mxu0 0
    %7559 = vmatpush1.bf16.msra.mxu0 %v5885
    %7560 = vmatprep.subr.bf16.mxu0 0
    %7561 = vmatpush1.bf16.msra.mxu0 %v5888
    %7562 = vmatprep.subr.bf16.mxu0 0
    %7563 = vmatpush1.bf16.msra.mxu0 %v5891
    %7564 = vmatprep.subr.bf16.mxu0 0
    %7565 = vmatpush1.bf16.msra.mxu0 %v5894
    %7566 = vmatprep.subr.bf16.mxu0 0
    %7567 = vmatpush1.bf16.msra.mxu0 %v5897
    %7568 = vmatprep.subr.bf16.mxu0 0
    %7569 = vmatpush1.bf16.msra.mxu0 %v5900
    %7570 = vmatprep.subr.bf16.mxu0 0
    %7571 = vmatpush1.bf16.msra.mxu0 %v5903
    %7572 = vmatprep.subr.bf16.mxu0 0
    %7573 = vmatpush1.bf16.msra.mxu0 0
    %7574 = vmatprep.subr.bf16.mxu0 0
    %7575 = vmatpush1.bf16.msra.mxu0 0
    %7576 = vmatprep.subr.bf16.mxu0 0
    %7577 = vmatpush1.bf16.msra.mxu0 0
    %7578 = vmatprep.subr.bf16.mxu0 0
    %7579 = vmatpush1.bf16.msra.mxu0 0
    %7580 = vmatprep.subr.bf16.mxu0 0
    %7581 = vmatpush1.bf16.msra.mxu0 0
    %7582 = vmatprep.subr.bf16.mxu0 0
    %7583 = vmatpush1.bf16.msra.mxu0 0
    %7584 = vmatprep.subr.bf16.mxu0 0
    %7585 = vmatpush1.bf16.msra.mxu0 0
    %7586 = vmatprep.subr.bf16.mxu0 0
    %7587 = vmatpush1.bf16.msra.mxu0 0
    %7588 = vmatprep.mubr.bf16.mxu0 0
    %7589 = vmatmul.mubr.bf16.gmra.mrb[0].mxu0 %v7513
    %v7590 = vpop.f32.mrb[0].mxu0
    %v7591 = vadd.f32 %v5799, %v7590
    %v7592 = vpop.f32.mrb[0].mxu0
    %v7593 = vpop.f32.mrb[0].mxu0
    %v7594 = vpop.f32.mrb[0].mxu0
    %7595 = vdwg.mxu0
    %v7597 = vrot.slane %v7550, 4
    %v7599 = vadd.f32 %v5702, %v7597
    %v7600 = vsub.f32 0.0, %v7599
    %v7601 = vmul.f32 %v7600, 1.442695
    %v7602 = vpow.pop %v7601
    %v7603 = vadd.f32 %v7602, 1.0
    %v7604 = vrcp.pop %v7603
    %v7606 = vrot.slane %v7552, 4
    %v7608 = vadd.f32 %v5704, %v7606
    %v7609 = vsub.f32 0.0, %v7608
    %v7610 = vmul.f32 %v7609, 1.442695
    %v7611 = vpow.pop %v7610
    %v7612 = vadd.f32 %v7611, 1.0
    %v7613 = vrcp.pop %v7612
    %v7615 = vrot.slane %v7591, 4
    %v7617 = vmul.f32 %v7604, %v7615
    %v7618 = vadd.f32 %v5752, %v7617
    %v7619 = vtanh.pop %v7618
    %v7620 = vsub.f32 1.0, %v7613
    %v7621 = vmul.f32 %v7620, %v7619
    %v7623 = vrot.slane %v7509, 6
    %v7625 = vmul.f32 %v7613, %v7623
    %v7626 = vadd.f32 %v7621, %v7625
    %7627 = vst [vmem:[#allocation2 + $0x18] sm:$0x30] %v7626
    %v7628 = vld [vmem:[#allocation2] sm:$0xff]
    %v7629 = vld [vmem:[#allocation2 + $0x8] sm:$0xff]
    %v7630 = vld [vmem:[#allocation2 + $0x10] sm:$0xff]
    %v7631 = vld [vmem:[#allocation2 + $0x18] sm:$0x3f]
    %v7632 = vpack.c.bf16 %v7629, %v7628
    %v7633 = vpack.c.bf16 %v7631, %v7630
    %v7634 = vlaneseq
    %v7635 = vshrl.u32 %v7634, 7
    %v7636 = vsub.s32 6, %v7635
    %v7637 = vrot.slane %v502, %v7636
    %v7654 = vunpack.c.l.b16 %v1252
    %v7655 = vunpack.c.l.b16 %v1253
    %v7656 = vunpack.c.l.b16 %v1254
    %v7657 = vunpack.c.l.b16 %v1255
    %v7658 = vunpack.c.l.b16 %v1256
    %v7659 = vunpack.c.l.b16 %v1257
    %v7660 = vunpack.c.l.b16 %v1258
    %v7661 = vunpack.c.l.b16 %v1259
    %v7662 = vunpack.c.l.b16 %v1260
    %v7663 = vunpack.c.l.b16 %v1261
    %v7664 = vunpack.c.l.b16 %v1262
    %v7665 = vunpack.c.l.b16 %v1263
    %v7666 = vunpack.c.l.b16 %v1264
    %v7667 = vunpack.c.l.b16 %v1265
    %v7668 = vunpack.c.l.b16 %v1266
    %v7669 = vunpack.c.l.b16 %v1267
    %v7670 = vpack.c.b16 %v7655, %v7654
    %v7671 = vpack.c.b16 %v7657, %v7656
    %v7672 = vpack.c.b16 %v7659, %v7658
    %v7673 = vpack.c.b16 %v7661, %v7660
    %v7674 = vpack.c.b16 %v7663, %v7662
    %v7675 = vpack.c.b16 %v7665, %v7664
    %v7676 = vpack.c.b16 %v7667, %v7666
    %v7677 = vpack.c.b16 %v7669, %v7668
    %7686 = vmatprep.subr.bf16.mxu0 0
    %7687 = vmatpush1.bf16.msra.mxu0 %v7670
    %7688 = vmatprep.subr.bf16.mxu0 0
    %7689 = vmatpush1.bf16.msra.mxu0 %v7671
    %7690 = vmatprep.subr.bf16.mxu0 0
    %7691 = vmatpush1.bf16.msra.mxu0 %v7672
    %7692 = vmatprep.subr.bf16.mxu0 0
    %7693 = vmatpush1.bf16.msra.mxu0 %v7673
    %7694 = vmatprep.subr.bf16.mxu0 0
    %7695 = vmatpush1.bf16.msra.mxu0 %v7674
    %7696 = vmatprep.subr.bf16.mxu0 0
    %7697 = vmatpush1.bf16.msra.mxu0 %v7675
    %7698 = vmatprep.subr.bf16.mxu0 0
    %7699 = vmatpush1.bf16.msra.mxu0 %v7676
    %7700 = vmatprep.subr.bf16.mxu0 0
    %7701 = vmatpush1.bf16.msra.mxu0 %v7677
    %7702 = vmatprep.subr.bf16.mxu0 0
    %7703 = vmatpush1.bf16.msra.mxu0 0
    %7704 = vmatprep.subr.bf16.mxu0 0
    %7705 = vmatpush1.bf16.msra.mxu0 0
    %7706 = vmatprep.subr.bf16.mxu0 0
    %7707 = vmatpush1.bf16.msra.mxu0 0
    %7708 = vmatprep.subr.bf16.mxu0 0
    %7709 = vmatpush1.bf16.msra.mxu0 0
    %7710 = vmatprep.subr.bf16.mxu0 0
    %7711 = vmatpush1.bf16.msra.mxu0 0
    %7712 = vmatprep.subr.bf16.mxu0 0
    %7713 = vmatpush1.bf16.msra.mxu0 0
    %7714 = vmatprep.subr.bf16.mxu0 0
    %7715 = vmatpush1.bf16.msra.mxu0 0
    %7716 = vmatprep.subr.bf16.mxu0 0
    %7717 = vmatpush1.bf16.msra.mxu0 0
    %7718 = vmatprep.mubr.bf16.mxu0 0
    %7719 = vmatmul.mubr.bf16.gmra.mrb[0].mxu0 %v7632
    %v7720 = vpop.f32.mrb[0].mxu0
    %v7721 = vadd.f32 %v7637, %v7720
    %v7722 = vpop.f32.mrb[0].mxu0
    %v7723 = vpop.f32.mrb[0].mxu0
    %v7724 = vadd.f32 %v7637, %v7723
    %v7725 = vpop.f32.mrb[0].mxu0
    %7726 = vmatprep.mubr.bf16.mxu0 0
    %7727 = vmatmul.mubr.bf16.gmra.mrb[0].mxu0 %v7633
    %v7728 = vpop.f32.mrb[0].mxu0
    %v7729 = vadd.f32 %v7637, %v7728
    %v7730 = vpop.f32.mrb[0].mxu0
    %v7731 = vpop.f32.mrb[0].mxu0
    %v7732 = vadd.f32 %v7637, %v7731
    %v7733 = vpop.f32.mrb[0].mxu0
    %7734 = vdwg.mxu0
    %v7735 = vsub.f32 0.0, %v7721
    %v7736 = vsub.f32 0.0, %v7724
    %v7737 = vsub.f32 0.0, %v7729
    %v7738 = vsub.f32 0.0, %v7732
    %v7739 = vmul.f32 %v7735, 1.442695
    %v7740 = vpow.pop %v7739
    %v7741 = vmul.f32 %v7736, 1.442695
    %v7742 = vpow.pop %v7741
    %v7743 = vmul.f32 %v7737, 1.442695
    %v7744 = vpow.pop %v7743
    %v7745 = vmul.f32 %v7738, 1.442695
    %v7746 = vpow.pop %v7745
    %v7747 = vadd.f32 %v7740, 1.0
    %v7748 = vadd.f32 %v7742, 1.0
    %v7749 = vadd.f32 %v7744, 1.0
    %v7750 = vadd.f32 %v7746, 1.0
    %v7751 = vrcp.pop %v7747
    %v7752 = vrcp.pop %v7748
    %v7753 = vrcp.pop %v7749
    %v7754 = vrcp.pop %v7750
    %7755 = vst [vmem:[#allocation12] sm:$0xff] %v7751
    %7756 = vst [vmem:[#allocation12 + $0x8] sm:$0xff] %v7752
    %7757 = vst [vmem:[#allocation12 + $0x10] sm:$0xff] %v7753
    %7758 = vst [vmem:[#allocation12 + $0x18] sm:$0x3f] %v7754
    // Predicated region
    $region58: #{tpu_custom_call.1} parent=1 // pred_check
      _
    $region59: #{tpu_custom_call.1} parent=1 // pred_check_branch
      %7760 = sbr.rel (0) target = $region61
    $region60: #{tpu_custom_call.1} parent=1 // pred_region
      %s7762 = ssub.s32 64, 64
      %7763 = vsyncadd [#allocation5], %s7762
      %s7765 = sshll.u32 [#allocation11], 4
      %s7766 = int_to_ptr.vmem [resolvable:$true] %s7765
      %7768 = dma.vmem_to_hbm [thread:$0]  %s7766, 64, %s10, [#allocation5]
    $region61: #{tpu_custom_call.1} parent=1 // pred_fallthru
      _
    // Predicated region
    $region62: #{tpu_custom_call.1} parent=1 // pred_check
      _
    $region63: #{tpu_custom_call.1} parent=1 // pred_check_branch
      %7770 = sbr.rel (0) target = $region65
    $region64: #{tpu_custom_call.1} parent=1 // pred_region
      %s7772 = ssub.s32 512, 512
      %7773 = vsyncadd [#allocation13], %s7772
      %s7774 = sshll.u32 [#allocation12], 4
      %s7775 = int_to_ptr.vmem [resolvable:$true] %s7774
      %7780 = dma.vmem_to_hbm [thread:$0]  %s7775, 512, %s11, [#allocation13], 128, 128, 8
    $region65: #{tpu_custom_call.1} parent=1 // pred_fallthru
      _
    // Predicated region
    $region66: #{tpu_custom_call.1} parent=1 // pred_check
      _
    $region67: #{tpu_custom_call.1} parent=1 // pred_check_branch
      %7782 = sbr.rel (0) target = $region69
    $region68: #{tpu_custom_call.1} parent=1 // pred_region
      %7783 = dma.done [#allocation5], 64
    $region69: #{tpu_custom_call.1} parent=1 // pred_fallthru
      _
    // Predicated region
    $region70: #{tpu_custom_call.1} parent=1 // pred_check
      _
    $region71: #{tpu_custom_call.1} parent=1 // pred_check_branch
      %7785 = sbr.rel (0) target = $region73
    $region72: #{tpu_custom_call.1} parent=1 // pred_region
      %7786 = dma.done [#allocation13], 512
    $region73: #{tpu_custom_call.1} parent=1 // pred_fallthru
      _
    %7787 = vsyncpa [#allocation4], 1
    %7788 = vsyncpa [#allocation7], 1
    %7789 = vsyncpa [#allocation10], 1
    %7790 = vsyncpa [#allocation5], 1
    %7791 = vsyncpa [#allocation13], 1

</llo_original>
